<compile_context>
chip_gen: v7x
topology: tpu7x:2x2x1
jax: 0.10.0
libtpu: 0.0.40
codegen_flags: <defaults>
</compile_context>

<pallas_src>
import jax
import jax.numpy as jnp
import numpy as np
from jax.experimental import pallas as pl
from jax.experimental.pallas import tpu as pltpu

BN_EPS = 1e-5


# ---------------------------------------------------------------------------
# Fused Pallas kernel: the entire Generator forward in one invocation
# ---------------------------------------------------------------------------
def _make_generator_kernel(n):
    """Builds the fused forward kernel for a fixed (static) batch size n."""

    def kernel(z_ref, w1_ref, sel1_ref, selt1_ref, gb1_ref, gs1_ref,
               m2_ref, sel2_ref, selt2_ref, gb2_ref, g2_ref,
               m3_ref, sel3_ref, selt3_ref, gb3_ref, g3_ref,
               m4_ref, sel4_ref, selt4_ref, gb4_ref, g4_ref,
               m5_ref, out_ref):
        f32 = jnp.float32
        bf16 = jnp.bfloat16

        def bn_relu(y, sel_ref, selt_ref, gb_ref, count, hin=None):
            # Train-mode BatchNorm2d (batch stats, biased variance, eps=1e-5)
            # + ReLU.  y: (M, L) f32 with lanes (.., x, c); channel = lane % C.
            if hin is None:
                ym = y
            else:
                # Mask the junk rows whose 3-row slab straddled sample
                # boundaries: valid rows satisfy r % (hin+2) < hin.
                rows = jax.lax.broadcasted_iota(jnp.int32, (y.shape[0], 1), 0)
                maskf = (rows % (hin + 2) < hin).astype(f32)
                ym = y * maskf
            s1 = jnp.sum(ym, axis=0, keepdims=True)            # sum x    (1, L)
            s2 = jnp.sum(ym * y, axis=0, keepdims=True)        # sum x^2  (1, L)
            st = jnp.concatenate([s1, s2], axis=0)             # (2, L)
            stc = jnp.dot(st, sel_ref[...],
                          preferred_element_type=f32) * (1.0 / count)  # (2, C)
            mean_c = stc[0:1, :]
            var_c = stc[1:2, :] - mean_c * mean_c              # biased variance
            scale_c = gb_ref[0:1, :] * jax.lax.rsqrt(var_c + BN_EPS)
            shift_c = gb_ref[1:2, :] - mean_c * scale_c
            sb = jnp.dot(jnp.concatenate([scale_c, shift_c], axis=0),
                         selt_ref[...], preferred_element_type=f32)    # (2, L)
            return jnp.maximum(y * sb[0:1, :] + sb[1:2, :], 0.0)

        def deconv(a, m_ref):
            # a: (R, Lin) f32 with per-sample zero-pad rows already in place.
            # One merged bf16 MXU matmul covers BOTH output-row parities:
            #   lhs row r = [a[r] | a[r+1] | a[r+2]]   (K = 3*Lin)
            #   output columns ordered (parity, x, c_out).
            r, _ = a.shape
            m = r - 2
            lhs = jnp.concatenate([a[0:m, :], a[1:m + 1, :], a[2:m + 2, :]],
                                  axis=1)
            return jnp.dot(lhs.astype(bf16), m_ref[...],
                           preferred_element_type=f32)

        def scatter(pieces, g_ref):
            # Row placement (interleave parities, insert zero pad rows, drop
            # junk rows) via one tiny 0/1 matmul on the MXU.
            stacked = pieces[0] if len(pieces) == 1 else jnp.concatenate(pieces, axis=0)
            return jnp.dot(g_ref[...], stacked, preferred_element_type=f32)

        # ---- block 1: ConvTranspose(latent->h1, 4x4, s=1, p=0) on 1x1 == matmul
        y1 = jnp.dot(z_ref[...], w1_ref[...], preferred_element_type=f32)  # (n, 16*h1)
        y1 = bn_relu(y1, sel1_ref, selt1_ref, gb1_ref, count=16 * n)
        blk = w1_ref.shape[1] // 4                              # 4*h1 lanes per kh
        a = scatter([y1[:, k * blk:(k + 1) * blk] for k in range(4)],
                    gs1_ref)                                    # (n*6, 4*h1)

        # ---- blocks 2-4: ConvTranspose(4x4, s=2, p=1) + BN + ReLU
        for m_ref, sel_ref, selt_ref, gb_ref, g_ref in (
                (m2_ref, sel2_ref, selt2_ref, gb2_ref, g2_ref),
                (m3_ref, sel3_ref, selt3_ref, gb3_ref, g3_ref),
                (m4_ref, sel4_ref, selt4_ref, gb4_ref, g4_ref)):
            hin = a.shape[0] // n - 2
            cout = sel_ref.shape[1]
            count = n * hin * (m_ref.shape[1] // cout)          # = n * Hout * Wout
            y = deconv(a, m_ref)                                # (M, 2*Wout*Cout)
            y = bn_relu(y, sel_ref, selt_ref, gb_ref, count, hin=hin)
            lout = m_ref.shape[1] // 2
            a = scatter([y[:, :lout], y[:, lout:]], g_ref)      # (n*(2*hin+2), Wout*Cout)

        # ---- block 5: ConvTranspose(h4->3, 4x4, s=2, p=1) + tanh.
        # Output stays in (row-pair, parity-major lanes) form: 384 lanes
        # = 3 full vregs per row (unmasked stores).  The wrapper de-interleaves
        # the ~100 KB result and drops the junk / unused rows.
        y5 = jnp.tanh(deconv(a, m5_ref))                        # (n*34-2, 2*64*3)
        m5rows = y5.shape[0]
        out_ref[0:m5rows, :] = y5
        out_ref[m5rows:, :] = jnp.zeros(
            (out_ref.shape[0] - m5rows, out_ref.shape[1]), f32)

    return kernel


# ---------------------------------------------------------------------------
# One-time host-side weight packing (hoisted out of the forward path)
# ---------------------------------------------------------------------------
def _build_m_merged(wt, w_in):
    """Merged width-folded ConvTranspose2d(k=4, s=2, p=1) weights.

    Rows = (slab d, input col i, cin); columns = (parity ph, output col x, cout).
    wt: PyTorch layout (Cin, Cout, kH, kW).
    """
    cin, cout = wt.shape[0], wt.shape[1]
    wo = 2 * w_in
    m = np.zeros((3 * w_in * cin, 2 * wo * cout), np.float32)
    for ph in range(2):
        for d in range(3):
            kh = ph - 2 * d + 3                 # oh = 2*ih - 1 + kh, ih = j + d - 1
            if not 0 <= kh <= 3:
                continue                        # structural-zero block
            for i in range(w_in):
                r0 = (d * w_in + i) * cin
                for kw in range(4):
                    x = 2 * i + kw - 1
                    if 0 <= x < wo:
                        c0 = (ph * wo + x) * cout
                        m[r0:r0 + cin, c0:c0 + cout] = wt[:, :, kh, kw]
    # TODO(synk): band-tile the ~2/3-structurally-zero m4/m5 for v5e MAC savings.
    return m


def _build_sel(c, lanes):
    """Skinny 0/1 per-channel selector (lanes, c): sel[l, ch] = (l % c == ch)."""
    return (np.arange(lanes)[:, None] % c == np.arange(c)[None, :]).astype(np.float32)


def _build_gs1(n):
    """Scatter the 4 kh-row blocks of block-1 output into the padded (n*6) rows."""
    g = np.zeros((n * 6, 4 * n), np.float32)
    for kh in range(4):
        for b in range(n):
            g[b * 6 + 1 + kh, kh * n + b] = 1.0
    return g


def _build_scatter(n, hin):
    """Row-placement matrix for one deconv layer.

    Source rows: the two parity halves stacked, each with M = n*(hin+2)-2 rows
    (valid rows r = b*(hin+2)+j, j<hin; junk rows are simply never selected).
    Destination: n*(2*hin+2) rows with a zero pad row on each side per sample,
    row = b*(2*hin+2) + 1 + 2*j + ph.
    """
    hout = 2 * hin
    m = n * (hin + 2) - 2
    g = np.zeros((n * (hout + 2), 2 * m), np.float32)
    for ph in range(2):
        for b in range(n):
            for j in range(hin):
                g[b * (hout + 2) + 1 + 2 * j + ph, ph * m + b * (hin + 2) + j] = 1.0
    return g


def _gb(gamma, beta):
    return np.stack([np.asarray(gamma, np.float32),
                     np.asarray(beta, np.float32)], axis=0)   # (2, C)


def pack_params(params, n):
    """Precompute every constant the fused kernel needs (runs once)."""
    w1 = np.asarray(params["w1"], np.float32)                 # (latent, h1, 4, 4)
    latent, h1 = w1.shape[0], w1.shape[1]
    h2 = int(np.asarray(params["w2"]).shape[1])
    h3 = int(np.asarray(params["w3"]).shape[1])
    h4 = int(np.asarray(params["w4"]).shape[1])

    w1p = np.transpose(w1, (0, 2, 3, 1)).reshape(latent, 16 * h1)   # cols = (kh, kw, c)
    sel1 = _build_sel(h1, 16 * h1)
    m2 = _build_m_merged(np.asarray(params["w2"], np.float32), 4)
    sel2 = _build_sel(h2, 2 * 8 * h2)
    m3 = _build_m_merged(np.asarray(params["w3"], np.float32), 8)
    sel3 = _build_sel(h3, 2 * 16 * h3)
    m4 = _build_m_merged(np.asarray(params["w4"], np.float32), 16)
    sel4 = _build_sel(h4, 2 * 32 * h4)
    m5 = _build_m_merged(np.asarray(params["w5"], np.float32), 32)

    def f32(x):
        return jnp.asarray(x, jnp.float32)

    def bf16(x):
        return jnp.asarray(x, jnp.bfloat16)

    return (
        f32(w1p), f32(sel1), f32(sel1.T), f32(_gb(params["g1"], params["b1"])), f32(_build_gs1(n)),
        bf16(m2), f32(sel2), f32(sel2.T), f32(_gb(params["g2"], params["b2"])), f32(_build_scatter(n, 4)),
        bf16(m3), f32(sel3), f32(sel3.T), f32(_gb(params["g3"], params["b3"])), f32(_build_scatter(n, 8)),
        bf16(m4), f32(sel4), f32(sel4.T), f32(_gb(params["g4"], params["b4"])), f32(_build_scatter(n, 16)),
        bf16(m5),
    )


# ---------------------------------------------------------------------------
# Generator
# ---------------------------------------------------------------------------
def init_params(key, latent, h1, h2, h3, h4):
    ks = jax.random.split(key, 13)

    def wconv(k, cin, cout):
        # PyTorch ConvTranspose2d weight layout: (in_channels, out_channels, kH, kW)
        return 0.05 * jax.random.normal(k, (cin, cout, 4, 4), jnp.float32)

    return {
        "w1": wconv(ks[0], latent, h1),
        "g1": 1.0 + 0.1 * jax.random.normal(ks[1], (h1,), jnp.float32),
        "b1": 0.1 * jax.random.normal(ks[2], (h1,), jnp.float32),
        "w2": wconv(ks[3], h1, h2),
        "g2": 1.0 + 0.1 * jax.random.normal(ks[4], (h2,), jnp.float32),
        "b2": 0.1 * jax.random.normal(ks[5], (h2,), jnp.float32),
        "w3": wconv(ks[6], h2, h3),
        "g3": 1.0 + 0.1 * jax.random.normal(ks[7], (h3,), jnp.float32),
        "b3": 0.1 * jax.random.normal(ks[8], (h3,), jnp.float32),
        "w4": wconv(ks[9], h3, h4),
        "g4": 1.0 + 0.1 * jax.random.normal(ks[10], (h4,), jnp.float32),
        "b4": 0.1 * jax.random.normal(ks[11], (h4,), jnp.float32),
        "w5": wconv(ks[12], h4, 3),
    }


@jax.jit
def generator_forward(z, packed):
    # z: (N, latent, 1, 1) in PyTorch NCHW convention
    n = z.shape[0]
    zf = z.reshape(n, -1).astype(jnp.float32)
    n_in = 1 + len(packed)
    out = pl.pallas_call(
        _make_generator_kernel(n),
        out_shape=jax.ShapeDtypeStruct((n * 34, 384), jnp.float32),
        in_specs=[pl.BlockSpec(memory_space=pltpu.MemorySpace.VMEM)] * n_in,
        out_specs=pl.BlockSpec(memory_space=pltpu.MemorySpace.VMEM),
        compiler_params=pltpu.CompilerParams(vmem_limit_bytes=32 * 1024 * 1024),
    )(zf, *packed)
    # rows are (sample, row-pair) with parity-major lanes (ph, x, c).
    # Drop the 2 junk row-pairs per sample, then de-interleave to NCHW.
    o = out.reshape(n, 34, 2, 64, 3)[:, :32]          # (n, 32, ph, 64, 3)
    return o.transpose(0, 4, 1, 2, 3).reshape(n, 3, 64, 64)


if __name__ == "__main__":
    latent_size, hidden_1, hidden_2, hidden_3, hidden_4 = 16, 32, 16, 16, 8
    key = jax.random.PRNGKey(0)
    kz, kp = jax.random.split(key)
    params = init_params(kp, latent_size, hidden_1, hidden_2, hidden_3, hidden_4)
    packed = pack_params(params, n=2)
    z = jax.random.normal(kz, (2, latent_size, 1, 1), jnp.float32)

    out = generator_forward(z, packed)
    out = jax.block_until_ready(out)

    assert out.shape == (2, 3, 64, 64), out.shape
    assert bool(jnp.all(jnp.isfinite(out)))
    assert bool(jnp.all(jnp.abs(out) <= 1.0 + 1e-5))  # tanh output range
    print("KERNEL_OK")
</pallas_src>

<mosaic_0001>
module attributes {stable_mosaic.version = 11 : i64} {
  func.func @kernel(%arg0: memref<2x16xf32, #tpu.memory_space<vmem>>, %arg1: memref<16x512xf32, #tpu.memory_space<vmem>>, %arg2: memref<512x32xf32, #tpu.memory_space<vmem>>, %arg3: memref<32x512xf32, #tpu.memory_space<vmem>>, %arg4: memref<2x32xf32, #tpu.memory_space<vmem>>, %arg5: memref<12x8xf32, #tpu.memory_space<vmem>>, %arg6: memref<384x256xbf16, #tpu.memory_space<vmem>>, %arg7: memref<256x16xf32, #tpu.memory_space<vmem>>, %arg8: memref<16x256xf32, #tpu.memory_space<vmem>>, %arg9: memref<2x16xf32, #tpu.memory_space<vmem>>, %arg10: memref<20x20xf32, #tpu.memory_space<vmem>>, %arg11: memref<384x512xbf16, #tpu.memory_space<vmem>>, %arg12: memref<512x16xf32, #tpu.memory_space<vmem>>, %arg13: memref<16x512xf32, #tpu.memory_space<vmem>>, %arg14: memref<2x16xf32, #tpu.memory_space<vmem>>, %arg15: memref<36x36xf32, #tpu.memory_space<vmem>>, %arg16: memref<768x512xbf16, #tpu.memory_space<vmem>>, %arg17: memref<512x8xf32, #tpu.memory_space<vmem>>, %arg18: memref<8x512xf32, #tpu.memory_space<vmem>>, %arg19: memref<2x8xf32, #tpu.memory_space<vmem>>, %arg20: memref<68x68xf32, #tpu.memory_space<vmem>>, %arg21: memref<768x384xbf16, #tpu.memory_space<vmem>>, %arg22: memref<68x384xf32, #tpu.memory_space<vmem>>) attributes {dimension_semantics = [], scalar_prefetch = 0 : i64, scratch_operands = 0 : i64, tpu.core_type = #tpu.core_type<tc>} {
    %c0 = arith.constant 0 : index
    %c0_0 = arith.constant 0 : index
    %0 = vector.load %arg0[%c0, %c0_0] : memref<2x16xf32, #tpu.memory_space<vmem>>, vector<2x16xf32>
    %c0_1 = arith.constant 0 : index
    %c0_2 = arith.constant 0 : index
    %1 = vector.load %arg1[%c0_1, %c0_2] : memref<16x512xf32, #tpu.memory_space<vmem>>, vector<16x512xf32>
    %cst = arith.constant dense<0.000000e+00> : vector<2x512xf32>
    %2 = tpu.matmul %0, %1, %cst {dimension_numbers = #tpu.dot_dimension_numbers<[1], [0], [0], [1], [0, 0, 1, 1], [], []>} : vector<2x16xf32>, vector<16x512xf32>, vector<2x512xf32> -> vector<2x512xf32>
    %cst_3 = arith.constant dense<0.000000e+00> : vector<512xf32>
    %3 = vector.multi_reduction <add>, %2, %cst_3 [0] : vector<2x512xf32> to vector<512xf32>
    %4 = vector.shape_cast %3 : vector<512xf32> to vector<1x512xf32>
    %5 = arith.mulf %2, %2 : vector<2x512xf32>
    %cst_4 = arith.constant dense<0.000000e+00> : vector<512xf32>
    %6 = vector.multi_reduction <add>, %5, %cst_4 [0] : vector<2x512xf32> to vector<512xf32>
    %7 = vector.shape_cast %6 : vector<512xf32> to vector<1x512xf32>
    %8 = tpu.concatenate %4, %7 in 0 : vector<1x512xf32>, vector<1x512xf32> -> vector<2x512xf32>
    %c0_5 = arith.constant 0 : index
    %c0_6 = arith.constant 0 : index
    %9 = vector.load %arg2[%c0_5, %c0_6] : memref<512x32xf32, #tpu.memory_space<vmem>>, vector<512x32xf32>
    %cst_7 = arith.constant dense<0.000000e+00> : vector<2x32xf32>
    %10 = tpu.matmul %8, %9, %cst_7 {dimension_numbers = #tpu.dot_dimension_numbers<[1], [0], [0], [1], [0, 0, 1, 1], [], []>} : vector<2x512xf32>, vector<512x32xf32>, vector<2x32xf32> -> vector<2x32xf32>
    %cst_8 = arith.constant 3.125000e-02 : f32
    %11 = vector.broadcast %cst_8 : f32 to vector<2x32xf32>
    %12 = arith.mulf %10, %11 : vector<2x32xf32>
    %13 = vector.extract_strided_slice %12 {offsets = [0, 0], sizes = [1, 32], strides = [1, 1]} : vector<2x32xf32> to vector<1x32xf32>
    %14 = vector.extract_strided_slice %12 {offsets = [1, 0], sizes = [1, 32], strides = [1, 1]} : vector<2x32xf32> to vector<1x32xf32>
    %15 = arith.mulf %13, %13 : vector<1x32xf32>
    %16 = arith.subf %14, %15 : vector<1x32xf32>
    %c0_9 = arith.constant 0 : index
    %c0_10 = arith.constant 0 : index
    %17 = vector.load %arg4[%c0_9, %c0_10] : memref<2x32xf32, #tpu.memory_space<vmem>>, vector<1x32xf32>
    %cst_11 = arith.constant 9.99999974E-6 : f32
    %18 = vector.broadcast %cst_11 : f32 to vector<1x32xf32>
    %19 = arith.addf %16, %18 : vector<1x32xf32>
    %20 = math.rsqrt %19 : vector<1x32xf32>
    %21 = arith.mulf %17, %20 : vector<1x32xf32>
    %c1 = arith.constant 1 : index
    %c0_12 = arith.constant 0 : index
    %22 = vector.load %arg4[%c1, %c0_12] : memref<2x32xf32, #tpu.memory_space<vmem>>, vector<1x32xf32>
    %23 = arith.mulf %13, %21 : vector<1x32xf32>
    %24 = arith.subf %22, %23 : vector<1x32xf32>
    %25 = tpu.concatenate %21, %24 in 0 : vector<1x32xf32>, vector<1x32xf32> -> vector<2x32xf32>
    %c0_13 = arith.constant 0 : index
    %c0_14 = arith.constant 0 : index
    %26 = vector.load %arg3[%c0_13, %c0_14] : memref<32x512xf32, #tpu.memory_space<vmem>>, vector<32x512xf32>
    %cst_15 = arith.constant dense<0.000000e+00> : vector<2x512xf32>
    %27 = tpu.matmul %25, %26, %cst_15 {dimension_numbers = #tpu.dot_dimension_numbers<[1], [0], [0], [1], [0, 0, 1, 1], [], []>} : vector<2x32xf32>, vector<32x512xf32>, vector<2x512xf32> -> vector<2x512xf32>
    %28 = vector.extract_strided_slice %27 {offsets = [0, 0], sizes = [1, 512], strides = [1, 1]} : vector<2x512xf32> to vector<1x512xf32>
    %29 = vector.broadcast %28 : vector<1x512xf32> to vector<2x512xf32>
    %30 = arith.mulf %2, %29 : vector<2x512xf32>
    %31 = vector.extract_strided_slice %27 {offsets = [1, 0], sizes = [1, 512], strides = [1, 1]} : vector<2x512xf32> to vector<1x512xf32>
    %32 = vector.broadcast %31 : vector<1x512xf32> to vector<2x512xf32>
    %33 = arith.addf %30, %32 : vector<2x512xf32>
    %cst_16 = arith.constant 0.000000e+00 : f32
    %34 = vector.broadcast %cst_16 : f32 to vector<2x512xf32>
    %35 = arith.maximumf %33, %34 : vector<2x512xf32>
    %36 = vector.extract_strided_slice %35 {offsets = [0, 0], sizes = [2, 128], strides = [1, 1]} : vector<2x512xf32> to vector<2x128xf32>
    %37 = vector.extract_strided_slice %35 {offsets = [0, 128], sizes = [2, 128], strides = [1, 1]} : vector<2x512xf32> to vector<2x128xf32>
    %38 = vector.extract_strided_slice %35 {offsets = [0, 256], sizes = [2, 128], strides = [1, 1]} : vector<2x512xf32> to vector<2x128xf32>
    %39 = vector.extract_strided_slice %35 {offsets = [0, 384], sizes = [2, 128], strides = [1, 1]} : vector<2x512xf32> to vector<2x128xf32>
    %40 = tpu.concatenate %36, %37, %38, %39 in 0 : vector<2x128xf32>, vector<2x128xf32>, vector<2x128xf32>, vector<2x128xf32> -> vector<8x128xf32>
    %c0_17 = arith.constant 0 : index
    %c0_18 = arith.constant 0 : index
    %41 = vector.load %arg5[%c0_17, %c0_18] : memref<12x8xf32, #tpu.memory_space<vmem>>, vector<12x8xf32>
    %cst_19 = arith.constant dense<0.000000e+00> : vector<12x128xf32>
    %42 = tpu.matmul %41, %40, %cst_19 {dimension_numbers = #tpu.dot_dimension_numbers<[1], [0], [0], [1], [0, 0, 1, 1], [], []>} : vector<12x8xf32>, vector<8x128xf32>, vector<12x128xf32> -> vector<12x128xf32>
    %43 = vector.extract_strided_slice %42 {offsets = [0, 0], sizes = [10, 128], strides = [1, 1]} : vector<12x128xf32> to vector<10x128xf32>
    %44 = vector.extract_strided_slice %42 {offsets = [1, 0], sizes = [10, 128], strides = [1, 1]} : vector<12x128xf32> to vector<10x128xf32>
    %45 = vector.extract_strided_slice %42 {offsets = [2, 0], sizes = [10, 128], strides = [1, 1]} : vector<12x128xf32> to vector<10x128xf32>
    %46 = tpu.concatenate %43, %44, %45 in 1 : vector<10x128xf32>, vector<10x128xf32>, vector<10x128xf32> -> vector<10x384xf32>
    %47 = arith.truncf %46 : vector<10x384xf32> to vector<10x384xbf16>
    %c0_20 = arith.constant 0 : index
    %c0_21 = arith.constant 0 : index
    %48 = vector.load %arg6[%c0_20, %c0_21] : memref<384x256xbf16, #tpu.memory_space<vmem>>, vector<384x256xbf16>
    %cst_22 = arith.constant dense<0.000000e+00> : vector<10x256xf32>
    %49 = tpu.matmul %47, %48, %cst_22 {dimension_numbers = #tpu.dot_dimension_numbers<[1], [0], [0], [1], [0, 0, 1, 1], [], []>} : vector<10x384xbf16>, vector<384x256xbf16>, vector<10x256xf32> -> vector<10x256xf32>
    %50 = tpu.iota {dimensions = array<i32: 0>} : vector<10x1xi32>
    %c6_i32 = arith.constant 6 : i32
    %c0_i32 = arith.constant 0 : i32
    %51 = arith.cmpi eq, %c6_i32, %c0_i32 : i32
    %c1_i32 = arith.constant 1 : i32
    %52 = arith.select %51, %c1_i32, %c6_i32 : i32
    %53 = vector.broadcast %52 : i32 to vector<10x1xi32>
    %54 = arith.remsi %50, %53 : vector<10x1xi32>
    %c0_i32_23 = arith.constant 0 : i32
    %55 = vector.broadcast %c0_i32_23 : i32 to vector<10x1xi32>
    %56 = arith.cmpi ne, %54, %55 : vector<10x1xi32>
    %c0_i32_24 = arith.constant 0 : i32
    %57 = vector.broadcast %c0_i32_24 : i32 to vector<10x1xi32>
    %58 = arith.cmpi slt, %54, %57 : vector<10x1xi32>
    %c0_i32_25 = arith.constant 0 : i32
    %59 = arith.cmpi slt, %52, %c0_i32_25 : i32
    %60 = vector.broadcast %59 : i1 to vector<10x1xi1>
    %61 = vector.broadcast %60 : vector<10x1xi1> to vector<10x1xi1>
    %62 = arith.xori %58, %61 : vector<10x1xi1>
    %63 = arith.andi %62, %56 : vector<10x1xi1>
    %64 = vector.broadcast %52 : i32 to vector<10x1xi32>
    %65 = arith.addi %54, %64 : vector<10x1xi32>
    %66 = arith.select %63, %65, %54 : vector<10x1xi1>, vector<10x1xi32>
    %c4_i32 = arith.constant 4 : i32
    %67 = vector.broadcast %c4_i32 : i32 to vector<10x1xi32>
    %68 = arith.cmpi slt, %66, %67 : vector<10x1xi32>
    %69 = arith.extui %68 : vector<10x1xi1> to vector<10x1xi32>
    %70 = arith.sitofp %69 : vector<10x1xi32> to vector<10x1xf32>
    %71 = vector.broadcast %70 : vector<10x1xf32> to vector<10x256xf32>
    %72 = arith.mulf %49, %71 : vector<10x256xf32>
    %cst_26 = arith.constant dense<0.000000e+00> : vector<256xf32>
    %73 = vector.multi_reduction <add>, %72, %cst_26 [0] : vector<10x256xf32> to vector<256xf32>
    %74 = vector.shape_cast %73 : vector<256xf32> to vector<1x256xf32>
    %75 = arith.mulf %72, %49 : vector<10x256xf32>
    %cst_27 = arith.constant dense<0.000000e+00> : vector<256xf32>
    %76 = vector.multi_reduction <add>, %75, %cst_27 [0] : vector<10x256xf32> to vector<256xf32>
    %77 = vector.shape_cast %76 : vector<256xf32> to vector<1x256xf32>
    %78 = tpu.concatenate %74, %77 in 0 : vector<1x256xf32>, vector<1x256xf32> -> vector<2x256xf32>
    %c0_28 = arith.constant 0 : index
    %c0_29 = arith.constant 0 : index
    %79 = vector.load %arg7[%c0_28, %c0_29] : memref<256x16xf32, #tpu.memory_space<vmem>>, vector<256x16xf32>
    %cst_30 = arith.constant dense<0.000000e+00> : vector<2x16xf32>
    %80 = tpu.matmul %78, %79, %cst_30 {dimension_numbers = #tpu.dot_dimension_numbers<[1], [0], [0], [1], [0, 0, 1, 1], [], []>} : vector<2x256xf32>, vector<256x16xf32>, vector<2x16xf32> -> vector<2x16xf32>
    %cst_31 = arith.constant 7.812500e-03 : f32
    %81 = vector.broadcast %cst_31 : f32 to vector<2x16xf32>
    %82 = arith.mulf %80, %81 : vector<2x16xf32>
    %83 = vector.extract_strided_slice %82 {offsets = [0, 0], sizes = [1, 16], strides = [1, 1]} : vector<2x16xf32> to vector<1x16xf32>
    %84 = vector.extract_strided_slice %82 {offsets = [1, 0], sizes = [1, 16], strides = [1, 1]} : vector<2x16xf32> to vector<1x16xf32>
    %85 = arith.mulf %83, %83 : vector<1x16xf32>
    %86 = arith.subf %84, %85 : vector<1x16xf32>
    %c0_32 = arith.constant 0 : index
    %c0_33 = arith.constant 0 : index
    %87 = vector.load %arg9[%c0_32, %c0_33] : memref<2x16xf32, #tpu.memory_space<vmem>>, vector<1x16xf32>
    %cst_34 = arith.constant 9.99999974E-6 : f32
    %88 = vector.broadcast %cst_34 : f32 to vector<1x16xf32>
    %89 = arith.addf %86, %88 : vector<1x16xf32>
    %90 = math.rsqrt %89 : vector<1x16xf32>
    %91 = arith.mulf %87, %90 : vector<1x16xf32>
    %c1_35 = arith.constant 1 : index
    %c0_36 = arith.constant 0 : index
    %92 = vector.load %arg9[%c1_35, %c0_36] : memref<2x16xf32, #tpu.memory_space<vmem>>, vector<1x16xf32>
    %93 = arith.mulf %83, %91 : vector<1x16xf32>
    %94 = arith.subf %92, %93 : vector<1x16xf32>
    %95 = tpu.concatenate %91, %94 in 0 : vector<1x16xf32>, vector<1x16xf32> -> vector<2x16xf32>
    %c0_37 = arith.constant 0 : index
    %c0_38 = arith.constant 0 : index
    %96 = vector.load %arg8[%c0_37, %c0_38] : memref<16x256xf32, #tpu.memory_space<vmem>>, vector<16x256xf32>
    %cst_39 = arith.constant dense<0.000000e+00> : vector<2x256xf32>
    %97 = tpu.matmul %95, %96, %cst_39 {dimension_numbers = #tpu.dot_dimension_numbers<[1], [0], [0], [1], [0, 0, 1, 1], [], []>} : vector<2x16xf32>, vector<16x256xf32>, vector<2x256xf32> -> vector<2x256xf32>
    %98 = vector.extract_strided_slice %97 {offsets = [0, 0], sizes = [1, 256], strides = [1, 1]} : vector<2x256xf32> to vector<1x256xf32>
    %99 = vector.broadcast %98 : vector<1x256xf32> to vector<10x256xf32>
    %100 = arith.mulf %49, %99 : vector<10x256xf32>
    %101 = vector.extract_strided_slice %97 {offsets = [1, 0], sizes = [1, 256], strides = [1, 1]} : vector<2x256xf32> to vector<1x256xf32>
    %102 = vector.broadcast %101 : vector<1x256xf32> to vector<10x256xf32>
    %103 = arith.addf %100, %102 : vector<10x256xf32>
    %cst_40 = arith.constant 0.000000e+00 : f32
    %104 = vector.broadcast %cst_40 : f32 to vector<10x256xf32>
    %105 = arith.maximumf %103, %104 : vector<10x256xf32>
    %106 = vector.extract_strided_slice %105 {offsets = [0, 0], sizes = [10, 128], strides = [1, 1]} : vector<10x256xf32> to vector<10x128xf32>
    %107 = vector.extract_strided_slice %105 {offsets = [0, 128], sizes = [10, 128], strides = [1, 1]} : vector<10x256xf32> to vector<10x128xf32>
    %108 = tpu.concatenate %106, %107 in 0 : vector<10x128xf32>, vector<10x128xf32> -> vector<20x128xf32>
    %c0_41 = arith.constant 0 : index
    %c0_42 = arith.constant 0 : index
    %109 = vector.load %arg10[%c0_41, %c0_42] : memref<20x20xf32, #tpu.memory_space<vmem>>, vector<20x20xf32>
    %cst_43 = arith.constant dense<0.000000e+00> : vector<20x128xf32>
    %110 = tpu.matmul %109, %108, %cst_43 {dimension_numbers = #tpu.dot_dimension_numbers<[1], [0], [0], [1], [0, 0, 1, 1], [], []>} : vector<20x20xf32>, vector<20x128xf32>, vector<20x128xf32> -> vector<20x128xf32>
    %111 = vector.extract_strided_slice %110 {offsets = [0, 0], sizes = [18, 128], strides = [1, 1]} : vector<20x128xf32> to vector<18x128xf32>
    %112 = vector.extract_strided_slice %110 {offsets = [1, 0], sizes = [18, 128], strides = [1, 1]} : vector<20x128xf32> to vector<18x128xf32>
    %113 = vector.extract_strided_slice %110 {offsets = [2, 0], sizes = [18, 128], strides = [1, 1]} : vector<20x128xf32> to vector<18x128xf32>
    %114 = tpu.concatenate %111, %112, %113 in 1 : vector<18x128xf32>, vector<18x128xf32>, vector<18x128xf32> -> vector<18x384xf32>
    %115 = arith.truncf %114 : vector<18x384xf32> to vector<18x384xbf16>
    %c0_44 = arith.constant 0 : index
    %c0_45 = arith.constant 0 : index
    %116 = vector.load %arg11[%c0_44, %c0_45] : memref<384x512xbf16, #tpu.memory_space<vmem>>, vector<384x512xbf16>
    %cst_46 = arith.constant dense<0.000000e+00> : vector<18x512xf32>
    %117 = tpu.matmul %115, %116, %cst_46 {dimension_numbers = #tpu.dot_dimension_numbers<[1], [0], [0], [1], [0, 0, 1, 1], [], []>} : vector<18x384xbf16>, vector<384x512xbf16>, vector<18x512xf32> -> vector<18x512xf32>
    %118 = tpu.iota {dimensions = array<i32: 0>} : vector<18x1xi32>
    %c10_i32 = arith.constant 10 : i32
    %c0_i32_47 = arith.constant 0 : i32
    %119 = arith.cmpi eq, %c10_i32, %c0_i32_47 : i32
    %c1_i32_48 = arith.constant 1 : i32
    %120 = arith.select %119, %c1_i32_48, %c10_i32 : i32
    %121 = vector.broadcast %120 : i32 to vector<18x1xi32>
    %122 = arith.remsi %118, %121 : vector<18x1xi32>
    %c0_i32_49 = arith.constant 0 : i32
    %123 = vector.broadcast %c0_i32_49 : i32 to vector<18x1xi32>
    %124 = arith.cmpi ne, %122, %123 : vector<18x1xi32>
    %c0_i32_50 = arith.constant 0 : i32
    %125 = vector.broadcast %c0_i32_50 : i32 to vector<18x1xi32>
    %126 = arith.cmpi slt, %122, %125 : vector<18x1xi32>
    %c0_i32_51 = arith.constant 0 : i32
    %127 = arith.cmpi slt, %120, %c0_i32_51 : i32
    %128 = vector.broadcast %127 : i1 to vector<18x1xi1>
    %129 = vector.broadcast %128 : vector<18x1xi1> to vector<18x1xi1>
    %130 = arith.xori %126, %129 : vector<18x1xi1>
    %131 = arith.andi %130, %124 : vector<18x1xi1>
    %132 = vector.broadcast %120 : i32 to vector<18x1xi32>
    %133 = arith.addi %122, %132 : vector<18x1xi32>
    %134 = arith.select %131, %133, %122 : vector<18x1xi1>, vector<18x1xi32>
    %c8_i32 = arith.constant 8 : i32
    %135 = vector.broadcast %c8_i32 : i32 to vector<18x1xi32>
    %136 = arith.cmpi slt, %134, %135 : vector<18x1xi32>
    %137 = arith.extui %136 : vector<18x1xi1> to vector<18x1xi32>
    %138 = arith.sitofp %137 : vector<18x1xi32> to vector<18x1xf32>
    %139 = vector.broadcast %138 : vector<18x1xf32> to vector<18x512xf32>
    %140 = arith.mulf %117, %139 : vector<18x512xf32>
    %cst_52 = arith.constant dense<0.000000e+00> : vector<512xf32>
    %141 = vector.multi_reduction <add>, %140, %cst_52 [0] : vector<18x512xf32> to vector<512xf32>
    %142 = vector.shape_cast %141 : vector<512xf32> to vector<1x512xf32>
    %143 = arith.mulf %140, %117 : vector<18x512xf32>
    %cst_53 = arith.constant dense<0.000000e+00> : vector<512xf32>
    %144 = vector.multi_reduction <add>, %143, %cst_53 [0] : vector<18x512xf32> to vector<512xf32>
    %145 = vector.shape_cast %144 : vector<512xf32> to vector<1x512xf32>
    %146 = tpu.concatenate %142, %145 in 0 : vector<1x512xf32>, vector<1x512xf32> -> vector<2x512xf32>
    %c0_54 = arith.constant 0 : index
    %c0_55 = arith.constant 0 : index
    %147 = vector.load %arg12[%c0_54, %c0_55] : memref<512x16xf32, #tpu.memory_space<vmem>>, vector<512x16xf32>
    %cst_56 = arith.constant dense<0.000000e+00> : vector<2x16xf32>
    %148 = tpu.matmul %146, %147, %cst_56 {dimension_numbers = #tpu.dot_dimension_numbers<[1], [0], [0], [1], [0, 0, 1, 1], [], []>} : vector<2x512xf32>, vector<512x16xf32>, vector<2x16xf32> -> vector<2x16xf32>
    %cst_57 = arith.constant 0.001953125 : f32
    %149 = vector.broadcast %cst_57 : f32 to vector<2x16xf32>
    %150 = arith.mulf %148, %149 : vector<2x16xf32>
    %151 = vector.extract_strided_slice %150 {offsets = [0, 0], sizes = [1, 16], strides = [1, 1]} : vector<2x16xf32> to vector<1x16xf32>
    %152 = vector.extract_strided_slice %150 {offsets = [1, 0], sizes = [1, 16], strides = [1, 1]} : vector<2x16xf32> to vector<1x16xf32>
    %153 = arith.mulf %151, %151 : vector<1x16xf32>
    %154 = arith.subf %152, %153 : vector<1x16xf32>
    %c0_58 = arith.constant 0 : index
    %c0_59 = arith.constant 0 : index
    %155 = vector.load %arg14[%c0_58, %c0_59] : memref<2x16xf32, #tpu.memory_space<vmem>>, vector<1x16xf32>
    %cst_60 = arith.constant 9.99999974E-6 : f32
    %156 = vector.broadcast %cst_60 : f32 to vector<1x16xf32>
    %157 = arith.addf %154, %156 : vector<1x16xf32>
    %158 = math.rsqrt %157 : vector<1x16xf32>
    %159 = arith.mulf %155, %158 : vector<1x16xf32>
    %c1_61 = arith.constant 1 : index
    %c0_62 = arith.constant 0 : index
    %160 = vector.load %arg14[%c1_61, %c0_62] : memref<2x16xf32, #tpu.memory_space<vmem>>, vector<1x16xf32>
    %161 = arith.mulf %151, %159 : vector<1x16xf32>
    %162 = arith.subf %160, %161 : vector<1x16xf32>
    %163 = tpu.concatenate %159, %162 in 0 : vector<1x16xf32>, vector<1x16xf32> -> vector<2x16xf32>
    %c0_63 = arith.constant 0 : index
    %c0_64 = arith.constant 0 : index
    %164 = vector.load %arg13[%c0_63, %c0_64] : memref<16x512xf32, #tpu.memory_space<vmem>>, vector<16x512xf32>
    %cst_65 = arith.constant dense<0.000000e+00> : vector<2x512xf32>
    %165 = tpu.matmul %163, %164, %cst_65 {dimension_numbers = #tpu.dot_dimension_numbers<[1], [0], [0], [1], [0, 0, 1, 1], [], []>} : vector<2x16xf32>, vector<16x512xf32>, vector<2x512xf32> -> vector<2x512xf32>
    %166 = vector.extract_strided_slice %165 {offsets = [0, 0], sizes = [1, 512], strides = [1, 1]} : vector<2x512xf32> to vector<1x512xf32>
    %167 = vector.broadcast %166 : vector<1x512xf32> to vector<18x512xf32>
    %168 = arith.mulf %117, %167 : vector<18x512xf32>
    %169 = vector.extract_strided_slice %165 {offsets = [1, 0], sizes = [1, 512], strides = [1, 1]} : vector<2x512xf32> to vector<1x512xf32>
    %170 = vector.broadcast %169 : vector<1x512xf32> to vector<18x512xf32>
    %171 = arith.addf %168, %170 : vector<18x512xf32>
    %cst_66 = arith.constant 0.000000e+00 : f32
    %172 = vector.broadcast %cst_66 : f32 to vector<18x512xf32>
    %173 = arith.maximumf %171, %172 : vector<18x512xf32>
    %174 = vector.extract_strided_slice %173 {offsets = [0, 0], sizes = [18, 256], strides = [1, 1]} : vector<18x512xf32> to vector<18x256xf32>
    %175 = vector.extract_strided_slice %173 {offsets = [0, 256], sizes = [18, 256], strides = [1, 1]} : vector<18x512xf32> to vector<18x256xf32>
    %176 = tpu.concatenate %174, %175 in 0 : vector<18x256xf32>, vector<18x256xf32> -> vector<36x256xf32>
    %c0_67 = arith.constant 0 : index
    %c0_68 = arith.constant 0 : index
    %177 = vector.load %arg15[%c0_67, %c0_68] : memref<36x36xf32, #tpu.memory_space<vmem>>, vector<36x36xf32>
    %cst_69 = arith.constant dense<0.000000e+00> : vector<36x256xf32>
    %178 = tpu.matmul %177, %176, %cst_69 {dimension_numbers = #tpu.dot_dimension_numbers<[1], [0], [0], [1], [0, 0, 1, 1], [], []>} : vector<36x36xf32>, vector<36x256xf32>, vector<36x256xf32> -> vector<36x256xf32>
    %179 = vector.extract_strided_slice %178 {offsets = [0, 0], sizes = [34, 256], strides = [1, 1]} : vector<36x256xf32> to vector<34x256xf32>
    %180 = vector.extract_strided_slice %178 {offsets = [1, 0], sizes = [34, 256], strides = [1, 1]} : vector<36x256xf32> to vector<34x256xf32>
    %181 = vector.extract_strided_slice %178 {offsets = [2, 0], sizes = [34, 256], strides = [1, 1]} : vector<36x256xf32> to vector<34x256xf32>
    %182 = tpu.concatenate %179, %180, %181 in 1 : vector<34x256xf32>, vector<34x256xf32>, vector<34x256xf32> -> vector<34x768xf32>
    %183 = arith.truncf %182 : vector<34x768xf32> to vector<34x768xbf16>
    %c0_70 = arith.constant 0 : index
    %c0_71 = arith.constant 0 : index
    %184 = vector.load %arg16[%c0_70, %c0_71] : memref<768x512xbf16, #tpu.memory_space<vmem>>, vector<768x512xbf16>
    %cst_72 = arith.constant dense<0.000000e+00> : vector<34x512xf32>
    %185 = tpu.matmul %183, %184, %cst_72 {dimension_numbers = #tpu.dot_dimension_numbers<[1], [0], [0], [1], [0, 0, 1, 1], [], []>} : vector<34x768xbf16>, vector<768x512xbf16>, vector<34x512xf32> -> vector<34x512xf32>
    %186 = tpu.iota {dimensions = array<i32: 0>} : vector<34x1xi32>
    %c18_i32 = arith.constant 18 : i32
    %c0_i32_73 = arith.constant 0 : i32
    %187 = arith.cmpi eq, %c18_i32, %c0_i32_73 : i32
    %c1_i32_74 = arith.constant 1 : i32
    %188 = arith.select %187, %c1_i32_74, %c18_i32 : i32
    %189 = vector.broadcast %188 : i32 to vector<34x1xi32>
    %190 = arith.remsi %186, %189 : vector<34x1xi32>
    %c0_i32_75 = arith.constant 0 : i32
    %191 = vector.broadcast %c0_i32_75 : i32 to vector<34x1xi32>
    %192 = arith.cmpi ne, %190, %191 : vector<34x1xi32>
    %c0_i32_76 = arith.constant 0 : i32
    %193 = vector.broadcast %c0_i32_76 : i32 to vector<34x1xi32>
    %194 = arith.cmpi slt, %190, %193 : vector<34x1xi32>
    %c0_i32_77 = arith.constant 0 : i32
    %195 = arith.cmpi slt, %188, %c0_i32_77 : i32
    %196 = vector.broadcast %195 : i1 to vector<34x1xi1>
    %197 = vector.broadcast %196 : vector<34x1xi1> to vector<34x1xi1>
    %198 = arith.xori %194, %197 : vector<34x1xi1>
    %199 = arith.andi %198, %192 : vector<34x1xi1>
    %200 = vector.broadcast %188 : i32 to vector<34x1xi32>
    %201 = arith.addi %190, %200 : vector<34x1xi32>
    %202 = arith.select %199, %201, %190 : vector<34x1xi1>, vector<34x1xi32>
    %c16_i32 = arith.constant 16 : i32
    %203 = vector.broadcast %c16_i32 : i32 to vector<34x1xi32>
    %204 = arith.cmpi slt, %202, %203 : vector<34x1xi32>
    %205 = arith.extui %204 : vector<34x1xi1> to vector<34x1xi32>
    %206 = arith.sitofp %205 : vector<34x1xi32> to vector<34x1xf32>
    %207 = vector.broadcast %206 : vector<34x1xf32> to vector<34x512xf32>
    %208 = arith.mulf %185, %207 : vector<34x512xf32>
    %cst_78 = arith.constant dense<0.000000e+00> : vector<512xf32>
    %209 = vector.multi_reduction <add>, %208, %cst_78 [0] : vector<34x512xf32> to vector<512xf32>
    %210 = vector.shape_cast %209 : vector<512xf32> to vector<1x512xf32>
    %211 = arith.mulf %208, %185 : vector<34x512xf32>
    %cst_79 = arith.constant dense<0.000000e+00> : vector<512xf32>
    %212 = vector.multi_reduction <add>, %211, %cst_79 [0] : vector<34x512xf32> to vector<512xf32>
    %213 = vector.shape_cast %212 : vector<512xf32> to vector<1x512xf32>
    %214 = tpu.concatenate %210, %213 in 0 : vector<1x512xf32>, vector<1x512xf32> -> vector<2x512xf32>
    %c0_80 = arith.constant 0 : index
    %c0_81 = arith.constant 0 : index
    %215 = vector.load %arg17[%c0_80, %c0_81] : memref<512x8xf32, #tpu.memory_space<vmem>>, vector<512x8xf32>
    %cst_82 = arith.constant dense<0.000000e+00> : vector<2x8xf32>
    %216 = tpu.matmul %214, %215, %cst_82 {dimension_numbers = #tpu.dot_dimension_numbers<[1], [0], [0], [1], [0, 0, 1, 1], [], []>} : vector<2x512xf32>, vector<512x8xf32>, vector<2x8xf32> -> vector<2x8xf32>
    %cst_83 = arith.constant 4.8828125E-4 : f32
    %217 = vector.broadcast %cst_83 : f32 to vector<2x8xf32>
    %218 = arith.mulf %216, %217 : vector<2x8xf32>
    %219 = vector.extract_strided_slice %218 {offsets = [0, 0], sizes = [1, 8], strides = [1, 1]} : vector<2x8xf32> to vector<1x8xf32>
    %220 = vector.extract_strided_slice %218 {offsets = [1, 0], sizes = [1, 8], strides = [1, 1]} : vector<2x8xf32> to vector<1x8xf32>
    %221 = arith.mulf %219, %219 : vector<1x8xf32>
    %222 = arith.subf %220, %221 : vector<1x8xf32>
    %c0_84 = arith.constant 0 : index
    %c0_85 = arith.constant 0 : index
    %223 = vector.load %arg19[%c0_84, %c0_85] : memref<2x8xf32, #tpu.memory_space<vmem>>, vector<1x8xf32>
    %cst_86 = arith.constant 9.99999974E-6 : f32
    %224 = vector.broadcast %cst_86 : f32 to vector<1x8xf32>
    %225 = arith.addf %222, %224 : vector<1x8xf32>
    %226 = math.rsqrt %225 : vector<1x8xf32>
    %227 = arith.mulf %223, %226 : vector<1x8xf32>
    %c1_87 = arith.constant 1 : index
    %c0_88 = arith.constant 0 : index
    %228 = vector.load %arg19[%c1_87, %c0_88] : memref<2x8xf32, #tpu.memory_space<vmem>>, vector<1x8xf32>
    %229 = arith.mulf %219, %227 : vector<1x8xf32>
    %230 = arith.subf %228, %229 : vector<1x8xf32>
    %231 = tpu.concatenate %227, %230 in 0 : vector<1x8xf32>, vector<1x8xf32> -> vector<2x8xf32>
    %c0_89 = arith.constant 0 : index
    %c0_90 = arith.constant 0 : index
    %232 = vector.load %arg18[%c0_89, %c0_90] : memref<8x512xf32, #tpu.memory_space<vmem>>, vector<8x512xf32>
    %cst_91 = arith.constant dense<0.000000e+00> : vector<2x512xf32>
    %233 = tpu.matmul %231, %232, %cst_91 {dimension_numbers = #tpu.dot_dimension_numbers<[1], [0], [0], [1], [0, 0, 1, 1], [], []>} : vector<2x8xf32>, vector<8x512xf32>, vector<2x512xf32> -> vector<2x512xf32>
    %234 = vector.extract_strided_slice %233 {offsets = [0, 0], sizes = [1, 512], strides = [1, 1]} : vector<2x512xf32> to vector<1x512xf32>
    %235 = vector.broadcast %234 : vector<1x512xf32> to vector<34x512xf32>
    %236 = arith.mulf %185, %235 : vector<34x512xf32>
    %237 = vector.extract_strided_slice %233 {offsets = [1, 0], sizes = [1, 512], strides = [1, 1]} : vector<2x512xf32> to vector<1x512xf32>
    %238 = vector.broadcast %237 : vector<1x512xf32> to vector<34x512xf32>
    %239 = arith.addf %236, %238 : vector<34x512xf32>
    %cst_92 = arith.constant 0.000000e+00 : f32
    %240 = vector.broadcast %cst_92 : f32 to vector<34x512xf32>
    %241 = arith.maximumf %239, %240 : vector<34x512xf32>
    %242 = vector.extract_strided_slice %241 {offsets = [0, 0], sizes = [34, 256], strides = [1, 1]} : vector<34x512xf32> to vector<34x256xf32>
    %243 = vector.extract_strided_slice %241 {offsets = [0, 256], sizes = [34, 256], strides = [1, 1]} : vector<34x512xf32> to vector<34x256xf32>
    %244 = tpu.concatenate %242, %243 in 0 : vector<34x256xf32>, vector<34x256xf32> -> vector<68x256xf32>
    %c0_93 = arith.constant 0 : index
    %c0_94 = arith.constant 0 : index
    %245 = vector.load %arg20[%c0_93, %c0_94] : memref<68x68xf32, #tpu.memory_space<vmem>>, vector<68x68xf32>
    %cst_95 = arith.constant dense<0.000000e+00> : vector<68x256xf32>
    %246 = tpu.matmul %245, %244, %cst_95 {dimension_numbers = #tpu.dot_dimension_numbers<[1], [0], [0], [1], [0, 0, 1, 1], [], []>} : vector<68x68xf32>, vector<68x256xf32>, vector<68x256xf32> -> vector<68x256xf32>
    %247 = vector.extract_strided_slice %246 {offsets = [0, 0], sizes = [66, 256], strides = [1, 1]} : vector<68x256xf32> to vector<66x256xf32>
    %248 = vector.extract_strided_slice %246 {offsets = [1, 0], sizes = [66, 256], strides = [1, 1]} : vector<68x256xf32> to vector<66x256xf32>
    %249 = vector.extract_strided_slice %246 {offsets = [2, 0], sizes = [66, 256], strides = [1, 1]} : vector<68x256xf32> to vector<66x256xf32>
    %250 = tpu.concatenate %247, %248, %249 in 1 : vector<66x256xf32>, vector<66x256xf32>, vector<66x256xf32> -> vector<66x768xf32>
    %251 = arith.truncf %250 : vector<66x768xf32> to vector<66x768xbf16>
    %c0_96 = arith.constant 0 : index
    %c0_97 = arith.constant 0 : index
    %252 = vector.load %arg21[%c0_96, %c0_97] : memref<768x384xbf16, #tpu.memory_space<vmem>>, vector<768x384xbf16>
    %cst_98 = arith.constant dense<0.000000e+00> : vector<66x384xf32>
    %253 = tpu.matmul %251, %252, %cst_98 {dimension_numbers = #tpu.dot_dimension_numbers<[1], [0], [0], [1], [0, 0, 1, 1], [], []>} : vector<66x768xbf16>, vector<768x384xbf16>, vector<66x384xf32> -> vector<66x384xf32>
    %254 = math.tanh %253 : vector<66x384xf32>
    %c0_99 = arith.constant 0 : index
    %c0_100 = arith.constant 0 : index
    %255 = vector.load %arg22[%c0_99, %c0_100] : memref<68x384xf32, #tpu.memory_space<vmem>>, vector<66x384xf32>
    tpu.vector_store %arg22[%c0_99, %c0_100], %254 {strides = array<i32>} : memref<68x384xf32, #tpu.memory_space<vmem>>, vector<66x384xf32>,
    %cst_101 = arith.constant 0.000000e+00 : f32
    %256 = vector.broadcast %cst_101 : f32 to vector<2x384xf32>
    %c66 = arith.constant 66 : index
    %c0_102 = arith.constant 0 : index
    %257 = vector.load %arg22[%c66, %c0_102] : memref<68x384xf32, #tpu.memory_space<vmem>>, vector<2x384xf32>
    tpu.vector_store %arg22[%c66, %c0_102], %256 {strides = array<i32>} : memref<68x384xf32, #tpu.memory_space<vmem>>, vector<2x384xf32>,
    return
  }
}

</mosaic_0001>

<llo_original>
// kernel: generator_forward.1
$region0: #{generator_forward.1}
  #allocation0 [shape = 'u32[]', space=smem, size = 0x4, offset = 0x4, fixed_abs, tag = 'smem constant byte address 0x4 - core index']
  #allocation1 [shape = 'u32[144,128]{1,0:T(1,128)}', space=vmem, size = 0x12000, scoped, tag = 'internal scratch']
  %s0 = inlined_call_operand.vmem [shape: f32[2,16], index: 0, kind: input, shape index: {}]
  %s1 = inlined_call_operand.hbm [shape: f32[16,512], index: 1, kind: input, shape index: {}]
  %s2 = inlined_call_operand.vmem [shape: f32[512,32], index: 2, kind: input, shape index: {}]
  %s3 = inlined_call_operand.vmem [shape: f32[32,512], index: 3, kind: input, shape index: {}]
  %s4 = inlined_call_operand.vmem [shape: f32[2,32], index: 4, kind: input, shape index: {}]
  %s5 = inlined_call_operand.vmem [shape: f32[12,8], index: 5, kind: input, shape index: {}]
  %s6 = inlined_call_operand.vmem [shape: bf16[384,256], index: 6, kind: input, shape index: {}]
  %s7 = inlined_call_operand.vmem [shape: f32[256,16], index: 7, kind: input, shape index: {}]
  %s8 = inlined_call_operand.hbm [shape: f32[16,256], index: 8, kind: input, shape index: {}]
  %s9 = inlined_call_operand.vmem [shape: f32[2,16], index: 9, kind: input, shape index: {}]
  %s10 = inlined_call_operand.hbm [shape: f32[20,20], index: 10, kind: input, shape index: {}]
  %s11 = inlined_call_operand.hbm [shape: bf16[384,512], index: 11, kind: input, shape index: {}]
  %s12 = inlined_call_operand.vmem [shape: f32[512,16], index: 12, kind: input, shape index: {}]
  %s13 = inlined_call_operand.hbm [shape: f32[16,512], index: 13, kind: input, shape index: {}]
  %s14 = inlined_call_operand.vmem [shape: f32[2,16], index: 14, kind: input, shape index: {}]
  %s15 = inlined_call_operand.hbm [shape: f32[36,36], index: 15, kind: input, shape index: {}]
  %s16 = inlined_call_operand.vmem [shape: bf16[768,512], index: 16, kind: input, shape index: {}]
  %s17 = inlined_call_operand.vmem [shape: f32[512,8], index: 17, kind: input, shape index: {}]
  %s18 = inlined_call_operand.hbm [shape: f32[8,512], index: 18, kind: input, shape index: {}]
  %s19 = inlined_call_operand.vmem [shape: f32[2,8], index: 19, kind: input, shape index: {}]
  %s20 = inlined_call_operand.vmem [shape: f32[68,68], index: 20, kind: input, shape index: {}]
  %s21 = inlined_call_operand.hbm [shape: bf16[768,384], index: 21, kind: input, shape index: {}]
  %s22 = inlined_call_operand.vmem [shape: f32[68,384], index: 22, kind: output, shape index: {}]
  %s23 = sld [smem:[#allocation0]]
  $region130: #{generator_forward.1} parent=0
    _
  %s25 = ssub.s32 1, %s23
  %s26 = scalar_select 0, %s25, %s23
  $region1: #{generator_forward.1} parent=0
    #allocation2 [shape = 'u8[32768]{0}', space=vmem, size = 0x8000, scoped, tag = 'input window, operand 1, single buffered']
    #allocation3 [shape = 's32[1]{0}', space=sflag, size = 0x4, scoped, tag = 'scoped memory for generator_forward.1']
    #allocation4 [shape = 'u8[16384]{0}', space=vmem, size = 0x4000, scoped, tag = 'input window, operand 8, single buffered']
    #allocation5 [shape = 's32[1]{0}', space=sflag, size = 0x4, scoped, tag = 'scoped memory for generator_forward.1']
    #allocation6 [shape = 'u8[12288]{0}', space=vmem, size = 0x3000, scoped, tag = 'input window, operand 10, single buffered']
    #allocation7 [shape = 'u8[393216]{0}', space=vmem, size = 0x60000, scoped, tag = 'input window, operand 11, single buffered']
    #allocation8 [shape = 's32[1]{0}', space=sflag, size = 0x4, scoped, tag = 'scoped memory for generator_forward.1']
    #allocation9 [shape = 'u8[32768]{0}', space=vmem, size = 0x8000, scoped, tag = 'input window, operand 13, single buffered']
    #allocation10 [shape = 'u8[20480]{0}', space=vmem, size = 0x5000, scoped, tag = 'input window, operand 15, single buffered']
    #allocation11 [shape = 's32[1]{0}', space=sflag, size = 0x4, scoped, tag = 'scoped memory for generator_forward.1']
    #allocation12 [shape = 'u8[16384]{0}', space=vmem, size = 0x4000, scoped, tag = 'input window, operand 18, single buffered']
    #allocation13 [shape = 'u8[589824]{0}', space=vmem, size = 0x90000, scoped, tag = 'input window, operand 21, single buffered']
    #allocation14 [shape = 's32[1]{0}', space=sflag, size = 0x4, scoped, tag = 'scoped memory for generator_forward.1']
    %27 = vsyncpa [#allocation3], 0
    %28 = vsyncpa [#allocation5], 0
    %29 = vsyncpa [#allocation8], 0
    %30 = vsyncpa [#allocation11], 0
    %31 = vsyncpa [#allocation14], 0
    // Predicated region
    $region2: #{generator_forward.1} parent=1 // pred_check
      _
    $region3: #{generator_forward.1} parent=1 // pred_check_branch
      %33 = sbr.rel (0) target = $region5
    $region4: #{generator_forward.1} parent=1 // pred_region
      _
    $region5: #{generator_forward.1} parent=1 // pred_fallthru
      _
    // Predicated region
    $region6: #{generator_forward.1} parent=1 // pred_check
      _
    $region7: #{generator_forward.1} parent=1 // pred_check_branch
      %35 = sbr.rel (0) target = $region9
    $region8: #{generator_forward.1} parent=1 // pred_region
      %s37 = ssub.s32 1024, 1024
      %38 = vsyncadd [#allocation3], %s37
      %s39 = sshll.u32 [#allocation2], 4
      %s40 = int_to_ptr.vmem [resolvable:$true] %s39
      %45 = dma.hbm_to_vmem [thread:$0]  %s1, 1024, %s40, [#allocation3], 512, 512, 32
    $region9: #{generator_forward.1} parent=1 // pred_fallthru
      _
    // Predicated region
    $region10: #{generator_forward.1} parent=1 // pred_check
      _
    $region11: #{generator_forward.1} parent=1 // pred_check_branch
      %47 = sbr.rel (0) target = $region13
    $region12: #{generator_forward.1} parent=1 // pred_region
      _
    $region13: #{generator_forward.1} parent=1 // pred_fallthru
      _
    // Predicated region
    $region14: #{generator_forward.1} parent=1 // pred_check
      _
    $region15: #{generator_forward.1} parent=1 // pred_check_branch
      %49 = sbr.rel (0) target = $region17
    $region16: #{generator_forward.1} parent=1 // pred_region
      _
    $region17: #{generator_forward.1} parent=1 // pred_fallthru
      _
    // Predicated region
    $region18: #{generator_forward.1} parent=1 // pred_check
      _
    $region19: #{generator_forward.1} parent=1 // pred_check_branch
      %51 = sbr.rel (0) target = $region21
    $region20: #{generator_forward.1} parent=1 // pred_region
      _
    $region21: #{generator_forward.1} parent=1 // pred_fallthru
      _
    // Predicated region
    $region22: #{generator_forward.1} parent=1 // pred_check
      _
    $region23: #{generator_forward.1} parent=1 // pred_check_branch
      %53 = sbr.rel (0) target = $region25
    $region24: #{generator_forward.1} parent=1 // pred_region
      _
    $region25: #{generator_forward.1} parent=1 // pred_fallthru
      _
    // Predicated region
    $region26: #{generator_forward.1} parent=1 // pred_check
      _
    $region27: #{generator_forward.1} parent=1 // pred_check_branch
      %55 = sbr.rel (0) target = $region29
    $region28: #{generator_forward.1} parent=1 // pred_region
      _
    $region29: #{generator_forward.1} parent=1 // pred_fallthru
      _
    // Predicated region
    $region30: #{generator_forward.1} parent=1 // pred_check
      _
    $region31: #{generator_forward.1} parent=1 // pred_check_branch
      %57 = sbr.rel (0) target = $region33
    $region32: #{generator_forward.1} parent=1 // pred_region
      _
    $region33: #{generator_forward.1} parent=1 // pred_fallthru
      _
    // Predicated region
    $region34: #{generator_forward.1} parent=1 // pred_check
      _
    $region35: #{generator_forward.1} parent=1 // pred_check_branch
      %59 = sbr.rel (0) target = $region37
    $region36: #{generator_forward.1} parent=1 // pred_region
      %s61 = ssub.s32 512, 512
      %62 = vsyncadd [#allocation5], %s61
      %s63 = sshll.u32 [#allocation4], 4
      %s64 = int_to_ptr.vmem [resolvable:$true] %s63
      %69 = dma.hbm_to_vmem [thread:$0]  %s8, 512, %s64, [#allocation5], 256, 256, 16
    $region37: #{generator_forward.1} parent=1 // pred_fallthru
      _
    // Predicated region
    $region38: #{generator_forward.1} parent=1 // pred_check
      _
    $region39: #{generator_forward.1} parent=1 // pred_check_branch
      %71 = sbr.rel (0) target = $region41
    $region40: #{generator_forward.1} parent=1 // pred_region
      _
    $region41: #{generator_forward.1} parent=1 // pred_fallthru
      _
    // Predicated region
    $region42: #{generator_forward.1} parent=1 // pred_check
      _
    $region43: #{generator_forward.1} parent=1 // pred_check_branch
      %73 = sbr.rel (0) target = $region45
    $region44: #{generator_forward.1} parent=1 // pred_region
      %s75 = ssub.s32 384, 384
      %76 = vsyncadd [#allocation5], %s75
      %s77 = sshll.u32 [#allocation6], 4
      %s78 = int_to_ptr.vmem [resolvable:$true] %s77
      %83 = dma.hbm_to_vmem [thread:$0]  %s10, 384, %s78, [#allocation5], 128, 128, 8
    $region45: #{generator_forward.1} parent=1 // pred_fallthru
      _
    // Predicated region
    $region46: #{generator_forward.1} parent=1 // pred_check
      _
    $region47: #{generator_forward.1} parent=1 // pred_check_branch
      %85 = sbr.rel (0) target = $region49
    $region48: #{generator_forward.1} parent=1 // pred_region
      %s87 = ssub.s32 12288, 12288
      %88 = vsyncadd [#allocation8], %s87
      %s89 = sshll.u32 [#allocation7], 4
      %s90 = int_to_ptr.vmem [resolvable:$true] %s89
      %95 = dma.hbm_to_vmem [thread:$0]  %s11, 12288, %s90, [#allocation8], 256, 256, 16
    $region49: #{generator_forward.1} parent=1 // pred_fallthru
      _
    // Predicated region
    $region50: #{generator_forward.1} parent=1 // pred_check
      _
    $region51: #{generator_forward.1} parent=1 // pred_check_branch
      %97 = sbr.rel (0) target = $region53
    $region52: #{generator_forward.1} parent=1 // pred_region
      _
    $region53: #{generator_forward.1} parent=1 // pred_fallthru
      _
    // Predicated region
    $region54: #{generator_forward.1} parent=1 // pred_check
      _
    $region55: #{generator_forward.1} parent=1 // pred_check_branch
      %99 = sbr.rel (0) target = $region57
    $region56: #{generator_forward.1} parent=1 // pred_region
      %s101 = ssub.s32 1024, 1024
      %102 = vsyncadd [#allocation8], %s101
      %s103 = sshll.u32 [#allocation9], 4
      %s104 = int_to_ptr.vmem [resolvable:$true] %s103
      %109 = dma.hbm_to_vmem [thread:$0]  %s13, 1024, %s104, [#allocation8], 512, 512, 32
    $region57: #{generator_forward.1} parent=1 // pred_fallthru
      _
    // Predicated region
    $region58: #{generator_forward.1} parent=1 // pred_check
      _
    $region59: #{generator_forward.1} parent=1 // pred_check_branch
      %111 = sbr.rel (0) target = $region61
    $region60: #{generator_forward.1} parent=1 // pred_region
      _
    $region61: #{generator_forward.1} parent=1 // pred_fallthru
      _
    // Predicated region
    $region62: #{generator_forward.1} parent=1 // pred_check
      _
    $region63: #{generator_forward.1} parent=1 // pred_check_branch
      %113 = sbr.rel (0) target = $region65
    $region64: #{generator_forward.1} parent=1 // pred_region
      %s115 = ssub.s32 640, 640
      %116 = vsyncadd [#allocation11], %s115
      %s117 = sshll.u32 [#allocation10], 4
      %s118 = int_to_ptr.vmem [resolvable:$true] %s117
      %123 = dma.hbm_to_vmem [thread:$0]  %s15, 640, %s118, [#allocation11], 128, 128, 8
    $region65: #{generator_forward.1} parent=1 // pred_fallthru
      _
    // Predicated region
    $region66: #{generator_forward.1} parent=1 // pred_check
      _
    $region67: #{generator_forward.1} parent=1 // pred_check_branch
      %125 = sbr.rel (0) target = $region69
    $region68: #{generator_forward.1} parent=1 // pred_region
      _
    $region69: #{generator_forward.1} parent=1 // pred_fallthru
      _
    // Predicated region
    $region70: #{generator_forward.1} parent=1 // pred_check
      _
    $region71: #{generator_forward.1} parent=1 // pred_check_branch
      %127 = sbr.rel (0) target = $region73
    $region72: #{generator_forward.1} parent=1 // pred_region
      _
    $region73: #{generator_forward.1} parent=1 // pred_fallthru
      _
    // Predicated region
    $region74: #{generator_forward.1} parent=1 // pred_check
      _
    $region75: #{generator_forward.1} parent=1 // pred_check_branch
      %129 = sbr.rel (0) target = $region77
    $region76: #{generator_forward.1} parent=1 // pred_region
      %s131 = ssub.s32 512, 512
      %132 = vsyncadd [#allocation11], %s131
      %s134 = sshll.u32 [#allocation12], 4
      %s135 = int_to_ptr.vmem [resolvable:$true] %s134
      %137 = dma.hbm_to_vmem [thread:$0]  %s18, 512, %s135, [#allocation11]
    $region77: #{generator_forward.1} parent=1 // pred_fallthru
      _
    // Predicated region
    $region78: #{generator_forward.1} parent=1 // pred_check
      _
    $region79: #{generator_forward.1} parent=1 // pred_check_branch
      %139 = sbr.rel (0) target = $region81
    $region80: #{generator_forward.1} parent=1 // pred_region
      _
    $region81: #{generator_forward.1} parent=1 // pred_fallthru
      _
    // Predicated region
    $region82: #{generator_forward.1} parent=1 // pred_check
      _
    $region83: #{generator_forward.1} parent=1 // pred_check_branch
      %141 = sbr.rel (0) target = $region85
    $region84: #{generator_forward.1} parent=1 // pred_region
      _
    $region85: #{generator_forward.1} parent=1 // pred_fallthru
      _
    // Predicated region
    $region86: #{generator_forward.1} parent=1 // pred_check
      _
    $region87: #{generator_forward.1} parent=1 // pred_check_branch
      %143 = sbr.rel (0) target = $region89
    $region88: #{generator_forward.1} parent=1 // pred_region
      %s145 = ssub.s32 18432, 18432
      %146 = vsyncadd [#allocation14], %s145
      %s147 = sshll.u32 [#allocation13], 4
      %s148 = int_to_ptr.vmem [resolvable:$true] %s147
      %153 = dma.hbm_to_vmem [thread:$0]  %s21, 18432, %s148, [#allocation14], 192, 192, 12
    $region89: #{generator_forward.1} parent=1 // pred_fallthru
      _
    // Predicated region
    $region90: #{generator_forward.1} parent=1 // pred_check
      _
    $region91: #{generator_forward.1} parent=1 // pred_check_branch
      %155 = sbr.rel (0) target = $region93
    $region92: #{generator_forward.1} parent=1 // pred_region
      %156 = dma.done [#allocation3], 1024
    $region93: #{generator_forward.1} parent=1 // pred_fallthru
      _
    // Predicated region
    $region94: #{generator_forward.1} parent=1 // pred_check
      _
    $region95: #{generator_forward.1} parent=1 // pred_check_branch
      %158 = sbr.rel (0) target = $region97
    $region96: #{generator_forward.1} parent=1 // pred_region
      %159 = dma.done [#allocation5], 512
    $region97: #{generator_forward.1} parent=1 // pred_fallthru
      _
    // Predicated region
    $region98: #{generator_forward.1} parent=1 // pred_check
      _
    $region99: #{generator_forward.1} parent=1 // pred_check_branch
      %161 = sbr.rel (0) target = $region101
    $region100: #{generator_forward.1} parent=1 // pred_region
      %162 = dma.done [#allocation5], 384
    $region101: #{generator_forward.1} parent=1 // pred_fallthru
      _
    // Predicated region
    $region102: #{generator_forward.1} parent=1 // pred_check
      _
    $region103: #{generator_forward.1} parent=1 // pred_check_branch
      %164 = sbr.rel (0) target = $region105
    $region104: #{generator_forward.1} parent=1 // pred_region
      %165 = dma.done [#allocation8], 12288
    $region105: #{generator_forward.1} parent=1 // pred_fallthru
      _
    // Predicated region
    $region106: #{generator_forward.1} parent=1 // pred_check
      _
    $region107: #{generator_forward.1} parent=1 // pred_check_branch
      %167 = sbr.rel (0) target = $region109
    $region108: #{generator_forward.1} parent=1 // pred_region
      %168 = dma.done [#allocation8], 1024
    $region109: #{generator_forward.1} parent=1 // pred_fallthru
      _
    // Predicated region
    $region110: #{generator_forward.1} parent=1 // pred_check
      _
    $region111: #{generator_forward.1} parent=1 // pred_check_branch
      %170 = sbr.rel (0) target = $region113
    $region112: #{generator_forward.1} parent=1 // pred_region
      %171 = dma.done [#allocation11], 640
    $region113: #{generator_forward.1} parent=1 // pred_fallthru
      _
    // Predicated region
    $region114: #{generator_forward.1} parent=1 // pred_check
      _
    $region115: #{generator_forward.1} parent=1 // pred_check_branch
      %173 = sbr.rel (0) target = $region117
    $region116: #{generator_forward.1} parent=1 // pred_region
      %174 = dma.done [#allocation11], 512
    $region117: #{generator_forward.1} parent=1 // pred_fallthru
      _
    // Predicated region
    $region118: #{generator_forward.1} parent=1 // pred_check
      _
    $region119: #{generator_forward.1} parent=1 // pred_check_branch
      %176 = sbr.rel (0) target = $region121
    $region120: #{generator_forward.1} parent=1 // pred_region
      %177 = dma.done [#allocation14], 18432
    $region121: #{generator_forward.1} parent=1 // pred_fallthru
      _
    %v179 = vld [vmem:[%s0] sm:$0x3]
    %v180 = vld [vmem:[#allocation2] sm:$0xff]
    %v181 = vld [vmem:[#allocation2 + $0x8] sm:$0xff]
    %v182 = vld [vmem:[#allocation2 + $0x10] sm:$0xff]
    %v183 = vld [vmem:[#allocation2 + $0x18] sm:$0xff]
    %v184 = vld [vmem:[#allocation2 + $0x20] sm:$0xff]
    %v185 = vld [vmem:[#allocation2 + $0x28] sm:$0xff]
    %v186 = vld [vmem:[#allocation2 + $0x30] sm:$0xff]
    %v187 = vld [vmem:[#allocation2 + $0x38] sm:$0xff]
    %vm188 = vcmask 130048
    %v190 = vsel %vm188, %v179, 0
    %192 = vmatprep.subr.mxu0 %v181
    %193 = vmatpush1.msra.mxu0 %v180
    %194 = vmatprep.subr.mxu0 %v185
    %195 = vmatpush1.msra.mxu0 %v184
    %196 = vmatprep.subr.mxu0 0.0
    %197 = vmatpush1.msra.mxu0 0.0
    %198 = vmatprep.subr.mxu0 0.0
    %199 = vmatpush1.msra.mxu0 0.0
    %200 = vmatprep.subr.mxu0 0.0
    %201 = vmatpush1.msra.mxu0 0.0
    %202 = vmatprep.subr.mxu0 0.0
    %203 = vmatpush1.msra.mxu0 0.0
    %204 = vmatprep.subr.mxu0 0.0
    %205 = vmatpush1.msra.mxu0 0.0
    %206 = vmatprep.subr.mxu0 0.0
    %207 = vmatpush1.msra.mxu0 0.0
    %208 = vmatprep.subr.mxu0 0.0
    %209 = vmatpush1.msra.mxu0 0.0
    %210 = vmatprep.subr.mxu0 0.0
    %211 = vmatpush1.msra.mxu0 0.0
    %212 = vmatprep.subr.mxu0 0.0
    %213 = vmatpush1.msra.mxu0 0.0
    %214 = vmatprep.subr.mxu0 0.0
    %215 = vmatpush1.msra.mxu0 0.0
    %216 = vmatprep.subr.mxu0 0.0
    %217 = vmatpush1.msra.mxu0 0.0
    %218 = vmatprep.subr.mxu0 0.0
    %219 = vmatpush1.msra.mxu0 0.0
    %220 = vmatprep.subr.mxu0 0.0
    %221 = vmatpush1.msra.mxu0 0.0
    %222 = vmatprep.subr.mxu0 0.0
    %223 = vmatpush1.msra.mxu0 0.0
    %224 = vmatprep.subr.mxu0 0.0
    %225 = vmatpush1.msra.mxu0 0.0
    %226 = vmatprep.subr.mxu0 0.0
    %227 = vmatpush1.msra.mxu0 0.0
    %228 = vmatprep.subr.mxu0 0.0
    %229 = vmatpush1.msra.mxu0 0.0
    %230 = vmatprep.subr.mxu0 0.0
    %231 = vmatpush1.msra.mxu0 0.0
    %232 = vmatprep.subr.mxu0 0.0
    %233 = vmatpush1.msra.mxu0 0.0
    %234 = vmatprep.subr.mxu0 0.0
    %235 = vmatpush1.msra.mxu0 0.0
    %236 = vmatprep.subr.mxu0 0.0
    %237 = vmatpush1.msra.mxu0 0.0
    %238 = vmatprep.subr.mxu0 0.0
    %239 = vmatpush1.msra.mxu0 0.0
    %240 = vmatprep.subr.mxu0 0.0
    %241 = vmatpush1.msra.mxu0 0.0
    %242 = vmatprep.subr.mxu0 0.0
    %243 = vmatpush1.msra.mxu0 0.0
    %244 = vmatprep.subr.mxu0 0.0
    %245 = vmatpush1.msra.mxu0 0.0
    %246 = vmatprep.subr.mxu0 0.0
    %247 = vmatpush1.msra.mxu0 0.0
    %248 = vmatprep.subr.mxu0 0.0
    %249 = vmatpush1.msra.mxu0 0.0
    %250 = vmatprep.subr.mxu0 0.0
    %251 = vmatpush1.msra.mxu0 0.0
    %252 = vmatprep.subr.mxu0 0.0
    %253 = vmatpush1.msra.mxu0 0.0
    %254 = vmatprep.subr.mxu0 0.0
    %255 = vmatpush1.msra.mxu0 0.0
    %256 = vmatprep.mubr.f32.mxu0 0.0
    %257 = vmatmul.mubr.f32.gmra.mrb[0].mxu0 %v190
    %v258 = vpop.f32.mrb[0].mxu0
    %v259 = vadd.f32 0.0, %v258
    %v260 = vpop.f32.mrb[0].mxu0
    %v261 = vadd.f32 0.0, %v260
    %262 = vdwg.mxu0
    %263 = vmatprep.subr.mxu0 %v183
    %264 = vmatpush1.msra.mxu0 %v182
    %265 = vmatprep.subr.mxu0 %v187
    %266 = vmatpush1.msra.mxu0 %v186
    %267 = vmatprep.subr.mxu0 0.0
    %268 = vmatpush1.msra.mxu0 0.0
    %269 = vmatprep.subr.mxu0 0.0
    %270 = vmatpush1.msra.mxu0 0.0
    %271 = vmatprep.subr.mxu0 0.0
    %272 = vmatpush1.msra.mxu0 0.0
    %273 = vmatprep.subr.mxu0 0.0
    %274 = vmatpush1.msra.mxu0 0.0
    %275 = vmatprep.subr.mxu0 0.0
    %276 = vmatpush1.msra.mxu0 0.0
    %277 = vmatprep.subr.mxu0 0.0
    %278 = vmatpush1.msra.mxu0 0.0
    %279 = vmatprep.subr.mxu0 0.0
    %280 = vmatpush1.msra.mxu0 0.0
    %281 = vmatprep.subr.mxu0 0.0
    %282 = vmatpush1.msra.mxu0 0.0
    %283 = vmatprep.subr.mxu0 0.0
    %284 = vmatpush1.msra.mxu0 0.0
    %285 = vmatprep.subr.mxu0 0.0
    %286 = vmatpush1.msra.mxu0 0.0
    %287 = vmatprep.subr.mxu0 0.0
    %288 = vmatpush1.msra.mxu0 0.0
    %289 = vmatprep.subr.mxu0 0.0
    %290 = vmatpush1.msra.mxu0 0.0
    %291 = vmatprep.subr.mxu0 0.0
    %292 = vmatpush1.msra.mxu0 0.0
    %293 = vmatprep.subr.mxu0 0.0
    %294 = vmatpush1.msra.mxu0 0.0
    %295 = vmatprep.subr.mxu0 0.0
    %296 = vmatpush1.msra.mxu0 0.0
    %297 = vmatprep.subr.mxu0 0.0
    %298 = vmatpush1.msra.mxu0 0.0
    %299 = vmatprep.subr.mxu0 0.0
    %300 = vmatpush1.msra.mxu0 0.0
    %301 = vmatprep.subr.mxu0 0.0
    %302 = vmatpush1.msra.mxu0 0.0
    %303 = vmatprep.subr.mxu0 0.0
    %304 = vmatpush1.msra.mxu0 0.0
    %305 = vmatprep.subr.mxu0 0.0
    %306 = vmatpush1.msra.mxu0 0.0
    %307 = vmatprep.subr.mxu0 0.0
    %308 = vmatpush1.msra.mxu0 0.0
    %309 = vmatprep.subr.mxu0 0.0
    %310 = vmatpush1.msra.mxu0 0.0
    %311 = vmatprep.subr.mxu0 0.0
    %312 = vmatpush1.msra.mxu0 0.0
    %313 = vmatprep.subr.mxu0 0.0
    %314 = vmatpush1.msra.mxu0 0.0
    %315 = vmatprep.subr.mxu0 0.0
    %316 = vmatpush1.msra.mxu0 0.0
    %317 = vmatprep.subr.mxu0 0.0
    %318 = vmatpush1.msra.mxu0 0.0
    %319 = vmatprep.subr.mxu0 0.0
    %320 = vmatpush1.msra.mxu0 0.0
    %321 = vmatprep.subr.mxu0 0.0
    %322 = vmatpush1.msra.mxu0 0.0
    %323 = vmatprep.subr.mxu0 0.0
    %324 = vmatpush1.msra.mxu0 0.0
    %325 = vmatprep.subr.mxu0 0.0
    %326 = vmatpush1.msra.mxu0 0.0
    %327 = vmatprep.mubr.f32.mxu0 0.0
    %328 = vmatmul.mubr.f32.gmra.mrb[0].mxu0 %v190
    %v329 = vpop.f32.mrb[0].mxu0
    %v330 = vadd.f32 0.0, %v329
    %v331 = vpop.f32.mrb[0].mxu0
    %v332 = vadd.f32 0.0, %v331
    %333 = vdwg.mxu0
    %vm334 = vcmask 1041408
    %v335 = vsel %vm334, %v259, 0.0
    %v336 = vrot.slane %v335, 4
    %v337 = vadd.f32 %v335, %v336
    %v338 = vrot.slane %v337, 2
    %v339 = vadd.f32 %v337, %v338
    %v340 = vrot.slane %v339, 1
    %v341 = vadd.f32 %v339, %v340
    %v342 = vsel %vm334, %v261, 0.0
    %v343 = vrot.slane %v342, 4
    %v344 = vadd.f32 %v342, %v343
    %v345 = vrot.slane %v344, 2
    %v346 = vadd.f32 %v344, %v345
    %v347 = vrot.slane %v346, 1
    %v348 = vadd.f32 %v346, %v347
    %v349 = vsel %vm334, %v330, 0.0
    %v350 = vrot.slane %v349, 4
    %v351 = vadd.f32 %v349, %v350
    %v352 = vrot.slane %v351, 2
    %v353 = vadd.f32 %v351, %v352
    %v354 = vrot.slane %v353, 1
    %v355 = vadd.f32 %v353, %v354
    %v356 = vsel %vm334, %v332, 0.0
    %v357 = vrot.slane %v356, 4
    %v358 = vadd.f32 %v356, %v357
    %v359 = vrot.slane %v358, 2
    %v360 = vadd.f32 %v358, %v359
    %v361 = vrot.slane %v360, 1
    %v362 = vadd.f32 %v360, %v361
    %v363 = vmul.f32 %v259, %v259
    %v364 = vmul.f32 %v261, %v261
    %v365 = vmul.f32 %v330, %v330
    %v366 = vmul.f32 %v332, %v332
    %v367 = vsel %vm334, %v363, 0.0
    %v368 = vrot.slane %v367, 4
    %v369 = vadd.f32 %v367, %v368
    %v370 = vrot.slane %v369, 2
    %v371 = vadd.f32 %v369, %v370
    %v372 = vrot.slane %v371, 1
    %v373 = vadd.f32 %v371, %v372
    %v374 = vsel %vm334, %v364, 0.0
    %v375 = vrot.slane %v374, 4
    %v376 = vadd.f32 %v374, %v375
    %v377 = vrot.slane %v376, 2
    %v378 = vadd.f32 %v376, %v377
    %v379 = vrot.slane %v378, 1
    %v380 = vadd.f32 %v378, %v379
    %v381 = vsel %vm334, %v365, 0.0
    %v382 = vrot.slane %v381, 4
    %v383 = vadd.f32 %v381, %v382
    %v384 = vrot.slane %v383, 2
    %v385 = vadd.f32 %v383, %v384
    %v386 = vrot.slane %v385, 1
    %v387 = vadd.f32 %v385, %v386
    %v388 = vsel %vm334, %v366, 0.0
    %v389 = vrot.slane %v388, 4
    %v390 = vadd.f32 %v388, %v389
    %v391 = vrot.slane %v390, 2
    %v392 = vadd.f32 %v390, %v391
    %v393 = vrot.slane %v392, 1
    %v394 = vadd.f32 %v392, %v393
    %vm395 = vcmask 1040384
    %v396 = vsel %vm395, %v341, %v373
    %v397 = vsel %vm395, %v348, %v380
    %v398 = vsel %vm395, %v355, %v387
    %v399 = vsel %vm395, %v362, %v394
    %v400 = vld [vmem:[%s2] sm:$0xff]
    %v401 = vld [vmem:[%s2 + $0x8] sm:$0xff]
    %v402 = vld [vmem:[%s2 + $0x10] sm:$0xff]
    %v403 = vld [vmem:[%s2 + $0x18] sm:$0xff]
    %v404 = vld [vmem:[%s2 + $0x20] sm:$0xff]
    %v405 = vld [vmem:[%s2 + $0x28] sm:$0xff]
    %v406 = vld [vmem:[%s2 + $0x30] sm:$0xff]
    %v407 = vld [vmem:[%s2 + $0x38] sm:$0xff]
    %v408 = vld [vmem:[%s2 + $0x40] sm:$0xff]
    %v409 = vld [vmem:[%s2 + $0x48] sm:$0xff]
    %v410 = vld [vmem:[%s2 + $0x50] sm:$0xff]
    %v411 = vld [vmem:[%s2 + $0x58] sm:$0xff]
    %v412 = vld [vmem:[%s2 + $0x60] sm:$0xff]
    %v413 = vld [vmem:[%s2 + $0x68] sm:$0xff]
    %v414 = vld [vmem:[%s2 + $0x70] sm:$0xff]
    %v415 = vld [vmem:[%s2 + $0x78] sm:$0xff]
    %v416 = vld [vmem:[%s2 + $0x80] sm:$0xff]
    %v417 = vld [vmem:[%s2 + $0x88] sm:$0xff]
    %v418 = vld [vmem:[%s2 + $0x90] sm:$0xff]
    %v419 = vld [vmem:[%s2 + $0x98] sm:$0xff]
    %v420 = vld [vmem:[%s2 + $0xa0] sm:$0xff]
    %v421 = vld [vmem:[%s2 + $0xa8] sm:$0xff]
    %v422 = vld [vmem:[%s2 + $0xb0] sm:$0xff]
    %v423 = vld [vmem:[%s2 + $0xb8] sm:$0xff]
    %v424 = vld [vmem:[%s2 + $0xc0] sm:$0xff]
    %v425 = vld [vmem:[%s2 + $0xc8] sm:$0xff]
    %v426 = vld [vmem:[%s2 + $0xd0] sm:$0xff]
    %v427 = vld [vmem:[%s2 + $0xd8] sm:$0xff]
    %v428 = vld [vmem:[%s2 + $0xe0] sm:$0xff]
    %v429 = vld [vmem:[%s2 + $0xe8] sm:$0xff]
    %v430 = vld [vmem:[%s2 + $0xf0] sm:$0xff]
    %v431 = vld [vmem:[%s2 + $0xf8] sm:$0xff]
    %v432 = vld [vmem:[%s2 + $0x100] sm:$0xff]
    %v433 = vld [vmem:[%s2 + $0x108] sm:$0xff]
    %v434 = vld [vmem:[%s2 + $0x110] sm:$0xff]
    %v435 = vld [vmem:[%s2 + $0x118] sm:$0xff]
    %v436 = vld [vmem:[%s2 + $0x120] sm:$0xff]
    %v437 = vld [vmem:[%s2 + $0x128] sm:$0xff]
    %v438 = vld [vmem:[%s2 + $0x130] sm:$0xff]
    %v439 = vld [vmem:[%s2 + $0x138] sm:$0xff]
    %v440 = vld [vmem:[%s2 + $0x140] sm:$0xff]
    %v441 = vld [vmem:[%s2 + $0x148] sm:$0xff]
    %v442 = vld [vmem:[%s2 + $0x150] sm:$0xff]
    %v443 = vld [vmem:[%s2 + $0x158] sm:$0xff]
    %v444 = vld [vmem:[%s2 + $0x160] sm:$0xff]
    %v445 = vld [vmem:[%s2 + $0x168] sm:$0xff]
    %v446 = vld [vmem:[%s2 + $0x170] sm:$0xff]
    %v447 = vld [vmem:[%s2 + $0x178] sm:$0xff]
    %v448 = vld [vmem:[%s2 + $0x180] sm:$0xff]
    %v449 = vld [vmem:[%s2 + $0x188] sm:$0xff]
    %v450 = vld [vmem:[%s2 + $0x190] sm:$0xff]
    %v451 = vld [vmem:[%s2 + $0x198] sm:$0xff]
    %v452 = vld [vmem:[%s2 + $0x1a0] sm:$0xff]
    %v453 = vld [vmem:[%s2 + $0x1a8] sm:$0xff]
    %v454 = vld [vmem:[%s2 + $0x1b0] sm:$0xff]
    %v455 = vld [vmem:[%s2 + $0x1b8] sm:$0xff]
    %v456 = vld [vmem:[%s2 + $0x1c0] sm:$0xff]
    %v457 = vld [vmem:[%s2 + $0x1c8] sm:$0xff]
    %v458 = vld [vmem:[%s2 + $0x1d0] sm:$0xff]
    %v459 = vld [vmem:[%s2 + $0x1d8] sm:$0xff]
    %v460 = vld [vmem:[%s2 + $0x1e0] sm:$0xff]
    %v461 = vld [vmem:[%s2 + $0x1e8] sm:$0xff]
    %v462 = vld [vmem:[%s2 + $0x1f0] sm:$0xff]
    %v463 = vld [vmem:[%s2 + $0x1f8] sm:$0xff]
    %464 = vmatprep.subr.mxu0 0.0
    %465 = vmatpush1.msra.mxu0 %v400
    %466 = vmatprep.subr.mxu0 0.0
    %467 = vmatpush1.msra.mxu0 %v401
    %468 = vmatprep.subr.mxu0 0.0
    %469 = vmatpush1.msra.mxu0 %v402
    %470 = vmatprep.subr.mxu0 0.0
    %471 = vmatpush1.msra.mxu0 %v403
    %472 = vmatprep.subr.mxu0 0.0
    %473 = vmatpush1.msra.mxu0 %v404
    %474 = vmatprep.subr.mxu0 0.0
    %475 = vmatpush1.msra.mxu0 %v405
    %476 = vmatprep.subr.mxu0 0.0
    %477 = vmatpush1.msra.mxu0 %v406
    %478 = vmatprep.subr.mxu0 0.0
    %479 = vmatpush1.msra.mxu0 %v407
    %480 = vmatprep.subr.mxu0 0.0
    %481 = vmatpush1.msra.mxu0 %v408
    %482 = vmatprep.subr.mxu0 0.0
    %483 = vmatpush1.msra.mxu0 %v409
    %484 = vmatprep.subr.mxu0 0.0
    %485 = vmatpush1.msra.mxu0 %v410
    %486 = vmatprep.subr.mxu0 0.0
    %487 = vmatpush1.msra.mxu0 %v411
    %488 = vmatprep.subr.mxu0 0.0
    %489 = vmatpush1.msra.mxu0 %v412
    %490 = vmatprep.subr.mxu0 0.0
    %491 = vmatpush1.msra.mxu0 %v413
    %492 = vmatprep.subr.mxu0 0.0
    %493 = vmatpush1.msra.mxu0 %v414
    %494 = vmatprep.subr.mxu0 0.0
    %495 = vmatpush1.msra.mxu0 %v415
    %496 = vmatprep.subr.mxu0 0.0
    %497 = vmatpush1.msra.mxu0 %v416
    %498 = vmatprep.subr.mxu0 0.0
    %499 = vmatpush1.msra.mxu0 %v417
    %500 = vmatprep.subr.mxu0 0.0
    %501 = vmatpush1.msra.mxu0 %v418
    %502 = vmatprep.subr.mxu0 0.0
    %503 = vmatpush1.msra.mxu0 %v419
    %504 = vmatprep.subr.mxu0 0.0
    %505 = vmatpush1.msra.mxu0 %v420
    %506 = vmatprep.subr.mxu0 0.0
    %507 = vmatpush1.msra.mxu0 %v421
    %508 = vmatprep.subr.mxu0 0.0
    %509 = vmatpush1.msra.mxu0 %v422
    %510 = vmatprep.subr.mxu0 0.0
    %511 = vmatpush1.msra.mxu0 %v423
    %512 = vmatprep.subr.mxu0 0.0
    %513 = vmatpush1.msra.mxu0 %v424
    %514 = vmatprep.subr.mxu0 0.0
    %515 = vmatpush1.msra.mxu0 %v425
    %516 = vmatprep.subr.mxu0 0.0
    %517 = vmatpush1.msra.mxu0 %v426
    %518 = vmatprep.subr.mxu0 0.0
    %519 = vmatpush1.msra.mxu0 %v427
    %520 = vmatprep.subr.mxu0 0.0
    %521 = vmatpush1.msra.mxu0 %v428
    %522 = vmatprep.subr.mxu0 0.0
    %523 = vmatpush1.msra.mxu0 %v429
    %524 = vmatprep.subr.mxu0 0.0
    %525 = vmatpush1.msra.mxu0 %v430
    %526 = vmatprep.subr.mxu0 0.0
    %527 = vmatpush1.msra.mxu0 %v431
    %528 = vmatprep.mubr.f32.mxu0 %v397
    %529 = vmatmul.mubr.f32.gmra.mrb[0].mxu0 %v396
    %v530 = vpop.f32.mrb[0].mxu0
    %v531 = vadd.f32 0.0, %v530
    %v532 = vpop.f32.mrb[0].mxu0
    %533 = vdwg.mxu0
    %534 = vmatprep.subr.mxu0 0.0
    %535 = vmatpush1.msra.mxu0 %v432
    %536 = vmatprep.subr.mxu0 0.0
    %537 = vmatpush1.msra.mxu0 %v433
    %538 = vmatprep.subr.mxu0 0.0
    %539 = vmatpush1.msra.mxu0 %v434
    %540 = vmatprep.subr.mxu0 0.0
    %541 = vmatpush1.msra.mxu0 %v435
    %542 = vmatprep.subr.mxu0 0.0
    %543 = vmatpush1.msra.mxu0 %v436
    %544 = vmatprep.subr.mxu0 0.0
    %545 = vmatpush1.msra.mxu0 %v437
    %546 = vmatprep.subr.mxu0 0.0
    %547 = vmatpush1.msra.mxu0 %v438
    %548 = vmatprep.subr.mxu0 0.0
    %549 = vmatpush1.msra.mxu0 %v439
    %550 = vmatprep.subr.mxu0 0.0
    %551 = vmatpush1.msra.mxu0 %v440
    %552 = vmatprep.subr.mxu0 0.0
    %553 = vmatpush1.msra.mxu0 %v441
    %554 = vmatprep.subr.mxu0 0.0
    %555 = vmatpush1.msra.mxu0 %v442
    %556 = vmatprep.subr.mxu0 0.0
    %557 = vmatpush1.msra.mxu0 %v443
    %558 = vmatprep.subr.mxu0 0.0
    %559 = vmatpush1.msra.mxu0 %v444
    %560 = vmatprep.subr.mxu0 0.0
    %561 = vmatpush1.msra.mxu0 %v445
    %562 = vmatprep.subr.mxu0 0.0
    %563 = vmatpush1.msra.mxu0 %v446
    %564 = vmatprep.subr.mxu0 0.0
    %565 = vmatpush1.msra.mxu0 %v447
    %566 = vmatprep.subr.mxu0 0.0
    %567 = vmatpush1.msra.mxu0 %v448
    %568 = vmatprep.subr.mxu0 0.0
    %569 = vmatpush1.msra.mxu0 %v449
    %570 = vmatprep.subr.mxu0 0.0
    %571 = vmatpush1.msra.mxu0 %v450
    %572 = vmatprep.subr.mxu0 0.0
    %573 = vmatpush1.msra.mxu0 %v451
    %574 = vmatprep.subr.mxu0 0.0
    %575 = vmatpush1.msra.mxu0 %v452
    %576 = vmatprep.subr.mxu0 0.0
    %577 = vmatpush1.msra.mxu0 %v453
    %578 = vmatprep.subr.mxu0 0.0
    %579 = vmatpush1.msra.mxu0 %v454
    %580 = vmatprep.subr.mxu0 0.0
    %581 = vmatpush1.msra.mxu0 %v455
    %582 = vmatprep.subr.mxu0 0.0
    %583 = vmatpush1.msra.mxu0 %v456
    %584 = vmatprep.subr.mxu0 0.0
    %585 = vmatpush1.msra.mxu0 %v457
    %586 = vmatprep.subr.mxu0 0.0
    %587 = vmatpush1.msra.mxu0 %v458
    %588 = vmatprep.subr.mxu0 0.0
    %589 = vmatpush1.msra.mxu0 %v459
    %590 = vmatprep.subr.mxu0 0.0
    %591 = vmatpush1.msra.mxu0 %v460
    %592 = vmatprep.subr.mxu0 0.0
    %593 = vmatpush1.msra.mxu0 %v461
    %594 = vmatprep.subr.mxu0 0.0
    %595 = vmatpush1.msra.mxu0 %v462
    %596 = vmatprep.subr.mxu0 0.0
    %597 = vmatpush1.msra.mxu0 %v463
    %598 = vmatprep.mubr.f32.mxu0 %v399
    %599 = vmatmul.mubr.f32.gmra.mrb[0].mxu0 %v398
    %v600 = vpop.f32.mrb[0].mxu0
    %v601 = vadd.f32 %v531, %v600
    %v602 = vpop.f32.mrb[0].mxu0
    %603 = vdwg.mxu0
    %v604 = vmul.f32 %v601, 0.03125
    %v605 = vmul.f32 %v604, %v604
    %v607 = vrot.slane %v605, 7
    %v609 = vsub.f32 %v604, %v607
    %v610 = vld [vmem:[%s4] sm:$0x1]
    %v611 = vadd.f32 %v609, 1e-05
    %v612 = vrsqrt.pop %v611
    %v614 = vrot.slane %v612, 1
    %v616 = vmul.f32 %v610, %v614
    %v617 = vld [vmem:[%s4 + $0x1] sm:$0x1]
    %v618 = vmul.f32 %v604, %v616
    %v619 = vsub.f32 %v617, %v618
    %v621 = vrot.slane %v619, 7
    %v623 = vsel %vm395, %v616, %v621
    %v624 = vld [vmem:[%s3] sm:$0xff]
    %v625 = vld [vmem:[%s3 + $0x8] sm:$0xff]
    %v626 = vld [vmem:[%s3 + $0x10] sm:$0xff]
    %v627 = vld [vmem:[%s3 + $0x18] sm:$0xff]
    %v628 = vld [vmem:[%s3 + $0x20] sm:$0xff]
    %v629 = vld [vmem:[%s3 + $0x28] sm:$0xff]
    %v630 = vld [vmem:[%s3 + $0x30] sm:$0xff]
    %v631 = vld [vmem:[%s3 + $0x38] sm:$0xff]
    %v632 = vld [vmem:[%s3 + $0x40] sm:$0xff]
    %v633 = vld [vmem:[%s3 + $0x48] sm:$0xff]
    %v634 = vld [vmem:[%s3 + $0x50] sm:$0xff]
    %v635 = vld [vmem:[%s3 + $0x58] sm:$0xff]
    %v636 = vld [vmem:[%s3 + $0x60] sm:$0xff]
    %v637 = vld [vmem:[%s3 + $0x68] sm:$0xff]
    %v638 = vld [vmem:[%s3 + $0x70] sm:$0xff]
    %v639 = vld [vmem:[%s3 + $0x78] sm:$0xff]
    %vm640 = vcmask 261120
    %v642 = vsel %vm640, %v623, 0
    %644 = vmatprep.subr.mxu0 %v625
    %645 = vmatpush1.msra.mxu0 %v624
    %646 = vmatprep.subr.mxu0 %v629
    %647 = vmatpush1.msra.mxu0 %v628
    %648 = vmatprep.subr.mxu0 %v633
    %649 = vmatpush1.msra.mxu0 %v632
    %650 = vmatprep.subr.mxu0 %v637
    %651 = vmatpush1.msra.mxu0 %v636
    %652 = vmatprep.subr.mxu0 0.0
    %653 = vmatpush1.msra.mxu0 0.0
    %654 = vmatprep.subr.mxu0 0.0
    %655 = vmatpush1.msra.mxu0 0.0
    %656 = vmatprep.subr.mxu0 0.0
    %657 = vmatpush1.msra.mxu0 0.0
    %658 = vmatprep.subr.mxu0 0.0
    %659 = vmatpush1.msra.mxu0 0.0
    %660 = vmatprep.subr.mxu0 0.0
    %661 = vmatpush1.msra.mxu0 0.0
    %662 = vmatprep.subr.mxu0 0.0
    %663 = vmatpush1.msra.mxu0 0.0
    %664 = vmatprep.subr.mxu0 0.0
    %665 = vmatpush1.msra.mxu0 0.0
    %666 = vmatprep.subr.mxu0 0.0
    %667 = vmatpush1.msra.mxu0 0.0
    %668 = vmatprep.subr.mxu0 0.0
    %669 = vmatpush1.msra.mxu0 0.0
    %670 = vmatprep.subr.mxu0 0.0
    %671 = vmatpush1.msra.mxu0 0.0
    %672 = vmatprep.subr.mxu0 0.0
    %673 = vmatpush1.msra.mxu0 0.0
    %674 = vmatprep.subr.mxu0 0.0
    %675 = vmatpush1.msra.mxu0 0.0
    %676 = vmatprep.subr.mxu0 0.0
    %677 = vmatpush1.msra.mxu0 0.0
    %678 = vmatprep.subr.mxu0 0.0
    %679 = vmatpush1.msra.mxu0 0.0
    %680 = vmatprep.subr.mxu0 0.0
    %681 = vmatpush1.msra.mxu0 0.0
    %682 = vmatprep.subr.mxu0 0.0
    %683 = vmatpush1.msra.mxu0 0.0
    %684 = vmatprep.subr.mxu0 0.0
    %685 = vmatpush1.msra.mxu0 0.0
    %686 = vmatprep.subr.mxu0 0.0
    %687 = vmatpush1.msra.mxu0 0.0
    %688 = vmatprep.subr.mxu0 0.0
    %689 = vmatpush1.msra.mxu0 0.0
    %690 = vmatprep.subr.mxu0 0.0
    %691 = vmatpush1.msra.mxu0 0.0
    %692 = vmatprep.subr.mxu0 0.0
    %693 = vmatpush1.msra.mxu0 0.0
    %694 = vmatprep.subr.mxu0 0.0
    %695 = vmatpush1.msra.mxu0 0.0
    %696 = vmatprep.subr.mxu0 0.0
    %697 = vmatpush1.msra.mxu0 0.0
    %698 = vmatprep.subr.mxu0 0.0
    %699 = vmatpush1.msra.mxu0 0.0
    %700 = vmatprep.subr.mxu0 0.0
    %701 = vmatpush1.msra.mxu0 0.0
    %702 = vmatprep.subr.mxu0 0.0
    %703 = vmatpush1.msra.mxu0 0.0
    %704 = vmatprep.subr.mxu0 0.0
    %705 = vmatpush1.msra.mxu0 0.0
    %706 = vmatprep.subr.mxu0 0.0
    %707 = vmatpush1.msra.mxu0 0.0
    %708 = vmatprep.mubr.f32.mxu0 0.0
    %709 = vmatmul.mubr.f32.gmra.mrb[0].mxu0 %v642
    %v710 = vpop.f32.mrb[0].mxu0
    %v711 = vadd.f32 0.0, %v710
    %v712 = vpop.f32.mrb[0].mxu0
    %v713 = vadd.f32 0.0, %v712
    %714 = vdwg.mxu0
    %715 = vmatprep.subr.mxu0 %v627
    %716 = vmatpush1.msra.mxu0 %v626
    %717 = vmatprep.subr.mxu0 %v631
    %718 = vmatpush1.msra.mxu0 %v630
    %719 = vmatprep.subr.mxu0 %v635
    %720 = vmatpush1.msra.mxu0 %v634
    %721 = vmatprep.subr.mxu0 %v639
    %722 = vmatpush1.msra.mxu0 %v638
    %723 = vmatprep.subr.mxu0 0.0
    %724 = vmatpush1.msra.mxu0 0.0
    %725 = vmatprep.subr.mxu0 0.0
    %726 = vmatpush1.msra.mxu0 0.0
    %727 = vmatprep.subr.mxu0 0.0
    %728 = vmatpush1.msra.mxu0 0.0
    %729 = vmatprep.subr.mxu0 0.0
    %730 = vmatpush1.msra.mxu0 0.0
    %731 = vmatprep.subr.mxu0 0.0
    %732 = vmatpush1.msra.mxu0 0.0
    %733 = vmatprep.subr.mxu0 0.0
    %734 = vmatpush1.msra.mxu0 0.0
    %735 = vmatprep.subr.mxu0 0.0
    %736 = vmatpush1.msra.mxu0 0.0
    %737 = vmatprep.subr.mxu0 0.0
    %738 = vmatpush1.msra.mxu0 0.0
    %739 = vmatprep.subr.mxu0 0.0
    %740 = vmatpush1.msra.mxu0 0.0
    %741 = vmatprep.subr.mxu0 0.0
    %742 = vmatpush1.msra.mxu0 0.0
    %743 = vmatprep.subr.mxu0 0.0
    %744 = vmatpush1.msra.mxu0 0.0
    %745 = vmatprep.subr.mxu0 0.0
    %746 = vmatpush1.msra.mxu0 0.0
    %747 = vmatprep.subr.mxu0 0.0
    %748 = vmatpush1.msra.mxu0 0.0
    %749 = vmatprep.subr.mxu0 0.0
    %750 = vmatpush1.msra.mxu0 0.0
    %751 = vmatprep.subr.mxu0 0.0
    %752 = vmatpush1.msra.mxu0 0.0
    %753 = vmatprep.subr.mxu0 0.0
    %754 = vmatpush1.msra.mxu0 0.0
    %755 = vmatprep.subr.mxu0 0.0
    %756 = vmatpush1.msra.mxu0 0.0
    %757 = vmatprep.subr.mxu0 0.0
    %758 = vmatpush1.msra.mxu0 0.0
    %759 = vmatprep.subr.mxu0 0.0
    %760 = vmatpush1.msra.mxu0 0.0
    %761 = vmatprep.subr.mxu0 0.0
    %762 = vmatpush1.msra.mxu0 0.0
    %763 = vmatprep.subr.mxu0 0.0
    %764 = vmatpush1.msra.mxu0 0.0
    %765 = vmatprep.subr.mxu0 0.0
    %766 = vmatpush1.msra.mxu0 0.0
    %767 = vmatprep.subr.mxu0 0.0
    %768 = vmatpush1.msra.mxu0 0.0
    %769 = vmatprep.subr.mxu0 0.0
    %770 = vmatpush1.msra.mxu0 0.0
    %771 = vmatprep.subr.mxu0 0.0
    %772 = vmatpush1.msra.mxu0 0.0
    %773 = vmatprep.subr.mxu0 0.0
    %774 = vmatpush1.msra.mxu0 0.0
    %775 = vmatprep.subr.mxu0 0.0
    %776 = vmatpush1.msra.mxu0 0.0
    %777 = vmatprep.subr.mxu0 0.0
    %778 = vmatpush1.msra.mxu0 0.0
    %779 = vmatprep.mubr.f32.mxu0 0.0
    %780 = vmatmul.mubr.f32.gmra.mrb[0].mxu0 %v642
    %v781 = vpop.f32.mrb[0].mxu0
    %v782 = vadd.f32 0.0, %v781
    %v783 = vpop.f32.mrb[0].mxu0
    %v784 = vadd.f32 0.0, %v783
    %785 = vdwg.mxu0
    %v786 = vlaneseq
    %v787 = vshrl.u32 %v786, 7
    %v788 = vsub.s32 0, %v787
    %v789 = vrot.slane %v711, %v788
    %v790 = vlaneseq
    %v791 = vshrl.u32 %v790, 7
    %v792 = vsub.s32 0, %v791
    %v793 = vrot.slane %v713, %v792
    %v794 = vlaneseq
    %v795 = vshrl.u32 %v794, 7
    %v796 = vsub.s32 0, %v795
    %v797 = vrot.slane %v782, %v796
    %v798 = vlaneseq
    %v799 = vshrl.u32 %v798, 7
    %v800 = vsub.s32 0, %v799
    %v801 = vrot.slane %v784, %v800
    %v802 = vmul.f32 %v259, %v789
    %v803 = vmul.f32 %v261, %v793
    %v804 = vmul.f32 %v330, %v797
    %v805 = vmul.f32 %v332, %v801
    %v806 = vlaneseq
    %v807 = vshrl.u32 %v806, 7
    %v808 = vsub.s32 1, %v807
    %v809 = vrot.slane %v711, %v808
    %v810 = vlaneseq
    %v811 = vshrl.u32 %v810, 7
    %v812 = vsub.s32 1, %v811
    %v813 = vrot.slane %v713, %v812
    %v814 = vlaneseq
    %v815 = vshrl.u32 %v814, 7
    %v816 = vsub.s32 1, %v815
    %v817 = vrot.slane %v782, %v816
    %v818 = vlaneseq
    %v819 = vshrl.u32 %v818, 7
    %v820 = vsub.s32 1, %v819
    %v821 = vrot.slane %v784, %v820
    %v822 = vadd.f32 %v802, %v809
    %v823 = vadd.f32 %v803, %v813
    %v824 = vadd.f32 %v804, %v817
    %v825 = vadd.f32 %v805, %v821
    %v826 = vmax.f32 %v822, 0.0
    %v827 = vmax.f32 %v823, 0.0
    %v828 = vmax.f32 %v824, 0.0
    %v829 = vmax.f32 %v825, 0.0
    %v831 = vrot.slane %v827, 6
    %v834 = vrot.slane %v828, 4
    %v837 = vrot.slane %v829, 2
    %v839 = vsel %vm334, %v826, %v831
    %vm840 = vcmask 1043456
    %v841 = vsel %vm840, %v839, %v834
    %vm842 = vcmask 1045504
    %v843 = vsel %vm842, %v841, %v837
    %v844 = vld [vmem:[%s5] sm:$0xff]
    %v845 = vld [vmem:[%s5 + $0x8] sm:$0xf]
    %vm846 = vcmask 64512
    %v848 = vsel %vm846, %v844, 0
    %v851 = vsel %vm846, %v845, 0
    %853 = vmatprep.subr.mxu0 0.0
    %854 = vmatpush1.msra.mxu0 %v843
    %855 = vmatprep.subr.mxu0 0.0
    %856 = vmatpush1.msra.mxu0 0.0
    %857 = vmatprep.subr.mxu0 0.0
    %858 = vmatpush1.msra.mxu0 0.0
    %859 = vmatprep.subr.mxu0 0.0
    %860 = vmatpush1.msra.mxu0 0.0
    %861 = vmatprep.subr.mxu0 0.0
    %862 = vmatpush1.msra.mxu0 0.0
    %863 = vmatprep.subr.mxu0 0.0
    %864 = vmatpush1.msra.mxu0 0.0
    %865 = vmatprep.subr.mxu0 0.0
    %866 = vmatpush1.msra.mxu0 0.0
    %867 = vmatprep.subr.mxu0 0.0
    %868 = vmatpush1.msra.mxu0 0.0
    %869 = vmatprep.subr.mxu0 0.0
    %870 = vmatpush1.msra.mxu0 0.0
    %871 = vmatprep.subr.mxu0 0.0
    %872 = vmatpush1.msra.mxu0 0.0
    %873 = vmatprep.subr.mxu0 0.0
    %874 = vmatpush1.msra.mxu0 0.0
    %875 = vmatprep.subr.mxu0 0.0
    %876 = vmatpush1.msra.mxu0 0.0
    %877 = vmatprep.subr.mxu0 0.0
    %878 = vmatpush1.msra.mxu0 0.0
    %879 = vmatprep.subr.mxu0 0.0
    %880 = vmatpush1.msra.mxu0 0.0
    %881 = vmatprep.subr.mxu0 0.0
    %882 = vmatpush1.msra.mxu0 0.0
    %883 = vmatprep.subr.mxu0 0.0
    %884 = vmatpush1.msra.mxu0 0.0
    %885 = vmatprep.subr.mxu0 0.0
    %886 = vmatpush1.msra.mxu0 0.0
    %887 = vmatprep.subr.mxu0 0.0
    %888 = vmatpush1.msra.mxu0 0.0
    %889 = vmatprep.subr.mxu0 0.0
    %890 = vmatpush1.msra.mxu0 0.0
    %891 = vmatprep.subr.mxu0 0.0
    %892 = vmatpush1.msra.mxu0 0.0
    %893 = vmatprep.subr.mxu0 0.0
    %894 = vmatpush1.msra.mxu0 0.0
    %895 = vmatprep.subr.mxu0 0.0
    %896 = vmatpush1.msra.mxu0 0.0
    %897 = vmatprep.subr.mxu0 0.0
    %898 = vmatpush1.msra.mxu0 0.0
    %899 = vmatprep.subr.mxu0 0.0
    %900 = vmatpush1.msra.mxu0 0.0
    %901 = vmatprep.subr.mxu0 0.0
    %902 = vmatpush1.msra.mxu0 0.0
    %903 = vmatprep.subr.mxu0 0.0
    %904 = vmatpush1.msra.mxu0 0.0
    %905 = vmatprep.subr.mxu0 0.0
    %906 = vmatpush1.msra.mxu0 0.0
    %907 = vmatprep.subr.mxu0 0.0
    %908 = vmatpush1.msra.mxu0 0.0
    %909 = vmatprep.subr.mxu0 0.0
    %910 = vmatpush1.msra.mxu0 0.0
    %911 = vmatprep.subr.mxu0 0.0
    %912 = vmatpush1.msra.mxu0 0.0
    %913 = vmatprep.subr.mxu0 0.0
    %914 = vmatpush1.msra.mxu0 0.0
    %915 = vmatprep.subr.mxu0 0.0
    %916 = vmatpush1.msra.mxu0 0.0
    %917 = vmatprep.mubr.f32.mxu0 0.0
    %918 = vmatmul.mubr.f32.gmra.mrb[0].mxu0 %v848
    %v919 = vpop.f32.mrb[0].mxu0
    %v920 = vadd.f32 0.0, %v919
    %v921 = vpop.f32.mrb[0].mxu0
    %922 = vmatprep.mubr.f32.mxu0 0.0
    %923 = vmatmul.mubr.f32.gmra.mrb[0].mxu0 %v851
    %v924 = vpop.f32.mrb[0].mxu0
    %v925 = vadd.f32 0.0, %v924
    %v926 = vpop.f32.mrb[0].mxu0
    %927 = vdwg.mxu0
    %vm930 = vcmask 1046528
    %v931 = vrot.slane %v920, 1
    %v932 = vrot.slane %v925, 1
    %v933 = vsel %vm930, %v931, %v932
    %v936 = vrot.slane %v920, 2
    %v937 = vrot.slane %v925, 2
    %v938 = vsel %vm842, %v936, %v937
    %v941 = vpack.c.bf16 %v925, %v920
    %v942 = vpack.c.bf16 %v932, %v933
    %v943 = vpack.c.bf16 %v937, %v938
    %v944 = vld [vmem:[%s6] sm:$0xff]
    %v945 = vld [vmem:[%s6 + $0x8] sm:$0xff]
    %v946 = vld [vmem:[%s6 + $0x10] sm:$0xff]
    %v947 = vld [vmem:[%s6 + $0x18] sm:$0xff]
    %v948 = vld [vmem:[%s6 + $0x20] sm:$0xff]
    %v949 = vld [vmem:[%s6 + $0x28] sm:$0xff]
    %v950 = vld [vmem:[%s6 + $0x30] sm:$0xff]
    %v951 = vld [vmem:[%s6 + $0x38] sm:$0xff]
    %v952 = vld [vmem:[%s6 + $0x40] sm:$0xff]
    %v953 = vld [vmem:[%s6 + $0x48] sm:$0xff]
    %v954 = vld [vmem:[%s6 + $0x50] sm:$0xff]
    %v955 = vld [vmem:[%s6 + $0x58] sm:$0xff]
    %v956 = vld [vmem:[%s6 + $0x60] sm:$0xff]
    %v957 = vld [vmem:[%s6 + $0x68] sm:$0xff]
    %v958 = vld [vmem:[%s6 + $0x70] sm:$0xff]
    %v959 = vld [vmem:[%s6 + $0x78] sm:$0xff]
    %v960 = vld [vmem:[%s6 + $0x80] sm:$0xff]
    %v961 = vld [vmem:[%s6 + $0x88] sm:$0xff]
    %v962 = vld [vmem:[%s6 + $0x90] sm:$0xff]
    %v963 = vld [vmem:[%s6 + $0x98] sm:$0xff]
    %v964 = vld [vmem:[%s6 + $0xa0] sm:$0xff]
    %v965 = vld [vmem:[%s6 + $0xa8] sm:$0xff]
    %v966 = vld [vmem:[%s6 + $0xb0] sm:$0xff]
    %v967 = vld [vmem:[%s6 + $0xb8] sm:$0xff]
    %v968 = vld [vmem:[%s6 + $0xc0] sm:$0xff]
    %v969 = vld [vmem:[%s6 + $0xc8] sm:$0xff]
    %v970 = vld [vmem:[%s6 + $0xd0] sm:$0xff]
    %v971 = vld [vmem:[%s6 + $0xd8] sm:$0xff]
    %v972 = vld [vmem:[%s6 + $0xe0] sm:$0xff]
    %v973 = vld [vmem:[%s6 + $0xe8] sm:$0xff]
    %v974 = vld [vmem:[%s6 + $0xf0] sm:$0xff]
    %v975 = vld [vmem:[%s6 + $0xf8] sm:$0xff]
    %v976 = vld [vmem:[%s6 + $0x100] sm:$0xff]
    %v977 = vld [vmem:[%s6 + $0x108] sm:$0xff]
    %v978 = vld [vmem:[%s6 + $0x110] sm:$0xff]
    %v979 = vld [vmem:[%s6 + $0x118] sm:$0xff]
    %v980 = vld [vmem:[%s6 + $0x120] sm:$0xff]
    %v981 = vld [vmem:[%s6 + $0x128] sm:$0xff]
    %v982 = vld [vmem:[%s6 + $0x130] sm:$0xff]
    %v983 = vld [vmem:[%s6 + $0x138] sm:$0xff]
    %v984 = vld [vmem:[%s6 + $0x140] sm:$0xff]
    %v985 = vld [vmem:[%s6 + $0x148] sm:$0xff]
    %v986 = vld [vmem:[%s6 + $0x150] sm:$0xff]
    %v987 = vld [vmem:[%s6 + $0x158] sm:$0xff]
    %v988 = vld [vmem:[%s6 + $0x160] sm:$0xff]
    %v989 = vld [vmem:[%s6 + $0x168] sm:$0xff]
    %v990 = vld [vmem:[%s6 + $0x170] sm:$0xff]
    %v991 = vld [vmem:[%s6 + $0x178] sm:$0xff]
    %v1040 = vunpack.c.l.b16 %v944
    %v1041 = vunpack.c.h.b16 %v944
    %v1042 = vunpack.c.l.b16 %v945
    %v1043 = vunpack.c.h.b16 %v945
    %v1044 = vunpack.c.l.b16 %v946
    %v1045 = vunpack.c.h.b16 %v946
    %v1046 = vunpack.c.l.b16 %v947
    %v1047 = vunpack.c.h.b16 %v947
    %v1048 = vunpack.c.l.b16 %v948
    %v1049 = vunpack.c.h.b16 %v948
    %v1050 = vunpack.c.l.b16 %v949
    %v1051 = vunpack.c.h.b16 %v949
    %v1052 = vunpack.c.l.b16 %v950
    %v1053 = vunpack.c.h.b16 %v950
    %v1054 = vunpack.c.l.b16 %v951
    %v1055 = vunpack.c.h.b16 %v951
    %v1056 = vunpack.c.l.b16 %v952
    %v1057 = vunpack.c.h.b16 %v952
    %v1058 = vunpack.c.l.b16 %v953
    %v1059 = vunpack.c.h.b16 %v953
    %v1060 = vunpack.c.l.b16 %v954
    %v1061 = vunpack.c.h.b16 %v954
    %v1062 = vunpack.c.l.b16 %v955
    %v1063 = vunpack.c.h.b16 %v955
    %v1064 = vunpack.c.l.b16 %v956
    %v1065 = vunpack.c.h.b16 %v956
    %v1066 = vunpack.c.l.b16 %v957
    %v1067 = vunpack.c.h.b16 %v957
    %v1068 = vunpack.c.l.b16 %v958
    %v1069 = vunpack.c.h.b16 %v958
    %v1070 = vunpack.c.l.b16 %v959
    %v1071 = vunpack.c.h.b16 %v959
    %v1072 = vunpack.c.l.b16 %v960
    %v1073 = vunpack.c.h.b16 %v960
    %v1074 = vunpack.c.l.b16 %v961
    %v1075 = vunpack.c.h.b16 %v961
    %v1076 = vunpack.c.l.b16 %v962
    %v1077 = vunpack.c.h.b16 %v962
    %v1078 = vunpack.c.l.b16 %v963
    %v1079 = vunpack.c.h.b16 %v963
    %v1080 = vunpack.c.l.b16 %v964
    %v1081 = vunpack.c.h.b16 %v964
    %v1082 = vunpack.c.l.b16 %v965
    %v1083 = vunpack.c.h.b16 %v965
    %v1084 = vunpack.c.l.b16 %v966
    %v1085 = vunpack.c.h.b16 %v966
    %v1086 = vunpack.c.l.b16 %v967
    %v1087 = vunpack.c.h.b16 %v967
    %v1088 = vunpack.c.l.b16 %v968
    %v1089 = vunpack.c.h.b16 %v968
    %v1090 = vunpack.c.l.b16 %v969
    %v1091 = vunpack.c.h.b16 %v969
    %v1092 = vunpack.c.l.b16 %v970
    %v1093 = vunpack.c.h.b16 %v970
    %v1094 = vunpack.c.l.b16 %v971
    %v1095 = vunpack.c.h.b16 %v971
    %v1096 = vunpack.c.l.b16 %v972
    %v1097 = vunpack.c.h.b16 %v972
    %v1098 = vunpack.c.l.b16 %v973
    %v1099 = vunpack.c.h.b16 %v973
    %v1100 = vunpack.c.l.b16 %v974
    %v1101 = vunpack.c.h.b16 %v974
    %v1102 = vunpack.c.l.b16 %v975
    %v1103 = vunpack.c.h.b16 %v975
    %v1104 = vunpack.c.l.b16 %v976
    %v1105 = vunpack.c.h.b16 %v976
    %v1106 = vunpack.c.l.b16 %v977
    %v1107 = vunpack.c.h.b16 %v977
    %v1108 = vunpack.c.l.b16 %v978
    %v1109 = vunpack.c.h.b16 %v978
    %v1110 = vunpack.c.l.b16 %v979
    %v1111 = vunpack.c.h.b16 %v979
    %v1112 = vunpack.c.l.b16 %v980
    %v1113 = vunpack.c.h.b16 %v980
    %v1114 = vunpack.c.l.b16 %v981
    %v1115 = vunpack.c.h.b16 %v981
    %v1116 = vunpack.c.l.b16 %v982
    %v1117 = vunpack.c.h.b16 %v982
    %v1118 = vunpack.c.l.b16 %v983
    %v1119 = vunpack.c.h.b16 %v983
    %v1120 = vunpack.c.l.b16 %v984
    %v1121 = vunpack.c.h.b16 %v984
    %v1122 = vunpack.c.l.b16 %v985
    %v1123 = vunpack.c.h.b16 %v985
    %v1124 = vunpack.c.l.b16 %v986
    %v1125 = vunpack.c.h.b16 %v986
    %v1126 = vunpack.c.l.b16 %v987
    %v1127 = vunpack.c.h.b16 %v987
    %v1128 = vunpack.c.l.b16 %v988
    %v1129 = vunpack.c.h.b16 %v988
    %v1130 = vunpack.c.l.b16 %v989
    %v1131 = vunpack.c.h.b16 %v989
    %v1132 = vunpack.c.l.b16 %v990
    %v1133 = vunpack.c.h.b16 %v990
    %v1134 = vunpack.c.l.b16 %v991
    %v1135 = vunpack.c.h.b16 %v991
    %v1136 = vpack.c.b16 %v1042, %v1040
    %v1137 = vpack.c.b16 %v1043, %v1041
    %v1138 = vpack.c.b16 %v1046, %v1044
    %v1139 = vpack.c.b16 %v1047, %v1045
    %v1140 = vpack.c.b16 %v1050, %v1048
    %v1141 = vpack.c.b16 %v1051, %v1049
    %v1142 = vpack.c.b16 %v1054, %v1052
    %v1143 = vpack.c.b16 %v1055, %v1053
    %v1144 = vpack.c.b16 %v1058, %v1056
    %v1145 = vpack.c.b16 %v1059, %v1057
    %v1146 = vpack.c.b16 %v1062, %v1060
    %v1147 = vpack.c.b16 %v1063, %v1061
    %v1148 = vpack.c.b16 %v1066, %v1064
    %v1149 = vpack.c.b16 %v1067, %v1065
    %v1150 = vpack.c.b16 %v1070, %v1068
    %v1151 = vpack.c.b16 %v1071, %v1069
    %v1152 = vpack.c.b16 %v1074, %v1072
    %v1153 = vpack.c.b16 %v1075, %v1073
    %v1154 = vpack.c.b16 %v1078, %v1076
    %v1155 = vpack.c.b16 %v1079, %v1077
    %v1156 = vpack.c.b16 %v1082, %v1080
    %v1157 = vpack.c.b16 %v1083, %v1081
    %v1158 = vpack.c.b16 %v1086, %v1084
    %v1159 = vpack.c.b16 %v1087, %v1085
    %v1160 = vpack.c.b16 %v1090, %v1088
    %v1161 = vpack.c.b16 %v1091, %v1089
    %v1162 = vpack.c.b16 %v1094, %v1092
    %v1163 = vpack.c.b16 %v1095, %v1093
    %v1164 = vpack.c.b16 %v1098, %v1096
    %v1165 = vpack.c.b16 %v1099, %v1097
    %v1166 = vpack.c.b16 %v1102, %v1100
    %v1167 = vpack.c.b16 %v1103, %v1101
    %v1168 = vpack.c.b16 %v1106, %v1104
    %v1169 = vpack.c.b16 %v1107, %v1105
    %v1170 = vpack.c.b16 %v1110, %v1108
    %v1171 = vpack.c.b16 %v1111, %v1109
    %v1172 = vpack.c.b16 %v1114, %v1112
    %v1173 = vpack.c.b16 %v1115, %v1113
    %v1174 = vpack.c.b16 %v1118, %v1116
    %v1175 = vpack.c.b16 %v1119, %v1117
    %v1176 = vpack.c.b16 %v1122, %v1120
    %v1177 = vpack.c.b16 %v1123, %v1121
    %v1178 = vpack.c.b16 %v1126, %v1124
    %v1179 = vpack.c.b16 %v1127, %v1125
    %v1180 = vpack.c.b16 %v1130, %v1128
    %v1181 = vpack.c.b16 %v1131, %v1129
    %v1182 = vpack.c.b16 %v1134, %v1132
    %v1183 = vpack.c.b16 %v1135, %v1133
    %1232 = vmatprep.subr.bf16.mxu0 %v1137
    %1233 = vmatpush1.bf16.msra.mxu0 %v1136
    %1234 = vmatprep.subr.bf16.mxu0 %v1139
    %1235 = vmatpush1.bf16.msra.mxu0 %v1138
    %1236 = vmatprep.subr.bf16.mxu0 %v1141
    %1237 = vmatpush1.bf16.msra.mxu0 %v1140
    %1238 = vmatprep.subr.bf16.mxu0 %v1143
    %1239 = vmatpush1.bf16.msra.mxu0 %v1142
    %1240 = vmatprep.subr.bf16.mxu0 %v1145
    %1241 = vmatpush1.bf16.msra.mxu0 %v1144
    %1242 = vmatprep.subr.bf16.mxu0 %v1147
    %1243 = vmatpush1.bf16.msra.mxu0 %v1146
    %1244 = vmatprep.subr.bf16.mxu0 %v1149
    %1245 = vmatpush1.bf16.msra.mxu0 %v1148
    %1246 = vmatprep.subr.bf16.mxu0 %v1151
    %1247 = vmatpush1.bf16.msra.mxu0 %v1150
    %1248 = vmatprep.subr.bf16.mxu0 %v1153
    %1249 = vmatpush1.bf16.msra.mxu0 %v1152
    %1250 = vmatprep.subr.bf16.mxu0 %v1155
    %1251 = vmatpush1.bf16.msra.mxu0 %v1154
    %1252 = vmatprep.subr.bf16.mxu0 %v1157
    %1253 = vmatpush1.bf16.msra.mxu0 %v1156
    %1254 = vmatprep.subr.bf16.mxu0 %v1159
    %1255 = vmatpush1.bf16.msra.mxu0 %v1158
    %1256 = vmatprep.subr.bf16.mxu0 %v1161
    %1257 = vmatpush1.bf16.msra.mxu0 %v1160
    %1258 = vmatprep.subr.bf16.mxu0 %v1163
    %1259 = vmatpush1.bf16.msra.mxu0 %v1162
    %1260 = vmatprep.subr.bf16.mxu0 %v1165
    %1261 = vmatpush1.bf16.msra.mxu0 %v1164
    %1262 = vmatprep.subr.bf16.mxu0 %v1167
    %1263 = vmatpush1.bf16.msra.mxu0 %v1166
    %1264 = vmatprep.mubr.bf16.mxu0 %v942
    %1265 = vmatmul.mubr.bf16.gmra.mrb[0].mxu0 %v941
    %v1266 = vpop.f32.mrb[0].mxu0
    %v1267 = vadd.f32 0.0, %v1266
    %v1268 = vpop.f32.mrb[0].mxu0
    %v1269 = vadd.f32 0.0, %v1268
    %v1270 = vpop.f32.mrb[0].mxu0
    %v1271 = vadd.f32 0.0, %v1270
    %v1272 = vpop.f32.mrb[0].mxu0
    %v1273 = vadd.f32 0.0, %v1272
    %1274 = vdwg.mxu0
    %1275 = vmatprep.subr.bf16.mxu0 %v1169
    %1276 = vmatpush1.bf16.msra.mxu0 %v1168
    %1277 = vmatprep.subr.bf16.mxu0 %v1171
    %1278 = vmatpush1.bf16.msra.mxu0 %v1170
    %1279 = vmatprep.subr.bf16.mxu0 %v1173
    %1280 = vmatpush1.bf16.msra.mxu0 %v1172
    %1281 = vmatprep.subr.bf16.mxu0 %v1175
    %1282 = vmatpush1.bf16.msra.mxu0 %v1174
    %1283 = vmatprep.subr.bf16.mxu0 %v1177
    %1284 = vmatpush1.bf16.msra.mxu0 %v1176
    %1285 = vmatprep.subr.bf16.mxu0 %v1179
    %1286 = vmatpush1.bf16.msra.mxu0 %v1178
    %1287 = vmatprep.subr.bf16.mxu0 %v1181
    %1288 = vmatpush1.bf16.msra.mxu0 %v1180
    %1289 = vmatprep.subr.bf16.mxu0 %v1183
    %1290 = vmatpush1.bf16.msra.mxu0 %v1182
    %1291 = vmatprep.subr.bf16.mxu0 0
    %1292 = vmatpush1.bf16.msra.mxu0 0
    %1293 = vmatprep.subr.bf16.mxu0 0
    %1294 = vmatpush1.bf16.msra.mxu0 0
    %1295 = vmatprep.subr.bf16.mxu0 0
    %1296 = vmatpush1.bf16.msra.mxu0 0
    %1297 = vmatprep.subr.bf16.mxu0 0
    %1298 = vmatpush1.bf16.msra.mxu0 0
    %1299 = vmatprep.subr.bf16.mxu0 0
    %1300 = vmatpush1.bf16.msra.mxu0 0
    %1301 = vmatprep.subr.bf16.mxu0 0
    %1302 = vmatpush1.bf16.msra.mxu0 0
    %1303 = vmatprep.subr.bf16.mxu0 0
    %1304 = vmatpush1.bf16.msra.mxu0 0
    %1305 = vmatprep.subr.bf16.mxu0 0
    %1306 = vmatpush1.bf16.msra.mxu0 0
    %1307 = vmatprep.mubr.bf16.mxu0 0
    %1308 = vmatmul.mubr.bf16.gmra.mrb[0].mxu0 %v943
    %v1309 = vpop.f32.mrb[0].mxu0
    %v1310 = vadd.f32 %v1267, %v1309
    %v1311 = vpop.f32.mrb[0].mxu0
    %v1312 = vadd.f32 %v1269, %v1311
    %v1313 = vpop.f32.mrb[0].mxu0
    %v1314 = vadd.f32 %v1271, %v1313
    %v1315 = vpop.f32.mrb[0].mxu0
    %v1316 = vadd.f32 %v1273, %v1315
    %1317 = vdwg.mxu0
    %v1318 = vlaneseq
    %v1319 = vshrl.u32 %v1318, 7
    %v1320 = vadd.s32 %v1319, 8
    %vm1321 = vcmp.lt.s32.totalorder %v1319, 0
    %v1322 = vsub.s32 0, %v1319
    %v1323 = vsel %vm1321, %v1322, %v1319
    %v1324 = vmul.u32.u64.compose %v1323, 2863311531
    %v1325 = vextract.low.u32 %v1324
    %v1326 = vextract.high.u32 %v1324
    %v1327 = vshrl.u32 %v1326, 2
    %v1328 = vmul.u32 %v1327, 6
    %v1329 = vsub.s32 %v1323, %v1328
    %v1330 = vsub.s32 0, %v1329
    %v1331 = vsel %vm1321, %v1330, %v1329
    %vm1332 = vcmp.lt.s32.totalorder %v1320, 0
    %v1333 = vsub.s32 0, %v1320
    %v1334 = vsel %vm1332, %v1333, %v1320
    %v1335 = vmul.u32.u64.compose %v1334, 2863311531
    %v1336 = vextract.low.u32 %v1335
    %v1337 = vextract.high.u32 %v1335
    %v1338 = vshrl.u32 %v1337, 2
    %v1339 = vmul.u32 %v1338, 6
    %v1340 = vsub.s32 %v1334, %v1339
    %v1341 = vsub.s32 0, %v1340
    %v1342 = vsel %vm1332, %v1341, %v1340
    %vm1343 = vcmp.ne.s32.totalorder %v1331, 0
    %vm1344 = vcmp.ne.s32.totalorder %v1342, 0
    %vm1345 = vcmp.lt.s32.totalorder %v1331, 0
    %vm1346 = vcmp.lt.s32.totalorder %v1342, 0
    %vm1347 = vmand %vm1345, %vm1343
    %vm1348 = vmand %vm1346, %vm1344
    %v1349 = vadd.s32 %v1331, 6
    %v1350 = vadd.s32 %v1342, 6
    %v1351 = vsel %vm1347, %v1349, %v1331
    %v1352 = vsel %vm1348, %v1350, %v1342
    %vm1353 = vcmp.lt.s32.totalorder %v1351, 4
    %vm1354 = vcmp.lt.s32.totalorder %v1352, 4
    %v1355 = vsel %vm1353, 1, 0
    %v1356 = vsel %vm1354, 1, 0
    %v1357 = vcvt.s32.f32 %v1355
    %v1358 = vcvt.s32.f32 %v1356
    %v1359 = vmul.f32 %v1310, %v1357
    %v1360 = vmul.f32 %v1312, %v1357
    %v1361 = vmul.f32 %v1314, %v1358
    %v1362 = vmul.f32 %v1316, %v1358
    %v1363 = vsel %vm334, %v1361, 0.0
    %v1364 = vadd.f32 %v1359, %v1363
    %v1365 = vrot.slane %v1364, 4
    %v1366 = vadd.f32 %v1364, %v1365
    %v1367 = vrot.slane %v1366, 2
    %v1368 = vadd.f32 %v1366, %v1367
    %v1369 = vrot.slane %v1368, 1
    %v1370 = vadd.f32 %v1368, %v1369
    %v1371 = vsel %vm334, %v1362, 0.0
    %v1372 = vadd.f32 %v1360, %v1371
    %v1373 = vrot.slane %v1372, 4
    %v1374 = vadd.f32 %v1372, %v1373
    %v1375 = vrot.slane %v1374, 2
    %v1376 = vadd.f32 %v1374, %v1375
    %v1377 = vrot.slane %v1376, 1
    %v1378 = vadd.f32 %v1376, %v1377
    %v1379 = vmul.f32 %v1359, %v1310
    %v1380 = vmul.f32 %v1360, %v1312
    %v1381 = vmul.f32 %v1361, %v1314
    %v1382 = vmul.f32 %v1362, %v1316
    %v1383 = vsel %vm334, %v1381, 0.0
    %v1384 = vadd.f32 %v1379, %v1383
    %v1385 = vrot.slane %v1384, 4
    %v1386 = vadd.f32 %v1384, %v1385
    %v1387 = vrot.slane %v1386, 2
    %v1388 = vadd.f32 %v1386, %v1387
    %v1389 = vrot.slane %v1388, 1
    %v1390 = vadd.f32 %v1388, %v1389
    %v1391 = vsel %vm334, %v1382, 0.0
    %v1392 = vadd.f32 %v1380, %v1391
    %v1393 = vrot.slane %v1392, 4
    %v1394 = vadd.f32 %v1392, %v1393
    %v1395 = vrot.slane %v1394, 2
    %v1396 = vadd.f32 %v1394, %v1395
    %v1397 = vrot.slane %v1396, 1
    %v1398 = vadd.f32 %v1396, %v1397
    %v1399 = vsel %vm395, %v1370, %v1390
    %v1400 = vsel %vm395, %v1378, %v1398
    %v1401 = vld [vmem:[%s7] sm:$0xff]
    %v1402 = vld [vmem:[%s7 + $0x8] sm:$0xff]
    %v1403 = vld [vmem:[%s7 + $0x10] sm:$0xff]
    %v1404 = vld [vmem:[%s7 + $0x18] sm:$0xff]
    %v1405 = vld [vmem:[%s7 + $0x20] sm:$0xff]
    %v1406 = vld [vmem:[%s7 + $0x28] sm:$0xff]
    %v1407 = vld [vmem:[%s7 + $0x30] sm:$0xff]
    %v1408 = vld [vmem:[%s7 + $0x38] sm:$0xff]
    %v1409 = vld [vmem:[%s7 + $0x40] sm:$0xff]
    %v1410 = vld [vmem:[%s7 + $0x48] sm:$0xff]
    %v1411 = vld [vmem:[%s7 + $0x50] sm:$0xff]
    %v1412 = vld [vmem:[%s7 + $0x58] sm:$0xff]
    %v1413 = vld [vmem:[%s7 + $0x60] sm:$0xff]
    %v1414 = vld [vmem:[%s7 + $0x68] sm:$0xff]
    %v1415 = vld [vmem:[%s7 + $0x70] sm:$0xff]
    %v1416 = vld [vmem:[%s7 + $0x78] sm:$0xff]
    %v1417 = vld [vmem:[%s7 + $0x80] sm:$0xff]
    %v1418 = vld [vmem:[%s7 + $0x88] sm:$0xff]
    %v1419 = vld [vmem:[%s7 + $0x90] sm:$0xff]
    %v1420 = vld [vmem:[%s7 + $0x98] sm:$0xff]
    %v1421 = vld [vmem:[%s7 + $0xa0] sm:$0xff]
    %v1422 = vld [vmem:[%s7 + $0xa8] sm:$0xff]
    %v1423 = vld [vmem:[%s7 + $0xb0] sm:$0xff]
    %v1424 = vld [vmem:[%s7 + $0xb8] sm:$0xff]
    %v1425 = vld [vmem:[%s7 + $0xc0] sm:$0xff]
    %v1426 = vld [vmem:[%s7 + $0xc8] sm:$0xff]
    %v1427 = vld [vmem:[%s7 + $0xd0] sm:$0xff]
    %v1428 = vld [vmem:[%s7 + $0xd8] sm:$0xff]
    %v1429 = vld [vmem:[%s7 + $0xe0] sm:$0xff]
    %v1430 = vld [vmem:[%s7 + $0xe8] sm:$0xff]
    %v1431 = vld [vmem:[%s7 + $0xf0] sm:$0xff]
    %v1432 = vld [vmem:[%s7 + $0xf8] sm:$0xff]
    %1433 = vmatprep.subr.mxu0 0.0
    %1434 = vmatpush1.msra.mxu0 %v1401
    %1435 = vmatprep.subr.mxu0 0.0
    %1436 = vmatpush1.msra.mxu0 %v1402
    %1437 = vmatprep.subr.mxu0 0.0
    %1438 = vmatpush1.msra.mxu0 %v1403
    %1439 = vmatprep.subr.mxu0 0.0
    %1440 = vmatpush1.msra.mxu0 %v1404
    %1441 = vmatprep.subr.mxu0 0.0
    %1442 = vmatpush1.msra.mxu0 %v1405
    %1443 = vmatprep.subr.mxu0 0.0
    %1444 = vmatpush1.msra.mxu0 %v1406
    %1445 = vmatprep.subr.mxu0 0.0
    %1446 = vmatpush1.msra.mxu0 %v1407
    %1447 = vmatprep.subr.mxu0 0.0
    %1448 = vmatpush1.msra.mxu0 %v1408
    %1449 = vmatprep.subr.mxu0 0.0
    %1450 = vmatpush1.msra.mxu0 %v1409
    %1451 = vmatprep.subr.mxu0 0.0
    %1452 = vmatpush1.msra.mxu0 %v1410
    %1453 = vmatprep.subr.mxu0 0.0
    %1454 = vmatpush1.msra.mxu0 %v1411
    %1455 = vmatprep.subr.mxu0 0.0
    %1456 = vmatpush1.msra.mxu0 %v1412
    %1457 = vmatprep.subr.mxu0 0.0
    %1458 = vmatpush1.msra.mxu0 %v1413
    %1459 = vmatprep.subr.mxu0 0.0
    %1460 = vmatpush1.msra.mxu0 %v1414
    %1461 = vmatprep.subr.mxu0 0.0
    %1462 = vmatpush1.msra.mxu0 %v1415
    %1463 = vmatprep.subr.mxu0 0.0
    %1464 = vmatpush1.msra.mxu0 %v1416
    %1465 = vmatprep.subr.mxu0 0.0
    %1466 = vmatpush1.msra.mxu0 %v1417
    %1467 = vmatprep.subr.mxu0 0.0
    %1468 = vmatpush1.msra.mxu0 %v1418
    %1469 = vmatprep.subr.mxu0 0.0
    %1470 = vmatpush1.msra.mxu0 %v1419
    %1471 = vmatprep.subr.mxu0 0.0
    %1472 = vmatpush1.msra.mxu0 %v1420
    %1473 = vmatprep.subr.mxu0 0.0
    %1474 = vmatpush1.msra.mxu0 %v1421
    %1475 = vmatprep.subr.mxu0 0.0
    %1476 = vmatpush1.msra.mxu0 %v1422
    %1477 = vmatprep.subr.mxu0 0.0
    %1478 = vmatpush1.msra.mxu0 %v1423
    %1479 = vmatprep.subr.mxu0 0.0
    %1480 = vmatpush1.msra.mxu0 %v1424
    %1481 = vmatprep.subr.mxu0 0.0
    %1482 = vmatpush1.msra.mxu0 %v1425
    %1483 = vmatprep.subr.mxu0 0.0
    %1484 = vmatpush1.msra.mxu0 %v1426
    %1485 = vmatprep.subr.mxu0 0.0
    %1486 = vmatpush1.msra.mxu0 %v1427
    %1487 = vmatprep.subr.mxu0 0.0
    %1488 = vmatpush1.msra.mxu0 %v1428
    %1489 = vmatprep.subr.mxu0 0.0
    %1490 = vmatpush1.msra.mxu0 %v1429
    %1491 = vmatprep.subr.mxu0 0.0
    %1492 = vmatpush1.msra.mxu0 %v1430
    %1493 = vmatprep.subr.mxu0 0.0
    %1494 = vmatpush1.msra.mxu0 %v1431
    %1495 = vmatprep.subr.mxu0 0.0
    %1496 = vmatpush1.msra.mxu0 %v1432
    %1497 = vmatprep.mubr.f32.mxu0 %v1400
    %1498 = vmatmul.mubr.f32.gmra.mrb[0].mxu0 %v1399
    %v1499 = vpop.f32.mrb[0].mxu0
    %v1500 = vadd.f32 0.0, %v1499
    %v1501 = vpop.f32.mrb[0].mxu0
    %1502 = vdwg.mxu0
    %v1503 = vmul.f32 %v1500, 0.0078125
    %v1504 = vmul.f32 %v1503, %v1503
    %v1506 = vrot.slane %v1504, 7
    %v1508 = vsub.f32 %v1503, %v1506
    %v1509 = vld [vmem:[%s9] sm:$0x1]
    %v1510 = vadd.f32 %v1508, 1e-05
    %v1511 = vrsqrt.pop %v1510
    %v1513 = vrot.slane %v1511, 1
    %v1515 = vmul.f32 %v1509, %v1513
    %v1516 = vld [vmem:[%s9 + $0x1] sm:$0x1]
    %v1517 = vmul.f32 %v1503, %v1515
    %v1518 = vsub.f32 %v1516, %v1517
    %v1520 = vrot.slane %v1518, 7
    %v1522 = vsel %vm395, %v1515, %v1520
    %v1523 = vld [vmem:[#allocation4] sm:$0xff]
    %v1524 = vld [vmem:[#allocation4 + $0x8] sm:$0xff]
    %v1525 = vld [vmem:[#allocation4 + $0x10] sm:$0xff]
    %v1526 = vld [vmem:[#allocation4 + $0x18] sm:$0xff]
    %v1528 = vsel %vm188, %v1522, 0
    %1530 = vmatprep.subr.mxu0 %v1524
    %1531 = vmatpush1.msra.mxu0 %v1523
    %1532 = vmatprep.subr.mxu0 %v1526
    %1533 = vmatpush1.msra.mxu0 %v1525
    %1534 = vmatprep.subr.mxu0 0.0
    %1535 = vmatpush1.msra.mxu0 0.0
    %1536 = vmatprep.subr.mxu0 0.0
    %1537 = vmatpush1.msra.mxu0 0.0
    %1538 = vmatprep.subr.mxu0 0.0
    %1539 = vmatpush1.msra.mxu0 0.0
    %1540 = vmatprep.subr.mxu0 0.0
    %1541 = vmatpush1.msra.mxu0 0.0
    %1542 = vmatprep.subr.mxu0 0.0
    %1543 = vmatpush1.msra.mxu0 0.0
    %1544 = vmatprep.subr.mxu0 0.0
    %1545 = vmatpush1.msra.mxu0 0.0
    %1546 = vmatprep.subr.mxu0 0.0
    %1547 = vmatpush1.msra.mxu0 0.0
    %1548 = vmatprep.subr.mxu0 0.0
    %1549 = vmatpush1.msra.mxu0 0.0
    %1550 = vmatprep.subr.mxu0 0.0
    %1551 = vmatpush1.msra.mxu0 0.0
    %1552 = vmatprep.subr.mxu0 0.0
    %1553 = vmatpush1.msra.mxu0 0.0
    %1554 = vmatprep.subr.mxu0 0.0
    %1555 = vmatpush1.msra.mxu0 0.0
    %1556 = vmatprep.subr.mxu0 0.0
    %1557 = vmatpush1.msra.mxu0 0.0
    %1558 = vmatprep.subr.mxu0 0.0
    %1559 = vmatpush1.msra.mxu0 0.0
    %1560 = vmatprep.subr.mxu0 0.0
    %1561 = vmatpush1.msra.mxu0 0.0
    %1562 = vmatprep.subr.mxu0 0.0
    %1563 = vmatpush1.msra.mxu0 0.0
    %1564 = vmatprep.subr.mxu0 0.0
    %1565 = vmatpush1.msra.mxu0 0.0
    %1566 = vmatprep.subr.mxu0 0.0
    %1567 = vmatpush1.msra.mxu0 0.0
    %1568 = vmatprep.subr.mxu0 0.0
    %1569 = vmatpush1.msra.mxu0 0.0
    %1570 = vmatprep.subr.mxu0 0.0
    %1571 = vmatpush1.msra.mxu0 0.0
    %1572 = vmatprep.subr.mxu0 0.0
    %1573 = vmatpush1.msra.mxu0 0.0
    %1574 = vmatprep.subr.mxu0 0.0
    %1575 = vmatpush1.msra.mxu0 0.0
    %1576 = vmatprep.subr.mxu0 0.0
    %1577 = vmatpush1.msra.mxu0 0.0
    %1578 = vmatprep.subr.mxu0 0.0
    %1579 = vmatpush1.msra.mxu0 0.0
    %1580 = vmatprep.subr.mxu0 0.0
    %1581 = vmatpush1.msra.mxu0 0.0
    %1582 = vmatprep.subr.mxu0 0.0
    %1583 = vmatpush1.msra.mxu0 0.0
    %1584 = vmatprep.subr.mxu0 0.0
    %1585 = vmatpush1.msra.mxu0 0.0
    %1586 = vmatprep.subr.mxu0 0.0
    %1587 = vmatpush1.msra.mxu0 0.0
    %1588 = vmatprep.subr.mxu0 0.0
    %1589 = vmatpush1.msra.mxu0 0.0
    %1590 = vmatprep.subr.mxu0 0.0
    %1591 = vmatpush1.msra.mxu0 0.0
    %1592 = vmatprep.subr.mxu0 0.0
    %1593 = vmatpush1.msra.mxu0 0.0
    %1594 = vmatprep.mubr.f32.mxu0 0.0
    %1595 = vmatmul.mubr.f32.gmra.mrb[0].mxu0 %v1528
    %v1596 = vpop.f32.mrb[0].mxu0
    %v1597 = vadd.f32 0.0, %v1596
    %v1598 = vpop.f32.mrb[0].mxu0
    %v1599 = vadd.f32 0.0, %v1598
    %1600 = vdwg.mxu0
    %v1601 = vlaneseq
    %v1602 = vshrl.u32 %v1601, 7
    %v1603 = vsub.s32 0, %v1602
    %v1604 = vrot.slane %v1597, %v1603
    %v1605 = vlaneseq
    %v1606 = vshrl.u32 %v1605, 7
    %v1607 = vsub.s32 0, %v1606
    %v1608 = vrot.slane %v1599, %v1607
    %v1609 = vmul.f32 %v1310, %v1604
    %v1610 = vmul.f32 %v1312, %v1608
    %v1611 = vmul.f32 %v1314, %v1604
    %v1612 = vmul.f32 %v1316, %v1608
    %v1613 = vlaneseq
    %v1614 = vshrl.u32 %v1613, 7
    %v1615 = vsub.s32 1, %v1614
    %v1616 = vrot.slane %v1597, %v1615
    %v1617 = vlaneseq
    %v1618 = vshrl.u32 %v1617, 7
    %v1619 = vsub.s32 1, %v1618
    %v1620 = vrot.slane %v1599, %v1619
    %v1621 = vadd.f32 %v1609, %v1616
    %v1622 = vadd.f32 %v1610, %v1620
    %v1623 = vadd.f32 %v1611, %v1616
    %v1624 = vadd.f32 %v1612, %v1620
    %v1625 = vmax.f32 %v1621, 0.0
    %v1626 = vmax.f32 %v1622, 0.0
    %v1627 = vmax.f32 %v1623, 0.0
    %v1628 = vmax.f32 %v1624, 0.0
    %v1631 = vrot.slane %v1626, 6
    %v1632 = vrot.slane %v1628, 6
    %v1633 = vsel %vm334, %v1631, %v1632
    %v1635 = vsel %vm334, %v1627, %v1631
    %v1636 = vld [vmem:[#allocation6] sm:$0xff]
    %v1637 = vld [vmem:[#allocation6 + $0x8] sm:$0xff]
    %v1638 = vld [vmem:[#allocation6 + $0x10] sm:$0xf]
    %vm1639 = vcmask 162816
    %v1641 = vsel %vm1639, %v1636, 0
    %v1644 = vsel %vm1639, %v1637, 0
    %v1647 = vsel %vm1639, %v1638, 0
    %v1649 = vsel %vm840, %v1633, 0
    %1651 = vmatprep.subr.mxu0 0.0
    %1652 = vmatpush1.msra.mxu0 %v1625
    %1653 = vmatprep.subr.mxu0 0.0
    %1654 = vmatpush1.msra.mxu0 %v1635
    %1655 = vmatprep.subr.mxu0 0.0
    %1656 = vmatpush1.msra.mxu0 %v1649
    %1657 = vmatprep.subr.mxu0 0.0
    %1658 = vmatpush1.msra.mxu0 0.0
    %1659 = vmatprep.subr.mxu0 0.0
    %1660 = vmatpush1.msra.mxu0 0.0
    %1661 = vmatprep.subr.mxu0 0.0
    %1662 = vmatpush1.msra.mxu0 0.0
    %1663 = vmatprep.subr.mxu0 0.0
    %1664 = vmatpush1.msra.mxu0 0.0
    %1665 = vmatprep.subr.mxu0 0.0
    %1666 = vmatpush1.msra.mxu0 0.0
    %1667 = vmatprep.subr.mxu0 0.0
    %1668 = vmatpush1.msra.mxu0 0.0
    %1669 = vmatprep.subr.mxu0 0.0
    %1670 = vmatpush1.msra.mxu0 0.0
    %1671 = vmatprep.subr.mxu0 0.0
    %1672 = vmatpush1.msra.mxu0 0.0
    %1673 = vmatprep.subr.mxu0 0.0
    %1674 = vmatpush1.msra.mxu0 0.0
    %1675 = vmatprep.subr.mxu0 0.0
    %1676 = vmatpush1.msra.mxu0 0.0
    %1677 = vmatprep.subr.mxu0 0.0
    %1678 = vmatpush1.msra.mxu0 0.0
    %1679 = vmatprep.subr.mxu0 0.0
    %1680 = vmatpush1.msra.mxu0 0.0
    %1681 = vmatprep.subr.mxu0 0.0
    %1682 = vmatpush1.msra.mxu0 0.0
    %1683 = vmatprep.subr.mxu0 0.0
    %1684 = vmatpush1.msra.mxu0 0.0
    %1685 = vmatprep.subr.mxu0 0.0
    %1686 = vmatpush1.msra.mxu0 0.0
    %1687 = vmatprep.subr.mxu0 0.0
    %1688 = vmatpush1.msra.mxu0 0.0
    %1689 = vmatprep.subr.mxu0 0.0
    %1690 = vmatpush1.msra.mxu0 0.0
    %1691 = vmatprep.subr.mxu0 0.0
    %1692 = vmatpush1.msra.mxu0 0.0
    %1693 = vmatprep.subr.mxu0 0.0
    %1694 = vmatpush1.msra.mxu0 0.0
    %1695 = vmatprep.subr.mxu0 0.0
    %1696 = vmatpush1.msra.mxu0 0.0
    %1697 = vmatprep.subr.mxu0 0.0
    %1698 = vmatpush1.msra.mxu0 0.0
    %1699 = vmatprep.subr.mxu0 0.0
    %1700 = vmatpush1.msra.mxu0 0.0
    %1701 = vmatprep.subr.mxu0 0.0
    %1702 = vmatpush1.msra.mxu0 0.0
    %1703 = vmatprep.subr.mxu0 0.0
    %1704 = vmatpush1.msra.mxu0 0.0
    %1705 = vmatprep.subr.mxu0 0.0
    %1706 = vmatpush1.msra.mxu0 0.0
    %1707 = vmatprep.subr.mxu0 0.0
    %1708 = vmatpush1.msra.mxu0 0.0
    %1709 = vmatprep.subr.mxu0 0.0
    %1710 = vmatpush1.msra.mxu0 0.0
    %1711 = vmatprep.subr.mxu0 0.0
    %1712 = vmatpush1.msra.mxu0 0.0
    %1713 = vmatprep.subr.mxu0 0.0
    %1714 = vmatpush1.msra.mxu0 0.0
    %1715 = vmatprep.mubr.f32.mxu0 0.0
    %1716 = vmatmul.mubr.f32.gmra.mrb[0].mxu0 %v1641
    %v1717 = vpop.f32.mrb[0].mxu0
    %v1718 = vadd.f32 0.0, %v1717
    %v1719 = vpop.f32.mrb[0].mxu0
    %1720 = vmatprep.mubr.f32.mxu0 0.0
    %1721 = vmatmul.mubr.f32.gmra.mrb[0].mxu0 %v1644
    %v1722 = vpop.f32.mrb[0].mxu0
    %v1723 = vadd.f32 0.0, %v1722
    %v1724 = vpop.f32.mrb[0].mxu0
    %1725 = vmatprep.mubr.f32.mxu0 0.0
    %1726 = vmatmul.mubr.f32.gmra.mrb[0].mxu0 %v1647
    %v1727 = vpop.f32.mrb[0].mxu0
    %v1728 = vadd.f32 0.0, %v1727
    %v1729 = vpop.f32.mrb[0].mxu0
    %1730 = vdwg.mxu0
    %v1734 = vrot.slane %v1718, 1
    %v1735 = vrot.slane %v1723, 1
    %v1736 = vsel %vm930, %v1734, %v1735
    %v1737 = vrot.slane %v1728, 1
    %v1738 = vsel %vm930, %v1735, %v1737
    %v1742 = vrot.slane %v1718, 2
    %v1743 = vrot.slane %v1723, 2
    %v1744 = vsel %vm842, %v1742, %v1743
    %v1745 = vrot.slane %v1728, 2
    %v1746 = vsel %vm842, %v1743, %v1745
    %v1750 = vpack.c.bf16 %v1723, %v1718
    %v1751 = vpack.c.bf16 %v1738, %v1736
    %v1752 = vpack.c.bf16 %v1746, %v1744
    %v1753 = vpack.c.bf16 %v1728, %v1728
    %v1754 = vpack.c.bf16 %v1737, %v1737
    %v1755 = vpack.c.bf16 %v1745, %v1745
    %v1756 = vld [vmem:[#allocation7] sm:$0xff]
    %v1757 = vld [vmem:[#allocation7 + $0x8] sm:$0xff]
    %v1758 = vld [vmem:[#allocation7 + $0x10] sm:$0xff]
    %v1759 = vld [vmem:[#allocation7 + $0x18] sm:$0xff]
    %v1760 = vld [vmem:[#allocation7 + $0x20] sm:$0xff]
    %v1761 = vld [vmem:[#allocation7 + $0x28] sm:$0xff]
    %v1762 = vld [vmem:[#allocation7 + $0x30] sm:$0xff]
    %v1763 = vld [vmem:[#allocation7 + $0x38] sm:$0xff]
    %v1764 = vld [vmem:[#allocation7 + $0x40] sm:$0xff]
    %v1765 = vld [vmem:[#allocation7 + $0x48] sm:$0xff]
    %v1766 = vld [vmem:[#allocation7 + $0x50] sm:$0xff]
    %v1767 = vld [vmem:[#allocation7 + $0x58] sm:$0xff]
    %v1768 = vld [vmem:[#allocation7 + $0x60] sm:$0xff]
    %v1769 = vld [vmem:[#allocation7 + $0x68] sm:$0xff]
    %v1770 = vld [vmem:[#allocation7 + $0x70] sm:$0xff]
    %v1771 = vld [vmem:[#allocation7 + $0x78] sm:$0xff]
    %v1772 = vld [vmem:[#allocation7 + $0x80] sm:$0xff]
    %v1773 = vld [vmem:[#allocation7 + $0x88] sm:$0xff]
    %v1774 = vld [vmem:[#allocation7 + $0x90] sm:$0xff]
    %v1775 = vld [vmem:[#allocation7 + $0x98] sm:$0xff]
    %v1776 = vld [vmem:[#allocation7 + $0xa0] sm:$0xff]
    %v1777 = vld [vmem:[#allocation7 + $0xa8] sm:$0xff]
    %v1778 = vld [vmem:[#allocation7 + $0xb0] sm:$0xff]
    %v1779 = vld [vmem:[#allocation7 + $0xb8] sm:$0xff]
    %v1780 = vld [vmem:[#allocation7 + $0xc0] sm:$0xff]
    %v1781 = vld [vmem:[#allocation7 + $0xc8] sm:$0xff]
    %v1782 = vld [vmem:[#allocation7 + $0xd0] sm:$0xff]
    %v1783 = vld [vmem:[#allocation7 + $0xd8] sm:$0xff]
    %v1784 = vld [vmem:[#allocation7 + $0xe0] sm:$0xff]
    %v1785 = vld [vmem:[#allocation7 + $0xe8] sm:$0xff]
    %v1786 = vld [vmem:[#allocation7 + $0xf0] sm:$0xff]
    %v1787 = vld [vmem:[#allocation7 + $0xf8] sm:$0xff]
    %v1788 = vld [vmem:[#allocation7 + $0x100] sm:$0xff]
    %v1789 = vld [vmem:[#allocation7 + $0x108] sm:$0xff]
    %v1790 = vld [vmem:[#allocation7 + $0x110] sm:$0xff]
    %v1791 = vld [vmem:[#allocation7 + $0x118] sm:$0xff]
    %v1792 = vld [vmem:[#allocation7 + $0x120] sm:$0xff]
    %v1793 = vld [vmem:[#allocation7 + $0x128] sm:$0xff]
    %v1794 = vld [vmem:[#allocation7 + $0x130] sm:$0xff]
    %v1795 = vld [vmem:[#allocation7 + $0x138] sm:$0xff]
    %v1796 = vld [vmem:[#allocation7 + $0x140] sm:$0xff]
    %v1797 = vld [vmem:[#allocation7 + $0x148] sm:$0xff]
    %v1798 = vld [vmem:[#allocation7 + $0x150] sm:$0xff]
    %v1799 = vld [vmem:[#allocation7 + $0x158] sm:$0xff]
    %v1800 = vld [vmem:[#allocation7 + $0x160] sm:$0xff]
    %v1801 = vld [vmem:[#allocation7 + $0x168] sm:$0xff]
    %v1802 = vld [vmem:[#allocation7 + $0x170] sm:$0xff]
    %v1803 = vld [vmem:[#allocation7 + $0x178] sm:$0xff]
    %v1804 = vld [vmem:[#allocation7 + $0x180] sm:$0xff]
    %v1805 = vld [vmem:[#allocation7 + $0x188] sm:$0xff]
    %v1806 = vld [vmem:[#allocation7 + $0x190] sm:$0xff]
    %v1807 = vld [vmem:[#allocation7 + $0x198] sm:$0xff]
    %v1808 = vld [vmem:[#allocation7 + $0x1a0] sm:$0xff]
    %v1809 = vld [vmem:[#allocation7 + $0x1a8] sm:$0xff]
    %v1810 = vld [vmem:[#allocation7 + $0x1b0] sm:$0xff]
    %v1811 = vld [vmem:[#allocation7 + $0x1b8] sm:$0xff]
    %v1812 = vld [vmem:[#allocation7 + $0x1c0] sm:$0xff]
    %v1813 = vld [vmem:[#allocation7 + $0x1c8] sm:$0xff]
    %v1814 = vld [vmem:[#allocation7 + $0x1d0] sm:$0xff]
    %v1815 = vld [vmem:[#allocation7 + $0x1d8] sm:$0xff]
    %v1816 = vld [vmem:[#allocation7 + $0x1e0] sm:$0xff]
    %v1817 = vld [vmem:[#allocation7 + $0x1e8] sm:$0xff]
    %v1818 = vld [vmem:[#allocation7 + $0x1f0] sm:$0xff]
    %v1819 = vld [vmem:[#allocation7 + $0x1f8] sm:$0xff]
    %v1820 = vld [vmem:[#allocation7 + $0x200] sm:$0xff]
    %v1821 = vld [vmem:[#allocation7 + $0x208] sm:$0xff]
    %v1822 = vld [vmem:[#allocation7 + $0x210] sm:$0xff]
    %v1823 = vld [vmem:[#allocation7 + $0x218] sm:$0xff]
    %v1824 = vld [vmem:[#allocation7 + $0x220] sm:$0xff]
    %v1825 = vld [vmem:[#allocation7 + $0x228] sm:$0xff]
    %v1826 = vld [vmem:[#allocation7 + $0x230] sm:$0xff]
    %v1827 = vld [vmem:[#allocation7 + $0x238] sm:$0xff]
    %v1828 = vld [vmem:[#allocation7 + $0x240] sm:$0xff]
    %v1829 = vld [vmem:[#allocation7 + $0x248] sm:$0xff]
    %v1830 = vld [vmem:[#allocation7 + $0x250] sm:$0xff]
    %v1831 = vld [vmem:[#allocation7 + $0x258] sm:$0xff]
    %v1832 = vld [vmem:[#allocation7 + $0x260] sm:$0xff]
    %v1833 = vld [vmem:[#allocation7 + $0x268] sm:$0xff]
    %v1834 = vld [vmem:[#allocation7 + $0x270] sm:$0xff]
    %v1835 = vld [vmem:[#allocation7 + $0x278] sm:$0xff]
    %v1836 = vld [vmem:[#allocation7 + $0x280] sm:$0xff]
    %v1837 = vld [vmem:[#allocation7 + $0x288] sm:$0xff]
    %v1838 = vld [vmem:[#allocation7 + $0x290] sm:$0xff]
    %v1839 = vld [vmem:[#allocation7 + $0x298] sm:$0xff]
    %v1840 = vld [vmem:[#allocation7 + $0x2a0] sm:$0xff]
    %v1841 = vld [vmem:[#allocation7 + $0x2a8] sm:$0xff]
    %v1842 = vld [vmem:[#allocation7 + $0x2b0] sm:$0xff]
    %v1843 = vld [vmem:[#allocation7 + $0x2b8] sm:$0xff]
    %v1844 = vld [vmem:[#allocation7 + $0x2c0] sm:$0xff]
    %v1845 = vld [vmem:[#allocation7 + $0x2c8] sm:$0xff]
    %v1846 = vld [vmem:[#allocation7 + $0x2d0] sm:$0xff]
    %v1847 = vld [vmem:[#allocation7 + $0x2d8] sm:$0xff]
    %v1848 = vld [vmem:[#allocation7 + $0x2e0] sm:$0xff]
    %v1849 = vld [vmem:[#allocation7 + $0x2e8] sm:$0xff]
    %v1850 = vld [vmem:[#allocation7 + $0x2f0] sm:$0xff]
    %v1851 = vld [vmem:[#allocation7 + $0x2f8] sm:$0xff]
    %v1948 = vunpack.c.l.b16 %v1756
    %v1949 = vunpack.c.h.b16 %v1756
    %v1950 = vunpack.c.l.b16 %v1757
    %v1951 = vunpack.c.h.b16 %v1757
    %v1952 = vunpack.c.l.b16 %v1758
    %v1953 = vunpack.c.h.b16 %v1758
    %v1954 = vunpack.c.l.b16 %v1759
    %v1955 = vunpack.c.h.b16 %v1759
    %v1956 = vunpack.c.l.b16 %v1760
    %v1957 = vunpack.c.h.b16 %v1760
    %v1958 = vunpack.c.l.b16 %v1761
    %v1959 = vunpack.c.h.b16 %v1761
    %v1960 = vunpack.c.l.b16 %v1762
    %v1961 = vunpack.c.h.b16 %v1762
    %v1962 = vunpack.c.l.b16 %v1763
    %v1963 = vunpack.c.h.b16 %v1763
    %v1964 = vunpack.c.l.b16 %v1764
    %v1965 = vunpack.c.h.b16 %v1764
    %v1966 = vunpack.c.l.b16 %v1765
    %v1967 = vunpack.c.h.b16 %v1765
    %v1968 = vunpack.c.l.b16 %v1766
    %v1969 = vunpack.c.h.b16 %v1766
    %v1970 = vunpack.c.l.b16 %v1767
    %v1971 = vunpack.c.h.b16 %v1767
    %v1972 = vunpack.c.l.b16 %v1768
    %v1973 = vunpack.c.h.b16 %v1768
    %v1974 = vunpack.c.l.b16 %v1769
    %v1975 = vunpack.c.h.b16 %v1769
    %v1976 = vunpack.c.l.b16 %v1770
    %v1977 = vunpack.c.h.b16 %v1770
    %v1978 = vunpack.c.l.b16 %v1771
    %v1979 = vunpack.c.h.b16 %v1771
    %v1980 = vunpack.c.l.b16 %v1772
    %v1981 = vunpack.c.h.b16 %v1772
    %v1982 = vunpack.c.l.b16 %v1773
    %v1983 = vunpack.c.h.b16 %v1773
    %v1984 = vunpack.c.l.b16 %v1774
    %v1985 = vunpack.c.h.b16 %v1774
    %v1986 = vunpack.c.l.b16 %v1775
    %v1987 = vunpack.c.h.b16 %v1775
    %v1988 = vunpack.c.l.b16 %v1776
    %v1989 = vunpack.c.h.b16 %v1776
    %v1990 = vunpack.c.l.b16 %v1777
    %v1991 = vunpack.c.h.b16 %v1777
    %v1992 = vunpack.c.l.b16 %v1778
    %v1993 = vunpack.c.h.b16 %v1778
    %v1994 = vunpack.c.l.b16 %v1779
    %v1995 = vunpack.c.h.b16 %v1779
    %v1996 = vunpack.c.l.b16 %v1780
    %v1997 = vunpack.c.h.b16 %v1780
    %v1998 = vunpack.c.l.b16 %v1781
    %v1999 = vunpack.c.h.b16 %v1781
    %v2000 = vunpack.c.l.b16 %v1782
    %v2001 = vunpack.c.h.b16 %v1782
    %v2002 = vunpack.c.l.b16 %v1783
    %v2003 = vunpack.c.h.b16 %v1783
    %v2004 = vunpack.c.l.b16 %v1784
    %v2005 = vunpack.c.h.b16 %v1784
    %v2006 = vunpack.c.l.b16 %v1785
    %v2007 = vunpack.c.h.b16 %v1785
    %v2008 = vunpack.c.l.b16 %v1786
    %v2009 = vunpack.c.h.b16 %v1786
    %v2010 = vunpack.c.l.b16 %v1787
    %v2011 = vunpack.c.h.b16 %v1787
    %v2012 = vunpack.c.l.b16 %v1788
    %v2013 = vunpack.c.h.b16 %v1788
    %v2014 = vunpack.c.l.b16 %v1789
    %v2015 = vunpack.c.h.b16 %v1789
    %v2016 = vunpack.c.l.b16 %v1790
    %v2017 = vunpack.c.h.b16 %v1790
    %v2018 = vunpack.c.l.b16 %v1791
    %v2019 = vunpack.c.h.b16 %v1791
    %v2020 = vunpack.c.l.b16 %v1792
    %v2021 = vunpack.c.h.b16 %v1792
    %v2022 = vunpack.c.l.b16 %v1793
    %v2023 = vunpack.c.h.b16 %v1793
    %v2024 = vunpack.c.l.b16 %v1794
    %v2025 = vunpack.c.h.b16 %v1794
    %v2026 = vunpack.c.l.b16 %v1795
    %v2027 = vunpack.c.h.b16 %v1795
    %v2028 = vunpack.c.l.b16 %v1796
    %v2029 = vunpack.c.h.b16 %v1796
    %v2030 = vunpack.c.l.b16 %v1797
    %v2031 = vunpack.c.h.b16 %v1797
    %v2032 = vunpack.c.l.b16 %v1798
    %v2033 = vunpack.c.h.b16 %v1798
    %v2034 = vunpack.c.l.b16 %v1799
    %v2035 = vunpack.c.h.b16 %v1799
    %v2036 = vunpack.c.l.b16 %v1800
    %v2037 = vunpack.c.h.b16 %v1800
    %v2038 = vunpack.c.l.b16 %v1801
    %v2039 = vunpack.c.h.b16 %v1801
    %v2040 = vunpack.c.l.b16 %v1802
    %v2041 = vunpack.c.h.b16 %v1802
    %v2042 = vunpack.c.l.b16 %v1803
    %v2043 = vunpack.c.h.b16 %v1803
    %v2044 = vunpack.c.l.b16 %v1804
    %v2045 = vunpack.c.h.b16 %v1804
    %v2046 = vunpack.c.l.b16 %v1805
    %v2047 = vunpack.c.h.b16 %v1805
    %v2048 = vunpack.c.l.b16 %v1806
    %v2049 = vunpack.c.h.b16 %v1806
    %v2050 = vunpack.c.l.b16 %v1807
    %v2051 = vunpack.c.h.b16 %v1807
    %v2052 = vunpack.c.l.b16 %v1808
    %v2053 = vunpack.c.h.b16 %v1808
    %v2054 = vunpack.c.l.b16 %v1809
    %v2055 = vunpack.c.h.b16 %v1809
    %v2056 = vunpack.c.l.b16 %v1810
    %v2057 = vunpack.c.h.b16 %v1810
    %v2058 = vunpack.c.l.b16 %v1811
    %v2059 = vunpack.c.h.b16 %v1811
    %v2060 = vunpack.c.l.b16 %v1812
    %v2061 = vunpack.c.h.b16 %v1812
    %v2062 = vunpack.c.l.b16 %v1813
    %v2063 = vunpack.c.h.b16 %v1813
    %v2064 = vunpack.c.l.b16 %v1814
    %v2065 = vunpack.c.h.b16 %v1814
    %v2066 = vunpack.c.l.b16 %v1815
    %v2067 = vunpack.c.h.b16 %v1815
    %v2068 = vunpack.c.l.b16 %v1816
    %v2069 = vunpack.c.h.b16 %v1816
    %v2070 = vunpack.c.l.b16 %v1817
    %v2071 = vunpack.c.h.b16 %v1817
    %v2072 = vunpack.c.l.b16 %v1818
    %v2073 = vunpack.c.h.b16 %v1818
    %v2074 = vunpack.c.l.b16 %v1819
    %v2075 = vunpack.c.h.b16 %v1819
    %v2076 = vunpack.c.l.b16 %v1820
    %v2077 = vunpack.c.h.b16 %v1820
    %v2078 = vunpack.c.l.b16 %v1821
    %v2079 = vunpack.c.h.b16 %v1821
    %v2080 = vunpack.c.l.b16 %v1822
    %v2081 = vunpack.c.h.b16 %v1822
    %v2082 = vunpack.c.l.b16 %v1823
    %v2083 = vunpack.c.h.b16 %v1823
    %v2084 = vunpack.c.l.b16 %v1824
    %v2085 = vunpack.c.h.b16 %v1824
    %v2086 = vunpack.c.l.b16 %v1825
    %v2087 = vunpack.c.h.b16 %v1825
    %v2088 = vunpack.c.l.b16 %v1826
    %v2089 = vunpack.c.h.b16 %v1826
    %v2090 = vunpack.c.l.b16 %v1827
    %v2091 = vunpack.c.h.b16 %v1827
    %v2092 = vunpack.c.l.b16 %v1828
    %v2093 = vunpack.c.h.b16 %v1828
    %v2094 = vunpack.c.l.b16 %v1829
    %v2095 = vunpack.c.h.b16 %v1829
    %v2096 = vunpack.c.l.b16 %v1830
    %v2097 = vunpack.c.h.b16 %v1830
    %v2098 = vunpack.c.l.b16 %v1831
    %v2099 = vunpack.c.h.b16 %v1831
    %v2100 = vunpack.c.l.b16 %v1832
    %v2101 = vunpack.c.h.b16 %v1832
    %v2102 = vunpack.c.l.b16 %v1833
    %v2103 = vunpack.c.h.b16 %v1833
    %v2104 = vunpack.c.l.b16 %v1834
    %v2105 = vunpack.c.h.b16 %v1834
    %v2106 = vunpack.c.l.b16 %v1835
    %v2107 = vunpack.c.h.b16 %v1835
    %v2108 = vunpack.c.l.b16 %v1836
    %v2109 = vunpack.c.h.b16 %v1836
    %v2110 = vunpack.c.l.b16 %v1837
    %v2111 = vunpack.c.h.b16 %v1837
    %v2112 = vunpack.c.l.b16 %v1838
    %v2113 = vunpack.c.h.b16 %v1838
    %v2114 = vunpack.c.l.b16 %v1839
    %v2115 = vunpack.c.h.b16 %v1839
    %v2116 = vunpack.c.l.b16 %v1840
    %v2117 = vunpack.c.h.b16 %v1840
    %v2118 = vunpack.c.l.b16 %v1841
    %v2119 = vunpack.c.h.b16 %v1841
    %v2120 = vunpack.c.l.b16 %v1842
    %v2121 = vunpack.c.h.b16 %v1842
    %v2122 = vunpack.c.l.b16 %v1843
    %v2123 = vunpack.c.h.b16 %v1843
    %v2124 = vunpack.c.l.b16 %v1844
    %v2125 = vunpack.c.h.b16 %v1844
    %v2126 = vunpack.c.l.b16 %v1845
    %v2127 = vunpack.c.h.b16 %v1845
    %v2128 = vunpack.c.l.b16 %v1846
    %v2129 = vunpack.c.h.b16 %v1846
    %v2130 = vunpack.c.l.b16 %v1847
    %v2131 = vunpack.c.h.b16 %v1847
    %v2132 = vunpack.c.l.b16 %v1848
    %v2133 = vunpack.c.h.b16 %v1848
    %v2134 = vunpack.c.l.b16 %v1849
    %v2135 = vunpack.c.h.b16 %v1849
    %v2136 = vunpack.c.l.b16 %v1850
    %v2137 = vunpack.c.h.b16 %v1850
    %v2138 = vunpack.c.l.b16 %v1851
    %v2139 = vunpack.c.h.b16 %v1851
    %v2140 = vpack.c.b16 %v1952, %v1948
    %v2141 = vpack.c.b16 %v1953, %v1949
    %v2142 = vpack.c.b16 %v1954, %v1950
    %v2143 = vpack.c.b16 %v1955, %v1951
    %v2144 = vpack.c.b16 %v1960, %v1956
    %v2145 = vpack.c.b16 %v1961, %v1957
    %v2146 = vpack.c.b16 %v1962, %v1958
    %v2147 = vpack.c.b16 %v1963, %v1959
    %v2148 = vpack.c.b16 %v1968, %v1964
    %v2149 = vpack.c.b16 %v1969, %v1965
    %v2150 = vpack.c.b16 %v1970, %v1966
    %v2151 = vpack.c.b16 %v1971, %v1967
    %v2152 = vpack.c.b16 %v1976, %v1972
    %v2153 = vpack.c.b16 %v1977, %v1973
    %v2154 = vpack.c.b16 %v1978, %v1974
    %v2155 = vpack.c.b16 %v1979, %v1975
    %v2156 = vpack.c.b16 %v1984, %v1980
    %v2157 = vpack.c.b16 %v1985, %v1981
    %v2158 = vpack.c.b16 %v1986, %v1982
    %v2159 = vpack.c.b16 %v1987, %v1983
    %v2160 = vpack.c.b16 %v1992, %v1988
    %v2161 = vpack.c.b16 %v1993, %v1989
    %v2162 = vpack.c.b16 %v1994, %v1990
    %v2163 = vpack.c.b16 %v1995, %v1991
    %v2164 = vpack.c.b16 %v2000, %v1996
    %v2165 = vpack.c.b16 %v2001, %v1997
    %v2166 = vpack.c.b16 %v2002, %v1998
    %v2167 = vpack.c.b16 %v2003, %v1999
    %v2168 = vpack.c.b16 %v2008, %v2004
    %v2169 = vpack.c.b16 %v2009, %v2005
    %v2170 = vpack.c.b16 %v2010, %v2006
    %v2171 = vpack.c.b16 %v2011, %v2007
    %v2172 = vpack.c.b16 %v2016, %v2012
    %v2173 = vpack.c.b16 %v2017, %v2013
    %v2174 = vpack.c.b16 %v2018, %v2014
    %v2175 = vpack.c.b16 %v2019, %v2015
    %v2176 = vpack.c.b16 %v2024, %v2020
    %v2177 = vpack.c.b16 %v2025, %v2021
    %v2178 = vpack.c.b16 %v2026, %v2022
    %v2179 = vpack.c.b16 %v2027, %v2023
    %v2180 = vpack.c.b16 %v2032, %v2028
    %v2181 = vpack.c.b16 %v2033, %v2029
    %v2182 = vpack.c.b16 %v2034, %v2030
    %v2183 = vpack.c.b16 %v2035, %v2031
    %v2184 = vpack.c.b16 %v2040, %v2036
    %v2185 = vpack.c.b16 %v2041, %v2037
    %v2186 = vpack.c.b16 %v2042, %v2038
    %v2187 = vpack.c.b16 %v2043, %v2039
    %v2188 = vpack.c.b16 %v2048, %v2044
    %v2189 = vpack.c.b16 %v2049, %v2045
    %v2190 = vpack.c.b16 %v2050, %v2046
    %v2191 = vpack.c.b16 %v2051, %v2047
    %v2192 = vpack.c.b16 %v2056, %v2052
    %v2193 = vpack.c.b16 %v2057, %v2053
    %v2194 = vpack.c.b16 %v2058, %v2054
    %v2195 = vpack.c.b16 %v2059, %v2055
    %v2196 = vpack.c.b16 %v2064, %v2060
    %v2197 = vpack.c.b16 %v2065, %v2061
    %v2198 = vpack.c.b16 %v2066, %v2062
    %v2199 = vpack.c.b16 %v2067, %v2063
    %v2200 = vpack.c.b16 %v2072, %v2068
    %v2201 = vpack.c.b16 %v2073, %v2069
    %v2202 = vpack.c.b16 %v2074, %v2070
    %v2203 = vpack.c.b16 %v2075, %v2071
    %v2204 = vpack.c.b16 %v2080, %v2076
    %v2205 = vpack.c.b16 %v2081, %v2077
    %v2206 = vpack.c.b16 %v2082, %v2078
    %v2207 = vpack.c.b16 %v2083, %v2079
    %v2208 = vpack.c.b16 %v2088, %v2084
    %v2209 = vpack.c.b16 %v2089, %v2085
    %v2210 = vpack.c.b16 %v2090, %v2086
    %v2211 = vpack.c.b16 %v2091, %v2087
    %v2212 = vpack.c.b16 %v2096, %v2092
    %v2213 = vpack.c.b16 %v2097, %v2093
    %v2214 = vpack.c.b16 %v2098, %v2094
    %v2215 = vpack.c.b16 %v2099, %v2095
    %v2216 = vpack.c.b16 %v2104, %v2100
    %v2217 = vpack.c.b16 %v2105, %v2101
    %v2218 = vpack.c.b16 %v2106, %v2102
    %v2219 = vpack.c.b16 %v2107, %v2103
    %v2220 = vpack.c.b16 %v2112, %v2108
    %v2221 = vpack.c.b16 %v2113, %v2109
    %v2222 = vpack.c.b16 %v2114, %v2110
    %v2223 = vpack.c.b16 %v2115, %v2111
    %v2224 = vpack.c.b16 %v2120, %v2116
    %v2225 = vpack.c.b16 %v2121, %v2117
    %v2226 = vpack.c.b16 %v2122, %v2118
    %v2227 = vpack.c.b16 %v2123, %v2119
    %v2228 = vpack.c.b16 %v2128, %v2124
    %v2229 = vpack.c.b16 %v2129, %v2125
    %v2230 = vpack.c.b16 %v2130, %v2126
    %v2231 = vpack.c.b16 %v2131, %v2127
    %v2232 = vpack.c.b16 %v2136, %v2132
    %v2233 = vpack.c.b16 %v2137, %v2133
    %v2234 = vpack.c.b16 %v2138, %v2134
    %v2235 = vpack.c.b16 %v2139, %v2135
    %2332 = vmatprep.subr.bf16.mxu0 %v2141
    %2333 = vmatpush1.bf16.msra.mxu0 %v2140
    %2334 = vmatprep.subr.bf16.mxu0 %v2145
    %2335 = vmatpush1.bf16.msra.mxu0 %v2144
    %2336 = vmatprep.subr.bf16.mxu0 %v2149
    %2337 = vmatpush1.bf16.msra.mxu0 %v2148
    %2338 = vmatprep.subr.bf16.mxu0 %v2153
    %2339 = vmatpush1.bf16.msra.mxu0 %v2152
    %2340 = vmatprep.subr.bf16.mxu0 %v2157
    %2341 = vmatpush1.bf16.msra.mxu0 %v2156
    %2342 = vmatprep.subr.bf16.mxu0 %v2161
    %2343 = vmatpush1.bf16.msra.mxu0 %v2160
    %2344 = vmatprep.subr.bf16.mxu0 %v2165
    %2345 = vmatpush1.bf16.msra.mxu0 %v2164
    %2346 = vmatprep.subr.bf16.mxu0 %v2169
    %2347 = vmatpush1.bf16.msra.mxu0 %v2168
    %2348 = vmatprep.subr.bf16.mxu0 %v2173
    %2349 = vmatpush1.bf16.msra.mxu0 %v2172
    %2350 = vmatprep.subr.bf16.mxu0 %v2177
    %2351 = vmatpush1.bf16.msra.mxu0 %v2176
    %2352 = vmatprep.subr.bf16.mxu0 %v2181
    %2353 = vmatpush1.bf16.msra.mxu0 %v2180
    %2354 = vmatprep.subr.bf16.mxu0 %v2185
    %2355 = vmatpush1.bf16.msra.mxu0 %v2184
    %2356 = vmatprep.subr.bf16.mxu0 %v2189
    %2357 = vmatpush1.bf16.msra.mxu0 %v2188
    %2358 = vmatprep.subr.bf16.mxu0 %v2193
    %2359 = vmatpush1.bf16.msra.mxu0 %v2192
    %2360 = vmatprep.subr.bf16.mxu0 %v2197
    %2361 = vmatpush1.bf16.msra.mxu0 %v2196
    %2362 = vmatprep.subr.bf16.mxu0 %v2201
    %2363 = vmatpush1.bf16.msra.mxu0 %v2200
    %2364 = vmatprep.mubr.bf16.mxu0 %v1751
    %2365 = vmatmul.mubr.bf16.gmra.mrb[0].mxu0 %v1750
    %v2366 = vpop.f32.mrb[0].mxu0
    %v2367 = vadd.f32 0.0, %v2366
    %v2368 = vpop.f32.mrb[0].mxu0
    %v2369 = vadd.f32 0.0, %v2368
    %v2370 = vpop.f32.mrb[0].mxu0
    %v2371 = vadd.f32 0.0, %v2370
    %v2372 = vpop.f32.mrb[0].mxu0
    %v2373 = vadd.f32 0.0, %v2372
    %2374 = vmatprep.mubr.bf16.mxu0 %v1754
    %2375 = vmatmul.mubr.bf16.gmra.mrb[0].mxu0 %v1753
    %v2376 = vpop.f32.mrb[0].mxu0
    %v2377 = vadd.f32 0.0, %v2376
    %v2378 = vpop.f32.mrb[0].mxu0
    %v2379 = vadd.f32 0.0, %v2378
    %v2380 = vpop.f32.mrb[0].mxu0
    %v2381 = vpop.f32.mrb[0].mxu0
    %2382 = vdwg.mxu0
    %2383 = vmatprep.subr.bf16.mxu0 %v2205
    %2384 = vmatpush1.bf16.msra.mxu0 %v2204
    %2385 = vmatprep.subr.bf16.mxu0 %v2209
    %2386 = vmatpush1.bf16.msra.mxu0 %v2208
    %2387 = vmatprep.subr.bf16.mxu0 %v2213
    %2388 = vmatpush1.bf16.msra.mxu0 %v2212
    %2389 = vmatprep.subr.bf16.mxu0 %v2217
    %2390 = vmatpush1.bf16.msra.mxu0 %v2216
    %2391 = vmatprep.subr.bf16.mxu0 %v2221
    %2392 = vmatpush1.bf16.msra.mxu0 %v2220
    %2393 = vmatprep.subr.bf16.mxu0 %v2225
    %2394 = vmatpush1.bf16.msra.mxu0 %v2224
    %2395 = vmatprep.subr.bf16.mxu0 %v2229
    %2396 = vmatpush1.bf16.msra.mxu0 %v2228
    %2397 = vmatprep.subr.bf16.mxu0 %v2233
    %2398 = vmatpush1.bf16.msra.mxu0 %v2232
    %2399 = vmatprep.subr.bf16.mxu0 0
    %2400 = vmatpush1.bf16.msra.mxu0 0
    %2401 = vmatprep.subr.bf16.mxu0 0
    %2402 = vmatpush1.bf16.msra.mxu0 0
    %2403 = vmatprep.subr.bf16.mxu0 0
    %2404 = vmatpush1.bf16.msra.mxu0 0
    %2405 = vmatprep.subr.bf16.mxu0 0
    %2406 = vmatpush1.bf16.msra.mxu0 0
    %2407 = vmatprep.subr.bf16.mxu0 0
    %2408 = vmatpush1.bf16.msra.mxu0 0
    %2409 = vmatprep.subr.bf16.mxu0 0
    %2410 = vmatpush1.bf16.msra.mxu0 0
    %2411 = vmatprep.subr.bf16.mxu0 0
    %2412 = vmatpush1.bf16.msra.mxu0 0
    %2413 = vmatprep.subr.bf16.mxu0 0
    %2414 = vmatpush1.bf16.msra.mxu0 0
    %2415 = vmatprep.mubr.bf16.mxu0 0
    %2416 = vmatmul.mubr.bf16.gmra.mrb[0].mxu0 %v1752
    %v2417 = vpop.f32.mrb[0].mxu0
    %v2418 = vadd.f32 %v2367, %v2417
    %v2419 = vpop.f32.mrb[0].mxu0
    %v2420 = vadd.f32 %v2369, %v2419
    %v2421 = vpop.f32.mrb[0].mxu0
    %v2422 = vadd.f32 %v2371, %v2421
    %v2423 = vpop.f32.mrb[0].mxu0
    %v2424 = vadd.f32 %v2373, %v2423
    %2425 = vmatprep.mubr.bf16.mxu0 0
    %2426 = vmatmul.mubr.bf16.gmra.mrb[0].mxu0 %v1755
    %v2427 = vpop.f32.mrb[0].mxu0
    %v2428 = vadd.f32 %v2377, %v2427
    %v2429 = vpop.f32.mrb[0].mxu0
    %v2430 = vadd.f32 %v2379, %v2429
    %v2431 = vpop.f32.mrb[0].mxu0
    %v2432 = vpop.f32.mrb[0].mxu0
    %2433 = vdwg.mxu0
    %2434 = vmatprep.subr.bf16.mxu0 %v2143
    %2435 = vmatpush1.bf16.msra.mxu0 %v2142
    %2436 = vmatprep.subr.bf16.mxu0 %v2147
    %2437 = vmatpush1.bf16.msra.mxu0 %v2146
    %2438 = vmatprep.subr.bf16.mxu0 %v2151
    %2439 = vmatpush1.bf16.msra.mxu0 %v2150
    %2440 = vmatprep.subr.bf16.mxu0 %v2155
    %2441 = vmatpush1.bf16.msra.mxu0 %v2154
    %2442 = vmatprep.subr.bf16.mxu0 %v2159
    %2443 = vmatpush1.bf16.msra.mxu0 %v2158
    %2444 = vmatprep.subr.bf16.mxu0 %v2163
    %2445 = vmatpush1.bf16.msra.mxu0 %v2162
    %2446 = vmatprep.subr.bf16.mxu0 %v2167
    %2447 = vmatpush1.bf16.msra.mxu0 %v2166
    %2448 = vmatprep.subr.bf16.mxu0 %v2171
    %2449 = vmatpush1.bf16.msra.mxu0 %v2170
    %2450 = vmatprep.subr.bf16.mxu0 %v2175
    %2451 = vmatpush1.bf16.msra.mxu0 %v2174
    %2452 = vmatprep.subr.bf16.mxu0 %v2179
    %2453 = vmatpush1.bf16.msra.mxu0 %v2178
    %2454 = vmatprep.subr.bf16.mxu0 %v2183
    %2455 = vmatpush1.bf16.msra.mxu0 %v2182
    %2456 = vmatprep.subr.bf16.mxu0 %v2187
    %2457 = vmatpush1.bf16.msra.mxu0 %v2186
    %2458 = vmatprep.subr.bf16.mxu0 %v2191
    %2459 = vmatpush1.bf16.msra.mxu0 %v2190
    %2460 = vmatprep.subr.bf16.mxu0 %v2195
    %2461 = vmatpush1.bf16.msra.mxu0 %v2194
    %2462 = vmatprep.subr.bf16.mxu0 %v2199
    %2463 = vmatpush1.bf16.msra.mxu0 %v2198
    %2464 = vmatprep.subr.bf16.mxu0 %v2203
    %2465 = vmatpush1.bf16.msra.mxu0 %v2202
    %2466 = vmatprep.mubr.bf16.mxu0 %v1751
    %2467 = vmatmul.mubr.bf16.gmra.mrb[0].mxu0 %v1750
    %v2468 = vpop.f32.mrb[0].mxu0
    %v2469 = vadd.f32 0.0, %v2468
    %v2470 = vpop.f32.mrb[0].mxu0
    %v2471 = vadd.f32 0.0, %v2470
    %v2472 = vpop.f32.mrb[0].mxu0
    %v2473 = vadd.f32 0.0, %v2472
    %v2474 = vpop.f32.mrb[0].mxu0
    %v2475 = vadd.f32 0.0, %v2474
    %2476 = vmatprep.mubr.bf16.mxu0 %v1754
    %2477 = vmatmul.mubr.bf16.gmra.mrb[0].mxu0 %v1753
    %v2478 = vpop.f32.mrb[0].mxu0
    %v2479 = vadd.f32 0.0, %v2478
    %v2480 = vpop.f32.mrb[0].mxu0
    %v2481 = vadd.f32 0.0, %v2480
    %v2482 = vpop.f32.mrb[0].mxu0
    %v2483 = vpop.f32.mrb[0].mxu0
    %2484 = vdwg.mxu0
    %2485 = vmatprep.subr.bf16.mxu0 %v2207
    %2486 = vmatpush1.bf16.msra.mxu0 %v2206
    %2487 = vmatprep.subr.bf16.mxu0 %v2211
    %2488 = vmatpush1.bf16.msra.mxu0 %v2210
    %2489 = vmatprep.subr.bf16.mxu0 %v2215
    %2490 = vmatpush1.bf16.msra.mxu0 %v2214
    %2491 = vmatprep.subr.bf16.mxu0 %v2219
    %2492 = vmatpush1.bf16.msra.mxu0 %v2218
    %2493 = vmatprep.subr.bf16.mxu0 %v2223
    %2494 = vmatpush1.bf16.msra.mxu0 %v2222
    %2495 = vmatprep.subr.bf16.mxu0 %v2227
    %2496 = vmatpush1.bf16.msra.mxu0 %v2226
    %2497 = vmatprep.subr.bf16.mxu0 %v2231
    %2498 = vmatpush1.bf16.msra.mxu0 %v2230
    %2499 = vmatprep.subr.bf16.mxu0 %v2235
    %2500 = vmatpush1.bf16.msra.mxu0 %v2234
    %2501 = vmatprep.subr.bf16.mxu0 0
    %2502 = vmatpush1.bf16.msra.mxu0 0
    %2503 = vmatprep.subr.bf16.mxu0 0
    %2504 = vmatpush1.bf16.msra.mxu0 0
    %2505 = vmatprep.subr.bf16.mxu0 0
    %2506 = vmatpush1.bf16.msra.mxu0 0
    %2507 = vmatprep.subr.bf16.mxu0 0
    %2508 = vmatpush1.bf16.msra.mxu0 0
    %2509 = vmatprep.subr.bf16.mxu0 0
    %2510 = vmatpush1.bf16.msra.mxu0 0
    %2511 = vmatprep.subr.bf16.mxu0 0
    %2512 = vmatpush1.bf16.msra.mxu0 0
    %2513 = vmatprep.subr.bf16.mxu0 0
    %2514 = vmatpush1.bf16.msra.mxu0 0
    %2515 = vmatprep.subr.bf16.mxu0 0
    %2516 = vmatpush1.bf16.msra.mxu0 0
    %2517 = vmatprep.mubr.bf16.mxu0 0
    %2518 = vmatmul.mubr.bf16.gmra.mrb[0].mxu0 %v1752
    %v2519 = vpop.f32.mrb[0].mxu0
    %v2520 = vadd.f32 %v2469, %v2519
    %v2521 = vpop.f32.mrb[0].mxu0
    %v2522 = vadd.f32 %v2471, %v2521
    %v2523 = vpop.f32.mrb[0].mxu0
    %v2524 = vadd.f32 %v2473, %v2523
    %v2525 = vpop.f32.mrb[0].mxu0
    %v2526 = vadd.f32 %v2475, %v2525
    %2527 = vmatprep.mubr.bf16.mxu0 0
    %2528 = vmatmul.mubr.bf16.gmra.mrb[0].mxu0 %v1755
    %v2529 = vpop.f32.mrb[0].mxu0
    %v2530 = vadd.f32 %v2479, %v2529
    %v2531 = vpop.f32.mrb[0].mxu0
    %v2532 = vadd.f32 %v2481, %v2531
    %v2533 = vpop.f32.mrb[0].mxu0
    %v2534 = vpop.f32.mrb[0].mxu0
    %2535 = vdwg.mxu0
    %v2536 = vadd.s32 %v1319, 16
    %vm2537 = vcmp.lt.s32.totalorder %v1319, 0
    %v2538 = vsub.s32 0, %v1319
    %v2539 = vsel %vm2537, %v2538, %v1319
    %v2540 = vmul.u32.u64.compose %v2539, 3435973837
    %v2541 = vextract.low.u32 %v2540
    %v2542 = vextract.high.u32 %v2540
    %v2543 = vshrl.u32 %v2542, 3
    %v2544 = vmul.u32 %v2543, 10
    %v2545 = vsub.s32 %v2539, %v2544
    %v2546 = vsub.s32 0, %v2545
    %v2547 = vsel %vm2537, %v2546, %v2545
    %vm2548 = vcmp.lt.s32.totalorder %v1320, 0
    %v2549 = vsub.s32 0, %v1320
    %v2550 = vsel %vm2548, %v2549, %v1320
    %v2551 = vmul.u32.u64.compose %v2550, 3435973837
    %v2552 = vextract.low.u32 %v2551
    %v2553 = vextract.high.u32 %v2551
    %v2554 = vshrl.u32 %v2553, 3
    %v2555 = vmul.u32 %v2554, 10
    %v2556 = vsub.s32 %v2550, %v2555
    %v2557 = vsub.s32 0, %v2556
    %v2558 = vsel %vm2548, %v2557, %v2556
    %vm2559 = vcmp.lt.s32.totalorder %v2536, 0
    %v2560 = vsub.s32 0, %v2536
    %v2561 = vsel %vm2559, %v2560, %v2536
    %v2562 = vmul.u32.u64.compose %v2561, 3435973837
    %v2563 = vextract.low.u32 %v2562
    %v2564 = vextract.high.u32 %v2562
    %v2565 = vshrl.u32 %v2564, 3
    %v2566 = vmul.u32 %v2565, 10
    %v2567 = vsub.s32 %v2561, %v2566
    %v2568 = vsub.s32 0, %v2567
    %v2569 = vsel %vm2559, %v2568, %v2567
    %vm2570 = vcmp.ne.s32.totalorder %v2547, 0
    %vm2571 = vcmp.ne.s32.totalorder %v2558, 0
    %vm2572 = vcmp.ne.s32.totalorder %v2569, 0
    %vm2573 = vcmp.lt.s32.totalorder %v2547, 0
    %vm2574 = vcmp.lt.s32.totalorder %v2558, 0
    %vm2575 = vcmp.lt.s32.totalorder %v2569, 0
    %vm2576 = vmand %vm2573, %vm2570
    %vm2577 = vmand %vm2574, %vm2571
    %vm2578 = vmand %vm2575, %vm2572
    %v2579 = vadd.s32 %v2547, 10
    %v2580 = vadd.s32 %v2558, 10
    %v2581 = vadd.s32 %v2569, 10
    %v2582 = vsel %vm2576, %v2579, %v2547
    %v2583 = vsel %vm2577, %v2580, %v2558
    %v2584 = vsel %vm2578, %v2581, %v2569
    %vm2585 = vcmp.lt.s32.totalorder %v2582, 8
    %vm2586 = vcmp.lt.s32.totalorder %v2583, 8
    %vm2587 = vcmp.lt.s32.totalorder %v2584, 8
    %v2588 = vsel %vm2585, 1, 0
    %v2589 = vsel %vm2586, 1, 0
    %v2590 = vsel %vm2587, 1, 0
    %v2591 = vcvt.s32.f32 %v2588
    %v2592 = vcvt.s32.f32 %v2589
    %v2593 = vcvt.s32.f32 %v2590
    %v2594 = vmul.f32 %v2418, %v2591
    %v2595 = vmul.f32 %v2420, %v2591
    %v2596 = vmul.f32 %v2520, %v2591
    %v2597 = vmul.f32 %v2522, %v2591
    %v2598 = vmul.f32 %v2422, %v2592
    %v2599 = vmul.f32 %v2424, %v2592
    %v2600 = vmul.f32 %v2524, %v2592
    %v2601 = vmul.f32 %v2526, %v2592
    %v2602 = vmul.f32 %v2428, %v2593
    %v2603 = vmul.f32 %v2430, %v2593
    %v2604 = vmul.f32 %v2530, %v2593
    %v2605 = vmul.f32 %v2532, %v2593
    %v2606 = vadd.f32 %v2594, %v2598
    %v2607 = vsel %vm334, %v2602, 0.0
    %v2608 = vadd.f32 %v2606, %v2607
    %v2609 = vrot.slane %v2608, 4
    %v2610 = vadd.f32 %v2608, %v2609
    %v2611 = vrot.slane %v2610, 2
    %v2612 = vadd.f32 %v2610, %v2611
    %v2613 = vrot.slane %v2612, 1
    %v2614 = vadd.f32 %v2612, %v2613
    %v2615 = vadd.f32 %v2595, %v2599
    %v2616 = vsel %vm334, %v2603, 0.0
    %v2617 = vadd.f32 %v2615, %v2616
    %v2618 = vrot.slane %v2617, 4
    %v2619 = vadd.f32 %v2617, %v2618
    %v2620 = vrot.slane %v2619, 2
    %v2621 = vadd.f32 %v2619, %v2620
    %v2622 = vrot.slane %v2621, 1
    %v2623 = vadd.f32 %v2621, %v2622
    %v2624 = vadd.f32 %v2596, %v2600
    %v2625 = vsel %vm334, %v2604, 0.0
    %v2626 = vadd.f32 %v2624, %v2625
    %v2627 = vrot.slane %v2626, 4
    %v2628 = vadd.f32 %v2626, %v2627
    %v2629 = vrot.slane %v2628, 2
    %v2630 = vadd.f32 %v2628, %v2629
    %v2631 = vrot.slane %v2630, 1
    %v2632 = vadd.f32 %v2630, %v2631
    %v2633 = vadd.f32 %v2597, %v2601
    %v2634 = vsel %vm334, %v2605, 0.0
    %v2635 = vadd.f32 %v2633, %v2634
    %v2636 = vrot.slane %v2635, 4
    %v2637 = vadd.f32 %v2635, %v2636
    %v2638 = vrot.slane %v2637, 2
    %v2639 = vadd.f32 %v2637, %v2638
    %v2640 = vrot.slane %v2639, 1
    %v2641 = vadd.f32 %v2639, %v2640
    %v2642 = vmul.f32 %v2594, %v2418
    %v2643 = vmul.f32 %v2595, %v2420
    %v2644 = vmul.f32 %v2596, %v2520
    %v2645 = vmul.f32 %v2597, %v2522
    %v2646 = vmul.f32 %v2598, %v2422
    %v2647 = vmul.f32 %v2599, %v2424
    %v2648 = vmul.f32 %v2600, %v2524
    %v2649 = vmul.f32 %v2601, %v2526
    %v2650 = vmul.f32 %v2602, %v2428
    %v2651 = vmul.f32 %v2603, %v2430
    %v2652 = vmul.f32 %v2604, %v2530
    %v2653 = vmul.f32 %v2605, %v2532
    %v2654 = vadd.f32 %v2642, %v2646
    %v2655 = vsel %vm334, %v2650, 0.0
    %v2656 = vadd.f32 %v2654, %v2655
    %v2657 = vrot.slane %v2656, 4
    %v2658 = vadd.f32 %v2656, %v2657
    %v2659 = vrot.slane %v2658, 2
    %v2660 = vadd.f32 %v2658, %v2659
    %v2661 = vrot.slane %v2660, 1
    %v2662 = vadd.f32 %v2660, %v2661
    %v2663 = vadd.f32 %v2643, %v2647
    %v2664 = vsel %vm334, %v2651, 0.0
    %v2665 = vadd.f32 %v2663, %v2664
    %v2666 = vrot.slane %v2665, 4
    %v2667 = vadd.f32 %v2665, %v2666
    %v2668 = vrot.slane %v2667, 2
    %v2669 = vadd.f32 %v2667, %v2668
    %v2670 = vrot.slane %v2669, 1
    %v2671 = vadd.f32 %v2669, %v2670
    %v2672 = vadd.f32 %v2644, %v2648
    %v2673 = vsel %vm334, %v2652, 0.0
    %v2674 = vadd.f32 %v2672, %v2673
    %v2675 = vrot.slane %v2674, 4
    %v2676 = vadd.f32 %v2674, %v2675
    %v2677 = vrot.slane %v2676, 2
    %v2678 = vadd.f32 %v2676, %v2677
    %v2679 = vrot.slane %v2678, 1
    %v2680 = vadd.f32 %v2678, %v2679
    %v2681 = vadd.f32 %v2645, %v2649
    %v2682 = vsel %vm334, %v2653, 0.0
    %v2683 = vadd.f32 %v2681, %v2682
    %v2684 = vrot.slane %v2683, 4
    %v2685 = vadd.f32 %v2683, %v2684
    %v2686 = vrot.slane %v2685, 2
    %v2687 = vadd.f32 %v2685, %v2686
    %v2688 = vrot.slane %v2687, 1
    %v2689 = vadd.f32 %v2687, %v2688
    %v2690 = vsel %vm395, %v2614, %v2662
    %v2691 = vsel %vm395, %v2623, %v2671
    %v2692 = vsel %vm395, %v2632, %v2680
    %v2693 = vsel %vm395, %v2641, %v2689
    %v2694 = vld [vmem:[%s12] sm:$0xff]
    %v2695 = vld [vmem:[%s12 + $0x8] sm:$0xff]
    %v2696 = vld [vmem:[%s12 + $0x10] sm:$0xff]
    %v2697 = vld [vmem:[%s12 + $0x18] sm:$0xff]
    %v2698 = vld [vmem:[%s12 + $0x20] sm:$0xff]
    %v2699 = vld [vmem:[%s12 + $0x28] sm:$0xff]
    %v2700 = vld [vmem:[%s12 + $0x30] sm:$0xff]
    %v2701 = vld [vmem:[%s12 + $0x38] sm:$0xff]
    %v2702 = vld [vmem:[%s12 + $0x40] sm:$0xff]
    %v2703 = vld [vmem:[%s12 + $0x48] sm:$0xff]
    %v2704 = vld [vmem:[%s12 + $0x50] sm:$0xff]
    %v2705 = vld [vmem:[%s12 + $0x58] sm:$0xff]
    %v2706 = vld [vmem:[%s12 + $0x60] sm:$0xff]
    %v2707 = vld [vmem:[%s12 + $0x68] sm:$0xff]
    %v2708 = vld [vmem:[%s12 + $0x70] sm:$0xff]
    %v2709 = vld [vmem:[%s12 + $0x78] sm:$0xff]
    %v2710 = vld [vmem:[%s12 + $0x80] sm:$0xff]
    %v2711 = vld [vmem:[%s12 + $0x88] sm:$0xff]
    %v2712 = vld [vmem:[%s12 + $0x90] sm:$0xff]
    %v2713 = vld [vmem:[%s12 + $0x98] sm:$0xff]
    %v2714 = vld [vmem:[%s12 + $0xa0] sm:$0xff]
    %v2715 = vld [vmem:[%s12 + $0xa8] sm:$0xff]
    %v2716 = vld [vmem:[%s12 + $0xb0] sm:$0xff]
    %v2717 = vld [vmem:[%s12 + $0xb8] sm:$0xff]
    %v2718 = vld [vmem:[%s12 + $0xc0] sm:$0xff]
    %v2719 = vld [vmem:[%s12 + $0xc8] sm:$0xff]
    %v2720 = vld [vmem:[%s12 + $0xd0] sm:$0xff]
    %v2721 = vld [vmem:[%s12 + $0xd8] sm:$0xff]
    %v2722 = vld [vmem:[%s12 + $0xe0] sm:$0xff]
    %v2723 = vld [vmem:[%s12 + $0xe8] sm:$0xff]
    %v2724 = vld [vmem:[%s12 + $0xf0] sm:$0xff]
    %v2725 = vld [vmem:[%s12 + $0xf8] sm:$0xff]
    %v2726 = vld [vmem:[%s12 + $0x100] sm:$0xff]
    %v2727 = vld [vmem:[%s12 + $0x108] sm:$0xff]
    %v2728 = vld [vmem:[%s12 + $0x110] sm:$0xff]
    %v2729 = vld [vmem:[%s12 + $0x118] sm:$0xff]
    %v2730 = vld [vmem:[%s12 + $0x120] sm:$0xff]
    %v2731 = vld [vmem:[%s12 + $0x128] sm:$0xff]
    %v2732 = vld [vmem:[%s12 + $0x130] sm:$0xff]
    %v2733 = vld [vmem:[%s12 + $0x138] sm:$0xff]
    %v2734 = vld [vmem:[%s12 + $0x140] sm:$0xff]
    %v2735 = vld [vmem:[%s12 + $0x148] sm:$0xff]
    %v2736 = vld [vmem:[%s12 + $0x150] sm:$0xff]
    %v2737 = vld [vmem:[%s12 + $0x158] sm:$0xff]
    %v2738 = vld [vmem:[%s12 + $0x160] sm:$0xff]
    %v2739 = vld [vmem:[%s12 + $0x168] sm:$0xff]
    %v2740 = vld [vmem:[%s12 + $0x170] sm:$0xff]
    %v2741 = vld [vmem:[%s12 + $0x178] sm:$0xff]
    %v2742 = vld [vmem:[%s12 + $0x180] sm:$0xff]
    %v2743 = vld [vmem:[%s12 + $0x188] sm:$0xff]
    %v2744 = vld [vmem:[%s12 + $0x190] sm:$0xff]
    %v2745 = vld [vmem:[%s12 + $0x198] sm:$0xff]
    %v2746 = vld [vmem:[%s12 + $0x1a0] sm:$0xff]
    %v2747 = vld [vmem:[%s12 + $0x1a8] sm:$0xff]
    %v2748 = vld [vmem:[%s12 + $0x1b0] sm:$0xff]
    %v2749 = vld [vmem:[%s12 + $0x1b8] sm:$0xff]
    %v2750 = vld [vmem:[%s12 + $0x1c0] sm:$0xff]
    %v2751 = vld [vmem:[%s12 + $0x1c8] sm:$0xff]
    %v2752 = vld [vmem:[%s12 + $0x1d0] sm:$0xff]
    %v2753 = vld [vmem:[%s12 + $0x1d8] sm:$0xff]
    %v2754 = vld [vmem:[%s12 + $0x1e0] sm:$0xff]
    %v2755 = vld [vmem:[%s12 + $0x1e8] sm:$0xff]
    %v2756 = vld [vmem:[%s12 + $0x1f0] sm:$0xff]
    %v2757 = vld [vmem:[%s12 + $0x1f8] sm:$0xff]
    %2758 = vmatprep.subr.mxu0 0.0
    %2759 = vmatpush1.msra.mxu0 %v2694
    %2760 = vmatprep.subr.mxu0 0.0
    %2761 = vmatpush1.msra.mxu0 %v2695
    %2762 = vmatprep.subr.mxu0 0.0
    %2763 = vmatpush1.msra.mxu0 %v2696
    %2764 = vmatprep.subr.mxu0 0.0
    %2765 = vmatpush1.msra.mxu0 %v2697
    %2766 = vmatprep.subr.mxu0 0.0
    %2767 = vmatpush1.msra.mxu0 %v2698
    %2768 = vmatprep.subr.mxu0 0.0
    %2769 = vmatpush1.msra.mxu0 %v2699
    %2770 = vmatprep.subr.mxu0 0.0
    %2771 = vmatpush1.msra.mxu0 %v2700
    %2772 = vmatprep.subr.mxu0 0.0
    %2773 = vmatpush1.msra.mxu0 %v2701
    %2774 = vmatprep.subr.mxu0 0.0
    %2775 = vmatpush1.msra.mxu0 %v2702
    %2776 = vmatprep.subr.mxu0 0.0
    %2777 = vmatpush1.msra.mxu0 %v2703
    %2778 = vmatprep.subr.mxu0 0.0
    %2779 = vmatpush1.msra.mxu0 %v2704
    %2780 = vmatprep.subr.mxu0 0.0
    %2781 = vmatpush1.msra.mxu0 %v2705
    %2782 = vmatprep.subr.mxu0 0.0
    %2783 = vmatpush1.msra.mxu0 %v2706
    %2784 = vmatprep.subr.mxu0 0.0
    %2785 = vmatpush1.msra.mxu0 %v2707
    %2786 = vmatprep.subr.mxu0 0.0
    %2787 = vmatpush1.msra.mxu0 %v2708
    %2788 = vmatprep.subr.mxu0 0.0
    %2789 = vmatpush1.msra.mxu0 %v2709
    %2790 = vmatprep.subr.mxu0 0.0
    %2791 = vmatpush1.msra.mxu0 %v2710
    %2792 = vmatprep.subr.mxu0 0.0
    %2793 = vmatpush1.msra.mxu0 %v2711
    %2794 = vmatprep.subr.mxu0 0.0
    %2795 = vmatpush1.msra.mxu0 %v2712
    %2796 = vmatprep.subr.mxu0 0.0
    %2797 = vmatpush1.msra.mxu0 %v2713
    %2798 = vmatprep.subr.mxu0 0.0
    %2799 = vmatpush1.msra.mxu0 %v2714
    %2800 = vmatprep.subr.mxu0 0.0
    %2801 = vmatpush1.msra.mxu0 %v2715
    %2802 = vmatprep.subr.mxu0 0.0
    %2803 = vmatpush1.msra.mxu0 %v2716
    %2804 = vmatprep.subr.mxu0 0.0
    %2805 = vmatpush1.msra.mxu0 %v2717
    %2806 = vmatprep.subr.mxu0 0.0
    %2807 = vmatpush1.msra.mxu0 %v2718
    %2808 = vmatprep.subr.mxu0 0.0
    %2809 = vmatpush1.msra.mxu0 %v2719
    %2810 = vmatprep.subr.mxu0 0.0
    %2811 = vmatpush1.msra.mxu0 %v2720
    %2812 = vmatprep.subr.mxu0 0.0
    %2813 = vmatpush1.msra.mxu0 %v2721
    %2814 = vmatprep.subr.mxu0 0.0
    %2815 = vmatpush1.msra.mxu0 %v2722
    %2816 = vmatprep.subr.mxu0 0.0
    %2817 = vmatpush1.msra.mxu0 %v2723
    %2818 = vmatprep.subr.mxu0 0.0
    %2819 = vmatpush1.msra.mxu0 %v2724
    %2820 = vmatprep.subr.mxu0 0.0
    %2821 = vmatpush1.msra.mxu0 %v2725
    %2822 = vmatprep.mubr.f32.mxu0 %v2691
    %2823 = vmatmul.mubr.f32.gmra.mrb[0].mxu0 %v2690
    %v2824 = vpop.f32.mrb[0].mxu0
    %v2825 = vadd.f32 0.0, %v2824
    %v2826 = vpop.f32.mrb[0].mxu0
    %2827 = vdwg.mxu0
    %2828 = vmatprep.subr.mxu0 0.0
    %2829 = vmatpush1.msra.mxu0 %v2726
    %2830 = vmatprep.subr.mxu0 0.0
    %2831 = vmatpush1.msra.mxu0 %v2727
    %2832 = vmatprep.subr.mxu0 0.0
    %2833 = vmatpush1.msra.mxu0 %v2728
    %2834 = vmatprep.subr.mxu0 0.0
    %2835 = vmatpush1.msra.mxu0 %v2729
    %2836 = vmatprep.subr.mxu0 0.0
    %2837 = vmatpush1.msra.mxu0 %v2730
    %2838 = vmatprep.subr.mxu0 0.0
    %2839 = vmatpush1.msra.mxu0 %v2731
    %2840 = vmatprep.subr.mxu0 0.0
    %2841 = vmatpush1.msra.mxu0 %v2732
    %2842 = vmatprep.subr.mxu0 0.0
    %2843 = vmatpush1.msra.mxu0 %v2733
    %2844 = vmatprep.subr.mxu0 0.0
    %2845 = vmatpush1.msra.mxu0 %v2734
    %2846 = vmatprep.subr.mxu0 0.0
    %2847 = vmatpush1.msra.mxu0 %v2735
    %2848 = vmatprep.subr.mxu0 0.0
    %2849 = vmatpush1.msra.mxu0 %v2736
    %2850 = vmatprep.subr.mxu0 0.0
    %2851 = vmatpush1.msra.mxu0 %v2737
    %2852 = vmatprep.subr.mxu0 0.0
    %2853 = vmatpush1.msra.mxu0 %v2738
    %2854 = vmatprep.subr.mxu0 0.0
    %2855 = vmatpush1.msra.mxu0 %v2739
    %2856 = vmatprep.subr.mxu0 0.0
    %2857 = vmatpush1.msra.mxu0 %v2740
    %2858 = vmatprep.subr.mxu0 0.0
    %2859 = vmatpush1.msra.mxu0 %v2741
    %2860 = vmatprep.subr.mxu0 0.0
    %2861 = vmatpush1.msra.mxu0 %v2742
    %2862 = vmatprep.subr.mxu0 0.0
    %2863 = vmatpush1.msra.mxu0 %v2743
    %2864 = vmatprep.subr.mxu0 0.0
    %2865 = vmatpush1.msra.mxu0 %v2744
    %2866 = vmatprep.subr.mxu0 0.0
    %2867 = vmatpush1.msra.mxu0 %v2745
    %2868 = vmatprep.subr.mxu0 0.0
    %2869 = vmatpush1.msra.mxu0 %v2746
    %2870 = vmatprep.subr.mxu0 0.0
    %2871 = vmatpush1.msra.mxu0 %v2747
    %2872 = vmatprep.subr.mxu0 0.0
    %2873 = vmatpush1.msra.mxu0 %v2748
    %2874 = vmatprep.subr.mxu0 0.0
    %2875 = vmatpush1.msra.mxu0 %v2749
    %2876 = vmatprep.subr.mxu0 0.0
    %2877 = vmatpush1.msra.mxu0 %v2750
    %2878 = vmatprep.subr.mxu0 0.0
    %2879 = vmatpush1.msra.mxu0 %v2751
    %2880 = vmatprep.subr.mxu0 0.0
    %2881 = vmatpush1.msra.mxu0 %v2752
    %2882 = vmatprep.subr.mxu0 0.0
    %2883 = vmatpush1.msra.mxu0 %v2753
    %2884 = vmatprep.subr.mxu0 0.0
    %2885 = vmatpush1.msra.mxu0 %v2754
    %2886 = vmatprep.subr.mxu0 0.0
    %2887 = vmatpush1.msra.mxu0 %v2755
    %2888 = vmatprep.subr.mxu0 0.0
    %2889 = vmatpush1.msra.mxu0 %v2756
    %2890 = vmatprep.subr.mxu0 0.0
    %2891 = vmatpush1.msra.mxu0 %v2757
    %2892 = vmatprep.mubr.f32.mxu0 %v2693
    %2893 = vmatmul.mubr.f32.gmra.mrb[0].mxu0 %v2692
    %v2894 = vpop.f32.mrb[0].mxu0
    %v2895 = vadd.f32 %v2825, %v2894
    %v2896 = vpop.f32.mrb[0].mxu0
    %2897 = vdwg.mxu0
    %v2898 = vmul.f32 %v2895, 0.001953125
    %v2899 = vmul.f32 %v2898, %v2898
    %v2901 = vrot.slane %v2899, 7
    %v2903 = vsub.f32 %v2898, %v2901
    %v2904 = vld [vmem:[%s14] sm:$0x1]
    %v2905 = vadd.f32 %v2903, 1e-05
    %v2906 = vrsqrt.pop %v2905
    %v2908 = vrot.slane %v2906, 1
    %v2910 = vmul.f32 %v2904, %v2908
    %v2911 = vld [vmem:[%s14 + $0x1] sm:$0x1]
    %v2912 = vmul.f32 %v2898, %v2910
    %v2913 = vsub.f32 %v2911, %v2912
    %v2915 = vrot.slane %v2913, 7
    %v2917 = vsel %vm395, %v2910, %v2915
    %v2918 = vld [vmem:[#allocation9] sm:$0xff]
    %v2919 = vld [vmem:[#allocation9 + $0x8] sm:$0xff]
    %v2920 = vld [vmem:[#allocation9 + $0x10] sm:$0xff]
    %v2921 = vld [vmem:[#allocation9 + $0x18] sm:$0xff]
    %v2922 = vld [vmem:[#allocation9 + $0x20] sm:$0xff]
    %v2923 = vld [vmem:[#allocation9 + $0x28] sm:$0xff]
    %v2924 = vld [vmem:[#allocation9 + $0x30] sm:$0xff]
    %v2925 = vld [vmem:[#allocation9 + $0x38] sm:$0xff]
    %v2927 = vsel %vm188, %v2917, 0
    %2929 = vmatprep.subr.mxu0 %v2919
    %2930 = vmatpush1.msra.mxu0 %v2918
    %2931 = vmatprep.subr.mxu0 %v2923
    %2932 = vmatpush1.msra.mxu0 %v2922
    %2933 = vmatprep.subr.mxu0 0.0
    %2934 = vmatpush1.msra.mxu0 0.0
    %2935 = vmatprep.subr.mxu0 0.0
    %2936 = vmatpush1.msra.mxu0 0.0
    %2937 = vmatprep.subr.mxu0 0.0
    %2938 = vmatpush1.msra.mxu0 0.0
    %2939 = vmatprep.subr.mxu0 0.0
    %2940 = vmatpush1.msra.mxu0 0.0
    %2941 = vmatprep.subr.mxu0 0.0
    %2942 = vmatpush1.msra.mxu0 0.0
    %2943 = vmatprep.subr.mxu0 0.0
    %2944 = vmatpush1.msra.mxu0 0.0
    %2945 = vmatprep.subr.mxu0 0.0
    %2946 = vmatpush1.msra.mxu0 0.0
    %2947 = vmatprep.subr.mxu0 0.0
    %2948 = vmatpush1.msra.mxu0 0.0
    %2949 = vmatprep.subr.mxu0 0.0
    %2950 = vmatpush1.msra.mxu0 0.0
    %2951 = vmatprep.subr.mxu0 0.0
    %2952 = vmatpush1.msra.mxu0 0.0
    %2953 = vmatprep.subr.mxu0 0.0
    %2954 = vmatpush1.msra.mxu0 0.0
    %2955 = vmatprep.subr.mxu0 0.0
    %2956 = vmatpush1.msra.mxu0 0.0
    %2957 = vmatprep.subr.mxu0 0.0
    %2958 = vmatpush1.msra.mxu0 0.0
    %2959 = vmatprep.subr.mxu0 0.0
    %2960 = vmatpush1.msra.mxu0 0.0
    %2961 = vmatprep.subr.mxu0 0.0
    %2962 = vmatpush1.msra.mxu0 0.0
    %2963 = vmatprep.subr.mxu0 0.0
    %2964 = vmatpush1.msra.mxu0 0.0
    %2965 = vmatprep.subr.mxu0 0.0
    %2966 = vmatpush1.msra.mxu0 0.0
    %2967 = vmatprep.subr.mxu0 0.0
    %2968 = vmatpush1.msra.mxu0 0.0
    %2969 = vmatprep.subr.mxu0 0.0
    %2970 = vmatpush1.msra.mxu0 0.0
    %2971 = vmatprep.subr.mxu0 0.0
    %2972 = vmatpush1.msra.mxu0 0.0
    %2973 = vmatprep.subr.mxu0 0.0
    %2974 = vmatpush1.msra.mxu0 0.0
    %2975 = vmatprep.subr.mxu0 0.0
    %2976 = vmatpush1.msra.mxu0 0.0
    %2977 = vmatprep.subr.mxu0 0.0
    %2978 = vmatpush1.msra.mxu0 0.0
    %2979 = vmatprep.subr.mxu0 0.0
    %2980 = vmatpush1.msra.mxu0 0.0
    %2981 = vmatprep.subr.mxu0 0.0
    %2982 = vmatpush1.msra.mxu0 0.0
    %2983 = vmatprep.subr.mxu0 0.0
    %2984 = vmatpush1.msra.mxu0 0.0
    %2985 = vmatprep.subr.mxu0 0.0
    %2986 = vmatpush1.msra.mxu0 0.0
    %2987 = vmatprep.subr.mxu0 0.0
    %2988 = vmatpush1.msra.mxu0 0.0
    %2989 = vmatprep.subr.mxu0 0.0
    %2990 = vmatpush1.msra.mxu0 0.0
    %2991 = vmatprep.subr.mxu0 0.0
    %2992 = vmatpush1.msra.mxu0 0.0
    %2993 = vmatprep.mubr.f32.mxu0 0.0
    %2994 = vmatmul.mubr.f32.gmra.mrb[0].mxu0 %v2927
    %v2995 = vpop.f32.mrb[0].mxu0
    %v2996 = vadd.f32 0.0, %v2995
    %v2997 = vpop.f32.mrb[0].mxu0
    %v2998 = vadd.f32 0.0, %v2997
    %2999 = vdwg.mxu0
    %3000 = vmatprep.subr.mxu0 %v2921
    %3001 = vmatpush1.msra.mxu0 %v2920
    %3002 = vmatprep.subr.mxu0 %v2925
    %3003 = vmatpush1.msra.mxu0 %v2924
    %3004 = vmatprep.subr.mxu0 0.0
    %3005 = vmatpush1.msra.mxu0 0.0
    %3006 = vmatprep.subr.mxu0 0.0
    %3007 = vmatpush1.msra.mxu0 0.0
    %3008 = vmatprep.subr.mxu0 0.0
    %3009 = vmatpush1.msra.mxu0 0.0
    %3010 = vmatprep.subr.mxu0 0.0
    %3011 = vmatpush1.msra.mxu0 0.0
    %3012 = vmatprep.subr.mxu0 0.0
    %3013 = vmatpush1.msra.mxu0 0.0
    %3014 = vmatprep.subr.mxu0 0.0
    %3015 = vmatpush1.msra.mxu0 0.0
    %3016 = vmatprep.subr.mxu0 0.0
    %3017 = vmatpush1.msra.mxu0 0.0
    %3018 = vmatprep.subr.mxu0 0.0
    %3019 = vmatpush1.msra.mxu0 0.0
    %3020 = vmatprep.subr.mxu0 0.0
    %3021 = vmatpush1.msra.mxu0 0.0
    %3022 = vmatprep.subr.mxu0 0.0
    %3023 = vmatpush1.msra.mxu0 0.0
    %3024 = vmatprep.subr.mxu0 0.0
    %3025 = vmatpush1.msra.mxu0 0.0
    %3026 = vmatprep.subr.mxu0 0.0
    %3027 = vmatpush1.msra.mxu0 0.0
    %3028 = vmatprep.subr.mxu0 0.0
    %3029 = vmatpush1.msra.mxu0 0.0
    %3030 = vmatprep.subr.mxu0 0.0
    %3031 = vmatpush1.msra.mxu0 0.0
    %3032 = vmatprep.subr.mxu0 0.0
    %3033 = vmatpush1.msra.mxu0 0.0
    %3034 = vmatprep.subr.mxu0 0.0
    %3035 = vmatpush1.msra.mxu0 0.0
    %3036 = vmatprep.subr.mxu0 0.0
    %3037 = vmatpush1.msra.mxu0 0.0
    %3038 = vmatprep.subr.mxu0 0.0
    %3039 = vmatpush1.msra.mxu0 0.0
    %3040 = vmatprep.subr.mxu0 0.0
    %3041 = vmatpush1.msra.mxu0 0.0
    %3042 = vmatprep.subr.mxu0 0.0
    %3043 = vmatpush1.msra.mxu0 0.0
    %3044 = vmatprep.subr.mxu0 0.0
    %3045 = vmatpush1.msra.mxu0 0.0
    %3046 = vmatprep.subr.mxu0 0.0
    %3047 = vmatpush1.msra.mxu0 0.0
    %3048 = vmatprep.subr.mxu0 0.0
    %3049 = vmatpush1.msra.mxu0 0.0
    %3050 = vmatprep.subr.mxu0 0.0
    %3051 = vmatpush1.msra.mxu0 0.0
    %3052 = vmatprep.subr.mxu0 0.0
    %3053 = vmatpush1.msra.mxu0 0.0
    %3054 = vmatprep.subr.mxu0 0.0
    %3055 = vmatpush1.msra.mxu0 0.0
    %3056 = vmatprep.subr.mxu0 0.0
    %3057 = vmatpush1.msra.mxu0 0.0
    %3058 = vmatprep.subr.mxu0 0.0
    %3059 = vmatpush1.msra.mxu0 0.0
    %3060 = vmatprep.subr.mxu0 0.0
    %3061 = vmatpush1.msra.mxu0 0.0
    %3062 = vmatprep.subr.mxu0 0.0
    %3063 = vmatpush1.msra.mxu0 0.0
    %3064 = vmatprep.mubr.f32.mxu0 0.0
    %3065 = vmatmul.mubr.f32.gmra.mrb[0].mxu0 %v2927
    %v3066 = vpop.f32.mrb[0].mxu0
    %v3067 = vadd.f32 0.0, %v3066
    %v3068 = vpop.f32.mrb[0].mxu0
    %v3069 = vadd.f32 0.0, %v3068
    %3070 = vdwg.mxu0
    %v3071 = vlaneseq
    %v3072 = vshrl.u32 %v3071, 7
    %v3073 = vsub.s32 0, %v3072
    %v3074 = vrot.slane %v2996, %v3073
    %v3075 = vlaneseq
    %v3076 = vshrl.u32 %v3075, 7
    %v3077 = vsub.s32 0, %v3076
    %v3078 = vrot.slane %v2998, %v3077
    %v3079 = vlaneseq
    %v3080 = vshrl.u32 %v3079, 7
    %v3081 = vsub.s32 0, %v3080
    %v3082 = vrot.slane %v3067, %v3081
    %v3083 = vlaneseq
    %v3084 = vshrl.u32 %v3083, 7
    %v3085 = vsub.s32 0, %v3084
    %v3086 = vrot.slane %v3069, %v3085
    %v3087 = vmul.f32 %v2418, %v3074
    %v3088 = vmul.f32 %v2420, %v3078
    %v3089 = vmul.f32 %v2520, %v3082
    %v3090 = vmul.f32 %v2522, %v3086
    %v3091 = vmul.f32 %v2422, %v3074
    %v3092 = vmul.f32 %v2424, %v3078
    %v3093 = vmul.f32 %v2524, %v3082
    %v3094 = vmul.f32 %v2526, %v3086
    %v3095 = vmul.f32 %v2428, %v3074
    %v3096 = vmul.f32 %v2430, %v3078
    %v3097 = vmul.f32 %v2530, %v3082
    %v3098 = vmul.f32 %v2532, %v3086
    %v3099 = vlaneseq
    %v3100 = vshrl.u32 %v3099, 7
    %v3101 = vsub.s32 1, %v3100
    %v3102 = vrot.slane %v2996, %v3101
    %v3103 = vlaneseq
    %v3104 = vshrl.u32 %v3103, 7
    %v3105 = vsub.s32 1, %v3104
    %v3106 = vrot.slane %v2998, %v3105
    %v3107 = vlaneseq
    %v3108 = vshrl.u32 %v3107, 7
    %v3109 = vsub.s32 1, %v3108
    %v3110 = vrot.slane %v3067, %v3109
    %v3111 = vlaneseq
    %v3112 = vshrl.u32 %v3111, 7
    %v3113 = vsub.s32 1, %v3112
    %v3114 = vrot.slane %v3069, %v3113
    %v3115 = vadd.f32 %v3087, %v3102
    %v3116 = vadd.f32 %v3088, %v3106
    %v3117 = vadd.f32 %v3089, %v3110
    %v3118 = vadd.f32 %v3090, %v3114
    %v3119 = vadd.f32 %v3091, %v3102
    %v3120 = vadd.f32 %v3092, %v3106
    %v3121 = vadd.f32 %v3093, %v3110
    %v3122 = vadd.f32 %v3094, %v3114
    %v3123 = vadd.f32 %v3095, %v3102
    %v3124 = vadd.f32 %v3096, %v3106
    %v3125 = vadd.f32 %v3097, %v3110
    %v3126 = vadd.f32 %v3098, %v3114
    %v3127 = vmax.f32 %v3115, 0.0
    %v3128 = vmax.f32 %v3116, 0.0
    %v3129 = vmax.f32 %v3117, 0.0
    %v3130 = vmax.f32 %v3118, 0.0
    %v3131 = vmax.f32 %v3119, 0.0
    %v3132 = vmax.f32 %v3120, 0.0
    %v3133 = vmax.f32 %v3121, 0.0
    %v3134 = vmax.f32 %v3122, 0.0
    %v3135 = vmax.f32 %v3123, 0.0
    %v3136 = vmax.f32 %v3124, 0.0
    %v3137 = vmax.f32 %v3125, 0.0
    %v3138 = vmax.f32 %v3126, 0.0
    %v3145 = vrot.slane %v3129, 6
    %v3146 = vrot.slane %v3130, 6
    %v3147 = vrot.slane %v3133, 6
    %v3148 = vsel %vm334, %v3145, %v3147
    %v3149 = vrot.slane %v3134, 6
    %v3150 = vsel %vm334, %v3146, %v3149
    %v3151 = vrot.slane %v3137, 6
    %v3152 = vsel %vm334, %v3147, %v3151
    %v3153 = vrot.slane %v3138, 6
    %v3154 = vsel %vm334, %v3149, %v3153
    %v3159 = vsel %vm334, %v3135, %v3145
    %v3160 = vsel %vm334, %v3136, %v3146
    %v3161 = vld [vmem:[#allocation10] sm:$0xff]
    %v3162 = vld [vmem:[#allocation10 + $0x8] sm:$0xff]
    %v3163 = vld [vmem:[#allocation10 + $0x10] sm:$0xff]
    %v3164 = vld [vmem:[#allocation10 + $0x18] sm:$0xff]
    %v3165 = vld [vmem:[#allocation10 + $0x20] sm:$0xf]
    %vm3166 = vcmask 293888
    %v3168 = vsel %vm3166, %v3161, 0
    %v3171 = vsel %vm3166, %v3162, 0
    %v3174 = vsel %vm3166, %v3163, 0
    %v3177 = vsel %vm3166, %v3164, 0
    %v3180 = vsel %vm3166, %v3165, 0
    %v3182 = vsel %vm840, %v3152, 0
    %v3184 = vsel %vm840, %v3154, 0
    %3186 = vmatprep.subr.mxu0 %v3128
    %3187 = vmatpush1.msra.mxu0 %v3127
    %3188 = vmatprep.subr.mxu0 %v3132
    %3189 = vmatpush1.msra.mxu0 %v3131
    %3190 = vmatprep.subr.mxu0 %v3160
    %3191 = vmatpush1.msra.mxu0 %v3159
    %3192 = vmatprep.subr.mxu0 %v3150
    %3193 = vmatpush1.msra.mxu0 %v3148
    %3194 = vmatprep.subr.mxu0 %v3184
    %3195 = vmatpush1.msra.mxu0 %v3182
    %3196 = vmatprep.subr.mxu0 0.0
    %3197 = vmatpush1.msra.mxu0 0.0
    %3198 = vmatprep.subr.mxu0 0.0
    %3199 = vmatpush1.msra.mxu0 0.0
    %3200 = vmatprep.subr.mxu0 0.0
    %3201 = vmatpush1.msra.mxu0 0.0
    %3202 = vmatprep.subr.mxu0 0.0
    %3203 = vmatpush1.msra.mxu0 0.0
    %3204 = vmatprep.subr.mxu0 0.0
    %3205 = vmatpush1.msra.mxu0 0.0
    %3206 = vmatprep.subr.mxu0 0.0
    %3207 = vmatpush1.msra.mxu0 0.0
    %3208 = vmatprep.subr.mxu0 0.0
    %3209 = vmatpush1.msra.mxu0 0.0
    %3210 = vmatprep.subr.mxu0 0.0
    %3211 = vmatpush1.msra.mxu0 0.0
    %3212 = vmatprep.subr.mxu0 0.0
    %3213 = vmatpush1.msra.mxu0 0.0
    %3214 = vmatprep.subr.mxu0 0.0
    %3215 = vmatpush1.msra.mxu0 0.0
    %3216 = vmatprep.subr.mxu0 0.0
    %3217 = vmatpush1.msra.mxu0 0.0
    %3218 = vmatprep.subr.mxu0 0.0
    %3219 = vmatpush1.msra.mxu0 0.0
    %3220 = vmatprep.subr.mxu0 0.0
    %3221 = vmatpush1.msra.mxu0 0.0
    %3222 = vmatprep.subr.mxu0 0.0
    %3223 = vmatpush1.msra.mxu0 0.0
    %3224 = vmatprep.subr.mxu0 0.0
    %3225 = vmatpush1.msra.mxu0 0.0
    %3226 = vmatprep.subr.mxu0 0.0
    %3227 = vmatpush1.msra.mxu0 0.0
    %3228 = vmatprep.subr.mxu0 0.0
    %3229 = vmatpush1.msra.mxu0 0.0
    %3230 = vmatprep.subr.mxu0 0.0
    %3231 = vmatpush1.msra.mxu0 0.0
    %3232 = vmatprep.subr.mxu0 0.0
    %3233 = vmatpush1.msra.mxu0 0.0
    %3234 = vmatprep.subr.mxu0 0.0
    %3235 = vmatpush1.msra.mxu0 0.0
    %3236 = vmatprep.subr.mxu0 0.0
    %3237 = vmatpush1.msra.mxu0 0.0
    %3238 = vmatprep.subr.mxu0 0.0
    %3239 = vmatpush1.msra.mxu0 0.0
    %3240 = vmatprep.subr.mxu0 0.0
    %3241 = vmatpush1.msra.mxu0 0.0
    %3242 = vmatprep.subr.mxu0 0.0
    %3243 = vmatpush1.msra.mxu0 0.0
    %3244 = vmatprep.subr.mxu0 0.0
    %3245 = vmatpush1.msra.mxu0 0.0
    %3246 = vmatprep.subr.mxu0 0.0
    %3247 = vmatpush1.msra.mxu0 0.0
    %3248 = vmatprep.subr.mxu0 0.0
    %3249 = vmatpush1.msra.mxu0 0.0
    %3250 = vmatprep.mubr.f32.mxu0 0.0
    %3251 = vmatmul.mubr.f32.gmra.mrb[0].mxu0 %v3168
    %v3252 = vpop.f32.mrb[0].mxu0
    %v3253 = vadd.f32 0.0, %v3252
    %v3254 = vpop.f32.mrb[0].mxu0
    %v3255 = vadd.f32 0.0, %v3254
    %3256 = vmatprep.mubr.f32.mxu0 0.0
    %3257 = vmatmul.mubr.f32.gmra.mrb[0].mxu0 %v3171
    %v3258 = vpop.f32.mrb[0].mxu0
    %v3259 = vadd.f32 0.0, %v3258
    %v3260 = vpop.f32.mrb[0].mxu0
    %v3261 = vadd.f32 0.0, %v3260
    %3262 = vmatprep.mubr.f32.mxu0 0.0
    %3263 = vmatmul.mubr.f32.gmra.mrb[0].mxu0 %v3174
    %v3264 = vpop.f32.mrb[0].mxu0
    %v3265 = vadd.f32 0.0, %v3264
    %v3266 = vpop.f32.mrb[0].mxu0
    %v3267 = vadd.f32 0.0, %v3266
    %3268 = vmatprep.mubr.f32.mxu0 0.0
    %3269 = vmatmul.mubr.f32.gmra.mrb[0].mxu0 %v3177
    %v3270 = vpop.f32.mrb[0].mxu0
    %v3271 = vadd.f32 0.0, %v3270
    %v3272 = vpop.f32.mrb[0].mxu0
    %v3273 = vadd.f32 0.0, %v3272
    %3274 = vmatprep.mubr.f32.mxu0 0.0
    %3275 = vmatmul.mubr.f32.gmra.mrb[0].mxu0 %v3180
    %v3276 = vpop.f32.mrb[0].mxu0
    %v3277 = vadd.f32 0.0, %v3276
    %v3278 = vpop.f32.mrb[0].mxu0
    %v3279 = vadd.f32 0.0, %v3278
    %3280 = vdwg.mxu0
    %v3291 = vrot.slane %v3253, 1
    %v3292 = vrot.slane %v3259, 1
    %v3293 = vsel %vm930, %v3291, %v3292
    %v3294 = vrot.slane %v3255, 1
    %v3295 = vrot.slane %v3261, 1
    %v3296 = vsel %vm930, %v3294, %v3295
    %v3297 = vrot.slane %v3265, 1
    %v3298 = vsel %vm930, %v3292, %v3297
    %v3299 = vrot.slane %v3267, 1
    %v3300 = vsel %vm930, %v3295, %v3299
    %v3301 = vrot.slane %v3271, 1
    %v3302 = vsel %vm930, %v3297, %v3301
    %v3303 = vrot.slane %v3273, 1
    %v3304 = vsel %vm930, %v3299, %v3303
    %v3305 = vrot.slane %v3277, 1
    %v3306 = vsel %vm930, %v3301, %v3305
    %v3307 = vrot.slane %v3279, 1
    %v3308 = vsel %vm930, %v3303, %v3307
    %v3319 = vrot.slane %v3253, 2
    %v3320 = vrot.slane %v3259, 2
    %v3321 = vsel %vm842, %v3319, %v3320
    %v3322 = vrot.slane %v3255, 2
    %v3323 = vrot.slane %v3261, 2
    %v3324 = vsel %vm842, %v3322, %v3323
    %v3325 = vrot.slane %v3265, 2
    %v3326 = vsel %vm842, %v3320, %v3325
    %v3327 = vrot.slane %v3267, 2
    %v3328 = vsel %vm842, %v3323, %v3327
    %v3329 = vrot.slane %v3271, 2
    %v3330 = vsel %vm842, %v3325, %v3329
    %v3331 = vrot.slane %v3273, 2
    %v3332 = vsel %vm842, %v3327, %v3331
    %v3333 = vrot.slane %v3277, 2
    %v3334 = vsel %vm842, %v3329, %v3333
    %v3335 = vrot.slane %v3279, 2
    %v3336 = vsel %vm842, %v3331, %v3335
    %v3347 = vpack.c.bf16 %v3259, %v3253
    %v3348 = vpack.c.bf16 %v3261, %v3255
    %v3349 = vpack.c.bf16 %v3298, %v3293
    %v3350 = vpack.c.bf16 %v3300, %v3296
    %v3351 = vpack.c.bf16 %v3326, %v3321
    %v3352 = vpack.c.bf16 %v3328, %v3324
    %v3353 = vpack.c.bf16 %v3271, %v3265
    %v3354 = vpack.c.bf16 %v3273, %v3267
    %v3355 = vpack.c.bf16 %v3306, %v3302
    %v3356 = vpack.c.bf16 %v3308, %v3304
    %v3357 = vpack.c.bf16 %v3334, %v3330
    %v3358 = vpack.c.bf16 %v3336, %v3332
    %v3359 = vpack.c.bf16 %v3277, %v3277
    %v3360 = vpack.c.bf16 %v3279, %v3279
    %v3361 = vpack.c.bf16 %v3305, %v3305
    %v3362 = vpack.c.bf16 %v3307, %v3307
    %v3363 = vpack.c.bf16 %v3333, %v3333
    %v3364 = vpack.c.bf16 %v3335, %v3335
    %v3365 = vld [vmem:[%s16] sm:$0xff]
    %v3366 = vld [vmem:[%s16 + $0x8] sm:$0xff]
    %v3367 = vld [vmem:[%s16 + $0x10] sm:$0xff]
    %v3368 = vld [vmem:[%s16 + $0x18] sm:$0xff]
    %v3369 = vld [vmem:[%s16 + $0x20] sm:$0xff]
    %v3370 = vld [vmem:[%s16 + $0x28] sm:$0xff]
    %v3371 = vld [vmem:[%s16 + $0x30] sm:$0xff]
    %v3372 = vld [vmem:[%s16 + $0x38] sm:$0xff]
    %v3373 = vld [vmem:[%s16 + $0x40] sm:$0xff]
    %v3374 = vld [vmem:[%s16 + $0x48] sm:$0xff]
    %v3375 = vld [vmem:[%s16 + $0x50] sm:$0xff]
    %v3376 = vld [vmem:[%s16 + $0x58] sm:$0xff]
    %v3377 = vld [vmem:[%s16 + $0x60] sm:$0xff]
    %v3378 = vld [vmem:[%s16 + $0x68] sm:$0xff]
    %v3379 = vld [vmem:[%s16 + $0x70] sm:$0xff]
    %v3380 = vld [vmem:[%s16 + $0x78] sm:$0xff]
    %v3381 = vld [vmem:[%s16 + $0x80] sm:$0xff]
    %v3382 = vld [vmem:[%s16 + $0x88] sm:$0xff]
    %v3383 = vld [vmem:[%s16 + $0x90] sm:$0xff]
    %v3384 = vld [vmem:[%s16 + $0x98] sm:$0xff]
    %v3385 = vld [vmem:[%s16 + $0xa0] sm:$0xff]
    %v3386 = vld [vmem:[%s16 + $0xa8] sm:$0xff]
    %v3387 = vld [vmem:[%s16 + $0xb0] sm:$0xff]
    %v3388 = vld [vmem:[%s16 + $0xb8] sm:$0xff]
    %v3389 = vld [vmem:[%s16 + $0xc0] sm:$0xff]
    %v3390 = vld [vmem:[%s16 + $0xc8] sm:$0xff]
    %v3391 = vld [vmem:[%s16 + $0xd0] sm:$0xff]
    %v3392 = vld [vmem:[%s16 + $0xd8] sm:$0xff]
    %v3393 = vld [vmem:[%s16 + $0xe0] sm:$0xff]
    %v3394 = vld [vmem:[%s16 + $0xe8] sm:$0xff]
    %v3395 = vld [vmem:[%s16 + $0xf0] sm:$0xff]
    %v3396 = vld [vmem:[%s16 + $0xf8] sm:$0xff]
    %v3397 = vld [vmem:[%s16 + $0x100] sm:$0xff]
    %v3398 = vld [vmem:[%s16 + $0x108] sm:$0xff]
    %v3399 = vld [vmem:[%s16 + $0x110] sm:$0xff]
    %v3400 = vld [vmem:[%s16 + $0x118] sm:$0xff]
    %v3401 = vld [vmem:[%s16 + $0x120] sm:$0xff]
    %v3402 = vld [vmem:[%s16 + $0x128] sm:$0xff]
    %v3403 = vld [vmem:[%s16 + $0x130] sm:$0xff]
    %v3404 = vld [vmem:[%s16 + $0x138] sm:$0xff]
    %v3405 = vld [vmem:[%s16 + $0x140] sm:$0xff]
    %v3406 = vld [vmem:[%s16 + $0x148] sm:$0xff]
    %v3407 = vld [vmem:[%s16 + $0x150] sm:$0xff]
    %v3408 = vld [vmem:[%s16 + $0x158] sm:$0xff]
    %v3409 = vld [vmem:[%s16 + $0x160] sm:$0xff]
    %v3410 = vld [vmem:[%s16 + $0x168] sm:$0xff]
    %v3411 = vld [vmem:[%s16 + $0x170] sm:$0xff]
    %v3412 = vld [vmem:[%s16 + $0x178] sm:$0xff]
    %v3413 = vld [vmem:[%s16 + $0x180] sm:$0xff]
    %v3414 = vld [vmem:[%s16 + $0x188] sm:$0xff]
    %v3415 = vld [vmem:[%s16 + $0x190] sm:$0xff]
    %v3416 = vld [vmem:[%s16 + $0x198] sm:$0xff]
    %v3417 = vld [vmem:[%s16 + $0x1a0] sm:$0xff]
    %v3418 = vld [vmem:[%s16 + $0x1a8] sm:$0xff]
    %v3419 = vld [vmem:[%s16 + $0x1b0] sm:$0xff]
    %v3420 = vld [vmem:[%s16 + $0x1b8] sm:$0xff]
    %v3421 = vld [vmem:[%s16 + $0x1c0] sm:$0xff]
    %v3422 = vld [vmem:[%s16 + $0x1c8] sm:$0xff]
    %v3423 = vld [vmem:[%s16 + $0x1d0] sm:$0xff]
    %v3424 = vld [vmem:[%s16 + $0x1d8] sm:$0xff]
    %v3425 = vld [vmem:[%s16 + $0x1e0] sm:$0xff]
    %v3426 = vld [vmem:[%s16 + $0x1e8] sm:$0xff]
    %v3427 = vld [vmem:[%s16 + $0x1f0] sm:$0xff]
    %v3428 = vld [vmem:[%s16 + $0x1f8] sm:$0xff]
    %v3429 = vld [vmem:[%s16 + $0x200] sm:$0xff]
    %v3430 = vld [vmem:[%s16 + $0x208] sm:$0xff]
    %v3431 = vld [vmem:[%s16 + $0x210] sm:$0xff]
    %v3432 = vld [vmem:[%s16 + $0x218] sm:$0xff]
    %v3433 = vld [vmem:[%s16 + $0x220] sm:$0xff]
    %v3434 = vld [vmem:[%s16 + $0x228] sm:$0xff]
    %v3435 = vld [vmem:[%s16 + $0x230] sm:$0xff]
    %v3436 = vld [vmem:[%s16 + $0x238] sm:$0xff]
    %v3437 = vld [vmem:[%s16 + $0x240] sm:$0xff]
    %v3438 = vld [vmem:[%s16 + $0x248] sm:$0xff]
    %v3439 = vld [vmem:[%s16 + $0x250] sm:$0xff]
    %v3440 = vld [vmem:[%s16 + $0x258] sm:$0xff]
    %v3441 = vld [vmem:[%s16 + $0x260] sm:$0xff]
    %v3442 = vld [vmem:[%s16 + $0x268] sm:$0xff]
    %v3443 = vld [vmem:[%s16 + $0x270] sm:$0xff]
    %v3444 = vld [vmem:[%s16 + $0x278] sm:$0xff]
    %v3445 = vld [vmem:[%s16 + $0x280] sm:$0xff]
    %v3446 = vld [vmem:[%s16 + $0x288] sm:$0xff]
    %v3447 = vld [vmem:[%s16 + $0x290] sm:$0xff]
    %v3448 = vld [vmem:[%s16 + $0x298] sm:$0xff]
    %v3449 = vld [vmem:[%s16 + $0x2a0] sm:$0xff]
    %v3450 = vld [vmem:[%s16 + $0x2a8] sm:$0xff]
    %v3451 = vld [vmem:[%s16 + $0x2b0] sm:$0xff]
    %v3452 = vld [vmem:[%s16 + $0x2b8] sm:$0xff]
    %v3453 = vld [vmem:[%s16 + $0x2c0] sm:$0xff]
    %v3454 = vld [vmem:[%s16 + $0x2c8] sm:$0xff]
    %v3455 = vld [vmem:[%s16 + $0x2d0] sm:$0xff]
    %v3456 = vld [vmem:[%s16 + $0x2d8] sm:$0xff]
    %v3457 = vld [vmem:[%s16 + $0x2e0] sm:$0xff]
    %v3458 = vld [vmem:[%s16 + $0x2e8] sm:$0xff]
    %v3459 = vld [vmem:[%s16 + $0x2f0] sm:$0xff]
    %v3460 = vld [vmem:[%s16 + $0x2f8] sm:$0xff]
    %v3461 = vld [vmem:[%s16 + $0x300] sm:$0xff]
    %v3462 = vld [vmem:[%s16 + $0x308] sm:$0xff]
    %v3463 = vld [vmem:[%s16 + $0x310] sm:$0xff]
    %v3464 = vld [vmem:[%s16 + $0x318] sm:$0xff]
    %v3465 = vld [vmem:[%s16 + $0x320] sm:$0xff]
    %v3466 = vld [vmem:[%s16 + $0x328] sm:$0xff]
    %v3467 = vld [vmem:[%s16 + $0x330] sm:$0xff]
    %v3468 = vld [vmem:[%s16 + $0x338] sm:$0xff]
    %v3469 = vld [vmem:[%s16 + $0x340] sm:$0xff]
    %v3470 = vld [vmem:[%s16 + $0x348] sm:$0xff]
    %v3471 = vld [vmem:[%s16 + $0x350] sm:$0xff]
    %v3472 = vld [vmem:[%s16 + $0x358] sm:$0xff]
    %v3473 = vld [vmem:[%s16 + $0x360] sm:$0xff]
    %v3474 = vld [vmem:[%s16 + $0x368] sm:$0xff]
    %v3475 = vld [vmem:[%s16 + $0x370] sm:$0xff]
    %v3476 = vld [vmem:[%s16 + $0x378] sm:$0xff]
    %v3477 = vld [vmem:[%s16 + $0x380] sm:$0xff]
    %v3478 = vld [vmem:[%s16 + $0x388] sm:$0xff]
    %v3479 = vld [vmem:[%s16 + $0x390] sm:$0xff]
    %v3480 = vld [vmem:[%s16 + $0x398] sm:$0xff]
    %v3481 = vld [vmem:[%s16 + $0x3a0] sm:$0xff]
    %v3482 = vld [vmem:[%s16 + $0x3a8] sm:$0xff]
    %v3483 = vld [vmem:[%s16 + $0x3b0] sm:$0xff]
    %v3484 = vld [vmem:[%s16 + $0x3b8] sm:$0xff]
    %v3485 = vld [vmem:[%s16 + $0x3c0] sm:$0xff]
    %v3486 = vld [vmem:[%s16 + $0x3c8] sm:$0xff]
    %v3487 = vld [vmem:[%s16 + $0x3d0] sm:$0xff]
    %v3488 = vld [vmem:[%s16 + $0x3d8] sm:$0xff]
    %v3489 = vld [vmem:[%s16 + $0x3e0] sm:$0xff]
    %v3490 = vld [vmem:[%s16 + $0x3e8] sm:$0xff]
    %v3491 = vld [vmem:[%s16 + $0x3f0] sm:$0xff]
    %v3492 = vld [vmem:[%s16 + $0x3f8] sm:$0xff]
    %v3493 = vld [vmem:[%s16 + $0x400] sm:$0xff]
    %v3494 = vld [vmem:[%s16 + $0x408] sm:$0xff]
    %v3495 = vld [vmem:[%s16 + $0x410] sm:$0xff]
    %v3496 = vld [vmem:[%s16 + $0x418] sm:$0xff]
    %v3497 = vld [vmem:[%s16 + $0x420] sm:$0xff]
    %v3498 = vld [vmem:[%s16 + $0x428] sm:$0xff]
    %v3499 = vld [vmem:[%s16 + $0x430] sm:$0xff]
    %v3500 = vld [vmem:[%s16 + $0x438] sm:$0xff]
    %v3501 = vld [vmem:[%s16 + $0x440] sm:$0xff]
    %v3502 = vld [vmem:[%s16 + $0x448] sm:$0xff]
    %v3503 = vld [vmem:[%s16 + $0x450] sm:$0xff]
    %v3504 = vld [vmem:[%s16 + $0x458] sm:$0xff]
    %v3505 = vld [vmem:[%s16 + $0x460] sm:$0xff]
    %v3506 = vld [vmem:[%s16 + $0x468] sm:$0xff]
    %v3507 = vld [vmem:[%s16 + $0x470] sm:$0xff]
    %v3508 = vld [vmem:[%s16 + $0x478] sm:$0xff]
    %v3509 = vld [vmem:[%s16 + $0x480] sm:$0xff]
    %v3510 = vld [vmem:[%s16 + $0x488] sm:$0xff]
    %v3511 = vld [vmem:[%s16 + $0x490] sm:$0xff]
    %v3512 = vld [vmem:[%s16 + $0x498] sm:$0xff]
    %v3513 = vld [vmem:[%s16 + $0x4a0] sm:$0xff]
    %v3514 = vld [vmem:[%s16 + $0x4a8] sm:$0xff]
    %v3515 = vld [vmem:[%s16 + $0x4b0] sm:$0xff]
    %v3516 = vld [vmem:[%s16 + $0x4b8] sm:$0xff]
    %v3517 = vld [vmem:[%s16 + $0x4c0] sm:$0xff]
    %v3518 = vld [vmem:[%s16 + $0x4c8] sm:$0xff]
    %v3519 = vld [vmem:[%s16 + $0x4d0] sm:$0xff]
    %v3520 = vld [vmem:[%s16 + $0x4d8] sm:$0xff]
    %v3521 = vld [vmem:[%s16 + $0x4e0] sm:$0xff]
    %v3522 = vld [vmem:[%s16 + $0x4e8] sm:$0xff]
    %v3523 = vld [vmem:[%s16 + $0x4f0] sm:$0xff]
    %v3524 = vld [vmem:[%s16 + $0x4f8] sm:$0xff]
    %v3525 = vld [vmem:[%s16 + $0x500] sm:$0xff]
    %v3526 = vld [vmem:[%s16 + $0x508] sm:$0xff]
    %v3527 = vld [vmem:[%s16 + $0x510] sm:$0xff]
    %v3528 = vld [vmem:[%s16 + $0x518] sm:$0xff]
    %v3529 = vld [vmem:[%s16 + $0x520] sm:$0xff]
    %v3530 = vld [vmem:[%s16 + $0x528] sm:$0xff]
    %v3531 = vld [vmem:[%s16 + $0x530] sm:$0xff]
    %v3532 = vld [vmem:[%s16 + $0x538] sm:$0xff]
    %v3533 = vld [vmem:[%s16 + $0x540] sm:$0xff]
    %v3534 = vld [vmem:[%s16 + $0x548] sm:$0xff]
    %v3535 = vld [vmem:[%s16 + $0x550] sm:$0xff]
    %v3536 = vld [vmem:[%s16 + $0x558] sm:$0xff]
    %v3537 = vld [vmem:[%s16 + $0x560] sm:$0xff]
    %v3538 = vld [vmem:[%s16 + $0x568] sm:$0xff]
    %v3539 = vld [vmem:[%s16 + $0x570] sm:$0xff]
    %v3540 = vld [vmem:[%s16 + $0x578] sm:$0xff]
    %v3541 = vld [vmem:[%s16 + $0x580] sm:$0xff]
    %v3542 = vld [vmem:[%s16 + $0x588] sm:$0xff]
    %v3543 = vld [vmem:[%s16 + $0x590] sm:$0xff]
    %v3544 = vld [vmem:[%s16 + $0x598] sm:$0xff]
    %v3545 = vld [vmem:[%s16 + $0x5a0] sm:$0xff]
    %v3546 = vld [vmem:[%s16 + $0x5a8] sm:$0xff]
    %v3547 = vld [vmem:[%s16 + $0x5b0] sm:$0xff]
    %v3548 = vld [vmem:[%s16 + $0x5b8] sm:$0xff]
    %v3549 = vld [vmem:[%s16 + $0x5c0] sm:$0xff]
    %v3550 = vld [vmem:[%s16 + $0x5c8] sm:$0xff]
    %v3551 = vld [vmem:[%s16 + $0x5d0] sm:$0xff]
    %v3552 = vld [vmem:[%s16 + $0x5d8] sm:$0xff]
    %v3553 = vld [vmem:[%s16 + $0x5e0] sm:$0xff]
    %v3554 = vld [vmem:[%s16 + $0x5e8] sm:$0xff]
    %v3555 = vld [vmem:[%s16 + $0x5f0] sm:$0xff]
    %v3556 = vld [vmem:[%s16 + $0x5f8] sm:$0xff]
    %v3749 = vunpack.c.l.b16 %v3365
    %v3750 = vunpack.c.h.b16 %v3365
    %v3751 = vunpack.c.l.b16 %v3366
    %v3752 = vunpack.c.h.b16 %v3366
    %v3753 = vunpack.c.l.b16 %v3367
    %v3754 = vunpack.c.h.b16 %v3367
    %v3755 = vunpack.c.l.b16 %v3368
    %v3756 = vunpack.c.h.b16 %v3368
    %v3757 = vunpack.c.l.b16 %v3369
    %v3758 = vunpack.c.h.b16 %v3369
    %v3759 = vunpack.c.l.b16 %v3370
    %v3760 = vunpack.c.h.b16 %v3370
    %v3761 = vunpack.c.l.b16 %v3371
    %v3762 = vunpack.c.h.b16 %v3371
    %v3763 = vunpack.c.l.b16 %v3372
    %v3764 = vunpack.c.h.b16 %v3372
    %v3765 = vunpack.c.l.b16 %v3373
    %v3766 = vunpack.c.h.b16 %v3373
    %v3767 = vunpack.c.l.b16 %v3374
    %v3768 = vunpack.c.h.b16 %v3374
    %v3769 = vunpack.c.l.b16 %v3375
    %v3770 = vunpack.c.h.b16 %v3375
    %v3771 = vunpack.c.l.b16 %v3376
    %v3772 = vunpack.c.h.b16 %v3376
    %v3773 = vunpack.c.l.b16 %v3377
    %v3774 = vunpack.c.h.b16 %v3377
    %v3775 = vunpack.c.l.b16 %v3378
    %v3776 = vunpack.c.h.b16 %v3378
    %v3777 = vunpack.c.l.b16 %v3379
    %v3778 = vunpack.c.h.b16 %v3379
    %v3779 = vunpack.c.l.b16 %v3380
    %v3780 = vunpack.c.h.b16 %v3380
    %v3781 = vunpack.c.l.b16 %v3381
    %v3782 = vunpack.c.h.b16 %v3381
    %v3783 = vunpack.c.l.b16 %v3382
    %v3784 = vunpack.c.h.b16 %v3382
    %v3785 = vunpack.c.l.b16 %v3383
    %v3786 = vunpack.c.h.b16 %v3383
    %v3787 = vunpack.c.l.b16 %v3384
    %v3788 = vunpack.c.h.b16 %v3384
    %v3789 = vunpack.c.l.b16 %v3385
    %v3790 = vunpack.c.h.b16 %v3385
    %v3791 = vunpack.c.l.b16 %v3386
    %v3792 = vunpack.c.h.b16 %v3386
    %v3793 = vunpack.c.l.b16 %v3387
    %v3794 = vunpack.c.h.b16 %v3387
    %v3795 = vunpack.c.l.b16 %v3388
    %v3796 = vunpack.c.h.b16 %v3388
    %v3797 = vunpack.c.l.b16 %v3389
    %v3798 = vunpack.c.h.b16 %v3389
    %v3799 = vunpack.c.l.b16 %v3390
    %v3800 = vunpack.c.h.b16 %v3390
    %v3801 = vunpack.c.l.b16 %v3391
    %v3802 = vunpack.c.h.b16 %v3391
    %v3803 = vunpack.c.l.b16 %v3392
    %v3804 = vunpack.c.h.b16 %v3392
    %v3805 = vunpack.c.l.b16 %v3393
    %v3806 = vunpack.c.h.b16 %v3393
    %v3807 = vunpack.c.l.b16 %v3394
    %v3808 = vunpack.c.h.b16 %v3394
    %v3809 = vunpack.c.l.b16 %v3395
    %v3810 = vunpack.c.h.b16 %v3395
    %v3811 = vunpack.c.l.b16 %v3396
    %v3812 = vunpack.c.h.b16 %v3396
    %v3813 = vunpack.c.l.b16 %v3397
    %v3814 = vunpack.c.h.b16 %v3397
    %v3815 = vunpack.c.l.b16 %v3398
    %v3816 = vunpack.c.h.b16 %v3398
    %v3817 = vunpack.c.l.b16 %v3399
    %v3818 = vunpack.c.h.b16 %v3399
    %v3819 = vunpack.c.l.b16 %v3400
    %v3820 = vunpack.c.h.b16 %v3400
    %v3821 = vunpack.c.l.b16 %v3401
    %v3822 = vunpack.c.h.b16 %v3401
    %v3823 = vunpack.c.l.b16 %v3402
    %v3824 = vunpack.c.h.b16 %v3402
    %v3825 = vunpack.c.l.b16 %v3403
    %v3826 = vunpack.c.h.b16 %v3403
    %v3827 = vunpack.c.l.b16 %v3404
    %v3828 = vunpack.c.h.b16 %v3404
    %v3829 = vunpack.c.l.b16 %v3405
    %v3830 = vunpack.c.h.b16 %v3405
    %v3831 = vunpack.c.l.b16 %v3406
    %v3832 = vunpack.c.h.b16 %v3406
    %v3833 = vunpack.c.l.b16 %v3407
    %v3834 = vunpack.c.h.b16 %v3407
    %v3835 = vunpack.c.l.b16 %v3408
    %v3836 = vunpack.c.h.b16 %v3408
    %v3837 = vunpack.c.l.b16 %v3409
    %v3838 = vunpack.c.h.b16 %v3409
    %v3839 = vunpack.c.l.b16 %v3410
    %v3840 = vunpack.c.h.b16 %v3410
    %v3841 = vunpack.c.l.b16 %v3411
    %v3842 = vunpack.c.h.b16 %v3411
    %v3843 = vunpack.c.l.b16 %v3412
    %v3844 = vunpack.c.h.b16 %v3412
    %v3845 = vunpack.c.l.b16 %v3413
    %v3846 = vunpack.c.h.b16 %v3413
    %v3847 = vunpack.c.l.b16 %v3414
    %v3848 = vunpack.c.h.b16 %v3414
    %v3849 = vunpack.c.l.b16 %v3415
    %v3850 = vunpack.c.h.b16 %v3415
    %v3851 = vunpack.c.l.b16 %v3416
    %v3852 = vunpack.c.h.b16 %v3416
    %v3853 = vunpack.c.l.b16 %v3417
    %v3854 = vunpack.c.h.b16 %v3417
    %v3855 = vunpack.c.l.b16 %v3418
    %v3856 = vunpack.c.h.b16 %v3418
    %v3857 = vunpack.c.l.b16 %v3419
    %v3858 = vunpack.c.h.b16 %v3419
    %v3859 = vunpack.c.l.b16 %v3420
    %v3860 = vunpack.c.h.b16 %v3420
    %v3861 = vunpack.c.l.b16 %v3421
    %v3862 = vunpack.c.h.b16 %v3421
    %v3863 = vunpack.c.l.b16 %v3422
    %v3864 = vunpack.c.h.b16 %v3422
    %v3865 = vunpack.c.l.b16 %v3423
    %v3866 = vunpack.c.h.b16 %v3423
    %v3867 = vunpack.c.l.b16 %v3424
    %v3868 = vunpack.c.h.b16 %v3424
    %v3869 = vunpack.c.l.b16 %v3425
    %v3870 = vunpack.c.h.b16 %v3425
    %v3871 = vunpack.c.l.b16 %v3426
    %v3872 = vunpack.c.h.b16 %v3426
    %v3873 = vunpack.c.l.b16 %v3427
    %v3874 = vunpack.c.h.b16 %v3427
    %v3875 = vunpack.c.l.b16 %v3428
    %v3876 = vunpack.c.h.b16 %v3428
    %v3877 = vunpack.c.l.b16 %v3429
    %v3878 = vunpack.c.h.b16 %v3429
    %v3879 = vunpack.c.l.b16 %v3430
    %v3880 = vunpack.c.h.b16 %v3430
    %v3881 = vunpack.c.l.b16 %v3431
    %v3882 = vunpack.c.h.b16 %v3431
    %v3883 = vunpack.c.l.b16 %v3432
    %v3884 = vunpack.c.h.b16 %v3432
    %v3885 = vunpack.c.l.b16 %v3433
    %v3886 = vunpack.c.h.b16 %v3433
    %v3887 = vunpack.c.l.b16 %v3434
    %v3888 = vunpack.c.h.b16 %v3434
    %v3889 = vunpack.c.l.b16 %v3435
    %v3890 = vunpack.c.h.b16 %v3435
    %v3891 = vunpack.c.l.b16 %v3436
    %v3892 = vunpack.c.h.b16 %v3436
    %v3893 = vunpack.c.l.b16 %v3437
    %v3894 = vunpack.c.h.b16 %v3437
    %v3895 = vunpack.c.l.b16 %v3438
    %v3896 = vunpack.c.h.b16 %v3438
    %v3897 = vunpack.c.l.b16 %v3439
    %v3898 = vunpack.c.h.b16 %v3439
    %v3899 = vunpack.c.l.b16 %v3440
    %v3900 = vunpack.c.h.b16 %v3440
    %v3901 = vunpack.c.l.b16 %v3441
    %v3902 = vunpack.c.h.b16 %v3441
    %v3903 = vunpack.c.l.b16 %v3442
    %v3904 = vunpack.c.h.b16 %v3442
    %v3905 = vunpack.c.l.b16 %v3443
    %v3906 = vunpack.c.h.b16 %v3443
    %v3907 = vunpack.c.l.b16 %v3444
    %v3908 = vunpack.c.h.b16 %v3444
    %v3909 = vunpack.c.l.b16 %v3445
    %v3910 = vunpack.c.h.b16 %v3445
    %v3911 = vunpack.c.l.b16 %v3446
    %v3912 = vunpack.c.h.b16 %v3446
    %v3913 = vunpack.c.l.b16 %v3447
    %v3914 = vunpack.c.h.b16 %v3447
    %v3915 = vunpack.c.l.b16 %v3448
    %v3916 = vunpack.c.h.b16 %v3448
    %v3917 = vunpack.c.l.b16 %v3449
    %v3918 = vunpack.c.h.b16 %v3449
    %v3919 = vunpack.c.l.b16 %v3450
    %v3920 = vunpack.c.h.b16 %v3450
    %v3921 = vunpack.c.l.b16 %v3451
    %v3922 = vunpack.c.h.b16 %v3451
    %v3923 = vunpack.c.l.b16 %v3452
    %v3924 = vunpack.c.h.b16 %v3452
    %v3925 = vunpack.c.l.b16 %v3453
    %v3926 = vunpack.c.h.b16 %v3453
    %v3927 = vunpack.c.l.b16 %v3454
    %v3928 = vunpack.c.h.b16 %v3454
    %v3929 = vunpack.c.l.b16 %v3455
    %v3930 = vunpack.c.h.b16 %v3455
    %v3931 = vunpack.c.l.b16 %v3456
    %v3932 = vunpack.c.h.b16 %v3456
    %v3933 = vunpack.c.l.b16 %v3457
    %v3934 = vunpack.c.h.b16 %v3457
    %v3935 = vunpack.c.l.b16 %v3458
    %v3936 = vunpack.c.h.b16 %v3458
    %v3937 = vunpack.c.l.b16 %v3459
    %v3938 = vunpack.c.h.b16 %v3459
    %v3939 = vunpack.c.l.b16 %v3460
    %v3940 = vunpack.c.h.b16 %v3460
    %v3941 = vunpack.c.l.b16 %v3461
    %v3942 = vunpack.c.h.b16 %v3461
    %v3943 = vunpack.c.l.b16 %v3462
    %v3944 = vunpack.c.h.b16 %v3462
    %v3945 = vunpack.c.l.b16 %v3463
    %v3946 = vunpack.c.h.b16 %v3463
    %v3947 = vunpack.c.l.b16 %v3464
    %v3948 = vunpack.c.h.b16 %v3464
    %v3949 = vunpack.c.l.b16 %v3465
    %v3950 = vunpack.c.h.b16 %v3465
    %v3951 = vunpack.c.l.b16 %v3466
    %v3952 = vunpack.c.h.b16 %v3466
    %v3953 = vunpack.c.l.b16 %v3467
    %v3954 = vunpack.c.h.b16 %v3467
    %v3955 = vunpack.c.l.b16 %v3468
    %v3956 = vunpack.c.h.b16 %v3468
    %v3957 = vunpack.c.l.b16 %v3469
    %v3958 = vunpack.c.h.b16 %v3469
    %v3959 = vunpack.c.l.b16 %v3470
    %v3960 = vunpack.c.h.b16 %v3470
    %v3961 = vunpack.c.l.b16 %v3471
    %v3962 = vunpack.c.h.b16 %v3471
    %v3963 = vunpack.c.l.b16 %v3472
    %v3964 = vunpack.c.h.b16 %v3472
    %v3965 = vunpack.c.l.b16 %v3473
    %v3966 = vunpack.c.h.b16 %v3473
    %v3967 = vunpack.c.l.b16 %v3474
    %v3968 = vunpack.c.h.b16 %v3474
    %v3969 = vunpack.c.l.b16 %v3475
    %v3970 = vunpack.c.h.b16 %v3475
    %v3971 = vunpack.c.l.b16 %v3476
    %v3972 = vunpack.c.h.b16 %v3476
    %v3973 = vunpack.c.l.b16 %v3477
    %v3974 = vunpack.c.h.b16 %v3477
    %v3975 = vunpack.c.l.b16 %v3478
    %v3976 = vunpack.c.h.b16 %v3478
    %v3977 = vunpack.c.l.b16 %v3479
    %v3978 = vunpack.c.h.b16 %v3479
    %v3979 = vunpack.c.l.b16 %v3480
    %v3980 = vunpack.c.h.b16 %v3480
    %v3981 = vunpack.c.l.b16 %v3481
    %v3982 = vunpack.c.h.b16 %v3481
    %v3983 = vunpack.c.l.b16 %v3482
    %v3984 = vunpack.c.h.b16 %v3482
    %v3985 = vunpack.c.l.b16 %v3483
    %v3986 = vunpack.c.h.b16 %v3483
    %v3987 = vunpack.c.l.b16 %v3484
    %v3988 = vunpack.c.h.b16 %v3484
    %v3989 = vunpack.c.l.b16 %v3485
    %v3990 = vunpack.c.h.b16 %v3485
    %v3991 = vunpack.c.l.b16 %v3486
    %v3992 = vunpack.c.h.b16 %v3486
    %v3993 = vunpack.c.l.b16 %v3487
    %v3994 = vunpack.c.h.b16 %v3487
    %v3995 = vunpack.c.l.b16 %v3488
    %v3996 = vunpack.c.h.b16 %v3488
    %v3997 = vunpack.c.l.b16 %v3489
    %v3998 = vunpack.c.h.b16 %v3489
    %v3999 = vunpack.c.l.b16 %v3490
    %v4000 = vunpack.c.h.b16 %v3490
    %v4001 = vunpack.c.l.b16 %v3491
    %v4002 = vunpack.c.h.b16 %v3491
    %v4003 = vunpack.c.l.b16 %v3492
    %v4004 = vunpack.c.h.b16 %v3492
    %v4005 = vunpack.c.l.b16 %v3493
    %v4006 = vunpack.c.h.b16 %v3493
    %v4007 = vunpack.c.l.b16 %v3494
    %v4008 = vunpack.c.h.b16 %v3494
    %v4009 = vunpack.c.l.b16 %v3495
    %v4010 = vunpack.c.h.b16 %v3495
    %v4011 = vunpack.c.l.b16 %v3496
    %v4012 = vunpack.c.h.b16 %v3496
    %v4013 = vunpack.c.l.b16 %v3497
    %v4014 = vunpack.c.h.b16 %v3497
    %v4015 = vunpack.c.l.b16 %v3498
    %v4016 = vunpack.c.h.b16 %v3498
    %v4017 = vunpack.c.l.b16 %v3499
    %v4018 = vunpack.c.h.b16 %v3499
    %v4019 = vunpack.c.l.b16 %v3500
    %v4020 = vunpack.c.h.b16 %v3500
    %v4021 = vunpack.c.l.b16 %v3501
    %v4022 = vunpack.c.h.b16 %v3501
    %v4023 = vunpack.c.l.b16 %v3502
    %v4024 = vunpack.c.h.b16 %v3502
    %v4025 = vunpack.c.l.b16 %v3503
    %v4026 = vunpack.c.h.b16 %v3503
    %v4027 = vunpack.c.l.b16 %v3504
    %v4028 = vunpack.c.h.b16 %v3504
    %v4029 = vunpack.c.l.b16 %v3505
    %v4030 = vunpack.c.h.b16 %v3505
    %v4031 = vunpack.c.l.b16 %v3506
    %v4032 = vunpack.c.h.b16 %v3506
    %v4033 = vunpack.c.l.b16 %v3507
    %v4034 = vunpack.c.h.b16 %v3507
    %v4035 = vunpack.c.l.b16 %v3508
    %v4036 = vunpack.c.h.b16 %v3508
    %v4037 = vunpack.c.l.b16 %v3509
    %v4038 = vunpack.c.h.b16 %v3509
    %v4039 = vunpack.c.l.b16 %v3510
    %v4040 = vunpack.c.h.b16 %v3510
    %v4041 = vunpack.c.l.b16 %v3511
    %v4042 = vunpack.c.h.b16 %v3511
    %v4043 = vunpack.c.l.b16 %v3512
    %v4044 = vunpack.c.h.b16 %v3512
    %v4045 = vunpack.c.l.b16 %v3513
    %v4046 = vunpack.c.h.b16 %v3513
    %v4047 = vunpack.c.l.b16 %v3514
    %v4048 = vunpack.c.h.b16 %v3514
    %v4049 = vunpack.c.l.b16 %v3515
    %v4050 = vunpack.c.h.b16 %v3515
    %v4051 = vunpack.c.l.b16 %v3516
    %v4052 = vunpack.c.h.b16 %v3516
    %v4053 = vunpack.c.l.b16 %v3517
    %v4054 = vunpack.c.h.b16 %v3517
    %v4055 = vunpack.c.l.b16 %v3518
    %v4056 = vunpack.c.h.b16 %v3518
    %v4057 = vunpack.c.l.b16 %v3519
    %v4058 = vunpack.c.h.b16 %v3519
    %v4059 = vunpack.c.l.b16 %v3520
    %v4060 = vunpack.c.h.b16 %v3520
    %v4061 = vunpack.c.l.b16 %v3521
    %v4062 = vunpack.c.h.b16 %v3521
    %v4063 = vunpack.c.l.b16 %v3522
    %v4064 = vunpack.c.h.b16 %v3522
    %v4065 = vunpack.c.l.b16 %v3523
    %v4066 = vunpack.c.h.b16 %v3523
    %v4067 = vunpack.c.l.b16 %v3524
    %v4068 = vunpack.c.h.b16 %v3524
    %v4069 = vunpack.c.l.b16 %v3525
    %v4070 = vunpack.c.h.b16 %v3525
    %v4071 = vunpack.c.l.b16 %v3526
    %v4072 = vunpack.c.h.b16 %v3526
    %v4073 = vunpack.c.l.b16 %v3527
    %v4074 = vunpack.c.h.b16 %v3527
    %v4075 = vunpack.c.l.b16 %v3528
    %v4076 = vunpack.c.h.b16 %v3528
    %v4077 = vunpack.c.l.b16 %v3529
    %v4078 = vunpack.c.h.b16 %v3529
    %v4079 = vunpack.c.l.b16 %v3530
    %v4080 = vunpack.c.h.b16 %v3530
    %v4081 = vunpack.c.l.b16 %v3531
    %v4082 = vunpack.c.h.b16 %v3531
    %v4083 = vunpack.c.l.b16 %v3532
    %v4084 = vunpack.c.h.b16 %v3532
    %v4085 = vunpack.c.l.b16 %v3533
    %v4086 = vunpack.c.h.b16 %v3533
    %v4087 = vunpack.c.l.b16 %v3534
    %v4088 = vunpack.c.h.b16 %v3534
    %v4089 = vunpack.c.l.b16 %v3535
    %v4090 = vunpack.c.h.b16 %v3535
    %v4091 = vunpack.c.l.b16 %v3536
    %v4092 = vunpack.c.h.b16 %v3536
    %v4093 = vunpack.c.l.b16 %v3537
    %v4094 = vunpack.c.h.b16 %v3537
    %v4095 = vunpack.c.l.b16 %v3538
    %v4096 = vunpack.c.h.b16 %v3538
    %v4097 = vunpack.c.l.b16 %v3539
    %v4098 = vunpack.c.h.b16 %v3539
    %v4099 = vunpack.c.l.b16 %v3540
    %v4100 = vunpack.c.h.b16 %v3540
    %v4101 = vunpack.c.l.b16 %v3541
    %v4102 = vunpack.c.h.b16 %v3541
    %v4103 = vunpack.c.l.b16 %v3542
    %v4104 = vunpack.c.h.b16 %v3542
    %v4105 = vunpack.c.l.b16 %v3543
    %v4106 = vunpack.c.h.b16 %v3543
    %v4107 = vunpack.c.l.b16 %v3544
    %v4108 = vunpack.c.h.b16 %v3544
    %v4109 = vunpack.c.l.b16 %v3545
    %v4110 = vunpack.c.h.b16 %v3545
    %v4111 = vunpack.c.l.b16 %v3546
    %v4112 = vunpack.c.h.b16 %v3546
    %v4113 = vunpack.c.l.b16 %v3547
    %v4114 = vunpack.c.h.b16 %v3547
    %v4115 = vunpack.c.l.b16 %v3548
    %v4116 = vunpack.c.h.b16 %v3548
    %v4117 = vunpack.c.l.b16 %v3549
    %v4118 = vunpack.c.h.b16 %v3549
    %v4119 = vunpack.c.l.b16 %v3550
    %v4120 = vunpack.c.h.b16 %v3550
    %v4121 = vunpack.c.l.b16 %v3551
    %v4122 = vunpack.c.h.b16 %v3551
    %v4123 = vunpack.c.l.b16 %v3552
    %v4124 = vunpack.c.h.b16 %v3552
    %v4125 = vunpack.c.l.b16 %v3553
    %v4126 = vunpack.c.h.b16 %v3553
    %v4127 = vunpack.c.l.b16 %v3554
    %v4128 = vunpack.c.h.b16 %v3554
    %v4129 = vunpack.c.l.b16 %v3555
    %v4130 = vunpack.c.h.b16 %v3555
    %v4131 = vunpack.c.l.b16 %v3556
    %v4132 = vunpack.c.h.b16 %v3556
    %v4133 = vpack.c.b16 %v3753, %v3749
    %v4134 = vpack.c.b16 %v3754, %v3750
    %v4135 = vpack.c.b16 %v3755, %v3751
    %v4136 = vpack.c.b16 %v3756, %v3752
    %v4137 = vpack.c.b16 %v3761, %v3757
    %v4138 = vpack.c.b16 %v3762, %v3758
    %v4139 = vpack.c.b16 %v3763, %v3759
    %v4140 = vpack.c.b16 %v3764, %v3760
    %v4141 = vpack.c.b16 %v3769, %v3765
    %v4142 = vpack.c.b16 %v3770, %v3766
    %v4143 = vpack.c.b16 %v3771, %v3767
    %v4144 = vpack.c.b16 %v3772, %v3768
    %v4145 = vpack.c.b16 %v3777, %v3773
    %v4146 = vpack.c.b16 %v3778, %v3774
    %v4147 = vpack.c.b16 %v3779, %v3775
    %v4148 = vpack.c.b16 %v3780, %v3776
    %v4149 = vpack.c.b16 %v3785, %v3781
    %v4150 = vpack.c.b16 %v3786, %v3782
    %v4151 = vpack.c.b16 %v3787, %v3783
    %v4152 = vpack.c.b16 %v3788, %v3784
    %v4153 = vpack.c.b16 %v3793, %v3789
    %v4154 = vpack.c.b16 %v3794, %v3790
    %v4155 = vpack.c.b16 %v3795, %v3791
    %v4156 = vpack.c.b16 %v3796, %v3792
    %v4157 = vpack.c.b16 %v3801, %v3797
    %v4158 = vpack.c.b16 %v3802, %v3798
    %v4159 = vpack.c.b16 %v3803, %v3799
    %v4160 = vpack.c.b16 %v3804, %v3800
    %v4161 = vpack.c.b16 %v3809, %v3805
    %v4162 = vpack.c.b16 %v3810, %v3806
    %v4163 = vpack.c.b16 %v3811, %v3807
    %v4164 = vpack.c.b16 %v3812, %v3808
    %v4165 = vpack.c.b16 %v3817, %v3813
    %v4166 = vpack.c.b16 %v3818, %v3814
    %v4167 = vpack.c.b16 %v3819, %v3815
    %v4168 = vpack.c.b16 %v3820, %v3816
    %v4169 = vpack.c.b16 %v3825, %v3821
    %v4170 = vpack.c.b16 %v3826, %v3822
    %v4171 = vpack.c.b16 %v3827, %v3823
    %v4172 = vpack.c.b16 %v3828, %v3824
    %v4173 = vpack.c.b16 %v3833, %v3829
    %v4174 = vpack.c.b16 %v3834, %v3830
    %v4175 = vpack.c.b16 %v3835, %v3831
    %v4176 = vpack.c.b16 %v3836, %v3832
    %v4177 = vpack.c.b16 %v3841, %v3837
    %v4178 = vpack.c.b16 %v3842, %v3838
    %v4179 = vpack.c.b16 %v3843, %v3839
    %v4180 = vpack.c.b16 %v3844, %v3840
    %v4181 = vpack.c.b16 %v3849, %v3845
    %v4182 = vpack.c.b16 %v3850, %v3846
    %v4183 = vpack.c.b16 %v3851, %v3847
    %v4184 = vpack.c.b16 %v3852, %v3848
    %v4185 = vpack.c.b16 %v3857, %v3853
    %v4186 = vpack.c.b16 %v3858, %v3854
    %v4187 = vpack.c.b16 %v3859, %v3855
    %v4188 = vpack.c.b16 %v3860, %v3856
    %v4189 = vpack.c.b16 %v3865, %v3861
    %v4190 = vpack.c.b16 %v3866, %v3862
    %v4191 = vpack.c.b16 %v3867, %v3863
    %v4192 = vpack.c.b16 %v3868, %v3864
    %v4193 = vpack.c.b16 %v3873, %v3869
    %v4194 = vpack.c.b16 %v3874, %v3870
    %v4195 = vpack.c.b16 %v3875, %v3871
    %v4196 = vpack.c.b16 %v3876, %v3872
    %v4197 = vpack.c.b16 %v3881, %v3877
    %v4198 = vpack.c.b16 %v3882, %v3878
    %v4199 = vpack.c.b16 %v3883, %v3879
    %v4200 = vpack.c.b16 %v3884, %v3880
    %v4201 = vpack.c.b16 %v3889, %v3885
    %v4202 = vpack.c.b16 %v3890, %v3886
    %v4203 = vpack.c.b16 %v3891, %v3887
    %v4204 = vpack.c.b16 %v3892, %v3888
    %v4205 = vpack.c.b16 %v3897, %v3893
    %v4206 = vpack.c.b16 %v3898, %v3894
    %v4207 = vpack.c.b16 %v3899, %v3895
    %v4208 = vpack.c.b16 %v3900, %v3896
    %v4209 = vpack.c.b16 %v3905, %v3901
    %v4210 = vpack.c.b16 %v3906, %v3902
    %v4211 = vpack.c.b16 %v3907, %v3903
    %v4212 = vpack.c.b16 %v3908, %v3904
    %v4213 = vpack.c.b16 %v3913, %v3909
    %v4214 = vpack.c.b16 %v3914, %v3910
    %v4215 = vpack.c.b16 %v3915, %v3911
    %v4216 = vpack.c.b16 %v3916, %v3912
    %v4217 = vpack.c.b16 %v3921, %v3917
    %v4218 = vpack.c.b16 %v3922, %v3918
    %v4219 = vpack.c.b16 %v3923, %v3919
    %v4220 = vpack.c.b16 %v3924, %v3920
    %v4221 = vpack.c.b16 %v3929, %v3925
    %v4222 = vpack.c.b16 %v3930, %v3926
    %v4223 = vpack.c.b16 %v3931, %v3927
    %v4224 = vpack.c.b16 %v3932, %v3928
    %v4225 = vpack.c.b16 %v3937, %v3933
    %v4226 = vpack.c.b16 %v3938, %v3934
    %v4227 = vpack.c.b16 %v3939, %v3935
    %v4228 = vpack.c.b16 %v3940, %v3936
    %v4229 = vpack.c.b16 %v3945, %v3941
    %v4230 = vpack.c.b16 %v3946, %v3942
    %v4231 = vpack.c.b16 %v3947, %v3943
    %v4232 = vpack.c.b16 %v3948, %v3944
    %v4233 = vpack.c.b16 %v3953, %v3949
    %v4234 = vpack.c.b16 %v3954, %v3950
    %v4235 = vpack.c.b16 %v3955, %v3951
    %v4236 = vpack.c.b16 %v3956, %v3952
    %v4237 = vpack.c.b16 %v3961, %v3957
    %v4238 = vpack.c.b16 %v3962, %v3958
    %v4239 = vpack.c.b16 %v3963, %v3959
    %v4240 = vpack.c.b16 %v3964, %v3960
    %v4241 = vpack.c.b16 %v3969, %v3965
    %v4242 = vpack.c.b16 %v3970, %v3966
    %v4243 = vpack.c.b16 %v3971, %v3967
    %v4244 = vpack.c.b16 %v3972, %v3968
    %v4245 = vpack.c.b16 %v3977, %v3973
    %v4246 = vpack.c.b16 %v3978, %v3974
    %v4247 = vpack.c.b16 %v3979, %v3975
    %v4248 = vpack.c.b16 %v3980, %v3976
    %v4249 = vpack.c.b16 %v3985, %v3981
    %v4250 = vpack.c.b16 %v3986, %v3982
    %v4251 = vpack.c.b16 %v3987, %v3983
    %v4252 = vpack.c.b16 %v3988, %v3984
    %v4253 = vpack.c.b16 %v3993, %v3989
    %v4254 = vpack.c.b16 %v3994, %v3990
    %v4255 = vpack.c.b16 %v3995, %v3991
    %v4256 = vpack.c.b16 %v3996, %v3992
    %v4257 = vpack.c.b16 %v4001, %v3997
    %v4258 = vpack.c.b16 %v4002, %v3998
    %v4259 = vpack.c.b16 %v4003, %v3999
    %v4260 = vpack.c.b16 %v4004, %v4000
    %v4261 = vpack.c.b16 %v4009, %v4005
    %v4262 = vpack.c.b16 %v4010, %v4006
    %v4263 = vpack.c.b16 %v4011, %v4007
    %v4264 = vpack.c.b16 %v4012, %v4008
    %v4265 = vpack.c.b16 %v4017, %v4013
    %v4266 = vpack.c.b16 %v4018, %v4014
    %v4267 = vpack.c.b16 %v4019, %v4015
    %v4268 = vpack.c.b16 %v4020, %v4016
    %v4269 = vpack.c.b16 %v4025, %v4021
    %v4270 = vpack.c.b16 %v4026, %v4022
    %v4271 = vpack.c.b16 %v4027, %v4023
    %v4272 = vpack.c.b16 %v4028, %v4024
    %v4273 = vpack.c.b16 %v4033, %v4029
    %v4274 = vpack.c.b16 %v4034, %v4030
    %v4275 = vpack.c.b16 %v4035, %v4031
    %v4276 = vpack.c.b16 %v4036, %v4032
    %v4277 = vpack.c.b16 %v4041, %v4037
    %v4278 = vpack.c.b16 %v4042, %v4038
    %v4279 = vpack.c.b16 %v4043, %v4039
    %v4280 = vpack.c.b16 %v4044, %v4040
    %v4281 = vpack.c.b16 %v4049, %v4045
    %v4282 = vpack.c.b16 %v4050, %v4046
    %v4283 = vpack.c.b16 %v4051, %v4047
    %v4284 = vpack.c.b16 %v4052, %v4048
    %v4285 = vpack.c.b16 %v4057, %v4053
    %v4286 = vpack.c.b16 %v4058, %v4054
    %v4287 = vpack.c.b16 %v4059, %v4055
    %v4288 = vpack.c.b16 %v4060, %v4056
    %v4289 = vpack.c.b16 %v4065, %v4061
    %v4290 = vpack.c.b16 %v4066, %v4062
    %v4291 = vpack.c.b16 %v4067, %v4063
    %v4292 = vpack.c.b16 %v4068, %v4064
    %v4293 = vpack.c.b16 %v4073, %v4069
    %v4294 = vpack.c.b16 %v4074, %v4070
    %v4295 = vpack.c.b16 %v4075, %v4071
    %v4296 = vpack.c.b16 %v4076, %v4072
    %v4297 = vpack.c.b16 %v4081, %v4077
    %v4298 = vpack.c.b16 %v4082, %v4078
    %v4299 = vpack.c.b16 %v4083, %v4079
    %v4300 = vpack.c.b16 %v4084, %v4080
    %v4301 = vpack.c.b16 %v4089, %v4085
    %v4302 = vpack.c.b16 %v4090, %v4086
    %v4303 = vpack.c.b16 %v4091, %v4087
    %v4304 = vpack.c.b16 %v4092, %v4088
    %v4305 = vpack.c.b16 %v4097, %v4093
    %v4306 = vpack.c.b16 %v4098, %v4094
    %v4307 = vpack.c.b16 %v4099, %v4095
    %v4308 = vpack.c.b16 %v4100, %v4096
    %v4309 = vpack.c.b16 %v4105, %v4101
    %v4310 = vpack.c.b16 %v4106, %v4102
    %v4311 = vpack.c.b16 %v4107, %v4103
    %v4312 = vpack.c.b16 %v4108, %v4104
    %v4313 = vpack.c.b16 %v4113, %v4109
    %v4314 = vpack.c.b16 %v4114, %v4110
    %v4315 = vpack.c.b16 %v4115, %v4111
    %v4316 = vpack.c.b16 %v4116, %v4112
    %v4317 = vpack.c.b16 %v4121, %v4117
    %v4318 = vpack.c.b16 %v4122, %v4118
    %v4319 = vpack.c.b16 %v4123, %v4119
    %v4320 = vpack.c.b16 %v4124, %v4120
    %v4321 = vpack.c.b16 %v4129, %v4125
    %v4322 = vpack.c.b16 %v4130, %v4126
    %v4323 = vpack.c.b16 %v4131, %v4127
    %v4324 = vpack.c.b16 %v4132, %v4128
    %4517 = vmatprep.subr.bf16.mxu0 %v4134
    %4518 = vmatpush1.bf16.msra.mxu0 %v4133
    %4519 = vmatprep.subr.bf16.mxu0 %v4138
    %4520 = vmatpush1.bf16.msra.mxu0 %v4137
    %4521 = vmatprep.subr.bf16.mxu0 %v4142
    %4522 = vmatpush1.bf16.msra.mxu0 %v4141
    %4523 = vmatprep.subr.bf16.mxu0 %v4146
    %4524 = vmatpush1.bf16.msra.mxu0 %v4145
    %4525 = vmatprep.subr.bf16.mxu0 %v4150
    %4526 = vmatpush1.bf16.msra.mxu0 %v4149
    %4527 = vmatprep.subr.bf16.mxu0 %v4154
    %4528 = vmatpush1.bf16.msra.mxu0 %v4153
    %4529 = vmatprep.subr.bf16.mxu0 %v4158
    %4530 = vmatpush1.bf16.msra.mxu0 %v4157
    %4531 = vmatprep.subr.bf16.mxu0 %v4162
    %4532 = vmatpush1.bf16.msra.mxu0 %v4161
    %4533 = vmatprep.subr.bf16.mxu0 %v4166
    %4534 = vmatpush1.bf16.msra.mxu0 %v4165
    %4535 = vmatprep.subr.bf16.mxu0 %v4170
    %4536 = vmatpush1.bf16.msra.mxu0 %v4169
    %4537 = vmatprep.subr.bf16.mxu0 %v4174
    %4538 = vmatpush1.bf16.msra.mxu0 %v4173
    %4539 = vmatprep.subr.bf16.mxu0 %v4178
    %4540 = vmatpush1.bf16.msra.mxu0 %v4177
    %4541 = vmatprep.subr.bf16.mxu0 %v4182
    %4542 = vmatpush1.bf16.msra.mxu0 %v4181
    %4543 = vmatprep.subr.bf16.mxu0 %v4186
    %4544 = vmatpush1.bf16.msra.mxu0 %v4185
    %4545 = vmatprep.subr.bf16.mxu0 %v4190
    %4546 = vmatpush1.bf16.msra.mxu0 %v4189
    %4547 = vmatprep.subr.bf16.mxu0 %v4194
    %4548 = vmatpush1.bf16.msra.mxu0 %v4193
    %4549 = vmatprep.mubr.bf16.mxu0 %v3348
    %4550 = vmatmul.mubr.bf16.gmra.mrb[0].mxu0 %v3347
    %v4551 = vpop.f32.mrb[0].mxu0
    %v4552 = vadd.f32 0.0, %v4551
    %v4553 = vpop.f32.mrb[0].mxu0
    %v4554 = vadd.f32 0.0, %v4553
    %v4555 = vpop.f32.mrb[0].mxu0
    %v4556 = vadd.f32 0.0, %v4555
    %v4557 = vpop.f32.mrb[0].mxu0
    %v4558 = vadd.f32 0.0, %v4557
    %4559 = vmatprep.mubr.bf16.mxu0 %v3354
    %4560 = vmatmul.mubr.bf16.gmra.mrb[0].mxu0 %v3353
    %v4561 = vpop.f32.mrb[0].mxu0
    %v4562 = vadd.f32 0.0, %v4561
    %v4563 = vpop.f32.mrb[0].mxu0
    %v4564 = vadd.f32 0.0, %v4563
    %v4565 = vpop.f32.mrb[0].mxu0
    %v4566 = vadd.f32 0.0, %v4565
    %v4567 = vpop.f32.mrb[0].mxu0
    %v4568 = vadd.f32 0.0, %v4567
    %4569 = vmatprep.mubr.bf16.mxu0 %v3360
    %4570 = vmatmul.mubr.bf16.gmra.mrb[0].mxu0 %v3359
    %v4571 = vpop.f32.mrb[0].mxu0
    %v4572 = vadd.f32 0.0, %v4571
    %v4573 = vpop.f32.mrb[0].mxu0
    %v4574 = vadd.f32 0.0, %v4573
    %v4575 = vpop.f32.mrb[0].mxu0
    %v4576 = vpop.f32.mrb[0].mxu0
    %4577 = vdwg.mxu0
    %4578 = vmatprep.subr.bf16.mxu0 %v4198
    %4579 = vmatpush1.bf16.msra.mxu0 %v4197
    %4580 = vmatprep.subr.bf16.mxu0 %v4202
    %4581 = vmatpush1.bf16.msra.mxu0 %v4201
    %4582 = vmatprep.subr.bf16.mxu0 %v4206
    %4583 = vmatpush1.bf16.msra.mxu0 %v4205
    %4584 = vmatprep.subr.bf16.mxu0 %v4210
    %4585 = vmatpush1.bf16.msra.mxu0 %v4209
    %4586 = vmatprep.subr.bf16.mxu0 %v4214
    %4587 = vmatpush1.bf16.msra.mxu0 %v4213
    %4588 = vmatprep.subr.bf16.mxu0 %v4218
    %4589 = vmatpush1.bf16.msra.mxu0 %v4217
    %4590 = vmatprep.subr.bf16.mxu0 %v4222
    %4591 = vmatpush1.bf16.msra.mxu0 %v4221
    %4592 = vmatprep.subr.bf16.mxu0 %v4226
    %4593 = vmatpush1.bf16.msra.mxu0 %v4225
    %4594 = vmatprep.subr.bf16.mxu0 %v4230
    %4595 = vmatpush1.bf16.msra.mxu0 %v4229
    %4596 = vmatprep.subr.bf16.mxu0 %v4234
    %4597 = vmatpush1.bf16.msra.mxu0 %v4233
    %4598 = vmatprep.subr.bf16.mxu0 %v4238
    %4599 = vmatpush1.bf16.msra.mxu0 %v4237
    %4600 = vmatprep.subr.bf16.mxu0 %v4242
    %4601 = vmatpush1.bf16.msra.mxu0 %v4241
    %4602 = vmatprep.subr.bf16.mxu0 %v4246
    %4603 = vmatpush1.bf16.msra.mxu0 %v4245
    %4604 = vmatprep.subr.bf16.mxu0 %v4250
    %4605 = vmatpush1.bf16.msra.mxu0 %v4249
    %4606 = vmatprep.subr.bf16.mxu0 %v4254
    %4607 = vmatpush1.bf16.msra.mxu0 %v4253
    %4608 = vmatprep.subr.bf16.mxu0 %v4258
    %4609 = vmatpush1.bf16.msra.mxu0 %v4257
    %4610 = vmatprep.mubr.bf16.mxu0 %v3350
    %4611 = vmatmul.mubr.bf16.gmra.mrb[0].mxu0 %v3349
    %v4612 = vpop.f32.mrb[0].mxu0
    %v4613 = vadd.f32 %v4552, %v4612
    %v4614 = vpop.f32.mrb[0].mxu0
    %v4615 = vadd.f32 %v4554, %v4614
    %v4616 = vpop.f32.mrb[0].mxu0
    %v4617 = vadd.f32 %v4556, %v4616
    %v4618 = vpop.f32.mrb[0].mxu0
    %v4619 = vadd.f32 %v4558, %v4618
    %4620 = vmatprep.mubr.bf16.mxu0 %v3356
    %4621 = vmatmul.mubr.bf16.gmra.mrb[0].mxu0 %v3355
    %v4622 = vpop.f32.mrb[0].mxu0
    %v4623 = vadd.f32 %v4562, %v4622
    %v4624 = vpop.f32.mrb[0].mxu0
    %v4625 = vadd.f32 %v4564, %v4624
    %v4626 = vpop.f32.mrb[0].mxu0
    %v4627 = vadd.f32 %v4566, %v4626
    %v4628 = vpop.f32.mrb[0].mxu0
    %v4629 = vadd.f32 %v4568, %v4628
    %4630 = vmatprep.mubr.bf16.mxu0 %v3362
    %4631 = vmatmul.mubr.bf16.gmra.mrb[0].mxu0 %v3361
    %v4632 = vpop.f32.mrb[0].mxu0
    %v4633 = vadd.f32 %v4572, %v4632
    %v4634 = vpop.f32.mrb[0].mxu0
    %v4635 = vadd.f32 %v4574, %v4634
    %v4636 = vpop.f32.mrb[0].mxu0
    %v4637 = vpop.f32.mrb[0].mxu0
    %4638 = vdwg.mxu0
    %4639 = vmatprep.subr.bf16.mxu0 %v4262
    %4640 = vmatpush1.bf16.msra.mxu0 %v4261
    %4641 = vmatprep.subr.bf16.mxu0 %v4266
    %4642 = vmatpush1.bf16.msra.mxu0 %v4265
    %4643 = vmatprep.subr.bf16.mxu0 %v4270
    %4644 = vmatpush1.bf16.msra.mxu0 %v4269
    %4645 = vmatprep.subr.bf16.mxu0 %v4274
    %4646 = vmatpush1.bf16.msra.mxu0 %v4273
    %4647 = vmatprep.subr.bf16.mxu0 %v4278
    %4648 = vmatpush1.bf16.msra.mxu0 %v4277
    %4649 = vmatprep.subr.bf16.mxu0 %v4282
    %4650 = vmatpush1.bf16.msra.mxu0 %v4281
    %4651 = vmatprep.subr.bf16.mxu0 %v4286
    %4652 = vmatpush1.bf16.msra.mxu0 %v4285
    %4653 = vmatprep.subr.bf16.mxu0 %v4290
    %4654 = vmatpush1.bf16.msra.mxu0 %v4289
    %4655 = vmatprep.subr.bf16.mxu0 %v4294
    %4656 = vmatpush1.bf16.msra.mxu0 %v4293
    %4657 = vmatprep.subr.bf16.mxu0 %v4298
    %4658 = vmatpush1.bf16.msra.mxu0 %v4297
    %4659 = vmatprep.subr.bf16.mxu0 %v4302
    %4660 = vmatpush1.bf16.msra.mxu0 %v4301
    %4661 = vmatprep.subr.bf16.mxu0 %v4306
    %4662 = vmatpush1.bf16.msra.mxu0 %v4305
    %4663 = vmatprep.subr.bf16.mxu0 %v4310
    %4664 = vmatpush1.bf16.msra.mxu0 %v4309
    %4665 = vmatprep.subr.bf16.mxu0 %v4314
    %4666 = vmatpush1.bf16.msra.mxu0 %v4313
    %4667 = vmatprep.subr.bf16.mxu0 %v4318
    %4668 = vmatpush1.bf16.msra.mxu0 %v4317
    %4669 = vmatprep.subr.bf16.mxu0 %v4322
    %4670 = vmatpush1.bf16.msra.mxu0 %v4321
    %4671 = vmatprep.mubr.bf16.mxu0 %v3352
    %4672 = vmatmul.mubr.bf16.gmra.mrb[0].mxu0 %v3351
    %v4673 = vpop.f32.mrb[0].mxu0
    %v4674 = vadd.f32 %v4613, %v4673
    %v4675 = vpop.f32.mrb[0].mxu0
    %v4676 = vadd.f32 %v4615, %v4675
    %v4677 = vpop.f32.mrb[0].mxu0
    %v4678 = vadd.f32 %v4617, %v4677
    %v4679 = vpop.f32.mrb[0].mxu0
    %v4680 = vadd.f32 %v4619, %v4679
    %4681 = vmatprep.mubr.bf16.mxu0 %v3358
    %4682 = vmatmul.mubr.bf16.gmra.mrb[0].mxu0 %v3357
    %v4683 = vpop.f32.mrb[0].mxu0
    %v4684 = vadd.f32 %v4623, %v4683
    %v4685 = vpop.f32.mrb[0].mxu0
    %v4686 = vadd.f32 %v4625, %v4685
    %v4687 = vpop.f32.mrb[0].mxu0
    %v4688 = vadd.f32 %v4627, %v4687
    %v4689 = vpop.f32.mrb[0].mxu0
    %v4690 = vadd.f32 %v4629, %v4689
    %4691 = vmatprep.mubr.bf16.mxu0 %v3364
    %4692 = vmatmul.mubr.bf16.gmra.mrb[0].mxu0 %v3363
    %v4693 = vpop.f32.mrb[0].mxu0
    %v4694 = vadd.f32 %v4633, %v4693
    %v4695 = vpop.f32.mrb[0].mxu0
    %v4696 = vadd.f32 %v4635, %v4695
    %v4697 = vpop.f32.mrb[0].mxu0
    %v4698 = vpop.f32.mrb[0].mxu0
    %4699 = vdwg.mxu0
    %4700 = vmatprep.subr.bf16.mxu0 %v4136
    %4701 = vmatpush1.bf16.msra.mxu0 %v4135
    %4702 = vmatprep.subr.bf16.mxu0 %v4140
    %4703 = vmatpush1.bf16.msra.mxu0 %v4139
    %4704 = vmatprep.subr.bf16.mxu0 %v4144
    %4705 = vmatpush1.bf16.msra.mxu0 %v4143
    %4706 = vmatprep.subr.bf16.mxu0 %v4148
    %4707 = vmatpush1.bf16.msra.mxu0 %v4147
    %4708 = vmatprep.subr.bf16.mxu0 %v4152
    %4709 = vmatpush1.bf16.msra.mxu0 %v4151
    %4710 = vmatprep.subr.bf16.mxu0 %v4156
    %4711 = vmatpush1.bf16.msra.mxu0 %v4155
    %4712 = vmatprep.subr.bf16.mxu0 %v4160
    %4713 = vmatpush1.bf16.msra.mxu0 %v4159
    %4714 = vmatprep.subr.bf16.mxu0 %v4164
    %4715 = vmatpush1.bf16.msra.mxu0 %v4163
    %4716 = vmatprep.subr.bf16.mxu0 %v4168
    %4717 = vmatpush1.bf16.msra.mxu0 %v4167
    %4718 = vmatprep.subr.bf16.mxu0 %v4172
    %4719 = vmatpush1.bf16.msra.mxu0 %v4171
    %4720 = vmatprep.subr.bf16.mxu0 %v4176
    %4721 = vmatpush1.bf16.msra.mxu0 %v4175
    %4722 = vmatprep.subr.bf16.mxu0 %v4180
    %4723 = vmatpush1.bf16.msra.mxu0 %v4179
    %4724 = vmatprep.subr.bf16.mxu0 %v4184
    %4725 = vmatpush1.bf16.msra.mxu0 %v4183
    %4726 = vmatprep.subr.bf16.mxu0 %v4188
    %4727 = vmatpush1.bf16.msra.mxu0 %v4187
    %4728 = vmatprep.subr.bf16.mxu0 %v4192
    %4729 = vmatpush1.bf16.msra.mxu0 %v4191
    %4730 = vmatprep.subr.bf16.mxu0 %v4196
    %4731 = vmatpush1.bf16.msra.mxu0 %v4195
    %4732 = vmatprep.mubr.bf16.mxu0 %v3348
    %4733 = vmatmul.mubr.bf16.gmra.mrb[0].mxu0 %v3347
    %v4734 = vpop.f32.mrb[0].mxu0
    %v4735 = vadd.f32 0.0, %v4734
    %v4736 = vpop.f32.mrb[0].mxu0
    %v4737 = vadd.f32 0.0, %v4736
    %v4738 = vpop.f32.mrb[0].mxu0
    %v4739 = vadd.f32 0.0, %v4738
    %v4740 = vpop.f32.mrb[0].mxu0
    %v4741 = vadd.f32 0.0, %v4740
    %4742 = vmatprep.mubr.bf16.mxu0 %v3354
    %4743 = vmatmul.mubr.bf16.gmra.mrb[0].mxu0 %v3353
    %v4744 = vpop.f32.mrb[0].mxu0
    %v4745 = vadd.f32 0.0, %v4744
    %v4746 = vpop.f32.mrb[0].mxu0
    %v4747 = vadd.f32 0.0, %v4746
    %v4748 = vpop.f32.mrb[0].mxu0
    %v4749 = vadd.f32 0.0, %v4748
    %v4750 = vpop.f32.mrb[0].mxu0
    %v4751 = vadd.f32 0.0, %v4750
    %4752 = vmatprep.mubr.bf16.mxu0 %v3360
    %4753 = vmatmul.mubr.bf16.gmra.mrb[0].mxu0 %v3359
    %v4754 = vpop.f32.mrb[0].mxu0
    %v4755 = vadd.f32 0.0, %v4754
    %v4756 = vpop.f32.mrb[0].mxu0
    %v4757 = vadd.f32 0.0, %v4756
    %v4758 = vpop.f32.mrb[0].mxu0
    %v4759 = vpop.f32.mrb[0].mxu0
    %4760 = vdwg.mxu0
    %4761 = vmatprep.subr.bf16.mxu0 %v4200
    %4762 = vmatpush1.bf16.msra.mxu0 %v4199
    %4763 = vmatprep.subr.bf16.mxu0 %v4204
    %4764 = vmatpush1.bf16.msra.mxu0 %v4203
    %4765 = vmatprep.subr.bf16.mxu0 %v4208
    %4766 = vmatpush1.bf16.msra.mxu0 %v4207
    %4767 = vmatprep.subr.bf16.mxu0 %v4212
    %4768 = vmatpush1.bf16.msra.mxu0 %v4211
    %4769 = vmatprep.subr.bf16.mxu0 %v4216
    %4770 = vmatpush1.bf16.msra.mxu0 %v4215
    %4771 = vmatprep.subr.bf16.mxu0 %v4220
    %4772 = vmatpush1.bf16.msra.mxu0 %v4219
    %4773 = vmatprep.subr.bf16.mxu0 %v4224
    %4774 = vmatpush1.bf16.msra.mxu0 %v4223
    %4775 = vmatprep.subr.bf16.mxu0 %v4228
    %4776 = vmatpush1.bf16.msra.mxu0 %v4227
    %4777 = vmatprep.subr.bf16.mxu0 %v4232
    %4778 = vmatpush1.bf16.msra.mxu0 %v4231
    %4779 = vmatprep.subr.bf16.mxu0 %v4236
    %4780 = vmatpush1.bf16.msra.mxu0 %v4235
    %4781 = vmatprep.subr.bf16.mxu0 %v4240
    %4782 = vmatpush1.bf16.msra.mxu0 %v4239
    %4783 = vmatprep.subr.bf16.mxu0 %v4244
    %4784 = vmatpush1.bf16.msra.mxu0 %v4243
    %4785 = vmatprep.subr.bf16.mxu0 %v4248
    %4786 = vmatpush1.bf16.msra.mxu0 %v4247
    %4787 = vmatprep.subr.bf16.mxu0 %v4252
    %4788 = vmatpush1.bf16.msra.mxu0 %v4251
    %4789 = vmatprep.subr.bf16.mxu0 %v4256
    %4790 = vmatpush1.bf16.msra.mxu0 %v4255
    %4791 = vmatprep.subr.bf16.mxu0 %v4260
    %4792 = vmatpush1.bf16.msra.mxu0 %v4259
    %4793 = vmatprep.mubr.bf16.mxu0 %v3350
    %4794 = vmatmul.mubr.bf16.gmra.mrb[0].mxu0 %v3349
    %v4795 = vpop.f32.mrb[0].mxu0
    %v4796 = vadd.f32 %v4735, %v4795
    %v4797 = vpop.f32.mrb[0].mxu0
    %v4798 = vadd.f32 %v4737, %v4797
    %v4799 = vpop.f32.mrb[0].mxu0
    %v4800 = vadd.f32 %v4739, %v4799
    %v4801 = vpop.f32.mrb[0].mxu0
    %v4802 = vadd.f32 %v4741, %v4801
    %4803 = vmatprep.mubr.bf16.mxu0 %v3356
    %4804 = vmatmul.mubr.bf16.gmra.mrb[0].mxu0 %v3355
    %v4805 = vpop.f32.mrb[0].mxu0
    %v4806 = vadd.f32 %v4745, %v4805
    %v4807 = vpop.f32.mrb[0].mxu0
    %v4808 = vadd.f32 %v4747, %v4807
    %v4809 = vpop.f32.mrb[0].mxu0
    %v4810 = vadd.f32 %v4749, %v4809
    %v4811 = vpop.f32.mrb[0].mxu0
    %v4812 = vadd.f32 %v4751, %v4811
    %4813 = vmatprep.mubr.bf16.mxu0 %v3362
    %4814 = vmatmul.mubr.bf16.gmra.mrb[0].mxu0 %v3361
    %v4815 = vpop.f32.mrb[0].mxu0
    %v4816 = vadd.f32 %v4755, %v4815
    %v4817 = vpop.f32.mrb[0].mxu0
    %v4818 = vadd.f32 %v4757, %v4817
    %v4819 = vpop.f32.mrb[0].mxu0
    %v4820 = vpop.f32.mrb[0].mxu0
    %4821 = vdwg.mxu0
    %4822 = vmatprep.subr.bf16.mxu0 %v4264
    %4823 = vmatpush1.bf16.msra.mxu0 %v4263
    %4824 = vmatprep.subr.bf16.mxu0 %v4268
    %4825 = vmatpush1.bf16.msra.mxu0 %v4267
    %4826 = vmatprep.subr.bf16.mxu0 %v4272
    %4827 = vmatpush1.bf16.msra.mxu0 %v4271
    %4828 = vmatprep.subr.bf16.mxu0 %v4276
    %4829 = vmatpush1.bf16.msra.mxu0 %v4275
    %4830 = vmatprep.subr.bf16.mxu0 %v4280
    %4831 = vmatpush1.bf16.msra.mxu0 %v4279
    %4832 = vmatprep.subr.bf16.mxu0 %v4284
    %4833 = vmatpush1.bf16.msra.mxu0 %v4283
    %4834 = vmatprep.subr.bf16.mxu0 %v4288
    %4835 = vmatpush1.bf16.msra.mxu0 %v4287
    %4836 = vmatprep.subr.bf16.mxu0 %v4292
    %4837 = vmatpush1.bf16.msra.mxu0 %v4291
    %4838 = vmatprep.subr.bf16.mxu0 %v4296
    %4839 = vmatpush1.bf16.msra.mxu0 %v4295
    %4840 = vmatprep.subr.bf16.mxu0 %v4300
    %4841 = vmatpush1.bf16.msra.mxu0 %v4299
    %4842 = vmatprep.subr.bf16.mxu0 %v4304
    %4843 = vmatpush1.bf16.msra.mxu0 %v4303
    %4844 = vmatprep.subr.bf16.mxu0 %v4308
    %4845 = vmatpush1.bf16.msra.mxu0 %v4307
    %4846 = vmatprep.subr.bf16.mxu0 %v4312
    %4847 = vmatpush1.bf16.msra.mxu0 %v4311
    %4848 = vmatprep.subr.bf16.mxu0 %v4316
    %4849 = vmatpush1.bf16.msra.mxu0 %v4315
    %4850 = vmatprep.subr.bf16.mxu0 %v4320
    %4851 = vmatpush1.bf16.msra.mxu0 %v4319
    %4852 = vmatprep.subr.bf16.mxu0 %v4324
    %4853 = vmatpush1.bf16.msra.mxu0 %v4323
    %4854 = vmatprep.mubr.bf16.mxu0 %v3352
    %4855 = vmatmul.mubr.bf16.gmra.mrb[0].mxu0 %v3351
    %v4856 = vpop.f32.mrb[0].mxu0
    %v4857 = vadd.f32 %v4796, %v4856
    %v4858 = vpop.f32.mrb[0].mxu0
    %v4859 = vadd.f32 %v4798, %v4858
    %v4860 = vpop.f32.mrb[0].mxu0
    %v4861 = vadd.f32 %v4800, %v4860
    %v4862 = vpop.f32.mrb[0].mxu0
    %v4863 = vadd.f32 %v4802, %v4862
    %4864 = vmatprep.mubr.bf16.mxu0 %v3358
    %4865 = vmatmul.mubr.bf16.gmra.mrb[0].mxu0 %v3357
    %v4866 = vpop.f32.mrb[0].mxu0
    %v4867 = vadd.f32 %v4806, %v4866
    %v4868 = vpop.f32.mrb[0].mxu0
    %v4869 = vadd.f32 %v4808, %v4868
    %v4870 = vpop.f32.mrb[0].mxu0
    %v4871 = vadd.f32 %v4810, %v4870
    %v4872 = vpop.f32.mrb[0].mxu0
    %v4873 = vadd.f32 %v4812, %v4872
    %4874 = vmatprep.mubr.bf16.mxu0 %v3364
    %4875 = vmatmul.mubr.bf16.gmra.mrb[0].mxu0 %v3363
    %v4876 = vpop.f32.mrb[0].mxu0
    %v4877 = vadd.f32 %v4816, %v4876
    %v4878 = vpop.f32.mrb[0].mxu0
    %v4879 = vadd.f32 %v4818, %v4878
    %v4880 = vpop.f32.mrb[0].mxu0
    %v4881 = vpop.f32.mrb[0].mxu0
    %4882 = vdwg.mxu0
    %v4883 = vadd.s32 %v1319, 24
    %v4884 = vadd.s32 %v1319, 32
    %vm4885 = vcmp.lt.s32.totalorder %v1319, 0
    %v4886 = vsub.s32 0, %v1319
    %v4887 = vsel %vm4885, %v4886, %v1319
    %v4888 = vmul.u32.u64.compose %v4887, 3817748708
    %v4889 = vextract.low.u32 %v4888
    %v4890 = vextract.high.u32 %v4888
    %v4891 = vshrl.u32 %v4890, 4
    %v4892 = vmul.u32 %v4891, 18
    %v4893 = vsub.s32 %v4887, %v4892
    %v4894 = vsub.s32 0, %v4893
    %v4895 = vsel %vm4885, %v4894, %v4893
    %vm4896 = vcmp.lt.s32.totalorder %v1320, 0
    %v4897 = vsub.s32 0, %v1320
    %v4898 = vsel %vm4896, %v4897, %v1320
    %v4899 = vmul.u32.u64.compose %v4898, 3817748708
    %v4900 = vextract.low.u32 %v4899
    %v4901 = vextract.high.u32 %v4899
    %v4902 = vshrl.u32 %v4901, 4
    %v4903 = vmul.u32 %v4902, 18
    %v4904 = vsub.s32 %v4898, %v4903
    %v4905 = vsub.s32 0, %v4904
    %v4906 = vsel %vm4896, %v4905, %v4904
    %vm4907 = vcmp.lt.s32.totalorder %v2536, 0
    %v4908 = vsub.s32 0, %v2536
    %v4909 = vsel %vm4907, %v4908, %v2536
    %v4910 = vmul.u32.u64.compose %v4909, 3817748708
    %v4911 = vextract.low.u32 %v4910
    %v4912 = vextract.high.u32 %v4910
    %v4913 = vshrl.u32 %v4912, 4
    %v4914 = vmul.u32 %v4913, 18
    %v4915 = vsub.s32 %v4909, %v4914
    %v4916 = vsub.s32 0, %v4915
    %v4917 = vsel %vm4907, %v4916, %v4915
    %vm4918 = vcmp.lt.s32.totalorder %v4883, 0
    %v4919 = vsub.s32 0, %v4883
    %v4920 = vsel %vm4918, %v4919, %v4883
    %v4921 = vmul.u32.u64.compose %v4920, 3817748708
    %v4922 = vextract.low.u32 %v4921
    %v4923 = vextract.high.u32 %v4921
    %v4924 = vshrl.u32 %v4923, 4
    %v4925 = vmul.u32 %v4924, 18
    %v4926 = vsub.s32 %v4920, %v4925
    %v4927 = vsub.s32 0, %v4926
    %v4928 = vsel %vm4918, %v4927, %v4926
    %vm4929 = vcmp.lt.s32.totalorder %v4884, 0
    %v4930 = vsub.s32 0, %v4884
    %v4931 = vsel %vm4929, %v4930, %v4884
    %v4932 = vmul.u32.u64.compose %v4931, 3817748708
    %v4933 = vextract.low.u32 %v4932
    %v4934 = vextract.high.u32 %v4932
    %v4935 = vshrl.u32 %v4934, 4
    %v4936 = vmul.u32 %v4935, 18
    %v4937 = vsub.s32 %v4931, %v4936
    %v4938 = vsub.s32 0, %v4937
    %v4939 = vsel %vm4929, %v4938, %v4937
    %vm4940 = vcmp.ne.s32.totalorder %v4895, 0
    %vm4941 = vcmp.ne.s32.totalorder %v4906, 0
    %vm4942 = vcmp.ne.s32.totalorder %v4917, 0
    %vm4943 = vcmp.ne.s32.totalorder %v4928, 0
    %vm4944 = vcmp.ne.s32.totalorder %v4939, 0
    %vm4945 = vcmp.lt.s32.totalorder %v4895, 0
    %vm4946 = vcmp.lt.s32.totalorder %v4906, 0
    %vm4947 = vcmp.lt.s32.totalorder %v4917, 0
    %vm4948 = vcmp.lt.s32.totalorder %v4928, 0
    %vm4949 = vcmp.lt.s32.totalorder %v4939, 0
    %vm4950 = vmand %vm4945, %vm4940
    %vm4951 = vmand %vm4946, %vm4941
    %vm4952 = vmand %vm4947, %vm4942
    %vm4953 = vmand %vm4948, %vm4943
    %vm4954 = vmand %vm4949, %vm4944
    %v4955 = vadd.s32 %v4895, 18
    %v4956 = vadd.s32 %v4906, 18
    %v4957 = vadd.s32 %v4917, 18
    %v4958 = vadd.s32 %v4928, 18
    %v4959 = vadd.s32 %v4939, 18
    %v4960 = vsel %vm4950, %v4955, %v4895
    %v4961 = vsel %vm4951, %v4956, %v4906
    %v4962 = vsel %vm4952, %v4957, %v4917
    %v4963 = vsel %vm4953, %v4958, %v4928
    %v4964 = vsel %vm4954, %v4959, %v4939
    %vm4965 = vcmp.lt.s32.totalorder %v4960, 16
    %vm4966 = vcmp.lt.s32.totalorder %v4961, 16
    %vm4967 = vcmp.lt.s32.totalorder %v4962, 16
    %vm4968 = vcmp.lt.s32.totalorder %v4963, 16
    %vm4969 = vcmp.lt.s32.totalorder %v4964, 16
    %v4970 = vsel %vm4965, 1, 0
    %v4971 = vsel %vm4966, 1, 0
    %v4972 = vsel %vm4967, 1, 0
    %v4973 = vsel %vm4968, 1, 0
    %v4974 = vsel %vm4969, 1, 0
    %v4975 = vcvt.s32.f32 %v4970
    %v4976 = vcvt.s32.f32 %v4971
    %v4977 = vcvt.s32.f32 %v4972
    %v4978 = vcvt.s32.f32 %v4973
    %v4979 = vcvt.s32.f32 %v4974
    %v4980 = vmul.f32 %v4674, %v4975
    %v4981 = vmul.f32 %v4676, %v4975
    %v4982 = vmul.f32 %v4857, %v4975
    %v4983 = vmul.f32 %v4859, %v4975
    %v4984 = vmul.f32 %v4678, %v4976
    %v4985 = vmul.f32 %v4680, %v4976
    %v4986 = vmul.f32 %v4861, %v4976
    %v4987 = vmul.f32 %v4863, %v4976
    %v4988 = vmul.f32 %v4684, %v4977
    %v4989 = vmul.f32 %v4686, %v4977
    %v4990 = vmul.f32 %v4867, %v4977
    %v4991 = vmul.f32 %v4869, %v4977
    %v4992 = vmul.f32 %v4688, %v4978
    %v4993 = vmul.f32 %v4690, %v4978
    %v4994 = vmul.f32 %v4871, %v4978
    %v4995 = vmul.f32 %v4873, %v4978
    %v4996 = vmul.f32 %v4694, %v4979
    %v4997 = vmul.f32 %v4696, %v4979
    %v4998 = vmul.f32 %v4877, %v4979
    %v4999 = vmul.f32 %v4879, %v4979
    %v5000 = vadd.f32 %v4980, %v4984
    %v5001 = vadd.f32 %v5000, %v4988
    %v5002 = vadd.f32 %v5001, %v4992
    %v5003 = vsel %vm334, %v4996, 0.0
    %v5004 = vadd.f32 %v5002, %v5003
    %v5005 = vrot.slane %v5004, 4
    %v5006 = vadd.f32 %v5004, %v5005
    %v5007 = vrot.slane %v5006, 2
    %v5008 = vadd.f32 %v5006, %v5007
    %v5009 = vrot.slane %v5008, 1
    %v5010 = vadd.f32 %v5008, %v5009
    %v5011 = vadd.f32 %v4981, %v4985
    %v5012 = vadd.f32 %v5011, %v4989
    %v5013 = vadd.f32 %v5012, %v4993
    %v5014 = vsel %vm334, %v4997, 0.0
    %v5015 = vadd.f32 %v5013, %v5014
    %v5016 = vrot.slane %v5015, 4
    %v5017 = vadd.f32 %v5015, %v5016
    %v5018 = vrot.slane %v5017, 2
    %v5019 = vadd.f32 %v5017, %v5018
    %v5020 = vrot.slane %v5019, 1
    %v5021 = vadd.f32 %v5019, %v5020
    %v5022 = vadd.f32 %v4982, %v4986
    %v5023 = vadd.f32 %v5022, %v4990
    %v5024 = vadd.f32 %v5023, %v4994
    %v5025 = vsel %vm334, %v4998, 0.0
    %v5026 = vadd.f32 %v5024, %v5025
    %v5027 = vrot.slane %v5026, 4
    %v5028 = vadd.f32 %v5026, %v5027
    %v5029 = vrot.slane %v5028, 2
    %v5030 = vadd.f32 %v5028, %v5029
    %v5031 = vrot.slane %v5030, 1
    %v5032 = vadd.f32 %v5030, %v5031
    %v5033 = vadd.f32 %v4983, %v4987
    %v5034 = vadd.f32 %v5033, %v4991
    %v5035 = vadd.f32 %v5034, %v4995
    %v5036 = vsel %vm334, %v4999, 0.0
    %v5037 = vadd.f32 %v5035, %v5036
    %v5038 = vrot.slane %v5037, 4
    %v5039 = vadd.f32 %v5037, %v5038
    %v5040 = vrot.slane %v5039, 2
    %v5041 = vadd.f32 %v5039, %v5040
    %v5042 = vrot.slane %v5041, 1
    %v5043 = vadd.f32 %v5041, %v5042
    %v5044 = vmul.f32 %v4980, %v4674
    %v5045 = vmul.f32 %v4981, %v4676
    %v5046 = vmul.f32 %v4982, %v4857
    %v5047 = vmul.f32 %v4983, %v4859
    %v5048 = vmul.f32 %v4984, %v4678
    %v5049 = vmul.f32 %v4985, %v4680
    %v5050 = vmul.f32 %v4986, %v4861
    %v5051 = vmul.f32 %v4987, %v4863
    %v5052 = vmul.f32 %v4988, %v4684
    %v5053 = vmul.f32 %v4989, %v4686
    %v5054 = vmul.f32 %v4990, %v4867
    %v5055 = vmul.f32 %v4991, %v4869
    %v5056 = vmul.f32 %v4992, %v4688
    %v5057 = vmul.f32 %v4993, %v4690
    %v5058 = vmul.f32 %v4994, %v4871
    %v5059 = vmul.f32 %v4995, %v4873
    %v5060 = vmul.f32 %v4996, %v4694
    %v5061 = vmul.f32 %v4997, %v4696
    %v5062 = vmul.f32 %v4998, %v4877
    %v5063 = vmul.f32 %v4999, %v4879
    %v5064 = vadd.f32 %v5044, %v5048
    %v5065 = vadd.f32 %v5064, %v5052
    %v5066 = vadd.f32 %v5065, %v5056
    %v5067 = vsel %vm334, %v5060, 0.0
    %v5068 = vadd.f32 %v5066, %v5067
    %v5069 = vrot.slane %v5068, 4
    %v5070 = vadd.f32 %v5068, %v5069
    %v5071 = vrot.slane %v5070, 2
    %v5072 = vadd.f32 %v5070, %v5071
    %v5073 = vrot.slane %v5072, 1
    %v5074 = vadd.f32 %v5072, %v5073
    %v5075 = vadd.f32 %v5045, %v5049
    %v5076 = vadd.f32 %v5075, %v5053
    %v5077 = vadd.f32 %v5076, %v5057
    %v5078 = vsel %vm334, %v5061, 0.0
    %v5079 = vadd.f32 %v5077, %v5078
    %v5080 = vrot.slane %v5079, 4
    %v5081 = vadd.f32 %v5079, %v5080
    %v5082 = vrot.slane %v5081, 2
    %v5083 = vadd.f32 %v5081, %v5082
    %v5084 = vrot.slane %v5083, 1
    %v5085 = vadd.f32 %v5083, %v5084
    %v5086 = vadd.f32 %v5046, %v5050
    %v5087 = vadd.f32 %v5086, %v5054
    %v5088 = vadd.f32 %v5087, %v5058
    %v5089 = vsel %vm334, %v5062, 0.0
    %v5090 = vadd.f32 %v5088, %v5089
    %v5091 = vrot.slane %v5090, 4
    %v5092 = vadd.f32 %v5090, %v5091
    %v5093 = vrot.slane %v5092, 2
    %v5094 = vadd.f32 %v5092, %v5093
    %v5095 = vrot.slane %v5094, 1
    %v5096 = vadd.f32 %v5094, %v5095
    %v5097 = vadd.f32 %v5047, %v5051
    %v5098 = vadd.f32 %v5097, %v5055
    %v5099 = vadd.f32 %v5098, %v5059
    %v5100 = vsel %vm334, %v5063, 0.0
    %v5101 = vadd.f32 %v5099, %v5100
    %v5102 = vrot.slane %v5101, 4
    %v5103 = vadd.f32 %v5101, %v5102
    %v5104 = vrot.slane %v5103, 2
    %v5105 = vadd.f32 %v5103, %v5104
    %v5106 = vrot.slane %v5105, 1
    %v5107 = vadd.f32 %v5105, %v5106
    %v5108 = vsel %vm395, %v5010, %v5074
    %v5109 = vsel %vm395, %v5021, %v5085
    %v5110 = vsel %vm395, %v5032, %v5096
    %v5111 = vsel %vm395, %v5043, %v5107
    %v5112 = vld [vmem:[%s17] sm:$0xff]
    %v5113 = vld [vmem:[%s17 + $0x8] sm:$0xff]
    %v5114 = vld [vmem:[%s17 + $0x10] sm:$0xff]
    %v5115 = vld [vmem:[%s17 + $0x18] sm:$0xff]
    %v5116 = vld [vmem:[%s17 + $0x20] sm:$0xff]
    %v5117 = vld [vmem:[%s17 + $0x28] sm:$0xff]
    %v5118 = vld [vmem:[%s17 + $0x30] sm:$0xff]
    %v5119 = vld [vmem:[%s17 + $0x38] sm:$0xff]
    %v5120 = vld [vmem:[%s17 + $0x40] sm:$0xff]
    %v5121 = vld [vmem:[%s17 + $0x48] sm:$0xff]
    %v5122 = vld [vmem:[%s17 + $0x50] sm:$0xff]
    %v5123 = vld [vmem:[%s17 + $0x58] sm:$0xff]
    %v5124 = vld [vmem:[%s17 + $0x60] sm:$0xff]
    %v5125 = vld [vmem:[%s17 + $0x68] sm:$0xff]
    %v5126 = vld [vmem:[%s17 + $0x70] sm:$0xff]
    %v5127 = vld [vmem:[%s17 + $0x78] sm:$0xff]
    %v5128 = vld [vmem:[%s17 + $0x80] sm:$0xff]
    %v5129 = vld [vmem:[%s17 + $0x88] sm:$0xff]
    %v5130 = vld [vmem:[%s17 + $0x90] sm:$0xff]
    %v5131 = vld [vmem:[%s17 + $0x98] sm:$0xff]
    %v5132 = vld [vmem:[%s17 + $0xa0] sm:$0xff]
    %v5133 = vld [vmem:[%s17 + $0xa8] sm:$0xff]
    %v5134 = vld [vmem:[%s17 + $0xb0] sm:$0xff]
    %v5135 = vld [vmem:[%s17 + $0xb8] sm:$0xff]
    %v5136 = vld [vmem:[%s17 + $0xc0] sm:$0xff]
    %v5137 = vld [vmem:[%s17 + $0xc8] sm:$0xff]
    %v5138 = vld [vmem:[%s17 + $0xd0] sm:$0xff]
    %v5139 = vld [vmem:[%s17 + $0xd8] sm:$0xff]
    %v5140 = vld [vmem:[%s17 + $0xe0] sm:$0xff]
    %v5141 = vld [vmem:[%s17 + $0xe8] sm:$0xff]
    %v5142 = vld [vmem:[%s17 + $0xf0] sm:$0xff]
    %v5143 = vld [vmem:[%s17 + $0xf8] sm:$0xff]
    %v5144 = vld [vmem:[%s17 + $0x100] sm:$0xff]
    %v5145 = vld [vmem:[%s17 + $0x108] sm:$0xff]
    %v5146 = vld [vmem:[%s17 + $0x110] sm:$0xff]
    %v5147 = vld [vmem:[%s17 + $0x118] sm:$0xff]
    %v5148 = vld [vmem:[%s17 + $0x120] sm:$0xff]
    %v5149 = vld [vmem:[%s17 + $0x128] sm:$0xff]
    %v5150 = vld [vmem:[%s17 + $0x130] sm:$0xff]
    %v5151 = vld [vmem:[%s17 + $0x138] sm:$0xff]
    %v5152 = vld [vmem:[%s17 + $0x140] sm:$0xff]
    %v5153 = vld [vmem:[%s17 + $0x148] sm:$0xff]
    %v5154 = vld [vmem:[%s17 + $0x150] sm:$0xff]
    %v5155 = vld [vmem:[%s17 + $0x158] sm:$0xff]
    %v5156 = vld [vmem:[%s17 + $0x160] sm:$0xff]
    %v5157 = vld [vmem:[%s17 + $0x168] sm:$0xff]
    %v5158 = vld [vmem:[%s17 + $0x170] sm:$0xff]
    %v5159 = vld [vmem:[%s17 + $0x178] sm:$0xff]
    %v5160 = vld [vmem:[%s17 + $0x180] sm:$0xff]
    %v5161 = vld [vmem:[%s17 + $0x188] sm:$0xff]
    %v5162 = vld [vmem:[%s17 + $0x190] sm:$0xff]
    %v5163 = vld [vmem:[%s17 + $0x198] sm:$0xff]
    %v5164 = vld [vmem:[%s17 + $0x1a0] sm:$0xff]
    %v5165 = vld [vmem:[%s17 + $0x1a8] sm:$0xff]
    %v5166 = vld [vmem:[%s17 + $0x1b0] sm:$0xff]
    %v5167 = vld [vmem:[%s17 + $0x1b8] sm:$0xff]
    %v5168 = vld [vmem:[%s17 + $0x1c0] sm:$0xff]
    %v5169 = vld [vmem:[%s17 + $0x1c8] sm:$0xff]
    %v5170 = vld [vmem:[%s17 + $0x1d0] sm:$0xff]
    %v5171 = vld [vmem:[%s17 + $0x1d8] sm:$0xff]
    %v5172 = vld [vmem:[%s17 + $0x1e0] sm:$0xff]
    %v5173 = vld [vmem:[%s17 + $0x1e8] sm:$0xff]
    %v5174 = vld [vmem:[%s17 + $0x1f0] sm:$0xff]
    %v5175 = vld [vmem:[%s17 + $0x1f8] sm:$0xff]
    %5176 = vmatprep.subr.mxu0 0.0
    %5177 = vmatpush1.msra.mxu0 %v5112
    %5178 = vmatprep.subr.mxu0 0.0
    %5179 = vmatpush1.msra.mxu0 %v5113
    %5180 = vmatprep.subr.mxu0 0.0
    %5181 = vmatpush1.msra.mxu0 %v5114
    %5182 = vmatprep.subr.mxu0 0.0
    %5183 = vmatpush1.msra.mxu0 %v5115
    %5184 = vmatprep.subr.mxu0 0.0
    %5185 = vmatpush1.msra.mxu0 %v5116
    %5186 = vmatprep.subr.mxu0 0.0
    %5187 = vmatpush1.msra.mxu0 %v5117
    %5188 = vmatprep.subr.mxu0 0.0
    %5189 = vmatpush1.msra.mxu0 %v5118
    %5190 = vmatprep.subr.mxu0 0.0
    %5191 = vmatpush1.msra.mxu0 %v5119
    %5192 = vmatprep.subr.mxu0 0.0
    %5193 = vmatpush1.msra.mxu0 %v5120
    %5194 = vmatprep.subr.mxu0 0.0
    %5195 = vmatpush1.msra.mxu0 %v5121
    %5196 = vmatprep.subr.mxu0 0.0
    %5197 = vmatpush1.msra.mxu0 %v5122
    %5198 = vmatprep.subr.mxu0 0.0
    %5199 = vmatpush1.msra.mxu0 %v5123
    %5200 = vmatprep.subr.mxu0 0.0
    %5201 = vmatpush1.msra.mxu0 %v5124
    %5202 = vmatprep.subr.mxu0 0.0
    %5203 = vmatpush1.msra.mxu0 %v5125
    %5204 = vmatprep.subr.mxu0 0.0
    %5205 = vmatpush1.msra.mxu0 %v5126
    %5206 = vmatprep.subr.mxu0 0.0
    %5207 = vmatpush1.msra.mxu0 %v5127
    %5208 = vmatprep.subr.mxu0 0.0
    %5209 = vmatpush1.msra.mxu0 %v5128
    %5210 = vmatprep.subr.mxu0 0.0
    %5211 = vmatpush1.msra.mxu0 %v5129
    %5212 = vmatprep.subr.mxu0 0.0
    %5213 = vmatpush1.msra.mxu0 %v5130
    %5214 = vmatprep.subr.mxu0 0.0
    %5215 = vmatpush1.msra.mxu0 %v5131
    %5216 = vmatprep.subr.mxu0 0.0
    %5217 = vmatpush1.msra.mxu0 %v5132
    %5218 = vmatprep.subr.mxu0 0.0
    %5219 = vmatpush1.msra.mxu0 %v5133
    %5220 = vmatprep.subr.mxu0 0.0
    %5221 = vmatpush1.msra.mxu0 %v5134
    %5222 = vmatprep.subr.mxu0 0.0
    %5223 = vmatpush1.msra.mxu0 %v5135
    %5224 = vmatprep.subr.mxu0 0.0
    %5225 = vmatpush1.msra.mxu0 %v5136
    %5226 = vmatprep.subr.mxu0 0.0
    %5227 = vmatpush1.msra.mxu0 %v5137
    %5228 = vmatprep.subr.mxu0 0.0
    %5229 = vmatpush1.msra.mxu0 %v5138
    %5230 = vmatprep.subr.mxu0 0.0
    %5231 = vmatpush1.msra.mxu0 %v5139
    %5232 = vmatprep.subr.mxu0 0.0
    %5233 = vmatpush1.msra.mxu0 %v5140
    %5234 = vmatprep.subr.mxu0 0.0
    %5235 = vmatpush1.msra.mxu0 %v5141
    %5236 = vmatprep.subr.mxu0 0.0
    %5237 = vmatpush1.msra.mxu0 %v5142
    %5238 = vmatprep.subr.mxu0 0.0
    %5239 = vmatpush1.msra.mxu0 %v5143
    %5240 = vmatprep.mubr.f32.mxu0 %v5109
    %5241 = vmatmul.mubr.f32.gmra.mrb[0].mxu0 %v5108
    %v5242 = vpop.f32.mrb[0].mxu0
    %v5243 = vadd.f32 0.0, %v5242
    %v5244 = vpop.f32.mrb[0].mxu0
    %5245 = vdwg.mxu0
    %5246 = vmatprep.subr.mxu0 0.0
    %5247 = vmatpush1.msra.mxu0 %v5144
    %5248 = vmatprep.subr.mxu0 0.0
    %5249 = vmatpush1.msra.mxu0 %v5145
    %5250 = vmatprep.subr.mxu0 0.0
    %5251 = vmatpush1.msra.mxu0 %v5146
    %5252 = vmatprep.subr.mxu0 0.0
    %5253 = vmatpush1.msra.mxu0 %v5147
    %5254 = vmatprep.subr.mxu0 0.0
    %5255 = vmatpush1.msra.mxu0 %v5148
    %5256 = vmatprep.subr.mxu0 0.0
    %5257 = vmatpush1.msra.mxu0 %v5149
    %5258 = vmatprep.subr.mxu0 0.0
    %5259 = vmatpush1.msra.mxu0 %v5150
    %5260 = vmatprep.subr.mxu0 0.0
    %5261 = vmatpush1.msra.mxu0 %v5151
    %5262 = vmatprep.subr.mxu0 0.0
    %5263 = vmatpush1.msra.mxu0 %v5152
    %5264 = vmatprep.subr.mxu0 0.0
    %5265 = vmatpush1.msra.mxu0 %v5153
    %5266 = vmatprep.subr.mxu0 0.0
    %5267 = vmatpush1.msra.mxu0 %v5154
    %5268 = vmatprep.subr.mxu0 0.0
    %5269 = vmatpush1.msra.mxu0 %v5155
    %5270 = vmatprep.subr.mxu0 0.0
    %5271 = vmatpush1.msra.mxu0 %v5156
    %5272 = vmatprep.subr.mxu0 0.0
    %5273 = vmatpush1.msra.mxu0 %v5157
    %5274 = vmatprep.subr.mxu0 0.0
    %5275 = vmatpush1.msra.mxu0 %v5158
    %5276 = vmatprep.subr.mxu0 0.0
    %5277 = vmatpush1.msra.mxu0 %v5159
    %5278 = vmatprep.subr.mxu0 0.0
    %5279 = vmatpush1.msra.mxu0 %v5160
    %5280 = vmatprep.subr.mxu0 0.0
    %5281 = vmatpush1.msra.mxu0 %v5161
    %5282 = vmatprep.subr.mxu0 0.0
    %5283 = vmatpush1.msra.mxu0 %v5162
    %5284 = vmatprep.subr.mxu0 0.0
    %5285 = vmatpush1.msra.mxu0 %v5163
    %5286 = vmatprep.subr.mxu0 0.0
    %5287 = vmatpush1.msra.mxu0 %v5164
    %5288 = vmatprep.subr.mxu0 0.0
    %5289 = vmatpush1.msra.mxu0 %v5165
    %5290 = vmatprep.subr.mxu0 0.0
    %5291 = vmatpush1.msra.mxu0 %v5166
    %5292 = vmatprep.subr.mxu0 0.0
    %5293 = vmatpush1.msra.mxu0 %v5167
    %5294 = vmatprep.subr.mxu0 0.0
    %5295 = vmatpush1.msra.mxu0 %v5168
    %5296 = vmatprep.subr.mxu0 0.0
    %5297 = vmatpush1.msra.mxu0 %v5169
    %5298 = vmatprep.subr.mxu0 0.0
    %5299 = vmatpush1.msra.mxu0 %v5170
    %5300 = vmatprep.subr.mxu0 0.0
    %5301 = vmatpush1.msra.mxu0 %v5171
    %5302 = vmatprep.subr.mxu0 0.0
    %5303 = vmatpush1.msra.mxu0 %v5172
    %5304 = vmatprep.subr.mxu0 0.0
    %5305 = vmatpush1.msra.mxu0 %v5173
    %5306 = vmatprep.subr.mxu0 0.0
    %5307 = vmatpush1.msra.mxu0 %v5174
    %5308 = vmatprep.subr.mxu0 0.0
    %5309 = vmatpush1.msra.mxu0 %v5175
    %5310 = vmatprep.mubr.f32.mxu0 %v5111
    %5311 = vmatmul.mubr.f32.gmra.mrb[0].mxu0 %v5110
    %v5312 = vpop.f32.mrb[0].mxu0
    %v5313 = vadd.f32 %v5243, %v5312
    %v5314 = vpop.f32.mrb[0].mxu0
    %5315 = vdwg.mxu0
    %v5316 = vmul.f32 %v5313, 0.00048828125
    %v5317 = vmul.f32 %v5316, %v5316
    %v5319 = vrot.slane %v5317, 7
    %v5321 = vsub.f32 %v5316, %v5319
    %v5322 = vld [vmem:[%s19] sm:$0x1]
    %v5323 = vadd.f32 %v5321, 1e-05
    %v5324 = vrsqrt.pop %v5323
    %v5326 = vrot.slane %v5324, 1
    %v5328 = vmul.f32 %v5322, %v5326
    %v5329 = vld [vmem:[%s19 + $0x1] sm:$0x1]
    %v5330 = vmul.f32 %v5316, %v5328
    %v5331 = vsub.f32 %v5329, %v5330
    %v5333 = vrot.slane %v5331, 7
    %v5335 = vsel %vm395, %v5328, %v5333
    %v5336 = vld [vmem:[#allocation12] sm:$0xff]
    %v5337 = vld [vmem:[#allocation12 + $0x8] sm:$0xff]
    %v5338 = vld [vmem:[#allocation12 + $0x10] sm:$0xff]
    %v5339 = vld [vmem:[#allocation12 + $0x18] sm:$0xff]
    %v5341 = vsel %vm846, %v5335, 0
    %5343 = vmatprep.subr.mxu0 %v5337
    %5344 = vmatpush1.msra.mxu0 %v5336
    %5345 = vmatprep.subr.mxu0 0.0
    %5346 = vmatpush1.msra.mxu0 0.0
    %5347 = vmatprep.subr.mxu0 0.0
    %5348 = vmatpush1.msra.mxu0 0.0
    %5349 = vmatprep.subr.mxu0 0.0
    %5350 = vmatpush1.msra.mxu0 0.0
    %5351 = vmatprep.subr.mxu0 0.0
    %5352 = vmatpush1.msra.mxu0 0.0
    %5353 = vmatprep.subr.mxu0 0.0
    %5354 = vmatpush1.msra.mxu0 0.0
    %5355 = vmatprep.subr.mxu0 0.0
    %5356 = vmatpush1.msra.mxu0 0.0
    %5357 = vmatprep.subr.mxu0 0.0
    %5358 = vmatpush1.msra.mxu0 0.0
    %5359 = vmatprep.subr.mxu0 0.0
    %5360 = vmatpush1.msra.mxu0 0.0
    %5361 = vmatprep.subr.mxu0 0.0
    %5362 = vmatpush1.msra.mxu0 0.0
    %5363 = vmatprep.subr.mxu0 0.0
    %5364 = vmatpush1.msra.mxu0 0.0
    %5365 = vmatprep.subr.mxu0 0.0
    %5366 = vmatpush1.msra.mxu0 0.0
    %5367 = vmatprep.subr.mxu0 0.0
    %5368 = vmatpush1.msra.mxu0 0.0
    %5369 = vmatprep.subr.mxu0 0.0
    %5370 = vmatpush1.msra.mxu0 0.0
    %5371 = vmatprep.subr.mxu0 0.0
    %5372 = vmatpush1.msra.mxu0 0.0
    %5373 = vmatprep.subr.mxu0 0.0
    %5374 = vmatpush1.msra.mxu0 0.0
    %5375 = vmatprep.subr.mxu0 0.0
    %5376 = vmatpush1.msra.mxu0 0.0
    %5377 = vmatprep.subr.mxu0 0.0
    %5378 = vmatpush1.msra.mxu0 0.0
    %5379 = vmatprep.subr.mxu0 0.0
    %5380 = vmatpush1.msra.mxu0 0.0
    %5381 = vmatprep.subr.mxu0 0.0
    %5382 = vmatpush1.msra.mxu0 0.0
    %5383 = vmatprep.subr.mxu0 0.0
    %5384 = vmatpush1.msra.mxu0 0.0
    %5385 = vmatprep.subr.mxu0 0.0
    %5386 = vmatpush1.msra.mxu0 0.0
    %5387 = vmatprep.subr.mxu0 0.0
    %5388 = vmatpush1.msra.mxu0 0.0
    %5389 = vmatprep.subr.mxu0 0.0
    %5390 = vmatpush1.msra.mxu0 0.0
    %5391 = vmatprep.subr.mxu0 0.0
    %5392 = vmatpush1.msra.mxu0 0.0
    %5393 = vmatprep.subr.mxu0 0.0
    %5394 = vmatpush1.msra.mxu0 0.0
    %5395 = vmatprep.subr.mxu0 0.0
    %5396 = vmatpush1.msra.mxu0 0.0
    %5397 = vmatprep.subr.mxu0 0.0
    %5398 = vmatpush1.msra.mxu0 0.0
    %5399 = vmatprep.subr.mxu0 0.0
    %5400 = vmatpush1.msra.mxu0 0.0
    %5401 = vmatprep.subr.mxu0 0.0
    %5402 = vmatpush1.msra.mxu0 0.0
    %5403 = vmatprep.subr.mxu0 0.0
    %5404 = vmatpush1.msra.mxu0 0.0
    %5405 = vmatprep.subr.mxu0 0.0
    %5406 = vmatpush1.msra.mxu0 0.0
    %5407 = vmatprep.mubr.f32.mxu0 0.0
    %5408 = vmatmul.mubr.f32.gmra.mrb[0].mxu0 %v5341
    %v5409 = vpop.f32.mrb[0].mxu0
    %v5410 = vadd.f32 0.0, %v5409
    %v5411 = vpop.f32.mrb[0].mxu0
    %v5412 = vadd.f32 0.0, %v5411
    %5413 = vdwg.mxu0
    %5414 = vmatprep.subr.mxu0 %v5339
    %5415 = vmatpush1.msra.mxu0 %v5338
    %5416 = vmatprep.subr.mxu0 0.0
    %5417 = vmatpush1.msra.mxu0 0.0
    %5418 = vmatprep.subr.mxu0 0.0
    %5419 = vmatpush1.msra.mxu0 0.0
    %5420 = vmatprep.subr.mxu0 0.0
    %5421 = vmatpush1.msra.mxu0 0.0
    %5422 = vmatprep.subr.mxu0 0.0
    %5423 = vmatpush1.msra.mxu0 0.0
    %5424 = vmatprep.subr.mxu0 0.0
    %5425 = vmatpush1.msra.mxu0 0.0
    %5426 = vmatprep.subr.mxu0 0.0
    %5427 = vmatpush1.msra.mxu0 0.0
    %5428 = vmatprep.subr.mxu0 0.0
    %5429 = vmatpush1.msra.mxu0 0.0
    %5430 = vmatprep.subr.mxu0 0.0
    %5431 = vmatpush1.msra.mxu0 0.0
    %5432 = vmatprep.subr.mxu0 0.0
    %5433 = vmatpush1.msra.mxu0 0.0
    %5434 = vmatprep.subr.mxu0 0.0
    %5435 = vmatpush1.msra.mxu0 0.0
    %5436 = vmatprep.subr.mxu0 0.0
    %5437 = vmatpush1.msra.mxu0 0.0
    %5438 = vmatprep.subr.mxu0 0.0
    %5439 = vmatpush1.msra.mxu0 0.0
    %5440 = vmatprep.subr.mxu0 0.0
    %5441 = vmatpush1.msra.mxu0 0.0
    %5442 = vmatprep.subr.mxu0 0.0
    %5443 = vmatpush1.msra.mxu0 0.0
    %5444 = vmatprep.subr.mxu0 0.0
    %5445 = vmatpush1.msra.mxu0 0.0
    %5446 = vmatprep.subr.mxu0 0.0
    %5447 = vmatpush1.msra.mxu0 0.0
    %5448 = vmatprep.subr.mxu0 0.0
    %5449 = vmatpush1.msra.mxu0 0.0
    %5450 = vmatprep.subr.mxu0 0.0
    %5451 = vmatpush1.msra.mxu0 0.0
    %5452 = vmatprep.subr.mxu0 0.0
    %5453 = vmatpush1.msra.mxu0 0.0
    %5454 = vmatprep.subr.mxu0 0.0
    %5455 = vmatpush1.msra.mxu0 0.0
    %5456 = vmatprep.subr.mxu0 0.0
    %5457 = vmatpush1.msra.mxu0 0.0
    %5458 = vmatprep.subr.mxu0 0.0
    %5459 = vmatpush1.msra.mxu0 0.0
    %5460 = vmatprep.subr.mxu0 0.0
    %5461 = vmatpush1.msra.mxu0 0.0
    %5462 = vmatprep.subr.mxu0 0.0
    %5463 = vmatpush1.msra.mxu0 0.0
    %5464 = vmatprep.subr.mxu0 0.0
    %5465 = vmatpush1.msra.mxu0 0.0
    %5466 = vmatprep.subr.mxu0 0.0
    %5467 = vmatpush1.msra.mxu0 0.0
    %5468 = vmatprep.subr.mxu0 0.0
    %5469 = vmatpush1.msra.mxu0 0.0
    %5470 = vmatprep.subr.mxu0 0.0
    %5471 = vmatpush1.msra.mxu0 0.0
    %5472 = vmatprep.subr.mxu0 0.0
    %5473 = vmatpush1.msra.mxu0 0.0
    %5474 = vmatprep.subr.mxu0 0.0
    %5475 = vmatpush1.msra.mxu0 0.0
    %5476 = vmatprep.subr.mxu0 0.0
    %5477 = vmatpush1.msra.mxu0 0.0
    %5478 = vmatprep.mubr.f32.mxu0 0.0
    %5479 = vmatmul.mubr.f32.gmra.mrb[0].mxu0 %v5341
    %v5480 = vpop.f32.mrb[0].mxu0
    %v5481 = vadd.f32 0.0, %v5480
    %v5482 = vpop.f32.mrb[0].mxu0
    %v5483 = vadd.f32 0.0, %v5482
    %5484 = vdwg.mxu0
    %v5485 = vlaneseq
    %v5486 = vshrl.u32 %v5485, 7
    %v5487 = vsub.s32 0, %v5486
    %v5488 = vrot.slane %v5410, %v5487
    %v5489 = vlaneseq
    %v5490 = vshrl.u32 %v5489, 7
    %v5491 = vsub.s32 0, %v5490
    %v5492 = vrot.slane %v5412, %v5491
    %v5493 = vlaneseq
    %v5494 = vshrl.u32 %v5493, 7
    %v5495 = vsub.s32 0, %v5494
    %v5496 = vrot.slane %v5481, %v5495
    %v5497 = vlaneseq
    %v5498 = vshrl.u32 %v5497, 7
    %v5499 = vsub.s32 0, %v5498
    %v5500 = vrot.slane %v5483, %v5499
    %v5501 = vmul.f32 %v4674, %v5488
    %v5502 = vmul.f32 %v4676, %v5492
    %v5503 = vmul.f32 %v4857, %v5496
    %v5504 = vmul.f32 %v4859, %v5500
    %v5505 = vmul.f32 %v4678, %v5488
    %v5506 = vmul.f32 %v4680, %v5492
    %v5507 = vmul.f32 %v4861, %v5496
    %v5508 = vmul.f32 %v4863, %v5500
    %v5509 = vmul.f32 %v4684, %v5488
    %v5510 = vmul.f32 %v4686, %v5492
    %v5511 = vmul.f32 %v4867, %v5496
    %v5512 = vmul.f32 %v4869, %v5500
    %v5513 = vmul.f32 %v4688, %v5488
    %v5514 = vmul.f32 %v4690, %v5492
    %v5515 = vmul.f32 %v4871, %v5496
    %v5516 = vmul.f32 %v4873, %v5500
    %v5517 = vmul.f32 %v4694, %v5488
    %v5518 = vmul.f32 %v4696, %v5492
    %v5519 = vmul.f32 %v4877, %v5496
    %v5520 = vmul.f32 %v4879, %v5500
    %v5521 = vlaneseq
    %v5522 = vshrl.u32 %v5521, 7
    %v5523 = vsub.s32 1, %v5522
    %v5524 = vrot.slane %v5410, %v5523
    %v5525 = vlaneseq
    %v5526 = vshrl.u32 %v5525, 7
    %v5527 = vsub.s32 1, %v5526
    %v5528 = vrot.slane %v5412, %v5527
    %v5529 = vlaneseq
    %v5530 = vshrl.u32 %v5529, 7
    %v5531 = vsub.s32 1, %v5530
    %v5532 = vrot.slane %v5481, %v5531
    %v5533 = vlaneseq
    %v5534 = vshrl.u32 %v5533, 7
    %v5535 = vsub.s32 1, %v5534
    %v5536 = vrot.slane %v5483, %v5535
    %v5537 = vadd.f32 %v5501, %v5524
    %v5538 = vadd.f32 %v5502, %v5528
    %v5539 = vadd.f32 %v5503, %v5532
    %v5540 = vadd.f32 %v5504, %v5536
    %v5541 = vadd.f32 %v5505, %v5524
    %v5542 = vadd.f32 %v5506, %v5528
    %v5543 = vadd.f32 %v5507, %v5532
    %v5544 = vadd.f32 %v5508, %v5536
    %v5545 = vadd.f32 %v5509, %v5524
    %v5546 = vadd.f32 %v5510, %v5528
    %v5547 = vadd.f32 %v5511, %v5532
    %v5548 = vadd.f32 %v5512, %v5536
    %v5549 = vadd.f32 %v5513, %v5524
    %v5550 = vadd.f32 %v5514, %v5528
    %v5551 = vadd.f32 %v5515, %v5532
    %v5552 = vadd.f32 %v5516, %v5536
    %v5553 = vadd.f32 %v5517, %v5524
    %v5554 = vadd.f32 %v5518, %v5528
    %v5555 = vadd.f32 %v5519, %v5532
    %v5556 = vadd.f32 %v5520, %v5536
    %v5557 = vmax.f32 %v5537, 0.0
    %v5558 = vmax.f32 %v5538, 0.0
    %v5559 = vmax.f32 %v5539, 0.0
    %v5560 = vmax.f32 %v5540, 0.0
    %v5561 = vmax.f32 %v5541, 0.0
    %v5562 = vmax.f32 %v5542, 0.0
    %v5563 = vmax.f32 %v5543, 0.0
    %v5564 = vmax.f32 %v5544, 0.0
    %v5565 = vmax.f32 %v5545, 0.0
    %v5566 = vmax.f32 %v5546, 0.0
    %v5567 = vmax.f32 %v5547, 0.0
    %v5568 = vmax.f32 %v5548, 0.0
    %v5569 = vmax.f32 %v5549, 0.0
    %v5570 = vmax.f32 %v5550, 0.0
    %v5571 = vmax.f32 %v5551, 0.0
    %v5572 = vmax.f32 %v5552, 0.0
    %v5573 = vmax.f32 %v5553, 0.0
    %v5574 = vmax.f32 %v5554, 0.0
    %v5575 = vmax.f32 %v5555, 0.0
    %v5576 = vmax.f32 %v5556, 0.0
    %v5587 = vrot.slane %v5559, 6
    %v5588 = vrot.slane %v5560, 6
    %v5589 = vrot.slane %v5563, 6
    %v5590 = vsel %vm334, %v5587, %v5589
    %v5591 = vrot.slane %v5564, 6
    %v5592 = vsel %vm334, %v5588, %v5591
    %v5593 = vrot.slane %v5567, 6
    %v5594 = vsel %vm334, %v5589, %v5593
    %v5595 = vrot.slane %v5568, 6
    %v5596 = vsel %vm334, %v5591, %v5595
    %v5597 = vrot.slane %v5571, 6
    %v5598 = vsel %vm334, %v5593, %v5597
    %v5599 = vrot.slane %v5572, 6
    %v5600 = vsel %vm334, %v5595, %v5599
    %v5601 = vrot.slane %v5575, 6
    %v5602 = vsel %vm334, %v5597, %v5601
    %v5603 = vrot.slane %v5576, 6
    %v5604 = vsel %vm334, %v5599, %v5603
    %v5613 = vsel %vm334, %v5573, %v5587
    %v5614 = vsel %vm334, %v5574, %v5588
    %v5615 = vld [vmem:[%s20] sm:$0xff]
    %v5616 = vld [vmem:[%s20 + $0x8] sm:$0xff]
    %v5617 = vld [vmem:[%s20 + $0x10] sm:$0xff]
    %v5618 = vld [vmem:[%s20 + $0x18] sm:$0xff]
    %v5619 = vld [vmem:[%s20 + $0x20] sm:$0xff]
    %v5620 = vld [vmem:[%s20 + $0x28] sm:$0xff]
    %v5621 = vld [vmem:[%s20 + $0x30] sm:$0xff]
    %v5622 = vld [vmem:[%s20 + $0x38] sm:$0xff]
    %v5623 = vld [vmem:[%s20 + $0x40] sm:$0xf]
    %vm5624 = vcmask 556032
    %v5626 = vsel %vm5624, %v5615, 0
    %v5629 = vsel %vm5624, %v5616, 0
    %v5632 = vsel %vm5624, %v5617, 0
    %v5635 = vsel %vm5624, %v5618, 0
    %v5638 = vsel %vm5624, %v5619, 0
    %v5641 = vsel %vm5624, %v5620, 0
    %v5644 = vsel %vm5624, %v5621, 0
    %v5647 = vsel %vm5624, %v5622, 0
    %v5650 = vsel %vm5624, %v5623, 0
    %v5652 = vsel %vm840, %v5602, 0
    %v5654 = vsel %vm840, %v5604, 0
    %5656 = vmatprep.subr.mxu0 %v5558
    %5657 = vmatpush1.msra.mxu0 %v5557
    %5658 = vmatprep.subr.mxu0 %v5562
    %5659 = vmatpush1.msra.mxu0 %v5561
    %5660 = vmatprep.subr.mxu0 %v5566
    %5661 = vmatpush1.msra.mxu0 %v5565
    %5662 = vmatprep.subr.mxu0 %v5570
    %5663 = vmatpush1.msra.mxu0 %v5569
    %5664 = vmatprep.subr.mxu0 %v5614
    %5665 = vmatpush1.msra.mxu0 %v5613
    %5666 = vmatprep.subr.mxu0 %v5592
    %5667 = vmatpush1.msra.mxu0 %v5590
    %5668 = vmatprep.subr.mxu0 %v5596
    %5669 = vmatpush1.msra.mxu0 %v5594
    %5670 = vmatprep.subr.mxu0 %v5600
    %5671 = vmatpush1.msra.mxu0 %v5598
    %5672 = vmatprep.subr.mxu0 %v5654
    %5673 = vmatpush1.msra.mxu0 %v5652
    %5674 = vmatprep.subr.mxu0 0.0
    %5675 = vmatpush1.msra.mxu0 0.0
    %5676 = vmatprep.subr.mxu0 0.0
    %5677 = vmatpush1.msra.mxu0 0.0
    %5678 = vmatprep.subr.mxu0 0.0
    %5679 = vmatpush1.msra.mxu0 0.0
    %5680 = vmatprep.subr.mxu0 0.0
    %5681 = vmatpush1.msra.mxu0 0.0
    %5682 = vmatprep.subr.mxu0 0.0
    %5683 = vmatpush1.msra.mxu0 0.0
    %5684 = vmatprep.subr.mxu0 0.0
    %5685 = vmatpush1.msra.mxu0 0.0
    %5686 = vmatprep.subr.mxu0 0.0
    %5687 = vmatpush1.msra.mxu0 0.0
    %5688 = vmatprep.subr.mxu0 0.0
    %5689 = vmatpush1.msra.mxu0 0.0
    %5690 = vmatprep.subr.mxu0 0.0
    %5691 = vmatpush1.msra.mxu0 0.0
    %5692 = vmatprep.subr.mxu0 0.0
    %5693 = vmatpush1.msra.mxu0 0.0
    %5694 = vmatprep.subr.mxu0 0.0
    %5695 = vmatpush1.msra.mxu0 0.0
    %5696 = vmatprep.subr.mxu0 0.0
    %5697 = vmatpush1.msra.mxu0 0.0
    %5698 = vmatprep.subr.mxu0 0.0
    %5699 = vmatpush1.msra.mxu0 0.0
    %5700 = vmatprep.subr.mxu0 0.0
    %5701 = vmatpush1.msra.mxu0 0.0
    %5702 = vmatprep.subr.mxu0 0.0
    %5703 = vmatpush1.msra.mxu0 0.0
    %5704 = vmatprep.subr.mxu0 0.0
    %5705 = vmatpush1.msra.mxu0 0.0
    %5706 = vmatprep.subr.mxu0 0.0
    %5707 = vmatpush1.msra.mxu0 0.0
    %5708 = vmatprep.subr.mxu0 0.0
    %5709 = vmatpush1.msra.mxu0 0.0
    %5710 = vmatprep.subr.mxu0 0.0
    %5711 = vmatpush1.msra.mxu0 0.0
    %5712 = vmatprep.subr.mxu0 0.0
    %5713 = vmatpush1.msra.mxu0 0.0
    %5714 = vmatprep.subr.mxu0 0.0
    %5715 = vmatpush1.msra.mxu0 0.0
    %5716 = vmatprep.subr.mxu0 0.0
    %5717 = vmatpush1.msra.mxu0 0.0
    %5718 = vmatprep.subr.mxu0 0.0
    %5719 = vmatpush1.msra.mxu0 0.0
    %5720 = vmatprep.mubr.f32.mxu0 0.0
    %5721 = vmatmul.mubr.f32.gmra.mrb[0].mxu0 %v5626
    %v5722 = vpop.f32.mrb[0].mxu0
    %v5723 = vadd.f32 0.0, %v5722
    %v5724 = vpop.f32.mrb[0].mxu0
    %v5725 = vadd.f32 0.0, %v5724
    %5726 = vmatprep.mubr.f32.mxu0 0.0
    %5727 = vmatmul.mubr.f32.gmra.mrb[0].mxu0 %v5629
    %v5728 = vpop.f32.mrb[0].mxu0
    %v5729 = vadd.f32 0.0, %v5728
    %v5730 = vpop.f32.mrb[0].mxu0
    %v5731 = vadd.f32 0.0, %v5730
    %5732 = vmatprep.mubr.f32.mxu0 0.0
    %5733 = vmatmul.mubr.f32.gmra.mrb[0].mxu0 %v5632
    %v5734 = vpop.f32.mrb[0].mxu0
    %v5735 = vadd.f32 0.0, %v5734
    %v5736 = vpop.f32.mrb[0].mxu0
    %v5737 = vadd.f32 0.0, %v5736
    %5738 = vmatprep.mubr.f32.mxu0 0.0
    %5739 = vmatmul.mubr.f32.gmra.mrb[0].mxu0 %v5635
    %v5740 = vpop.f32.mrb[0].mxu0
    %v5741 = vadd.f32 0.0, %v5740
    %v5742 = vpop.f32.mrb[0].mxu0
    %v5743 = vadd.f32 0.0, %v5742
    %5744 = vmatprep.mubr.f32.mxu0 0.0
    %5745 = vmatmul.mubr.f32.gmra.mrb[0].mxu0 %v5638
    %v5746 = vpop.f32.mrb[0].mxu0
    %v5747 = vadd.f32 0.0, %v5746
    %v5748 = vpop.f32.mrb[0].mxu0
    %v5749 = vadd.f32 0.0, %v5748
    %5750 = vmatprep.mubr.f32.mxu0 0.0
    %5751 = vmatmul.mubr.f32.gmra.mrb[0].mxu0 %v5641
    %v5752 = vpop.f32.mrb[0].mxu0
    %v5753 = vadd.f32 0.0, %v5752
    %v5754 = vpop.f32.mrb[0].mxu0
    %v5755 = vadd.f32 0.0, %v5754
    %5756 = vmatprep.mubr.f32.mxu0 0.0
    %5757 = vmatmul.mubr.f32.gmra.mrb[0].mxu0 %v5644
    %v5758 = vpop.f32.mrb[0].mxu0
    %v5759 = vadd.f32 0.0, %v5758
    %v5760 = vpop.f32.mrb[0].mxu0
    %v5761 = vadd.f32 0.0, %v5760
    %5762 = vmatprep.mubr.f32.mxu0 0.0
    %5763 = vmatmul.mubr.f32.gmra.mrb[0].mxu0 %v5647
    %v5764 = vpop.f32.mrb[0].mxu0
    %v5765 = vadd.f32 0.0, %v5764
    %v5766 = vpop.f32.mrb[0].mxu0
    %v5767 = vadd.f32 0.0, %v5766
    %5768 = vmatprep.mubr.f32.mxu0 0.0
    %5769 = vmatmul.mubr.f32.gmra.mrb[0].mxu0 %v5650
    %v5770 = vpop.f32.mrb[0].mxu0
    %v5771 = vadd.f32 0.0, %v5770
    %v5772 = vpop.f32.mrb[0].mxu0
    %v5773 = vadd.f32 0.0, %v5772
    %5774 = vdwg.mxu0
    %v5793 = vrot.slane %v5723, 1
    %v5794 = vrot.slane %v5729, 1
    %v5795 = vsel %vm930, %v5793, %v5794
    %v5796 = vrot.slane %v5725, 1
    %v5797 = vrot.slane %v5731, 1
    %v5798 = vsel %vm930, %v5796, %v5797
    %v5799 = vrot.slane %v5735, 1
    %v5800 = vsel %vm930, %v5794, %v5799
    %v5801 = vrot.slane %v5737, 1
    %v5802 = vsel %vm930, %v5797, %v5801
    %v5803 = vrot.slane %v5741, 1
    %v5804 = vsel %vm930, %v5799, %v5803
    %v5805 = vrot.slane %v5743, 1
    %v5806 = vsel %vm930, %v5801, %v5805
    %v5807 = vrot.slane %v5747, 1
    %v5808 = vsel %vm930, %v5803, %v5807
    %v5809 = vrot.slane %v5749, 1
    %v5810 = vsel %vm930, %v5805, %v5809
    %v5811 = vrot.slane %v5753, 1
    %v5812 = vsel %vm930, %v5807, %v5811
    %v5813 = vrot.slane %v5755, 1
    %v5814 = vsel %vm930, %v5809, %v5813
    %v5815 = vrot.slane %v5759, 1
    %v5816 = vsel %vm930, %v5811, %v5815
    %v5817 = vrot.slane %v5761, 1
    %v5818 = vsel %vm930, %v5813, %v5817
    %v5819 = vrot.slane %v5765, 1
    %v5820 = vsel %vm930, %v5815, %v5819
    %v5821 = vrot.slane %v5767, 1
    %v5822 = vsel %vm930, %v5817, %v5821
    %v5823 = vrot.slane %v5771, 1
    %v5824 = vsel %vm930, %v5819, %v5823
    %v5825 = vrot.slane %v5773, 1
    %v5826 = vsel %vm930, %v5821, %v5825
    %v5845 = vrot.slane %v5723, 2
    %v5846 = vrot.slane %v5729, 2
    %v5847 = vsel %vm842, %v5845, %v5846
    %v5848 = vrot.slane %v5725, 2
    %v5849 = vrot.slane %v5731, 2
    %v5850 = vsel %vm842, %v5848, %v5849
    %v5851 = vrot.slane %v5735, 2
    %v5852 = vsel %vm842, %v5846, %v5851
    %v5853 = vrot.slane %v5737, 2
    %v5854 = vsel %vm842, %v5849, %v5853
    %v5855 = vrot.slane %v5741, 2
    %v5856 = vsel %vm842, %v5851, %v5855
    %v5857 = vrot.slane %v5743, 2
    %v5858 = vsel %vm842, %v5853, %v5857
    %v5859 = vrot.slane %v5747, 2
    %v5860 = vsel %vm842, %v5855, %v5859
    %v5861 = vrot.slane %v5749, 2
    %v5862 = vsel %vm842, %v5857, %v5861
    %v5863 = vrot.slane %v5753, 2
    %v5864 = vsel %vm842, %v5859, %v5863
    %v5865 = vrot.slane %v5755, 2
    %v5866 = vsel %vm842, %v5861, %v5865
    %v5867 = vrot.slane %v5759, 2
    %v5868 = vsel %vm842, %v5863, %v5867
    %v5869 = vrot.slane %v5761, 2
    %v5870 = vsel %vm842, %v5865, %v5869
    %v5871 = vrot.slane %v5765, 2
    %v5872 = vsel %vm842, %v5867, %v5871
    %v5873 = vrot.slane %v5767, 2
    %v5874 = vsel %vm842, %v5869, %v5873
    %v5875 = vrot.slane %v5771, 2
    %v5876 = vsel %vm842, %v5871, %v5875
    %v5877 = vrot.slane %v5773, 2
    %v5878 = vsel %vm842, %v5873, %v5877
    %v5897 = vpack.c.bf16 %v5729, %v5723
    %v5898 = vpack.c.bf16 %v5731, %v5725
    %v5899 = vpack.c.bf16 %v5800, %v5795
    %v5900 = vpack.c.bf16 %v5802, %v5798
    %v5901 = vpack.c.bf16 %v5852, %v5847
    %v5902 = vpack.c.bf16 %v5854, %v5850
    %v5903 = vpack.c.bf16 %v5741, %v5735
    %v5904 = vpack.c.bf16 %v5743, %v5737
    %v5905 = vpack.c.bf16 %v5808, %v5804
    %v5906 = vpack.c.bf16 %v5810, %v5806
    %v5907 = vpack.c.bf16 %v5860, %v5856
    %v5908 = vpack.c.bf16 %v5862, %v5858
    %v5909 = vpack.c.bf16 %v5753, %v5747
    %v5910 = vpack.c.bf16 %v5755, %v5749
    %v5911 = vpack.c.bf16 %v5816, %v5812
    %v5912 = vpack.c.bf16 %v5818, %v5814
    %v5913 = vpack.c.bf16 %v5868, %v5864
    %v5914 = vpack.c.bf16 %v5870, %v5866
    %v5915 = vpack.c.bf16 %v5765, %v5759
    %v5916 = vpack.c.bf16 %v5767, %v5761
    %v5917 = vpack.c.bf16 %v5824, %v5820
    %v5918 = vpack.c.bf16 %v5826, %v5822
    %v5919 = vpack.c.bf16 %v5876, %v5872
    %v5920 = vpack.c.bf16 %v5878, %v5874
    %v5921 = vpack.c.bf16 %v5771, %v5771
    %v5922 = vpack.c.bf16 %v5773, %v5773
    %v5923 = vpack.c.bf16 %v5823, %v5823
    %v5924 = vpack.c.bf16 %v5825, %v5825
    %v5925 = vpack.c.bf16 %v5875, %v5875
    %v5926 = vpack.c.bf16 %v5877, %v5877
    %v5927 = vld [vmem:[#allocation13] sm:$0xff]
    %v5928 = vld [vmem:[#allocation13 + $0x8] sm:$0xf]
    %v5929 = vld [vmem:[#allocation13 + $0xc] sm:$0xff]
    %v5930 = vld [vmem:[#allocation13 + $0x14] sm:$0xf]
    %v5931 = vld [vmem:[#allocation13 + $0x18] sm:$0xff]
    %v5932 = vld [vmem:[#allocation13 + $0x20] sm:$0xf]
    %v5933 = vld [vmem:[#allocation13 + $0x24] sm:$0xff]
    %v5934 = vld [vmem:[#allocation13 + $0x2c] sm:$0xf]
    %v5935 = vld [vmem:[#allocation13 + $0x30] sm:$0xff]
    %v5936 = vld [vmem:[#allocation13 + $0x38] sm:$0xf]
    %v5937 = vld [vmem:[#allocation13 + $0x3c] sm:$0xff]
    %v5938 = vld [vmem:[#allocation13 + $0x44] sm:$0xf]
    %v5939 = vld [vmem:[#allocation13 + $0x48] sm:$0xff]
    %v5940 = vld [vmem:[#allocation13 + $0x50] sm:$0xf]
    %v5941 = vld [vmem:[#allocation13 + $0x54] sm:$0xff]
    %v5942 = vld [vmem:[#allocation13 + $0x5c] sm:$0xf]
    %v5943 = vld [vmem:[#allocation13 + $0x60] sm:$0xff]
    %v5944 = vld [vmem:[#allocation13 + $0x68] sm:$0xf]
    %v5945 = vld [vmem:[#allocation13 + $0x6c] sm:$0xff]
    %v5946 = vld [vmem:[#allocation13 + $0x74] sm:$0xf]
    %v5947 = vld [vmem:[#allocation13 + $0x78] sm:$0xff]
    %v5948 = vld [vmem:[#allocation13 + $0x80] sm:$0xf]
    %v5949 = vld [vmem:[#allocation13 + $0x84] sm:$0xff]
    %v5950 = vld [vmem:[#allocation13 + $0x8c] sm:$0xf]
    %v5951 = vld [vmem:[#allocation13 + $0x90] sm:$0xff]
    %v5952 = vld [vmem:[#allocation13 + $0x98] sm:$0xf]
    %v5953 = vld [vmem:[#allocation13 + $0x9c] sm:$0xff]
    %v5954 = vld [vmem:[#allocation13 + $0xa4] sm:$0xf]
    %v5955 = vld [vmem:[#allocation13 + $0xa8] sm:$0xff]
    %v5956 = vld [vmem:[#allocation13 + $0xb0] sm:$0xf]
    %v5957 = vld [vmem:[#allocation13 + $0xb4] sm:$0xff]
    %v5958 = vld [vmem:[#allocation13 + $0xbc] sm:$0xf]
    %v5959 = vld [vmem:[#allocation13 + $0xc0] sm:$0xff]
    %v5960 = vld [vmem:[#allocation13 + $0xc8] sm:$0xf]
    %v5961 = vld [vmem:[#allocation13 + $0xcc] sm:$0xff]
    %v5962 = vld [vmem:[#allocation13 + $0xd4] sm:$0xf]
    %v5963 = vld [vmem:[#allocation13 + $0xd8] sm:$0xff]
    %v5964 = vld [vmem:[#allocation13 + $0xe0] sm:$0xf]
    %v5965 = vld [vmem:[#allocation13 + $0xe4] sm:$0xff]
    %v5966 = vld [vmem:[#allocation13 + $0xec] sm:$0xf]
    %v5967 = vld [vmem:[#allocation13 + $0xf0] sm:$0xff]
    %v5968 = vld [vmem:[#allocation13 + $0xf8] sm:$0xf]
    %v5969 = vld [vmem:[#allocation13 + $0xfc] sm:$0xff]
    %v5970 = vld [vmem:[#allocation13 + $0x104] sm:$0xf]
    %v5971 = vld [vmem:[#allocation13 + $0x108] sm:$0xff]
    %v5972 = vld [vmem:[#allocation13 + $0x110] sm:$0xf]
    %v5973 = vld [vmem:[#allocation13 + $0x114] sm:$0xff]
    %v5974 = vld [vmem:[#allocation13 + $0x11c] sm:$0xf]
    %v5975 = vld [vmem:[#allocation13 + $0x120] sm:$0xff]
    %v5976 = vld [vmem:[#allocation13 + $0x128] sm:$0xf]
    %v5977 = vld [vmem:[#allocation13 + $0x12c] sm:$0xff]
    %v5978 = vld [vmem:[#allocation13 + $0x134] sm:$0xf]
    %v5979 = vld [vmem:[#allocation13 + $0x138] sm:$0xff]
    %v5980 = vld [vmem:[#allocation13 + $0x140] sm:$0xf]
    %v5981 = vld [vmem:[#allocation13 + $0x144] sm:$0xff]
    %v5982 = vld [vmem:[#allocation13 + $0x14c] sm:$0xf]
    %v5983 = vld [vmem:[#allocation13 + $0x150] sm:$0xff]
    %v5984 = vld [vmem:[#allocation13 + $0x158] sm:$0xf]
    %v5985 = vld [vmem:[#allocation13 + $0x15c] sm:$0xff]
    %v5986 = vld [vmem:[#allocation13 + $0x164] sm:$0xf]
    %v5987 = vld [vmem:[#allocation13 + $0x168] sm:$0xff]
    %v5988 = vld [vmem:[#allocation13 + $0x170] sm:$0xf]
    %v5989 = vld [vmem:[#allocation13 + $0x174] sm:$0xff]
    %v5990 = vld [vmem:[#allocation13 + $0x17c] sm:$0xf]
    %v5991 = vld [vmem:[#allocation13 + $0x180] sm:$0xff]
    %v5992 = vld [vmem:[#allocation13 + $0x188] sm:$0xf]
    %v5993 = vld [vmem:[#allocation13 + $0x18c] sm:$0xff]
    %v5994 = vld [vmem:[#allocation13 + $0x194] sm:$0xf]
    %v5995 = vld [vmem:[#allocation13 + $0x198] sm:$0xff]
    %v5996 = vld [vmem:[#allocation13 + $0x1a0] sm:$0xf]
    %v5997 = vld [vmem:[#allocation13 + $0x1a4] sm:$0xff]
    %v5998 = vld [vmem:[#allocation13 + $0x1ac] sm:$0xf]
    %v5999 = vld [vmem:[#allocation13 + $0x1b0] sm:$0xff]
    %v6000 = vld [vmem:[#allocation13 + $0x1b8] sm:$0xf]
    %v6001 = vld [vmem:[#allocation13 + $0x1bc] sm:$0xff]
    %v6002 = vld [vmem:[#allocation13 + $0x1c4] sm:$0xf]
    %v6003 = vld [vmem:[#allocation13 + $0x1c8] sm:$0xff]
    %v6004 = vld [vmem:[#allocation13 + $0x1d0] sm:$0xf]
    %v6005 = vld [vmem:[#allocation13 + $0x1d4] sm:$0xff]
    %v6006 = vld [vmem:[#allocation13 + $0x1dc] sm:$0xf]
    %v6007 = vld [vmem:[#allocation13 + $0x1e0] sm:$0xff]
    %v6008 = vld [vmem:[#allocation13 + $0x1e8] sm:$0xf]
    %v6009 = vld [vmem:[#allocation13 + $0x1ec] sm:$0xff]
    %v6010 = vld [vmem:[#allocation13 + $0x1f4] sm:$0xf]
    %v6011 = vld [vmem:[#allocation13 + $0x1f8] sm:$0xff]
    %v6012 = vld [vmem:[#allocation13 + $0x200] sm:$0xf]
    %v6013 = vld [vmem:[#allocation13 + $0x204] sm:$0xff]
    %v6014 = vld [vmem:[#allocation13 + $0x20c] sm:$0xf]
    %v6015 = vld [vmem:[#allocation13 + $0x210] sm:$0xff]
    %v6016 = vld [vmem:[#allocation13 + $0x218] sm:$0xf]
    %v6017 = vld [vmem:[#allocation13 + $0x21c] sm:$0xff]
    %v6018 = vld [vmem:[#allocation13 + $0x224] sm:$0xf]
    %v6019 = vld [vmem:[#allocation13 + $0x228] sm:$0xff]
    %v6020 = vld [vmem:[#allocation13 + $0x230] sm:$0xf]
    %v6021 = vld [vmem:[#allocation13 + $0x234] sm:$0xff]
    %v6022 = vld [vmem:[#allocation13 + $0x23c] sm:$0xf]
    %v6023 = vld [vmem:[#allocation13 + $0x240] sm:$0xff]
    %v6024 = vld [vmem:[#allocation13 + $0x248] sm:$0xf]
    %v6025 = vld [vmem:[#allocation13 + $0x24c] sm:$0xff]
    %v6026 = vld [vmem:[#allocation13 + $0x254] sm:$0xf]
    %v6027 = vld [vmem:[#allocation13 + $0x258] sm:$0xff]
    %v6028 = vld [vmem:[#allocation13 + $0x260] sm:$0xf]
    %v6029 = vld [vmem:[#allocation13 + $0x264] sm:$0xff]
    %v6030 = vld [vmem:[#allocation13 + $0x26c] sm:$0xf]
    %v6031 = vld [vmem:[#allocation13 + $0x270] sm:$0xff]
    %v6032 = vld [vmem:[#allocation13 + $0x278] sm:$0xf]
    %v6033 = vld [vmem:[#allocation13 + $0x27c] sm:$0xff]
    %v6034 = vld [vmem:[#allocation13 + $0x284] sm:$0xf]
    %v6035 = vld [vmem:[#allocation13 + $0x288] sm:$0xff]
    %v6036 = vld [vmem:[#allocation13 + $0x290] sm:$0xf]
    %v6037 = vld [vmem:[#allocation13 + $0x294] sm:$0xff]
    %v6038 = vld [vmem:[#allocation13 + $0x29c] sm:$0xf]
    %v6039 = vld [vmem:[#allocation13 + $0x2a0] sm:$0xff]
    %v6040 = vld [vmem:[#allocation13 + $0x2a8] sm:$0xf]
    %v6041 = vld [vmem:[#allocation13 + $0x2ac] sm:$0xff]
    %v6042 = vld [vmem:[#allocation13 + $0x2b4] sm:$0xf]
    %v6043 = vld [vmem:[#allocation13 + $0x2b8] sm:$0xff]
    %v6044 = vld [vmem:[#allocation13 + $0x2c0] sm:$0xf]
    %v6045 = vld [vmem:[#allocation13 + $0x2c4] sm:$0xff]
    %v6046 = vld [vmem:[#allocation13 + $0x2cc] sm:$0xf]
    %v6047 = vld [vmem:[#allocation13 + $0x2d0] sm:$0xff]
    %v6048 = vld [vmem:[#allocation13 + $0x2d8] sm:$0xf]
    %v6049 = vld [vmem:[#allocation13 + $0x2dc] sm:$0xff]
    %v6050 = vld [vmem:[#allocation13 + $0x2e4] sm:$0xf]
    %v6051 = vld [vmem:[#allocation13 + $0x2e8] sm:$0xff]
    %v6052 = vld [vmem:[#allocation13 + $0x2f0] sm:$0xf]
    %v6053 = vld [vmem:[#allocation13 + $0x2f4] sm:$0xff]
    %v6054 = vld [vmem:[#allocation13 + $0x2fc] sm:$0xf]
    %v6055 = vld [vmem:[#allocation13 + $0x300] sm:$0xff]
    %v6056 = vld [vmem:[#allocation13 + $0x308] sm:$0xf]
    %v6057 = vld [vmem:[#allocation13 + $0x30c] sm:$0xff]
    %v6058 = vld [vmem:[#allocation13 + $0x314] sm:$0xf]
    %v6059 = vld [vmem:[#allocation13 + $0x318] sm:$0xff]
    %v6060 = vld [vmem:[#allocation13 + $0x320] sm:$0xf]
    %v6061 = vld [vmem:[#allocation13 + $0x324] sm:$0xff]
    %v6062 = vld [vmem:[#allocation13 + $0x32c] sm:$0xf]
    %v6063 = vld [vmem:[#allocation13 + $0x330] sm:$0xff]
    %v6064 = vld [vmem:[#allocation13 + $0x338] sm:$0xf]
    %v6065 = vld [vmem:[#allocation13 + $0x33c] sm:$0xff]
    %v6066 = vld [vmem:[#allocation13 + $0x344] sm:$0xf]
    %v6067 = vld [vmem:[#allocation13 + $0x348] sm:$0xff]
    %v6068 = vld [vmem:[#allocation13 + $0x350] sm:$0xf]
    %v6069 = vld [vmem:[#allocation13 + $0x354] sm:$0xff]
    %v6070 = vld [vmem:[#allocation13 + $0x35c] sm:$0xf]
    %v6071 = vld [vmem:[#allocation13 + $0x360] sm:$0xff]
    %v6072 = vld [vmem:[#allocation13 + $0x368] sm:$0xf]
    %v6073 = vld [vmem:[#allocation13 + $0x36c] sm:$0xff]
    %v6074 = vld [vmem:[#allocation13 + $0x374] sm:$0xf]
    %v6075 = vld [vmem:[#allocation13 + $0x378] sm:$0xff]
    %v6076 = vld [vmem:[#allocation13 + $0x380] sm:$0xf]
    %v6077 = vld [vmem:[#allocation13 + $0x384] sm:$0xff]
    %v6078 = vld [vmem:[#allocation13 + $0x38c] sm:$0xf]
    %v6079 = vld [vmem:[#allocation13 + $0x390] sm:$0xff]
    %v6080 = vld [vmem:[#allocation13 + $0x398] sm:$0xf]
    %v6081 = vld [vmem:[#allocation13 + $0x39c] sm:$0xff]
    %v6082 = vld [vmem:[#allocation13 + $0x3a4] sm:$0xf]
    %v6083 = vld [vmem:[#allocation13 + $0x3a8] sm:$0xff]
    %v6084 = vld [vmem:[#allocation13 + $0x3b0] sm:$0xf]
    %v6085 = vld [vmem:[#allocation13 + $0x3b4] sm:$0xff]
    %v6086 = vld [vmem:[#allocation13 + $0x3bc] sm:$0xf]
    %v6087 = vld [vmem:[#allocation13 + $0x3c0] sm:$0xff]
    %v6088 = vld [vmem:[#allocation13 + $0x3c8] sm:$0xf]
    %v6089 = vld [vmem:[#allocation13 + $0x3cc] sm:$0xff]
    %v6090 = vld [vmem:[#allocation13 + $0x3d4] sm:$0xf]
    %v6091 = vld [vmem:[#allocation13 + $0x3d8] sm:$0xff]
    %v6092 = vld [vmem:[#allocation13 + $0x3e0] sm:$0xf]
    %v6093 = vld [vmem:[#allocation13 + $0x3e4] sm:$0xff]
    %v6094 = vld [vmem:[#allocation13 + $0x3ec] sm:$0xf]
    %v6095 = vld [vmem:[#allocation13 + $0x3f0] sm:$0xff]
    %v6096 = vld [vmem:[#allocation13 + $0x3f8] sm:$0xf]
    %v6097 = vld [vmem:[#allocation13 + $0x3fc] sm:$0xff]
    %v6098 = vld [vmem:[#allocation13 + $0x404] sm:$0xf]
    %v6099 = vld [vmem:[#allocation13 + $0x408] sm:$0xff]
    %v6100 = vld [vmem:[#allocation13 + $0x410] sm:$0xf]
    %v6101 = vld [vmem:[#allocation13 + $0x414] sm:$0xff]
    %v6102 = vld [vmem:[#allocation13 + $0x41c] sm:$0xf]
    %v6103 = vld [vmem:[#allocation13 + $0x420] sm:$0xff]
    %v6104 = vld [vmem:[#allocation13 + $0x428] sm:$0xf]
    %v6105 = vld [vmem:[#allocation13 + $0x42c] sm:$0xff]
    %v6106 = vld [vmem:[#allocation13 + $0x434] sm:$0xf]
    %v6107 = vld [vmem:[#allocation13 + $0x438] sm:$0xff]
    %v6108 = vld [vmem:[#allocation13 + $0x440] sm:$0xf]
    %v6109 = vld [vmem:[#allocation13 + $0x444] sm:$0xff]
    %v6110 = vld [vmem:[#allocation13 + $0x44c] sm:$0xf]
    %v6111 = vld [vmem:[#allocation13 + $0x450] sm:$0xff]
    %v6112 = vld [vmem:[#allocation13 + $0x458] sm:$0xf]
    %v6113 = vld [vmem:[#allocation13 + $0x45c] sm:$0xff]
    %v6114 = vld [vmem:[#allocation13 + $0x464] sm:$0xf]
    %v6115 = vld [vmem:[#allocation13 + $0x468] sm:$0xff]
    %v6116 = vld [vmem:[#allocation13 + $0x470] sm:$0xf]
    %v6117 = vld [vmem:[#allocation13 + $0x474] sm:$0xff]
    %v6118 = vld [vmem:[#allocation13 + $0x47c] sm:$0xf]
    %v6311 = vunpack.c.l.b16 %v5927
    %v6312 = vunpack.c.h.b16 %v5927
    %v6313 = vunpack.c.l.b16 %v5928
    %v6314 = vunpack.c.l.b16 %v5929
    %v6315 = vunpack.c.h.b16 %v5929
    %v6316 = vunpack.c.l.b16 %v5930
    %v6317 = vunpack.c.l.b16 %v5931
    %v6318 = vunpack.c.h.b16 %v5931
    %v6319 = vunpack.c.l.b16 %v5932
    %v6320 = vunpack.c.l.b16 %v5933
    %v6321 = vunpack.c.h.b16 %v5933
    %v6322 = vunpack.c.l.b16 %v5934
    %v6323 = vunpack.c.l.b16 %v5935
    %v6324 = vunpack.c.h.b16 %v5935
    %v6325 = vunpack.c.l.b16 %v5936
    %v6326 = vunpack.c.l.b16 %v5937
    %v6327 = vunpack.c.h.b16 %v5937
    %v6328 = vunpack.c.l.b16 %v5938
    %v6329 = vunpack.c.l.b16 %v5939
    %v6330 = vunpack.c.h.b16 %v5939
    %v6331 = vunpack.c.l.b16 %v5940
    %v6332 = vunpack.c.l.b16 %v5941
    %v6333 = vunpack.c.h.b16 %v5941
    %v6334 = vunpack.c.l.b16 %v5942
    %v6335 = vunpack.c.l.b16 %v5943
    %v6336 = vunpack.c.h.b16 %v5943
    %v6337 = vunpack.c.l.b16 %v5944
    %v6338 = vunpack.c.l.b16 %v5945
    %v6339 = vunpack.c.h.b16 %v5945
    %v6340 = vunpack.c.l.b16 %v5946
    %v6341 = vunpack.c.l.b16 %v5947
    %v6342 = vunpack.c.h.b16 %v5947
    %v6343 = vunpack.c.l.b16 %v5948
    %v6344 = vunpack.c.l.b16 %v5949
    %v6345 = vunpack.c.h.b16 %v5949
    %v6346 = vunpack.c.l.b16 %v5950
    %v6347 = vunpack.c.l.b16 %v5951
    %v6348 = vunpack.c.h.b16 %v5951
    %v6349 = vunpack.c.l.b16 %v5952
    %v6350 = vunpack.c.l.b16 %v5953
    %v6351 = vunpack.c.h.b16 %v5953
    %v6352 = vunpack.c.l.b16 %v5954
    %v6353 = vunpack.c.l.b16 %v5955
    %v6354 = vunpack.c.h.b16 %v5955
    %v6355 = vunpack.c.l.b16 %v5956
    %v6356 = vunpack.c.l.b16 %v5957
    %v6357 = vunpack.c.h.b16 %v5957
    %v6358 = vunpack.c.l.b16 %v5958
    %v6359 = vunpack.c.l.b16 %v5959
    %v6360 = vunpack.c.h.b16 %v5959
    %v6361 = vunpack.c.l.b16 %v5960
    %v6362 = vunpack.c.l.b16 %v5961
    %v6363 = vunpack.c.h.b16 %v5961
    %v6364 = vunpack.c.l.b16 %v5962
    %v6365 = vunpack.c.l.b16 %v5963
    %v6366 = vunpack.c.h.b16 %v5963
    %v6367 = vunpack.c.l.b16 %v5964
    %v6368 = vunpack.c.l.b16 %v5965
    %v6369 = vunpack.c.h.b16 %v5965
    %v6370 = vunpack.c.l.b16 %v5966
    %v6371 = vunpack.c.l.b16 %v5967
    %v6372 = vunpack.c.h.b16 %v5967
    %v6373 = vunpack.c.l.b16 %v5968
    %v6374 = vunpack.c.l.b16 %v5969
    %v6375 = vunpack.c.h.b16 %v5969
    %v6376 = vunpack.c.l.b16 %v5970
    %v6377 = vunpack.c.l.b16 %v5971
    %v6378 = vunpack.c.h.b16 %v5971
    %v6379 = vunpack.c.l.b16 %v5972
    %v6380 = vunpack.c.l.b16 %v5973
    %v6381 = vunpack.c.h.b16 %v5973
    %v6382 = vunpack.c.l.b16 %v5974
    %v6383 = vunpack.c.l.b16 %v5975
    %v6384 = vunpack.c.h.b16 %v5975
    %v6385 = vunpack.c.l.b16 %v5976
    %v6386 = vunpack.c.l.b16 %v5977
    %v6387 = vunpack.c.h.b16 %v5977
    %v6388 = vunpack.c.l.b16 %v5978
    %v6389 = vunpack.c.l.b16 %v5979
    %v6390 = vunpack.c.h.b16 %v5979
    %v6391 = vunpack.c.l.b16 %v5980
    %v6392 = vunpack.c.l.b16 %v5981
    %v6393 = vunpack.c.h.b16 %v5981
    %v6394 = vunpack.c.l.b16 %v5982
    %v6395 = vunpack.c.l.b16 %v5983
    %v6396 = vunpack.c.h.b16 %v5983
    %v6397 = vunpack.c.l.b16 %v5984
    %v6398 = vunpack.c.l.b16 %v5985
    %v6399 = vunpack.c.h.b16 %v5985
    %v6400 = vunpack.c.l.b16 %v5986
    %v6401 = vunpack.c.l.b16 %v5987
    %v6402 = vunpack.c.h.b16 %v5987
    %v6403 = vunpack.c.l.b16 %v5988
    %v6404 = vunpack.c.l.b16 %v5989
    %v6405 = vunpack.c.h.b16 %v5989
    %v6406 = vunpack.c.l.b16 %v5990
    %v6407 = vunpack.c.l.b16 %v5991
    %v6408 = vunpack.c.h.b16 %v5991
    %v6409 = vunpack.c.l.b16 %v5992
    %v6410 = vunpack.c.l.b16 %v5993
    %v6411 = vunpack.c.h.b16 %v5993
    %v6412 = vunpack.c.l.b16 %v5994
    %v6413 = vunpack.c.l.b16 %v5995
    %v6414 = vunpack.c.h.b16 %v5995
    %v6415 = vunpack.c.l.b16 %v5996
    %v6416 = vunpack.c.l.b16 %v5997
    %v6417 = vunpack.c.h.b16 %v5997
    %v6418 = vunpack.c.l.b16 %v5998
    %v6419 = vunpack.c.l.b16 %v5999
    %v6420 = vunpack.c.h.b16 %v5999
    %v6421 = vunpack.c.l.b16 %v6000
    %v6422 = vunpack.c.l.b16 %v6001
    %v6423 = vunpack.c.h.b16 %v6001
    %v6424 = vunpack.c.l.b16 %v6002
    %v6425 = vunpack.c.l.b16 %v6003
    %v6426 = vunpack.c.h.b16 %v6003
    %v6427 = vunpack.c.l.b16 %v6004
    %v6428 = vunpack.c.l.b16 %v6005
    %v6429 = vunpack.c.h.b16 %v6005
    %v6430 = vunpack.c.l.b16 %v6006
    %v6431 = vunpack.c.l.b16 %v6007
    %v6432 = vunpack.c.h.b16 %v6007
    %v6433 = vunpack.c.l.b16 %v6008
    %v6434 = vunpack.c.l.b16 %v6009
    %v6435 = vunpack.c.h.b16 %v6009
    %v6436 = vunpack.c.l.b16 %v6010
    %v6437 = vunpack.c.l.b16 %v6011
    %v6438 = vunpack.c.h.b16 %v6011
    %v6439 = vunpack.c.l.b16 %v6012
    %v6440 = vunpack.c.l.b16 %v6013
    %v6441 = vunpack.c.h.b16 %v6013
    %v6442 = vunpack.c.l.b16 %v6014
    %v6443 = vunpack.c.l.b16 %v6015
    %v6444 = vunpack.c.h.b16 %v6015
    %v6445 = vunpack.c.l.b16 %v6016
    %v6446 = vunpack.c.l.b16 %v6017
    %v6447 = vunpack.c.h.b16 %v6017
    %v6448 = vunpack.c.l.b16 %v6018
    %v6449 = vunpack.c.l.b16 %v6019
    %v6450 = vunpack.c.h.b16 %v6019
    %v6451 = vunpack.c.l.b16 %v6020
    %v6452 = vunpack.c.l.b16 %v6021
    %v6453 = vunpack.c.h.b16 %v6021
    %v6454 = vunpack.c.l.b16 %v6022
    %v6455 = vunpack.c.l.b16 %v6023
    %v6456 = vunpack.c.h.b16 %v6023
    %v6457 = vunpack.c.l.b16 %v6024
    %v6458 = vunpack.c.l.b16 %v6025
    %v6459 = vunpack.c.h.b16 %v6025
    %v6460 = vunpack.c.l.b16 %v6026
    %v6461 = vunpack.c.l.b16 %v6027
    %v6462 = vunpack.c.h.b16 %v6027
    %v6463 = vunpack.c.l.b16 %v6028
    %v6464 = vunpack.c.l.b16 %v6029
    %v6465 = vunpack.c.h.b16 %v6029
    %v6466 = vunpack.c.l.b16 %v6030
    %v6467 = vunpack.c.l.b16 %v6031
    %v6468 = vunpack.c.h.b16 %v6031
    %v6469 = vunpack.c.l.b16 %v6032
    %v6470 = vunpack.c.l.b16 %v6033
    %v6471 = vunpack.c.h.b16 %v6033
    %v6472 = vunpack.c.l.b16 %v6034
    %v6473 = vunpack.c.l.b16 %v6035
    %v6474 = vunpack.c.h.b16 %v6035
    %v6475 = vunpack.c.l.b16 %v6036
    %v6476 = vunpack.c.l.b16 %v6037
    %v6477 = vunpack.c.h.b16 %v6037
    %v6478 = vunpack.c.l.b16 %v6038
    %v6479 = vunpack.c.l.b16 %v6039
    %v6480 = vunpack.c.h.b16 %v6039
    %v6481 = vunpack.c.l.b16 %v6040
    %v6482 = vunpack.c.l.b16 %v6041
    %v6483 = vunpack.c.h.b16 %v6041
    %v6484 = vunpack.c.l.b16 %v6042
    %v6485 = vunpack.c.l.b16 %v6043
    %v6486 = vunpack.c.h.b16 %v6043
    %v6487 = vunpack.c.l.b16 %v6044
    %v6488 = vunpack.c.l.b16 %v6045
    %v6489 = vunpack.c.h.b16 %v6045
    %v6490 = vunpack.c.l.b16 %v6046
    %v6491 = vunpack.c.l.b16 %v6047
    %v6492 = vunpack.c.h.b16 %v6047
    %v6493 = vunpack.c.l.b16 %v6048
    %v6494 = vunpack.c.l.b16 %v6049
    %v6495 = vunpack.c.h.b16 %v6049
    %v6496 = vunpack.c.l.b16 %v6050
    %v6497 = vunpack.c.l.b16 %v6051
    %v6498 = vunpack.c.h.b16 %v6051
    %v6499 = vunpack.c.l.b16 %v6052
    %v6500 = vunpack.c.l.b16 %v6053
    %v6501 = vunpack.c.h.b16 %v6053
    %v6502 = vunpack.c.l.b16 %v6054
    %v6503 = vunpack.c.l.b16 %v6055
    %v6504 = vunpack.c.h.b16 %v6055
    %v6505 = vunpack.c.l.b16 %v6056
    %v6506 = vunpack.c.l.b16 %v6057
    %v6507 = vunpack.c.h.b16 %v6057
    %v6508 = vunpack.c.l.b16 %v6058
    %v6509 = vunpack.c.l.b16 %v6059
    %v6510 = vunpack.c.h.b16 %v6059
    %v6511 = vunpack.c.l.b16 %v6060
    %v6512 = vunpack.c.l.b16 %v6061
    %v6513 = vunpack.c.h.b16 %v6061
    %v6514 = vunpack.c.l.b16 %v6062
    %v6515 = vunpack.c.l.b16 %v6063
    %v6516 = vunpack.c.h.b16 %v6063
    %v6517 = vunpack.c.l.b16 %v6064
    %v6518 = vunpack.c.l.b16 %v6065
    %v6519 = vunpack.c.h.b16 %v6065
    %v6520 = vunpack.c.l.b16 %v6066
    %v6521 = vunpack.c.l.b16 %v6067
    %v6522 = vunpack.c.h.b16 %v6067
    %v6523 = vunpack.c.l.b16 %v6068
    %v6524 = vunpack.c.l.b16 %v6069
    %v6525 = vunpack.c.h.b16 %v6069
    %v6526 = vunpack.c.l.b16 %v6070
    %v6527 = vunpack.c.l.b16 %v6071
    %v6528 = vunpack.c.h.b16 %v6071
    %v6529 = vunpack.c.l.b16 %v6072
    %v6530 = vunpack.c.l.b16 %v6073
    %v6531 = vunpack.c.h.b16 %v6073
    %v6532 = vunpack.c.l.b16 %v6074
    %v6533 = vunpack.c.l.b16 %v6075
    %v6534 = vunpack.c.h.b16 %v6075
    %v6535 = vunpack.c.l.b16 %v6076
    %v6536 = vunpack.c.l.b16 %v6077
    %v6537 = vunpack.c.h.b16 %v6077
    %v6538 = vunpack.c.l.b16 %v6078
    %v6539 = vunpack.c.l.b16 %v6079
    %v6540 = vunpack.c.h.b16 %v6079
    %v6541 = vunpack.c.l.b16 %v6080
    %v6542 = vunpack.c.l.b16 %v6081
    %v6543 = vunpack.c.h.b16 %v6081
    %v6544 = vunpack.c.l.b16 %v6082
    %v6545 = vunpack.c.l.b16 %v6083
    %v6546 = vunpack.c.h.b16 %v6083
    %v6547 = vunpack.c.l.b16 %v6084
    %v6548 = vunpack.c.l.b16 %v6085
    %v6549 = vunpack.c.h.b16 %v6085
    %v6550 = vunpack.c.l.b16 %v6086
    %v6551 = vunpack.c.l.b16 %v6087
    %v6552 = vunpack.c.h.b16 %v6087
    %v6553 = vunpack.c.l.b16 %v6088
    %v6554 = vunpack.c.l.b16 %v6089
    %v6555 = vunpack.c.h.b16 %v6089
    %v6556 = vunpack.c.l.b16 %v6090
    %v6557 = vunpack.c.l.b16 %v6091
    %v6558 = vunpack.c.h.b16 %v6091
    %v6559 = vunpack.c.l.b16 %v6092
    %v6560 = vunpack.c.l.b16 %v6093
    %v6561 = vunpack.c.h.b16 %v6093
    %v6562 = vunpack.c.l.b16 %v6094
    %v6563 = vunpack.c.l.b16 %v6095
    %v6564 = vunpack.c.h.b16 %v6095
    %v6565 = vunpack.c.l.b16 %v6096
    %v6566 = vunpack.c.l.b16 %v6097
    %v6567 = vunpack.c.h.b16 %v6097
    %v6568 = vunpack.c.l.b16 %v6098
    %v6569 = vunpack.c.l.b16 %v6099
    %v6570 = vunpack.c.h.b16 %v6099
    %v6571 = vunpack.c.l.b16 %v6100
    %v6572 = vunpack.c.l.b16 %v6101
    %v6573 = vunpack.c.h.b16 %v6101
    %v6574 = vunpack.c.l.b16 %v6102
    %v6575 = vunpack.c.l.b16 %v6103
    %v6576 = vunpack.c.h.b16 %v6103
    %v6577 = vunpack.c.l.b16 %v6104
    %v6578 = vunpack.c.l.b16 %v6105
    %v6579 = vunpack.c.h.b16 %v6105
    %v6580 = vunpack.c.l.b16 %v6106
    %v6581 = vunpack.c.l.b16 %v6107
    %v6582 = vunpack.c.h.b16 %v6107
    %v6583 = vunpack.c.l.b16 %v6108
    %v6584 = vunpack.c.l.b16 %v6109
    %v6585 = vunpack.c.h.b16 %v6109
    %v6586 = vunpack.c.l.b16 %v6110
    %v6587 = vunpack.c.l.b16 %v6111
    %v6588 = vunpack.c.h.b16 %v6111
    %v6589 = vunpack.c.l.b16 %v6112
    %v6590 = vunpack.c.l.b16 %v6113
    %v6591 = vunpack.c.h.b16 %v6113
    %v6592 = vunpack.c.l.b16 %v6114
    %v6593 = vunpack.c.l.b16 %v6115
    %v6594 = vunpack.c.h.b16 %v6115
    %v6595 = vunpack.c.l.b16 %v6116
    %v6596 = vunpack.c.l.b16 %v6117
    %v6597 = vunpack.c.h.b16 %v6117
    %v6598 = vunpack.c.l.b16 %v6118
    %v6599 = vpack.c.b16 %v6314, %v6311
    %v6600 = vpack.c.b16 %v6315, %v6312
    %v6601 = vpack.c.b16 %v6316, %v6313
    %v6602 = vpack.c.b16 %v6320, %v6317
    %v6603 = vpack.c.b16 %v6321, %v6318
    %v6604 = vpack.c.b16 %v6322, %v6319
    %v6605 = vpack.c.b16 %v6326, %v6323
    %v6606 = vpack.c.b16 %v6327, %v6324
    %v6607 = vpack.c.b16 %v6328, %v6325
    %v6608 = vpack.c.b16 %v6332, %v6329
    %v6609 = vpack.c.b16 %v6333, %v6330
    %v6610 = vpack.c.b16 %v6334, %v6331
    %v6611 = vpack.c.b16 %v6338, %v6335
    %v6612 = vpack.c.b16 %v6339, %v6336
    %v6613 = vpack.c.b16 %v6340, %v6337
    %v6614 = vpack.c.b16 %v6344, %v6341
    %v6615 = vpack.c.b16 %v6345, %v6342
    %v6616 = vpack.c.b16 %v6346, %v6343
    %v6617 = vpack.c.b16 %v6350, %v6347
    %v6618 = vpack.c.b16 %v6351, %v6348
    %v6619 = vpack.c.b16 %v6352, %v6349
    %v6620 = vpack.c.b16 %v6356, %v6353
    %v6621 = vpack.c.b16 %v6357, %v6354
    %v6622 = vpack.c.b16 %v6358, %v6355
    %v6623 = vpack.c.b16 %v6362, %v6359
    %v6624 = vpack.c.b16 %v6363, %v6360
    %v6625 = vpack.c.b16 %v6364, %v6361
    %v6626 = vpack.c.b16 %v6368, %v6365
    %v6627 = vpack.c.b16 %v6369, %v6366
    %v6628 = vpack.c.b16 %v6370, %v6367
    %v6629 = vpack.c.b16 %v6374, %v6371
    %v6630 = vpack.c.b16 %v6375, %v6372
    %v6631 = vpack.c.b16 %v6376, %v6373
    %v6632 = vpack.c.b16 %v6380, %v6377
    %v6633 = vpack.c.b16 %v6381, %v6378
    %v6634 = vpack.c.b16 %v6382, %v6379
    %v6635 = vpack.c.b16 %v6386, %v6383
    %v6636 = vpack.c.b16 %v6387, %v6384
    %v6637 = vpack.c.b16 %v6388, %v6385
    %v6638 = vpack.c.b16 %v6392, %v6389
    %v6639 = vpack.c.b16 %v6393, %v6390
    %v6640 = vpack.c.b16 %v6394, %v6391
    %v6641 = vpack.c.b16 %v6398, %v6395
    %v6642 = vpack.c.b16 %v6399, %v6396
    %v6643 = vpack.c.b16 %v6400, %v6397
    %v6644 = vpack.c.b16 %v6404, %v6401
    %v6645 = vpack.c.b16 %v6405, %v6402
    %v6646 = vpack.c.b16 %v6406, %v6403
    %v6647 = vpack.c.b16 %v6410, %v6407
    %v6648 = vpack.c.b16 %v6411, %v6408
    %v6649 = vpack.c.b16 %v6412, %v6409
    %v6650 = vpack.c.b16 %v6416, %v6413
    %v6651 = vpack.c.b16 %v6417, %v6414
    %v6652 = vpack.c.b16 %v6418, %v6415
    %v6653 = vpack.c.b16 %v6422, %v6419
    %v6654 = vpack.c.b16 %v6423, %v6420
    %v6655 = vpack.c.b16 %v6424, %v6421
    %v6656 = vpack.c.b16 %v6428, %v6425
    %v6657 = vpack.c.b16 %v6429, %v6426
    %v6658 = vpack.c.b16 %v6430, %v6427
    %v6659 = vpack.c.b16 %v6434, %v6431
    %v6660 = vpack.c.b16 %v6435, %v6432
    %v6661 = vpack.c.b16 %v6436, %v6433
    %v6662 = vpack.c.b16 %v6440, %v6437
    %v6663 = vpack.c.b16 %v6441, %v6438
    %v6664 = vpack.c.b16 %v6442, %v6439
    %v6665 = vpack.c.b16 %v6446, %v6443
    %v6666 = vpack.c.b16 %v6447, %v6444
    %v6667 = vpack.c.b16 %v6448, %v6445
    %v6668 = vpack.c.b16 %v6452, %v6449
    %v6669 = vpack.c.b16 %v6453, %v6450
    %v6670 = vpack.c.b16 %v6454, %v6451
    %v6671 = vpack.c.b16 %v6458, %v6455
    %v6672 = vpack.c.b16 %v6459, %v6456
    %v6673 = vpack.c.b16 %v6460, %v6457
    %v6674 = vpack.c.b16 %v6464, %v6461
    %v6675 = vpack.c.b16 %v6465, %v6462
    %v6676 = vpack.c.b16 %v6466, %v6463
    %v6677 = vpack.c.b16 %v6470, %v6467
    %v6678 = vpack.c.b16 %v6471, %v6468
    %v6679 = vpack.c.b16 %v6472, %v6469
    %v6680 = vpack.c.b16 %v6476, %v6473
    %v6681 = vpack.c.b16 %v6477, %v6474
    %v6682 = vpack.c.b16 %v6478, %v6475
    %v6683 = vpack.c.b16 %v6482, %v6479
    %v6684 = vpack.c.b16 %v6483, %v6480
    %v6685 = vpack.c.b16 %v6484, %v6481
    %v6686 = vpack.c.b16 %v6488, %v6485
    %v6687 = vpack.c.b16 %v6489, %v6486
    %v6688 = vpack.c.b16 %v6490, %v6487
    %v6689 = vpack.c.b16 %v6494, %v6491
    %v6690 = vpack.c.b16 %v6495, %v6492
    %v6691 = vpack.c.b16 %v6496, %v6493
    %v6692 = vpack.c.b16 %v6500, %v6497
    %v6693 = vpack.c.b16 %v6501, %v6498
    %v6694 = vpack.c.b16 %v6502, %v6499
    %v6695 = vpack.c.b16 %v6506, %v6503
    %v6696 = vpack.c.b16 %v6507, %v6504
    %v6697 = vpack.c.b16 %v6508, %v6505
    %v6698 = vpack.c.b16 %v6512, %v6509
    %v6699 = vpack.c.b16 %v6513, %v6510
    %v6700 = vpack.c.b16 %v6514, %v6511
    %v6701 = vpack.c.b16 %v6518, %v6515
    %v6702 = vpack.c.b16 %v6519, %v6516
    %v6703 = vpack.c.b16 %v6520, %v6517
    %v6704 = vpack.c.b16 %v6524, %v6521
    %v6705 = vpack.c.b16 %v6525, %v6522
    %v6706 = vpack.c.b16 %v6526, %v6523
    %v6707 = vpack.c.b16 %v6530, %v6527
    %v6708 = vpack.c.b16 %v6531, %v6528
    %v6709 = vpack.c.b16 %v6532, %v6529
    %v6710 = vpack.c.b16 %v6536, %v6533
    %v6711 = vpack.c.b16 %v6537, %v6534
    %v6712 = vpack.c.b16 %v6538, %v6535
    %v6713 = vpack.c.b16 %v6542, %v6539
    %v6714 = vpack.c.b16 %v6543, %v6540
    %v6715 = vpack.c.b16 %v6544, %v6541
    %v6716 = vpack.c.b16 %v6548, %v6545
    %v6717 = vpack.c.b16 %v6549, %v6546
    %v6718 = vpack.c.b16 %v6550, %v6547
    %v6719 = vpack.c.b16 %v6554, %v6551
    %v6720 = vpack.c.b16 %v6555, %v6552
    %v6721 = vpack.c.b16 %v6556, %v6553
    %v6722 = vpack.c.b16 %v6560, %v6557
    %v6723 = vpack.c.b16 %v6561, %v6558
    %v6724 = vpack.c.b16 %v6562, %v6559
    %v6725 = vpack.c.b16 %v6566, %v6563
    %v6726 = vpack.c.b16 %v6567, %v6564
    %v6727 = vpack.c.b16 %v6568, %v6565
    %v6728 = vpack.c.b16 %v6572, %v6569
    %v6729 = vpack.c.b16 %v6573, %v6570
    %v6730 = vpack.c.b16 %v6574, %v6571
    %v6731 = vpack.c.b16 %v6578, %v6575
    %v6732 = vpack.c.b16 %v6579, %v6576
    %v6733 = vpack.c.b16 %v6580, %v6577
    %v6734 = vpack.c.b16 %v6584, %v6581
    %v6735 = vpack.c.b16 %v6585, %v6582
    %v6736 = vpack.c.b16 %v6586, %v6583
    %v6737 = vpack.c.b16 %v6590, %v6587
    %v6738 = vpack.c.b16 %v6591, %v6588
    %v6739 = vpack.c.b16 %v6592, %v6589
    %v6740 = vpack.c.b16 %v6596, %v6593
    %v6741 = vpack.c.b16 %v6597, %v6594
    %v6742 = vpack.c.b16 %v6598, %v6595
    %6887 = vmatprep.subr.bf16.mxu0 %v6600
    %6888 = vmatpush1.bf16.msra.mxu0 %v6599
    %6889 = vmatprep.subr.bf16.mxu0 %v6603
    %6890 = vmatpush1.bf16.msra.mxu0 %v6602
    %6891 = vmatprep.subr.bf16.mxu0 %v6606
    %6892 = vmatpush1.bf16.msra.mxu0 %v6605
    %6893 = vmatprep.subr.bf16.mxu0 %v6609
    %6894 = vmatpush1.bf16.msra.mxu0 %v6608
    %6895 = vmatprep.subr.bf16.mxu0 %v6612
    %6896 = vmatpush1.bf16.msra.mxu0 %v6611
    %6897 = vmatprep.subr.bf16.mxu0 %v6615
    %6898 = vmatpush1.bf16.msra.mxu0 %v6614
    %6899 = vmatprep.subr.bf16.mxu0 %v6618
    %6900 = vmatpush1.bf16.msra.mxu0 %v6617
    %6901 = vmatprep.subr.bf16.mxu0 %v6621
    %6902 = vmatpush1.bf16.msra.mxu0 %v6620
    %6903 = vmatprep.subr.bf16.mxu0 %v6624
    %6904 = vmatpush1.bf16.msra.mxu0 %v6623
    %6905 = vmatprep.subr.bf16.mxu0 %v6627
    %6906 = vmatpush1.bf16.msra.mxu0 %v6626
    %6907 = vmatprep.subr.bf16.mxu0 %v6630
    %6908 = vmatpush1.bf16.msra.mxu0 %v6629
    %6909 = vmatprep.subr.bf16.mxu0 %v6633
    %6910 = vmatpush1.bf16.msra.mxu0 %v6632
    %6911 = vmatprep.subr.bf16.mxu0 %v6636
    %6912 = vmatpush1.bf16.msra.mxu0 %v6635
    %6913 = vmatprep.subr.bf16.mxu0 %v6639
    %6914 = vmatpush1.bf16.msra.mxu0 %v6638
    %6915 = vmatprep.subr.bf16.mxu0 %v6642
    %6916 = vmatpush1.bf16.msra.mxu0 %v6641
    %6917 = vmatprep.subr.bf16.mxu0 %v6645
    %6918 = vmatpush1.bf16.msra.mxu0 %v6644
    %6919 = vmatprep.mubr.bf16.mxu0 %v5898
    %6920 = vmatmul.mubr.bf16.gmra.mrb[0].mxu0 %v5897
    %v6921 = vpop.f32.mrb[0].mxu0
    %v6922 = vadd.f32 0.0, %v6921
    %v6923 = vpop.f32.mrb[0].mxu0
    %v6924 = vadd.f32 0.0, %v6923
    %v6925 = vpop.f32.mrb[0].mxu0
    %v6926 = vadd.f32 0.0, %v6925
    %v6927 = vpop.f32.mrb[0].mxu0
    %v6928 = vadd.f32 0.0, %v6927
    %6929 = vmatprep.mubr.bf16.mxu0 %v5904
    %6930 = vmatmul.mubr.bf16.gmra.mrb[0].mxu0 %v5903
    %v6931 = vpop.f32.mrb[0].mxu0
    %v6932 = vadd.f32 0.0, %v6931
    %v6933 = vpop.f32.mrb[0].mxu0
    %v6934 = vadd.f32 0.0, %v6933
    %v6935 = vpop.f32.mrb[0].mxu0
    %v6936 = vadd.f32 0.0, %v6935
    %v6937 = vpop.f32.mrb[0].mxu0
    %v6938 = vadd.f32 0.0, %v6937
    %6939 = vmatprep.mubr.bf16.mxu0 %v5910
    %6940 = vmatmul.mubr.bf16.gmra.mrb[0].mxu0 %v5909
    %v6941 = vpop.f32.mrb[0].mxu0
    %v6942 = vadd.f32 0.0, %v6941
    %v6943 = vpop.f32.mrb[0].mxu0
    %v6944 = vadd.f32 0.0, %v6943
    %v6945 = vpop.f32.mrb[0].mxu0
    %v6946 = vadd.f32 0.0, %v6945
    %v6947 = vpop.f32.mrb[0].mxu0
    %v6948 = vadd.f32 0.0, %v6947
    %6949 = vmatprep.mubr.bf16.mxu0 %v5916
    %6950 = vmatmul.mubr.bf16.gmra.mrb[0].mxu0 %v5915
    %v6951 = vpop.f32.mrb[0].mxu0
    %v6952 = vadd.f32 0.0, %v6951
    %v6953 = vpop.f32.mrb[0].mxu0
    %v6954 = vadd.f32 0.0, %v6953
    %v6955 = vpop.f32.mrb[0].mxu0
    %v6956 = vadd.f32 0.0, %v6955
    %v6957 = vpop.f32.mrb[0].mxu0
    %v6958 = vadd.f32 0.0, %v6957
    %6959 = vmatprep.mubr.bf16.mxu0 %v5922
    %6960 = vmatmul.mubr.bf16.gmra.mrb[0].mxu0 %v5921
    %v6961 = vpop.f32.mrb[0].mxu0
    %v6962 = vadd.f32 0.0, %v6961
    %v6963 = vpop.f32.mrb[0].mxu0
    %v6964 = vadd.f32 0.0, %v6963
    %v6965 = vpop.f32.mrb[0].mxu0
    %v6966 = vpop.f32.mrb[0].mxu0
    %6967 = vdwg.mxu0
    %6968 = vmatprep.subr.bf16.mxu0 %v6648
    %6969 = vmatpush1.bf16.msra.mxu0 %v6647
    %6970 = vmatprep.subr.bf16.mxu0 %v6651
    %6971 = vmatpush1.bf16.msra.mxu0 %v6650
    %6972 = vmatprep.subr.bf16.mxu0 %v6654
    %6973 = vmatpush1.bf16.msra.mxu0 %v6653
    %6974 = vmatprep.subr.bf16.mxu0 %v6657
    %6975 = vmatpush1.bf16.msra.mxu0 %v6656
    %6976 = vmatprep.subr.bf16.mxu0 %v6660
    %6977 = vmatpush1.bf16.msra.mxu0 %v6659
    %6978 = vmatprep.subr.bf16.mxu0 %v6663
    %6979 = vmatpush1.bf16.msra.mxu0 %v6662
    %6980 = vmatprep.subr.bf16.mxu0 %v6666
    %6981 = vmatpush1.bf16.msra.mxu0 %v6665
    %6982 = vmatprep.subr.bf16.mxu0 %v6669
    %6983 = vmatpush1.bf16.msra.mxu0 %v6668
    %6984 = vmatprep.subr.bf16.mxu0 %v6672
    %6985 = vmatpush1.bf16.msra.mxu0 %v6671
    %6986 = vmatprep.subr.bf16.mxu0 %v6675
    %6987 = vmatpush1.bf16.msra.mxu0 %v6674
    %6988 = vmatprep.subr.bf16.mxu0 %v6678
    %6989 = vmatpush1.bf16.msra.mxu0 %v6677
    %6990 = vmatprep.subr.bf16.mxu0 %v6681
    %6991 = vmatpush1.bf16.msra.mxu0 %v6680
    %6992 = vmatprep.subr.bf16.mxu0 %v6684
    %6993 = vmatpush1.bf16.msra.mxu0 %v6683
    %6994 = vmatprep.subr.bf16.mxu0 %v6687
    %6995 = vmatpush1.bf16.msra.mxu0 %v6686
    %6996 = vmatprep.subr.bf16.mxu0 %v6690
    %6997 = vmatpush1.bf16.msra.mxu0 %v6689
    %6998 = vmatprep.subr.bf16.mxu0 %v6693
    %6999 = vmatpush1.bf16.msra.mxu0 %v6692
    %7000 = vmatprep.mubr.bf16.mxu0 %v5900
    %7001 = vmatmul.mubr.bf16.gmra.mrb[0].mxu0 %v5899
    %v7002 = vpop.f32.mrb[0].mxu0
    %v7003 = vadd.f32 %v6922, %v7002
    %v7004 = vpop.f32.mrb[0].mxu0
    %v7005 = vadd.f32 %v6924, %v7004
    %v7006 = vpop.f32.mrb[0].mxu0
    %v7007 = vadd.f32 %v6926, %v7006
    %v7008 = vpop.f32.mrb[0].mxu0
    %v7009 = vadd.f32 %v6928, %v7008
    %7010 = vmatprep.mubr.bf16.mxu0 %v5906
    %7011 = vmatmul.mubr.bf16.gmra.mrb[0].mxu0 %v5905
    %v7012 = vpop.f32.mrb[0].mxu0
    %v7013 = vadd.f32 %v6932, %v7012
    %v7014 = vpop.f32.mrb[0].mxu0
    %v7015 = vadd.f32 %v6934, %v7014
    %v7016 = vpop.f32.mrb[0].mxu0
    %v7017 = vadd.f32 %v6936, %v7016
    %v7018 = vpop.f32.mrb[0].mxu0
    %v7019 = vadd.f32 %v6938, %v7018
    %7020 = vmatprep.mubr.bf16.mxu0 %v5912
    %7021 = vmatmul.mubr.bf16.gmra.mrb[0].mxu0 %v5911
    %v7022 = vpop.f32.mrb[0].mxu0
    %v7023 = vadd.f32 %v6942, %v7022
    %v7024 = vpop.f32.mrb[0].mxu0
    %v7025 = vadd.f32 %v6944, %v7024
    %v7026 = vpop.f32.mrb[0].mxu0
    %v7027 = vadd.f32 %v6946, %v7026
    %v7028 = vpop.f32.mrb[0].mxu0
    %v7029 = vadd.f32 %v6948, %v7028
    %7030 = vmatprep.mubr.bf16.mxu0 %v5918
    %7031 = vmatmul.mubr.bf16.gmra.mrb[0].mxu0 %v5917
    %v7032 = vpop.f32.mrb[0].mxu0
    %v7033 = vadd.f32 %v6952, %v7032
    %v7034 = vpop.f32.mrb[0].mxu0
    %v7035 = vadd.f32 %v6954, %v7034
    %v7036 = vpop.f32.mrb[0].mxu0
    %v7037 = vadd.f32 %v6956, %v7036
    %v7038 = vpop.f32.mrb[0].mxu0
    %v7039 = vadd.f32 %v6958, %v7038
    %7040 = vmatprep.mubr.bf16.mxu0 %v5924
    %7041 = vmatmul.mubr.bf16.gmra.mrb[0].mxu0 %v5923
    %v7042 = vpop.f32.mrb[0].mxu0
    %v7043 = vadd.f32 %v6962, %v7042
    %v7044 = vpop.f32.mrb[0].mxu0
    %v7045 = vadd.f32 %v6964, %v7044
    %v7046 = vpop.f32.mrb[0].mxu0
    %v7047 = vpop.f32.mrb[0].mxu0
    %7048 = vdwg.mxu0
    %7049 = vmatprep.subr.bf16.mxu0 %v6696
    %7050 = vmatpush1.bf16.msra.mxu0 %v6695
    %7051 = vmatprep.subr.bf16.mxu0 %v6699
    %7052 = vmatpush1.bf16.msra.mxu0 %v6698
    %7053 = vmatprep.subr.bf16.mxu0 %v6702
    %7054 = vmatpush1.bf16.msra.mxu0 %v6701
    %7055 = vmatprep.subr.bf16.mxu0 %v6705
    %7056 = vmatpush1.bf16.msra.mxu0 %v6704
    %7057 = vmatprep.subr.bf16.mxu0 %v6708
    %7058 = vmatpush1.bf16.msra.mxu0 %v6707
    %7059 = vmatprep.subr.bf16.mxu0 %v6711
    %7060 = vmatpush1.bf16.msra.mxu0 %v6710
    %7061 = vmatprep.subr.bf16.mxu0 %v6714
    %7062 = vmatpush1.bf16.msra.mxu0 %v6713
    %7063 = vmatprep.subr.bf16.mxu0 %v6717
    %7064 = vmatpush1.bf16.msra.mxu0 %v6716
    %7065 = vmatprep.subr.bf16.mxu0 %v6720
    %7066 = vmatpush1.bf16.msra.mxu0 %v6719
    %7067 = vmatprep.subr.bf16.mxu0 %v6723
    %7068 = vmatpush1.bf16.msra.mxu0 %v6722
    %7069 = vmatprep.subr.bf16.mxu0 %v6726
    %7070 = vmatpush1.bf16.msra.mxu0 %v6725
    %7071 = vmatprep.subr.bf16.mxu0 %v6729
    %7072 = vmatpush1.bf16.msra.mxu0 %v6728
    %7073 = vmatprep.subr.bf16.mxu0 %v6732
    %7074 = vmatpush1.bf16.msra.mxu0 %v6731
    %7075 = vmatprep.subr.bf16.mxu0 %v6735
    %7076 = vmatpush1.bf16.msra.mxu0 %v6734
    %7077 = vmatprep.subr.bf16.mxu0 %v6738
    %7078 = vmatpush1.bf16.msra.mxu0 %v6737
    %7079 = vmatprep.subr.bf16.mxu0 %v6741
    %7080 = vmatpush1.bf16.msra.mxu0 %v6740
    %7081 = vmatprep.mubr.bf16.mxu0 %v5902
    %7082 = vmatmul.mubr.bf16.gmra.mrb[0].mxu0 %v5901
    %v7083 = vpop.f32.mrb[0].mxu0
    %v7084 = vadd.f32 %v7003, %v7083
    %v7085 = vpop.f32.mrb[0].mxu0
    %v7086 = vadd.f32 %v7005, %v7085
    %v7087 = vpop.f32.mrb[0].mxu0
    %v7088 = vadd.f32 %v7007, %v7087
    %v7089 = vpop.f32.mrb[0].mxu0
    %v7090 = vadd.f32 %v7009, %v7089
    %7091 = vmatprep.mubr.bf16.mxu0 %v5908
    %7092 = vmatmul.mubr.bf16.gmra.mrb[0].mxu0 %v5907
    %v7093 = vpop.f32.mrb[0].mxu0
    %v7094 = vadd.f32 %v7013, %v7093
    %v7095 = vpop.f32.mrb[0].mxu0
    %v7096 = vadd.f32 %v7015, %v7095
    %v7097 = vpop.f32.mrb[0].mxu0
    %v7098 = vadd.f32 %v7017, %v7097
    %v7099 = vpop.f32.mrb[0].mxu0
    %v7100 = vadd.f32 %v7019, %v7099
    %7101 = vmatprep.mubr.bf16.mxu0 %v5914
    %7102 = vmatmul.mubr.bf16.gmra.mrb[0].mxu0 %v5913
    %v7103 = vpop.f32.mrb[0].mxu0
    %v7104 = vadd.f32 %v7023, %v7103
    %v7105 = vpop.f32.mrb[0].mxu0
    %v7106 = vadd.f32 %v7025, %v7105
    %v7107 = vpop.f32.mrb[0].mxu0
    %v7108 = vadd.f32 %v7027, %v7107
    %v7109 = vpop.f32.mrb[0].mxu0
    %v7110 = vadd.f32 %v7029, %v7109
    %7111 = vmatprep.mubr.bf16.mxu0 %v5920
    %7112 = vmatmul.mubr.bf16.gmra.mrb[0].mxu0 %v5919
    %v7113 = vpop.f32.mrb[0].mxu0
    %v7114 = vadd.f32 %v7033, %v7113
    %v7115 = vpop.f32.mrb[0].mxu0
    %v7116 = vadd.f32 %v7035, %v7115
    %v7117 = vpop.f32.mrb[0].mxu0
    %v7118 = vadd.f32 %v7037, %v7117
    %v7119 = vpop.f32.mrb[0].mxu0
    %v7120 = vadd.f32 %v7039, %v7119
    %7121 = vmatprep.mubr.bf16.mxu0 %v5926
    %7122 = vmatmul.mubr.bf16.gmra.mrb[0].mxu0 %v5925
    %v7123 = vpop.f32.mrb[0].mxu0
    %v7124 = vadd.f32 %v7043, %v7123
    %v7125 = vpop.f32.mrb[0].mxu0
    %v7126 = vadd.f32 %v7045, %v7125
    %v7127 = vpop.f32.mrb[0].mxu0
    %v7128 = vpop.f32.mrb[0].mxu0
    %7129 = vdwg.mxu0
    %7130 = vmatprep.subr.bf16.mxu0 0
    %7131 = vmatpush1.bf16.msra.mxu0 %v6601
    %7132 = vmatprep.subr.bf16.mxu0 0
    %7133 = vmatpush1.bf16.msra.mxu0 %v6604
    %7134 = vmatprep.subr.bf16.mxu0 0
    %7135 = vmatpush1.bf16.msra.mxu0 %v6607
    %7136 = vmatprep.subr.bf16.mxu0 0
    %7137 = vmatpush1.bf16.msra.mxu0 %v6610
    %7138 = vmatprep.subr.bf16.mxu0 0
    %7139 = vmatpush1.bf16.msra.mxu0 %v6613
    %7140 = vmatprep.subr.bf16.mxu0 0
    %7141 = vmatpush1.bf16.msra.mxu0 %v6616
    %7142 = vmatprep.subr.bf16.mxu0 0
    %7143 = vmatpush1.bf16.msra.mxu0 %v6619
    %7144 = vmatprep.subr.bf16.mxu0 0
    %7145 = vmatpush1.bf16.msra.mxu0 %v6622
    %7146 = vmatprep.subr.bf16.mxu0 0
    %7147 = vmatpush1.bf16.msra.mxu0 %v6625
    %7148 = vmatprep.subr.bf16.mxu0 0
    %7149 = vmatpush1.bf16.msra.mxu0 %v6628
    %7150 = vmatprep.subr.bf16.mxu0 0
    %7151 = vmatpush1.bf16.msra.mxu0 %v6631
    %7152 = vmatprep.subr.bf16.mxu0 0
    %7153 = vmatpush1.bf16.msra.mxu0 %v6634
    %7154 = vmatprep.subr.bf16.mxu0 0
    %7155 = vmatpush1.bf16.msra.mxu0 %v6637
    %7156 = vmatprep.subr.bf16.mxu0 0
    %7157 = vmatpush1.bf16.msra.mxu0 %v6640
    %7158 = vmatprep.subr.bf16.mxu0 0
    %7159 = vmatpush1.bf16.msra.mxu0 %v6643
    %7160 = vmatprep.subr.bf16.mxu0 0
    %7161 = vmatpush1.bf16.msra.mxu0 %v6646
    %7162 = vmatprep.mubr.bf16.mxu0 %v5898
    %7163 = vmatmul.mubr.bf16.gmra.mrb[0].mxu0 %v5897
    %v7164 = vpop.f32.mrb[0].mxu0
    %v7165 = vadd.f32 0.0, %v7164
    %v7166 = vpop.f32.mrb[0].mxu0
    %v7167 = vpop.f32.mrb[0].mxu0
    %v7168 = vadd.f32 0.0, %v7167
    %v7169 = vpop.f32.mrb[0].mxu0
    %7170 = vmatprep.mubr.bf16.mxu0 %v5904
    %7171 = vmatmul.mubr.bf16.gmra.mrb[0].mxu0 %v5903
    %v7172 = vpop.f32.mrb[0].mxu0
    %v7173 = vadd.f32 0.0, %v7172
    %v7174 = vpop.f32.mrb[0].mxu0
    %v7175 = vpop.f32.mrb[0].mxu0
    %v7176 = vadd.f32 0.0, %v7175
    %v7177 = vpop.f32.mrb[0].mxu0
    %7178 = vmatprep.mubr.bf16.mxu0 %v5910
    %7179 = vmatmul.mubr.bf16.gmra.mrb[0].mxu0 %v5909
    %v7180 = vpop.f32.mrb[0].mxu0
    %v7181 = vadd.f32 0.0, %v7180
    %v7182 = vpop.f32.mrb[0].mxu0
    %v7183 = vpop.f32.mrb[0].mxu0
    %v7184 = vadd.f32 0.0, %v7183
    %v7185 = vpop.f32.mrb[0].mxu0
    %7186 = vmatprep.mubr.bf16.mxu0 %v5916
    %7187 = vmatmul.mubr.bf16.gmra.mrb[0].mxu0 %v5915
    %v7188 = vpop.f32.mrb[0].mxu0
    %v7189 = vadd.f32 0.0, %v7188
    %v7190 = vpop.f32.mrb[0].mxu0
    %v7191 = vpop.f32.mrb[0].mxu0
    %v7192 = vadd.f32 0.0, %v7191
    %v7193 = vpop.f32.mrb[0].mxu0
    %7194 = vmatprep.mubr.bf16.mxu0 %v5922
    %7195 = vmatmul.mubr.bf16.gmra.mrb[0].mxu0 %v5921
    %v7196 = vpop.f32.mrb[0].mxu0
    %v7197 = vadd.f32 0.0, %v7196
    %v7198 = vpop.f32.mrb[0].mxu0
    %v7199 = vpop.f32.mrb[0].mxu0
    %v7200 = vpop.f32.mrb[0].mxu0
    %7201 = vdwg.mxu0
    %7202 = vmatprep.subr.bf16.mxu0 0
    %7203 = vmatpush1.bf16.msra.mxu0 %v6649
    %7204 = vmatprep.subr.bf16.mxu0 0
    %7205 = vmatpush1.bf16.msra.mxu0 %v6652
    %7206 = vmatprep.subr.bf16.mxu0 0
    %7207 = vmatpush1.bf16.msra.mxu0 %v6655
    %7208 = vmatprep.subr.bf16.mxu0 0
    %7209 = vmatpush1.bf16.msra.mxu0 %v6658
    %7210 = vmatprep.subr.bf16.mxu0 0
    %7211 = vmatpush1.bf16.msra.mxu0 %v6661
    %7212 = vmatprep.subr.bf16.mxu0 0
    %7213 = vmatpush1.bf16.msra.mxu0 %v6664
    %7214 = vmatprep.subr.bf16.mxu0 0
    %7215 = vmatpush1.bf16.msra.mxu0 %v6667
    %7216 = vmatprep.subr.bf16.mxu0 0
    %7217 = vmatpush1.bf16.msra.mxu0 %v6670
    %7218 = vmatprep.subr.bf16.mxu0 0
    %7219 = vmatpush1.bf16.msra.mxu0 %v6673
    %7220 = vmatprep.subr.bf16.mxu0 0
    %7221 = vmatpush1.bf16.msra.mxu0 %v6676
    %7222 = vmatprep.subr.bf16.mxu0 0
    %7223 = vmatpush1.bf16.msra.mxu0 %v6679
    %7224 = vmatprep.subr.bf16.mxu0 0
    %7225 = vmatpush1.bf16.msra.mxu0 %v6682
    %7226 = vmatprep.subr.bf16.mxu0 0
    %7227 = vmatpush1.bf16.msra.mxu0 %v6685
    %7228 = vmatprep.subr.bf16.mxu0 0
    %7229 = vmatpush1.bf16.msra.mxu0 %v6688
    %7230 = vmatprep.subr.bf16.mxu0 0
    %7231 = vmatpush1.bf16.msra.mxu0 %v6691
    %7232 = vmatprep.subr.bf16.mxu0 0
    %7233 = vmatpush1.bf16.msra.mxu0 %v6694
    %7234 = vmatprep.mubr.bf16.mxu0 %v5900
    %7235 = vmatmul.mubr.bf16.gmra.mrb[0].mxu0 %v5899
    %v7236 = vpop.f32.mrb[0].mxu0
    %v7237 = vadd.f32 %v7165, %v7236
    %v7238 = vpop.f32.mrb[0].mxu0
    %v7239 = vpop.f32.mrb[0].mxu0
    %v7240 = vadd.f32 %v7168, %v7239
    %v7241 = vpop.f32.mrb[0].mxu0
    %7242 = vmatprep.mubr.bf16.mxu0 %v5906
    %7243 = vmatmul.mubr.bf16.gmra.mrb[0].mxu0 %v5905
    %v7244 = vpop.f32.mrb[0].mxu0
    %v7245 = vadd.f32 %v7173, %v7244
    %v7246 = vpop.f32.mrb[0].mxu0
    %v7247 = vpop.f32.mrb[0].mxu0
    %v7248 = vadd.f32 %v7176, %v7247
    %v7249 = vpop.f32.mrb[0].mxu0
    %7250 = vmatprep.mubr.bf16.mxu0 %v5912
    %7251 = vmatmul.mubr.bf16.gmra.mrb[0].mxu0 %v5911
    %v7252 = vpop.f32.mrb[0].mxu0
    %v7253 = vadd.f32 %v7181, %v7252
    %v7254 = vpop.f32.mrb[0].mxu0
    %v7255 = vpop.f32.mrb[0].mxu0
    %v7256 = vadd.f32 %v7184, %v7255
    %v7257 = vpop.f32.mrb[0].mxu0
    %7258 = vmatprep.mubr.bf16.mxu0 %v5918
    %7259 = vmatmul.mubr.bf16.gmra.mrb[0].mxu0 %v5917
    %v7260 = vpop.f32.mrb[0].mxu0
    %v7261 = vadd.f32 %v7189, %v7260
    %v7262 = vpop.f32.mrb[0].mxu0
    %v7263 = vpop.f32.mrb[0].mxu0
    %v7264 = vadd.f32 %v7192, %v7263
    %v7265 = vpop.f32.mrb[0].mxu0
    %7266 = vmatprep.mubr.bf16.mxu0 %v5924
    %7267 = vmatmul.mubr.bf16.gmra.mrb[0].mxu0 %v5923
    %v7268 = vpop.f32.mrb[0].mxu0
    %v7269 = vadd.f32 %v7197, %v7268
    %v7270 = vpop.f32.mrb[0].mxu0
    %v7271 = vpop.f32.mrb[0].mxu0
    %v7272 = vpop.f32.mrb[0].mxu0
    %7273 = vdwg.mxu0
    %7274 = vmatprep.subr.bf16.mxu0 0
    %7275 = vmatpush1.bf16.msra.mxu0 %v6697
    %7276 = vmatprep.subr.bf16.mxu0 0
    %7277 = vmatpush1.bf16.msra.mxu0 %v6700
    %7278 = vmatprep.subr.bf16.mxu0 0
    %7279 = vmatpush1.bf16.msra.mxu0 %v6703
    %7280 = vmatprep.subr.bf16.mxu0 0
    %7281 = vmatpush1.bf16.msra.mxu0 %v6706
    %7282 = vmatprep.subr.bf16.mxu0 0
    %7283 = vmatpush1.bf16.msra.mxu0 %v6709
    %7284 = vmatprep.subr.bf16.mxu0 0
    %7285 = vmatpush1.bf16.msra.mxu0 %v6712
    %7286 = vmatprep.subr.bf16.mxu0 0
    %7287 = vmatpush1.bf16.msra.mxu0 %v6715
    %7288 = vmatprep.subr.bf16.mxu0 0
    %7289 = vmatpush1.bf16.msra.mxu0 %v6718
    %7290 = vmatprep.subr.bf16.mxu0 0
    %7291 = vmatpush1.bf16.msra.mxu0 %v6721
    %7292 = vmatprep.subr.bf16.mxu0 0
    %7293 = vmatpush1.bf16.msra.mxu0 %v6724
    %7294 = vmatprep.subr.bf16.mxu0 0
    %7295 = vmatpush1.bf16.msra.mxu0 %v6727
    %7296 = vmatprep.subr.bf16.mxu0 0
    %7297 = vmatpush1.bf16.msra.mxu0 %v6730
    %7298 = vmatprep.subr.bf16.mxu0 0
    %7299 = vmatpush1.bf16.msra.mxu0 %v6733
    %7300 = vmatprep.subr.bf16.mxu0 0
    %7301 = vmatpush1.bf16.msra.mxu0 %v6736
    %7302 = vmatprep.subr.bf16.mxu0 0
    %7303 = vmatpush1.bf16.msra.mxu0 %v6739
    %7304 = vmatprep.subr.bf16.mxu0 0
    %7305 = vmatpush1.bf16.msra.mxu0 %v6742
    %7306 = vmatprep.mubr.bf16.mxu0 %v5902
    %7307 = vmatmul.mubr.bf16.gmra.mrb[0].mxu0 %v5901
    %v7308 = vpop.f32.mrb[0].mxu0
    %v7309 = vadd.f32 %v7237, %v7308
    %v7310 = vpop.f32.mrb[0].mxu0
    %v7311 = vpop.f32.mrb[0].mxu0
    %v7312 = vadd.f32 %v7240, %v7311
    %v7313 = vpop.f32.mrb[0].mxu0
    %7314 = vmatprep.mubr.bf16.mxu0 %v5908
    %7315 = vmatmul.mubr.bf16.gmra.mrb[0].mxu0 %v5907
    %v7316 = vpop.f32.mrb[0].mxu0
    %v7317 = vadd.f32 %v7245, %v7316
    %v7318 = vpop.f32.mrb[0].mxu0
    %v7319 = vpop.f32.mrb[0].mxu0
    %v7320 = vadd.f32 %v7248, %v7319
    %v7321 = vpop.f32.mrb[0].mxu0
    %7322 = vmatprep.mubr.bf16.mxu0 %v5914
    %7323 = vmatmul.mubr.bf16.gmra.mrb[0].mxu0 %v5913
    %v7324 = vpop.f32.mrb[0].mxu0
    %v7325 = vadd.f32 %v7253, %v7324
    %v7326 = vpop.f32.mrb[0].mxu0
    %v7327 = vpop.f32.mrb[0].mxu0
    %v7328 = vadd.f32 %v7256, %v7327
    %v7329 = vpop.f32.mrb[0].mxu0
    %7330 = vmatprep.mubr.bf16.mxu0 %v5920
    %7331 = vmatmul.mubr.bf16.gmra.mrb[0].mxu0 %v5919
    %v7332 = vpop.f32.mrb[0].mxu0
    %v7333 = vadd.f32 %v7261, %v7332
    %v7334 = vpop.f32.mrb[0].mxu0
    %v7335 = vpop.f32.mrb[0].mxu0
    %v7336 = vadd.f32 %v7264, %v7335
    %v7337 = vpop.f32.mrb[0].mxu0
    %7338 = vmatprep.mubr.bf16.mxu0 %v5926
    %7339 = vmatmul.mubr.bf16.gmra.mrb[0].mxu0 %v5925
    %v7340 = vpop.f32.mrb[0].mxu0
    %v7341 = vadd.f32 %v7269, %v7340
    %v7342 = vpop.f32.mrb[0].mxu0
    %v7343 = vpop.f32.mrb[0].mxu0
    %v7344 = vpop.f32.mrb[0].mxu0
    %7345 = vdwg.mxu0
    %v7346 = vtanh.pop %v7084
    %v7347 = vtanh.pop %v7086
    %v7348 = vtanh.pop %v7309
    %v7349 = vtanh.pop %v7088
    %v7350 = vtanh.pop %v7090
    %v7351 = vtanh.pop %v7312
    %v7352 = vtanh.pop %v7094
    %v7353 = vtanh.pop %v7096
    %v7354 = vtanh.pop %v7317
    %v7355 = vtanh.pop %v7098
    %v7356 = vtanh.pop %v7100
    %v7357 = vtanh.pop %v7320
    %v7358 = vtanh.pop %v7104
    %v7359 = vtanh.pop %v7106
    %v7360 = vtanh.pop %v7325
    %v7361 = vtanh.pop %v7108
    %v7362 = vtanh.pop %v7110
    %v7363 = vtanh.pop %v7328
    %v7364 = vtanh.pop %v7114
    %v7365 = vtanh.pop %v7116
    %v7366 = vtanh.pop %v7333
    %v7367 = vtanh.pop %v7118
    %v7368 = vtanh.pop %v7120
    %v7369 = vtanh.pop %v7336
    %v7370 = vtanh.pop %v7124
    %v7371 = vtanh.pop %v7126
    %v7372 = vtanh.pop %v7341
    %7373 = vst [vmem:[%s22] sm:$0xff] %v7346
    %7374 = vst [vmem:[%s22 + $0x8] sm:$0xff] %v7347
    %7375 = vst [vmem:[%s22 + $0x10] sm:$0xff] %v7348
    %7376 = vst [vmem:[%s22 + $0x18] sm:$0xff] %v7349
    %7377 = vst [vmem:[%s22 + $0x20] sm:$0xff] %v7350
    %7378 = vst [vmem:[%s22 + $0x28] sm:$0xff] %v7351
    %7379 = vst [vmem:[%s22 + $0x30] sm:$0xff] %v7352
    %7380 = vst [vmem:[%s22 + $0x38] sm:$0xff] %v7353
    %7381 = vst [vmem:[%s22 + $0x40] sm:$0xff] %v7354
    %7382 = vst [vmem:[%s22 + $0x48] sm:$0xff] %v7355
    %7383 = vst [vmem:[%s22 + $0x50] sm:$0xff] %v7356
    %7384 = vst [vmem:[%s22 + $0x58] sm:$0xff] %v7357
    %7385 = vst [vmem:[%s22 + $0x60] sm:$0xff] %v7358
    %7386 = vst [vmem:[%s22 + $0x68] sm:$0xff] %v7359
    %7387 = vst [vmem:[%s22 + $0x70] sm:$0xff] %v7360
    %7388 = vst [vmem:[%s22 + $0x78] sm:$0xff] %v7361
    %7389 = vst [vmem:[%s22 + $0x80] sm:$0xff] %v7362
    %7390 = vst [vmem:[%s22 + $0x88] sm:$0xff] %v7363
    %7391 = vst [vmem:[%s22 + $0x90] sm:$0xff] %v7364
    %7392 = vst [vmem:[%s22 + $0x98] sm:$0xff] %v7365
    %7393 = vst [vmem:[%s22 + $0xa0] sm:$0xff] %v7366
    %7394 = vst [vmem:[%s22 + $0xa8] sm:$0xff] %v7367
    %7395 = vst [vmem:[%s22 + $0xb0] sm:$0xff] %v7368
    %7396 = vst [vmem:[%s22 + $0xb8] sm:$0xff] %v7369
    %7397 = vst [vmem:[%s22 + $0xc0] sm:$0x3] %v7370
    %7398 = vst [vmem:[%s22 + $0xc8] sm:$0x3] %v7371
    %7399 = vst [vmem:[%s22 + $0xd0] sm:$0x3] %v7372
    %7400 = vst [vmem:[%s22 + $0xc0] sm:$0xc] 0.0
    %7401 = vst [vmem:[%s22 + $0xc8] sm:$0xc] 0.0
    %7402 = vst [vmem:[%s22 + $0xd0] sm:$0xc] 0.0
    // Predicated region
    $region122: #{generator_forward.1} parent=1 // pred_check
      _
    $region123: #{generator_forward.1} parent=1 // pred_check_branch
      %7404 = sbr.rel (0) target = $region125
    $region124: #{generator_forward.1} parent=1 // pred_region
      _
    $region125: #{generator_forward.1} parent=1 // pred_fallthru
      _
    // Predicated region
    $region126: #{generator_forward.1} parent=1 // pred_check
      _
    $region127: #{generator_forward.1} parent=1 // pred_check_branch
      %7406 = sbr.rel (0) target = $region129
    $region128: #{generator_forward.1} parent=1 // pred_region
      _
    $region129: #{generator_forward.1} parent=1 // pred_fallthru
      _
    %7407 = vsyncpa [#allocation3], 1
    %7408 = vsyncpa [#allocation5], 1
    %7409 = vsyncpa [#allocation8], 1
    %7410 = vsyncpa [#allocation11], 1
    %7411 = vsyncpa [#allocation14], 1

</llo_original>
